<compile_context>
chip_gen: v5e
topology: v5e:2x2
jax: 0.10.0
libtpu: 0.0.40
codegen_flags: <defaults>
</compile_context>

<pallas_src>
import numpy as np
import jax
import jax.numpy as jnp
from jax.experimental import pallas as pl
from jax.experimental.pallas import tpu as pltpu


_VMEM = pl.BlockSpec(memory_space=pltpu.MemorySpace.VMEM)

# TODO(synk): set to jnp.bfloat16 in production for ~2x MXU rate and half the
# weight/activation DMA on v5e/v6e/v7x (per perf review); kept f32 here so the
# demo validates tightly (2e-2) against the f32 reference through the S-step
# nonlinear recurrence.
MATMUL_DTYPE = jnp.float32


def _mxu(a, b):
    return jnp.dot(a.astype(MATMUL_DTYPE), b.astype(MATMUL_DTYPE),
                   preferred_element_type=jnp.float32)


# ----------------------------------------------------------------------------
# Pallas kernels
# ----------------------------------------------------------------------------
def _bilstm_fused_kernel(x_ref, wih1_ref, whhF1_ref, whhB1_ref, b1_ref,
                         wih2_ref, whhF2_ref, whhB2_ref, b2_ref,
                         out_ref,
                         xpF_scr, xpB_scr, hF_hist, hB_hist,
                         hF_scr, cF_scr, hB_scr, cB_scr):
    """Both 2-layer BiLSTM stacks, both directions, in one kernel.

    Chain grouping (H = 64 per chain, H2 = 2H = 128 lanes per group):
      group F = [stack1-fwd | stack2-fwd]     group B = [stack1-bwd | stack2-bwd]
    Gate column layout per group (width 4*H2 = 512), PyTorch gate order:
      [ i_s1 i_s2 | f_s1 f_s2 | g_s1 g_s2 | o_s1 o_s2 ]
    Hidden layout per group: [ h_s1 | h_s2 ]  (128 lanes, full vregs).
    """
    S, B, In = x_ref.shape
    H2 = hF_scr.shape[1]          # 128
    G = 4 * H2                    # 512 gates per group

    def run_layer(x_flat, wih, bias, whF, whB):
        # Hoisted input projection + bias for all 4 chains: one MXU matmul.
        xp = _mxu(x_flat, wih) + bias                       # (S*B, 2G)
        xpF_scr[...] = xp[:, :G].reshape(S, B, G)
        xpB_scr[...] = xp[:, G:].reshape(S, B, G)

        hF_scr[...] = jnp.zeros_like(hF_scr)
        cF_scr[...] = jnp.zeros_like(cF_scr)
        hB_scr[...] = jnp.zeros_like(hB_scr)
        cB_scr[...] = jnp.zeros_like(cB_scr)

        def cell(gates, c_prev):          # gates: (B, 512); i, f, g, o order
            i = jax.nn.sigmoid(gates[:, 0 * H2:1 * H2])
            f = jax.nn.sigmoid(gates[:, 1 * H2:2 * H2])
            g = jnp.tanh(gates[:, 2 * H2:3 * H2])
            o = jax.nn.sigmoid(gates[:, 3 * H2:4 * H2])
            c = f * c_prev + i * g
            return o * jnp.tanh(c), c

        def step(k, carry):
            tb = S - 1 - k
            # Two independent block-diagonal matmuls -> their latencies pipeline.
            gF = xpF_scr[k] + _mxu(hF_scr[...], whF)
            gB = xpB_scr[tb] + _mxu(hB_scr[...], whB)
            hF, cF = cell(gF, cF_scr[...])
            hB, cB = cell(gB, cB_scr[...])
            hF_scr[...] = hF
            cF_scr[...] = cF
            hB_scr[...] = hB
            cB_scr[...] = cB
            hF_hist[k] = hF               # stash only; concat/store is epilogue
            hB_hist[tb] = hB
            return carry

        # TODO(synk): at production S use a partial unroll (4) to bound vreg
        # live ranges; full unroll is fine at these demo lengths.
        jax.lax.fori_loop(0, S, step, 0, unroll=(True if S <= 16 else 4))

    # ---- layer 1: input x shared by all 4 chains ----
    run_layer(x_ref[...].reshape(S * B, In), wih1_ref[...], b1_ref[...],
              whhF1_ref[...], whhB1_ref[...])
    # inter-layer LSTM dropout(0.3): identity in eval mode.
    # TODO(synk): at production S keep this inter-layer activation in a VMEM
    # scratch (or chunk S) instead of a traced value.
    x2 = jnp.concatenate([hF_hist[...], hB_hist[...]], axis=-1)   # (S, B, 256)

    # ---- layer 2: per-stack inputs handled by block-structured W_ih ----
    run_layer(x2.reshape(S * B, 2 * H2), wih2_ref[...], b2_ref[...],
              whhF2_ref[...], whhB2_ref[...])

    # Epilogue: one vectorized concat + one lane-dense (256-wide) store.
    # Output layout: [hF_s1 | hF_s2 | hB_s1 | hB_s2]; the heads kernel's packed
    # weights are laid out to match, so no unscrambling is needed downstream.
    out_ref[...] = jnp.concatenate([hF_hist[...], hB_hist[...]], axis=-1)


def _heads_bilinear_kernel(bert_ref, lstm_ref, wb_ref, wl_ref, bias_ref,
                           u_ref, out_ref):
    """Fused head_tag/dep_tag Linears + bilinear label attention, one batch.

    bert_ref: (S, 768)   lstm_ref: (S, 256)  [hF_s1|hF_s2|hB_s1|hB_s2]
    wb_ref:   (768, 2E)  [W_bert_head | W_bert_dep]
    wl_ref:   (256, 2E)  packed so lstm @ wl gives [lstm1@Wl_head | lstm2@Wl_dep]
    bias_ref: (1, 2E)    u_ref: (L, E)       out_ref: (L, S, S)
    """
    hd = (_mxu(bert_ref[...], wb_ref[...])
          + _mxu(lstm_ref[...], wl_ref[...])
          + bias_ref[...])                                     # (S, 2E)
    L, E = u_ref.shape
    S = hd.shape[0]
    head = hd[:, :E]
    dep = hd[:, E:]
    # out[l, i, o] = sum_j head[i, j] * U[l, j] * dep[o, j]
    sh = (u_ref[...][:, None, :] * head[None, :, :]).reshape(L * S, E)
    res = jax.lax.dot_general(
        sh.astype(MATMUL_DTYPE), dep.astype(MATMUL_DTYPE),
        dimension_numbers=(((1,), (1,)), ((), ())),
        preferred_element_type=jnp.float32)                    # (L*S, S)
    out_ref[...] = res.reshape(L, S, S)


# ----------------------------------------------------------------------------
# Weight packing (host/trace-time jnp; matches the in-kernel layouts above)
# ----------------------------------------------------------------------------
def _pack_shared_cols(a1f, a2f, a1b, a2b, H):
    """Column-pack per-chain (…, 4H) arrays into the group/gate/chain layout."""
    def group(a1, a2):
        blocks = []
        for g in range(4):
            blocks += [a1[..., g * H:(g + 1) * H], a2[..., g * H:(g + 1) * H]]
        return jnp.concatenate(blocks, axis=-1)               # (…, 8H)
    return jnp.concatenate([group(a1f, a2f), group(a1b, a2b)], axis=-1)  # (…, 16H)


def _pack_hh_group(whh_s1, whh_s2, H):
    """Block-diagonal hidden->gate weight for one group: (2H, 8H)."""
    def cols(w, which):
        z = jnp.zeros((H, H), w.dtype)
        blocks = []
        for g in range(4):
            gate = w[:, g * H:(g + 1) * H]
            blocks += ([gate, z] if which == 0 else [z, gate])
        return jnp.concatenate(blocks, axis=1)                # (H, 8H)
    return jnp.concatenate([cols(whh_s1, 0), cols(whh_s2, 1)], axis=0)


def _pack_l2_input(v1f, v2f, v1b, v2b, H):
    """Layer-2 input->gate weight (4H, 16H): input rows in the layer-1 output
    layout [hF_s1 | hF_s2 | hB_s1 | hB_s2]; columns in group/gate/chain layout."""
    def chain_cols(w_rows, which):
        z = jnp.zeros((w_rows.shape[0], H), w_rows.dtype)
        blocks = []
        for g in range(4):
            gate = w_rows[:, g * H:(g + 1) * H]
            blocks += ([gate, z] if which == 0 else [z, gate])
        return jnp.concatenate(blocks, axis=1)                # (64, 8H)

    def row_block(wf_rows, wb_rows, which):
        return jnp.concatenate([chain_cols(wf_rows, which),
                                chain_cols(wb_rows, which)], axis=1)   # (64, 16H)

    return jnp.concatenate([
        row_block(v1f[:H], v1b[:H], 0),     # rows for hF_s1
        row_block(v2f[:H], v2b[:H], 1),     # rows for hF_s2
        row_block(v1f[H:], v1b[H:], 0),     # rows for hB_s1
        row_block(v2f[H:], v2b[H:], 1),     # rows for hB_s2
    ], axis=0)


def _pack_lstm_head_dep(wl_head, wl_dep, H):
    """Combined LSTM->head/dep weight (4H, 2E) matching the LSTM output layout."""
    E = wl_head.shape[1]
    z = jnp.zeros((H, E), wl_head.dtype)
    return jnp.concatenate([
        jnp.concatenate([wl_head[:H], z], axis=1),   # hF_s1 -> head
        jnp.concatenate([z, wl_dep[:H]], axis=1),    # hF_s2 -> dep
        jnp.concatenate([wl_head[H:], z], axis=1),   # hB_s1 -> head
        jnp.concatenate([z, wl_dep[H:]], axis=1),    # hB_s2 -> dep
    ], axis=0)


# ----------------------------------------------------------------------------
# Pallas wrappers
# ----------------------------------------------------------------------------
def bilstm_fused(context_vec, stack1, stack2):
    """Run both 2-layer BiLSTM stacks in a single pallas_call.

    Returns a time-major (S, B, 4H) array laid out [hF_s1|hF_s2|hB_s1|hB_s2].
    """
    B, S, In = context_vec.shape
    H = stack1[0][0][1].shape[0]                    # w_hh_t is (H, 4H)

    (w1f_ih, w1f_hh, b1f), (w1b_ih, w1b_hh, b1b) = stack1[0]
    (w2f_ih, w2f_hh, b2f), (w2b_ih, w2b_hh, b2b) = stack2[0]
    wih1 = _pack_shared_cols(w1f_ih, w2f_ih, w1b_ih, w2b_ih, H)   # (In, 16H)
    b1 = _pack_shared_cols(b1f, b2f, b1b, b2b, H)                 # (1, 16H)
    whhF1 = _pack_hh_group(w1f_hh, w2f_hh, H)                     # (2H, 8H)
    whhB1 = _pack_hh_group(w1b_hh, w2b_hh, H)

    (v1f_ih, v1f_hh, c1f), (v1b_ih, v1b_hh, c1b) = stack1[1]
    (v2f_ih, v2f_hh, c2f), (v2b_ih, v2b_hh, c2b) = stack2[1]
    wih2 = _pack_l2_input(v1f_ih, v2f_ih, v1b_ih, v2b_ih, H)      # (4H, 16H)
    b2 = _pack_shared_cols(c1f, c2f, c1b, c2b, H)
    whhF2 = _pack_hh_group(v1f_hh, v2f_hh, H)
    whhB2 = _pack_hh_group(v1b_hh, v2b_hh, H)

    x_tm = jnp.transpose(context_vec, (1, 0, 2))                  # (S, B, In)

    # TODO(synk): at production S chunk the hoisted x@W_ih over time-blocks
    # (emit_pipeline) and size scratches for v7x's 64 MiB VMEM; everything
    # fits trivially at demo sizes.
    return pl.pallas_call(
        _bilstm_fused_kernel,
        out_shape=jax.ShapeDtypeStruct((S, B, 4 * H), jnp.float32),
        in_specs=[_VMEM] * 9,
        out_specs=_VMEM,
        scratch_shapes=[
            pltpu.VMEM((S, B, 8 * H), jnp.float32),   # xp, fwd group
            pltpu.VMEM((S, B, 8 * H), jnp.float32),   # xp, bwd group
            pltpu.VMEM((S, B, 2 * H), jnp.float32),   # h history, fwd group
            pltpu.VMEM((S, B, 2 * H), jnp.float32),   # h history, bwd group
            pltpu.VMEM((B, 2 * H), jnp.float32),      # h state, fwd group
            pltpu.VMEM((B, 2 * H), jnp.float32),      # c state, fwd group
            pltpu.VMEM((B, 2 * H), jnp.float32),      # h state, bwd group
            pltpu.VMEM((B, 2 * H), jnp.float32),      # c state, bwd group
        ],
    )(x_tm, wih1, whhF1, whhB1, b1, wih2, whhF2, whhB2, b2)


def heads_bilinear(bert_out, lstm_bt, head_p, dep_p, label_u):
    """Fused head/dep projections + bilinear label attention, grid over B."""
    B, S, Db = bert_out.shape
    E = head_p[0].shape[1]
    L = label_u.shape[0]
    H = head_p[1].shape[0] // 2
    Dl = lstm_bt.shape[-1]

    wb = jnp.concatenate([head_p[0], dep_p[0]], axis=1)           # (768, 2E)
    bias = jnp.concatenate([head_p[2], dep_p[2]], axis=1)         # (1, 2E)
    wl = _pack_lstm_head_dep(head_p[1], dep_p[1], H)              # (256, 2E)

    # TODO(synk): fuse the bert_emb[ids] gather into this kernel via scalar
    # prefetch + manual DMA gather at production B*S to halve HBM traffic on
    # the 768-wide stream.
    # TODO(synk): on v7x, mark this grid axis CORE_PARALLEL (or core_map) to
    # split batches across both TensorCores.
    return pl.pallas_call(
        _heads_bilinear_kernel,
        out_shape=jax.ShapeDtypeStruct((B, L, S, S), jnp.float32),
        grid=(B,),
        in_specs=[
            pl.BlockSpec((None, S, Db), lambda b: (b, 0, 0)),
            pl.BlockSpec((None, S, Dl), lambda b: (b, 0, 0)),
            pl.BlockSpec((Db, 2 * E), lambda b: (0, 0)),
            pl.BlockSpec((Dl, 2 * E), lambda b: (0, 0)),
            pl.BlockSpec((1, 2 * E), lambda b: (0, 0)),
            pl.BlockSpec((L, E), lambda b: (0, 0)),
        ],
        out_specs=pl.BlockSpec((None, L, S, S), lambda b: (b, 0, 0, 0)),
        compiler_params=pltpu.CompilerParams(
            dimension_semantics=("parallel",)),
    )(bert_out, lstm_bt, wb, wl, bias, label_u)


# ----------------------------------------------------------------------------
# Forward pass (EntityModel.forward, eval path)
# ----------------------------------------------------------------------------
def entity_model_forward(params, ids, mask, context_vec):
    # TODO(synk): the full pretrained 12-layer BERT encoder is not reproduced;
    # o1 is approximated by a deterministic token-embedding lookup and `mask`
    # is therefore unused.
    o1 = params["bert_emb"][ids]                      # (B, S, 768)
    bo_tag = o1                                       # Dropout(0.3): identity in eval
    lstm_sb = bilstm_fused(context_vec, params["bilstm1"], params["bilstm2"])
    # TODO(synk): this small time->batch-major transpose could be folded into
    # the LSTM kernel epilogue to avoid one narrow HBM round trip.
    lstm_bt = jnp.transpose(lstm_sb, (1, 0, 2))       # (B, S, 256)
    tag = heads_bilinear(bo_tag, lstm_bt,
                         params["head_tag"], params["dep_tag"],
                         params["label_U_diag"])
    # TODO(synk): opt=='train' branch (weighted CrossEntropy loss_fn on
    # unpadded tokens) is not implemented; only the inference path is returned.
    return tag


# ----------------------------------------------------------------------------
# Deterministic parameter init (synthetic; shapes follow the module __init__)
# ----------------------------------------------------------------------------
def _xavier_uniform(key, shape):
    fan_out, fan_in = shape
    bound = float(np.sqrt(6.0 / (fan_in + fan_out)))
    return jax.random.uniform(key, shape, jnp.float32, -bound, bound)


def _init_lstm_dir(key, in_size, hidden):
    k = 1.0 / float(np.sqrt(hidden))
    k1, k2, k3, k4 = jax.random.split(key, 4)
    w_ih = jax.random.uniform(k1, (4 * hidden, in_size), jnp.float32, -k, k)
    w_hh = jax.random.uniform(k2, (4 * hidden, hidden), jnp.float32, -k, k)
    b_ih = jax.random.uniform(k3, (4 * hidden,), jnp.float32, -k, k)
    b_hh = jax.random.uniform(k4, (4 * hidden,), jnp.float32, -k, k)
    return (w_ih.T, w_hh.T, (b_ih + b_hh)[None, :])


def _init_bilstm(key, in_size, hidden, num_layers=2):
    layers = []
    cur = in_size
    for _ in range(num_layers):
        key, kf, kb = jax.random.split(key, 3)
        layers.append((_init_lstm_dir(kf, cur, hidden),
                       _init_lstm_dir(kb, cur, hidden)))
        cur = 2 * hidden
    return layers


def _init_linear_concat(key, d1, d2, out):
    k1, k2 = jax.random.split(key)
    w = _xavier_uniform(k1, (out, d1 + d2))           # PyTorch Linear: (out, in)
    b = jax.random.uniform(k2, (out,), jnp.float32, -0.1, 0.1)
    wt = w.T                                          # (in, out)
    return (wt[:d1], wt[d1:], b[None, :])


def init_params(key, vocab, bert_dim, context_len, lstm_hidden, dim_emb, label_count):
    keys = jax.random.split(key, 6)
    return {
        "bert_emb": jax.random.normal(keys[0], (vocab, bert_dim), jnp.float32),
        "bilstm1": _init_bilstm(keys[1], context_len, lstm_hidden),
        "bilstm2": _init_bilstm(keys[2], context_len, lstm_hidden),
        "head_tag": _init_linear_concat(keys[3], bert_dim, 2 * lstm_hidden, dim_emb),
        "dep_tag": _init_linear_concat(keys[4], bert_dim, 2 * lstm_hidden, dim_emb),
        "label_U_diag": _xavier_uniform(keys[5], (label_count, dim_emb)),
    }


# ----------------------------------------------------------------------------
# Pure-JAX reference (for correctness check)
# ----------------------------------------------------------------------------
def _lstm_dir_ref(x_tm, w_ih_t, w_hh_t, b):
    H = w_hh_t.shape[0]
    B = x_tm.shape[1]

    def step(carry, x_t):
        h, c = carry
        gates = x_t @ w_ih_t + h @ w_hh_t + b
        i = jax.nn.sigmoid(gates[:, :H])
        f = jax.nn.sigmoid(gates[:, H:2 * H])
        g = jnp.tanh(gates[:, 2 * H:3 * H])
        o = jax.nn.sigmoid(gates[:, 3 * H:])
        c = f * c + i * g
        h = o * jnp.tanh(c)
        return (h, c), h

    init = (jnp.zeros((B, H), jnp.float32), jnp.zeros((B, H), jnp.float32))
    _, hs = jax.lax.scan(step, init, x_tm)
    return hs


def _bilstm_ref(x, layer_params):
    out = x
    for (p_f, p_b) in layer_params:
        x_tm = jnp.transpose(out, (1, 0, 2))
        h_f = _lstm_dir_ref(x_tm, *p_f)
        h_b = _lstm_dir_ref(x_tm[::-1], *p_b)[::-1]
        out = jnp.transpose(jnp.concatenate([h_f, h_b], -1), (1, 0, 2))
    return out


def forward_ref(params, ids, mask, context_vec):
    o1 = params["bert_emb"][ids]
    l1 = _bilstm_ref(context_vec, params["bilstm1"])
    l2 = _bilstm_ref(context_vec, params["bilstm2"])
    w1, w2, b = params["head_tag"]
    m1 = jnp.concatenate([o1, l1], -1) @ jnp.concatenate([w1, w2], 0) + b
    w1d, w2d, bd = params["dep_tag"]
    m2 = jnp.concatenate([o1, l2], -1) @ jnp.concatenate([w1d, w2d], 0) + bd
    return jnp.einsum('bij,lj,boj->blio', m1, params["label_U_diag"], m2)


# ----------------------------------------------------------------------------
if __name__ == "__main__":
    B, S = 2, 8
    VOCAB = 50
    BERT_DIM = 768
    CONTEXT_LEN = 16       # self.context_len (synthetic)
    LSTM_HIDDEN = 64
    DIM_EMB = 32           # dim_emb
    LABEL_COUNT = 5        # label_count (matches 5 loss weights)

    key = jax.random.PRNGKey(0)
    k_params, k_ids, k_ctx = jax.random.split(key, 3)

    params = init_params(k_params, VOCAB, BERT_DIM, CONTEXT_LEN,
                         LSTM_HIDDEN, DIM_EMB, LABEL_COUNT)

    ids = jax.random.randint(k_ids, (B, S), 0, VOCAB, dtype=jnp.int32)
    mask = jnp.ones((B, S), jnp.int32)
    context_vec = jax.random.normal(k_ctx, (B, S, CONTEXT_LEN), jnp.float32)

    fwd = jax.jit(entity_model_forward)
    tag = jax.block_until_ready(fwd(params, ids, mask, context_vec))
    assert tag.shape == (B, LABEL_COUNT, S, S)

    tag_ref = jax.block_until_ready(forward_ref(params, ids, mask, context_vec))
    np.testing.assert_allclose(np.asarray(tag), np.asarray(tag_ref),
                               rtol=2e-2, atol=2e-2)

    print("KERNEL_OK")
</pallas_src>

<mosaic_0001>
module attributes {stable_mosaic.version = 11 : i64} {
  func.func @_heads_bilinear_kernel(%arg0: i32, %arg1: memref<1x8x768xf32, #tpu.memory_space<vmem>>, %arg2: memref<1x8x256xf32, #tpu.memory_space<vmem>>, %arg3: memref<768x64xf32, #tpu.memory_space<vmem>>, %arg4: memref<256x64xf32, #tpu.memory_space<vmem>>, %arg5: memref<1x64xf32, #tpu.memory_space<vmem>>, %arg6: memref<5x32xf32, #tpu.memory_space<vmem>>, %arg7: memref<1x5x8x8xf32, #tpu.memory_space<vmem>>) attributes {dimension_semantics = [#tpu.dimension_semantics<parallel>], iteration_bounds = array<i64: 2>, scalar_prefetch = 0 : i64, scratch_operands = 0 : i64, tpu.core_type = #tpu.core_type<tc>, window_params = [{transform_indices = @transform_0, window_bounds = array<i64: 1, 8, 768>}, {transform_indices = @transform_1, window_bounds = array<i64: 1, 8, 256>}, {pipeline_mode = #tpu.pipeline_mode<synchronous>, transform_indices = @transform_2, window_bounds = array<i64: 768, 64>}, {pipeline_mode = #tpu.pipeline_mode<synchronous>, transform_indices = @transform_3, window_bounds = array<i64: 256, 64>}, {pipeline_mode = #tpu.pipeline_mode<synchronous>, transform_indices = @transform_4, window_bounds = array<i64: 1, 64>}, {pipeline_mode = #tpu.pipeline_mode<synchronous>, transform_indices = @transform_5, window_bounds = array<i64: 5, 32>}, {transform_indices = @transform_6, window_bounds = array<i64: 1, 5, 8, 8>}]} {
    %c0 = arith.constant 0 : index
    %c0_0 = arith.constant 0 : index
    %c0_1 = arith.constant 0 : index
    %0 = vector.load %arg1[%c0, %c0_0, %c0_1] : memref<1x8x768xf32, #tpu.memory_space<vmem>>, vector<1x8x768xf32>
    %1 = vector.shape_cast %0 : vector<1x8x768xf32> to vector<8x768xf32>
    %c0_2 = arith.constant 0 : index
    %c0_3 = arith.constant 0 : index
    %2 = vector.load %arg3[%c0_2, %c0_3] : memref<768x64xf32, #tpu.memory_space<vmem>>, vector<768x64xf32>
    %cst = arith.constant dense<0.000000e+00> : vector<8x64xf32>
    %3 = tpu.matmul %1, %2, %cst {dimension_numbers = #tpu.dot_dimension_numbers<[1], [0], [0], [1], [0, 0, 1, 1], [], []>} : vector<8x768xf32>, vector<768x64xf32>, vector<8x64xf32> -> vector<8x64xf32>
    %c0_4 = arith.constant 0 : index
    %c0_5 = arith.constant 0 : index
    %c0_6 = arith.constant 0 : index
    %4 = vector.load %arg2[%c0_4, %c0_5, %c0_6] : memref<1x8x256xf32, #tpu.memory_space<vmem>>, vector<1x8x256xf32>
    %5 = vector.shape_cast %4 : vector<1x8x256xf32> to vector<8x256xf32>
    %c0_7 = arith.constant 0 : index
    %c0_8 = arith.constant 0 : index
    %6 = vector.load %arg4[%c0_7, %c0_8] : memref<256x64xf32, #tpu.memory_space<vmem>>, vector<256x64xf32>
    %cst_9 = arith.constant dense<0.000000e+00> : vector<8x64xf32>
    %7 = tpu.matmul %5, %6, %cst_9 {dimension_numbers = #tpu.dot_dimension_numbers<[1], [0], [0], [1], [0, 0, 1, 1], [], []>} : vector<8x256xf32>, vector<256x64xf32>, vector<8x64xf32> -> vector<8x64xf32>
    %8 = arith.addf %3, %7 : vector<8x64xf32>
    %c0_10 = arith.constant 0 : index
    %c0_11 = arith.constant 0 : index
    %9 = vector.load %arg5[%c0_10, %c0_11] : memref<1x64xf32, #tpu.memory_space<vmem>>, vector<1x64xf32>
    %10 = vector.broadcast %9 : vector<1x64xf32> to vector<8x64xf32>
    %11 = arith.addf %8, %10 : vector<8x64xf32>
    %12 = vector.extract_strided_slice %11 {offsets = [0, 0], sizes = [8, 32], strides = [1, 1]} : vector<8x64xf32> to vector<8x32xf32>
    %13 = vector.extract_strided_slice %11 {offsets = [0, 32], sizes = [8, 32], strides = [1, 1]} : vector<8x64xf32> to vector<8x32xf32>
    %c0_12 = arith.constant 0 : index
    %c0_13 = arith.constant 0 : index
    %14 = vector.load %arg6[%c0_12, %c0_13] : memref<5x32xf32, #tpu.memory_space<vmem>>, vector<5x32xf32>
    %15 = vector.shape_cast %14 : vector<5x32xf32> to vector<5x1x32xf32>
    %16 = vector.shape_cast %12 : vector<8x32xf32> to vector<1x8x32xf32>
    %17 = vector.broadcast %15 : vector<5x1x32xf32> to vector<5x8x32xf32>
    %18 = vector.broadcast %16 : vector<1x8x32xf32> to vector<5x8x32xf32>
    %19 = arith.mulf %17, %18 : vector<5x8x32xf32>
    %20 = vector.shape_cast %19 : vector<5x8x32xf32> to vector<40x32xf32>
    %cst_14 = arith.constant dense<0.000000e+00> : vector<40x8xf32>
    %21 = tpu.matmul %20, %13, %cst_14 {dimension_numbers = #tpu.dot_dimension_numbers<[1], [1], [0], [0], [0, 0, 1, 0], [], []>} : vector<40x32xf32>, vector<8x32xf32>, vector<40x8xf32> -> vector<40x8xf32>
    %22 = vector.shape_cast %21 : vector<40x8xf32> to vector<5x8x8xf32>
    %c0_15 = arith.constant 0 : index
    %c0_16 = arith.constant 0 : index
    %c0_17 = arith.constant 0 : index
    %c0_18 = arith.constant 0 : index
    %23 = vector.load %arg7[%c0_15, %c0_16, %c0_17, %c0_18] : memref<1x5x8x8xf32, #tpu.memory_space<vmem>>, vector<1x5x8x8xf32>
    %24 = vector.shape_cast %23 : vector<1x5x8x8xf32> to vector<5x8x8xf32>
    %25 = vector.shape_cast %22 : vector<5x8x8xf32> to vector<1x5x8x8xf32>
    tpu.vector_store %arg7[%c0_15, %c0_16, %c0_17, %c0_18], %25 {strides = array<i32>} : memref<1x5x8x8xf32, #tpu.memory_space<vmem>>, vector<1x5x8x8xf32>,
    return
  }
  func.func @transform_0(%arg0: i32) -> (i32, i32, i32) {
    %c0_i32 = arith.constant 0 : i32
    %c0_i32_0 = arith.constant 0 : i32
    %c0_i32_1 = arith.constant 0 : i32
    return %arg0, %c0_i32, %c0_i32_0 : i32, i32, i32
  }
  func.func @transform_1(%arg0: i32) -> (i32, i32, i32) {
    %c0_i32 = arith.constant 0 : i32
    %c0_i32_0 = arith.constant 0 : i32
    %c0_i32_1 = arith.constant 0 : i32
    return %arg0, %c0_i32, %c0_i32_0 : i32, i32, i32
  }
  func.func @transform_2(%arg0: i32) -> (i32, i32) {
    %c0_i32 = arith.constant 0 : i32
    %c0_i32_0 = arith.constant 0 : i32
    %c0_i32_1 = arith.constant 0 : i32
    return %c0_i32, %c0_i32_0 : i32, i32
  }
  func.func @transform_3(%arg0: i32) -> (i32, i32) {
    %c0_i32 = arith.constant 0 : i32
    %c0_i32_0 = arith.constant 0 : i32
    %c0_i32_1 = arith.constant 0 : i32
    return %c0_i32, %c0_i32_0 : i32, i32
  }
  func.func @transform_4(%arg0: i32) -> (i32, i32) {
    %c0_i32 = arith.constant 0 : i32
    %c0_i32_0 = arith.constant 0 : i32
    %c0_i32_1 = arith.constant 0 : i32
    return %c0_i32, %c0_i32_0 : i32, i32
  }
  func.func @transform_5(%arg0: i32) -> (i32, i32) {
    %c0_i32 = arith.constant 0 : i32
    %c0_i32_0 = arith.constant 0 : i32
    %c0_i32_1 = arith.constant 0 : i32
    return %c0_i32, %c0_i32_0 : i32, i32
  }
  func.func @transform_6(%arg0: i32) -> (i32, i32, i32, i32) {
    %c0_i32 = arith.constant 0 : i32
    %c0_i32_0 = arith.constant 0 : i32
    %c0_i32_1 = arith.constant 0 : i32
    %c0_i32_2 = arith.constant 0 : i32
    return %arg0, %c0_i32, %c0_i32_0, %c0_i32_1 : i32, i32, i32, i32
  }
}

module attributes {stable_mosaic.version = 11 : i64} {
  func.func @_bilstm_fused_kernel(%arg0: memref<8x2x16xf32, #tpu.memory_space<vmem>>, %arg1: memref<16x1024xf32, #tpu.memory_space<vmem>>, %arg2: memref<128x512xf32, #tpu.memory_space<vmem>>, %arg3: memref<128x512xf32, #tpu.memory_space<vmem>>, %arg4: memref<1x1024xf32, #tpu.memory_space<vmem>>, %arg5: memref<256x1024xf32, #tpu.memory_space<vmem>>, %arg6: memref<128x512xf32, #tpu.memory_space<vmem>>, %arg7: memref<128x512xf32, #tpu.memory_space<vmem>>, %arg8: memref<1x1024xf32, #tpu.memory_space<vmem>>, %arg9: memref<8x2x256xf32, #tpu.memory_space<vmem>>, %arg10: memref<8x2x512xf32, #tpu.memory_space<vmem>>, %arg11: memref<8x2x512xf32, #tpu.memory_space<vmem>>, %arg12: memref<8x2x128xf32, #tpu.memory_space<vmem>>, %arg13: memref<8x2x128xf32, #tpu.memory_space<vmem>>, %arg14: memref<2x128xf32, #tpu.memory_space<vmem>>, %arg15: memref<2x128xf32, #tpu.memory_space<vmem>>, %arg16: memref<2x128xf32, #tpu.memory_space<vmem>>, %arg17: memref<2x128xf32, #tpu.memory_space<vmem>>) attributes {dimension_semantics = [], scalar_prefetch = 0 : i64, scratch_operands = 8 : i64, tpu.core_type = #tpu.core_type<tc>} {
    %c0 = arith.constant 0 : index
    %c0_0 = arith.constant 0 : index
    %c0_1 = arith.constant 0 : index
    %0 = vector.load %arg0[%c0, %c0_0, %c0_1] : memref<8x2x16xf32, #tpu.memory_space<vmem>>, vector<8x2x16xf32>
    %1 = vector.shape_cast %0 : vector<8x2x16xf32> to vector<16x16xf32>
    %c0_2 = arith.constant 0 : index
    %c0_3 = arith.constant 0 : index
    %2 = vector.load %arg1[%c0_2, %c0_3] : memref<16x1024xf32, #tpu.memory_space<vmem>>, vector<16x1024xf32>
    %c0_4 = arith.constant 0 : index
    %c0_5 = arith.constant 0 : index
    %3 = vector.load %arg4[%c0_4, %c0_5] : memref<1x1024xf32, #tpu.memory_space<vmem>>, vector<1x1024xf32>
    %c0_6 = arith.constant 0 : index
    %c0_7 = arith.constant 0 : index
    %4 = vector.load %arg2[%c0_6, %c0_7] : memref<128x512xf32, #tpu.memory_space<vmem>>, vector<128x512xf32>
    %c0_8 = arith.constant 0 : index
    %c0_9 = arith.constant 0 : index
    %5 = vector.load %arg3[%c0_8, %c0_9] : memref<128x512xf32, #tpu.memory_space<vmem>>, vector<128x512xf32>
    %cst = arith.constant dense<0.000000e+00> : vector<16x1024xf32>
    %6 = tpu.matmul %1, %2, %cst {dimension_numbers = #tpu.dot_dimension_numbers<[1], [0], [0], [1], [0, 0, 1, 1], [], []>} : vector<16x16xf32>, vector<16x1024xf32>, vector<16x1024xf32> -> vector<16x1024xf32>
    %7 = vector.broadcast %3 : vector<1x1024xf32> to vector<16x1024xf32>
    %8 = arith.addf %6, %7 : vector<16x1024xf32>
    %9 = vector.extract_strided_slice %8 {offsets = [0, 0], sizes = [16, 512], strides = [1, 1]} : vector<16x1024xf32> to vector<16x512xf32>
    %10 = vector.shape_cast %9 : vector<16x512xf32> to vector<8x2x512xf32>
    %c0_10 = arith.constant 0 : index
    %c0_11 = arith.constant 0 : index
    %c0_12 = arith.constant 0 : index
    %11 = vector.load %arg10[%c0_10, %c0_11, %c0_12] : memref<8x2x512xf32, #tpu.memory_space<vmem>>, vector<8x2x512xf32>
    tpu.vector_store %arg10[%c0_10, %c0_11, %c0_12], %10 {strides = array<i32>} : memref<8x2x512xf32, #tpu.memory_space<vmem>>, vector<8x2x512xf32>,
    %12 = vector.extract_strided_slice %8 {offsets = [0, 512], sizes = [16, 512], strides = [1, 1]} : vector<16x1024xf32> to vector<16x512xf32>
    %13 = vector.shape_cast %12 : vector<16x512xf32> to vector<8x2x512xf32>
    %c0_13 = arith.constant 0 : index
    %c0_14 = arith.constant 0 : index
    %c0_15 = arith.constant 0 : index
    %14 = vector.load %arg11[%c0_13, %c0_14, %c0_15] : memref<8x2x512xf32, #tpu.memory_space<vmem>>, vector<8x2x512xf32>
    tpu.vector_store %arg11[%c0_13, %c0_14, %c0_15], %13 {strides = array<i32>} : memref<8x2x512xf32, #tpu.memory_space<vmem>>, vector<8x2x512xf32>,
    %cst_16 = arith.constant 0.000000e+00 : f32
    %15 = vector.broadcast %cst_16 : f32 to vector<2x128xf32>
    %c0_17 = arith.constant 0 : index
    %c0_18 = arith.constant 0 : index
    %16 = vector.load %arg14[%c0_17, %c0_18] : memref<2x128xf32, #tpu.memory_space<vmem>>, vector<2x128xf32>
    tpu.vector_store %arg14[%c0_17, %c0_18], %15 {strides = array<i32>} : memref<2x128xf32, #tpu.memory_space<vmem>>, vector<2x128xf32>,
    %cst_19 = arith.constant 0.000000e+00 : f32
    %17 = vector.broadcast %cst_19 : f32 to vector<2x128xf32>
    %c0_20 = arith.constant 0 : index
    %c0_21 = arith.constant 0 : index
    %18 = vector.load %arg15[%c0_20, %c0_21] : memref<2x128xf32, #tpu.memory_space<vmem>>, vector<2x128xf32>
    tpu.vector_store %arg15[%c0_20, %c0_21], %17 {strides = array<i32>} : memref<2x128xf32, #tpu.memory_space<vmem>>, vector<2x128xf32>,
    %cst_22 = arith.constant 0.000000e+00 : f32
    %19 = vector.broadcast %cst_22 : f32 to vector<2x128xf32>
    %c0_23 = arith.constant 0 : index
    %c0_24 = arith.constant 0 : index
    %20 = vector.load %arg16[%c0_23, %c0_24] : memref<2x128xf32, #tpu.memory_space<vmem>>, vector<2x128xf32>
    tpu.vector_store %arg16[%c0_23, %c0_24], %19 {strides = array<i32>} : memref<2x128xf32, #tpu.memory_space<vmem>>, vector<2x128xf32>,
    %cst_25 = arith.constant 0.000000e+00 : f32
    %21 = vector.broadcast %cst_25 : f32 to vector<2x128xf32>
    %c0_26 = arith.constant 0 : index
    %c0_27 = arith.constant 0 : index
    %22 = vector.load %arg17[%c0_26, %c0_27] : memref<2x128xf32, #tpu.memory_space<vmem>>, vector<2x128xf32>
    tpu.vector_store %arg17[%c0_26, %c0_27], %21 {strides = array<i32>} : memref<2x128xf32, #tpu.memory_space<vmem>>, vector<2x128xf32>,
    %c0_i32 = arith.constant 0 : i32
    %c7_i32 = arith.constant 7 : i32
    %23 = arith.subi %c7_i32, %c0_i32 : i32
    %24 = arith.index_cast %c0_i32 : i32 to index
    %c0_28 = arith.constant 0 : index
    %c0_29 = arith.constant 0 : index
    %25 = vector.load %arg10[%24, %c0_28, %c0_29] : memref<8x2x512xf32, #tpu.memory_space<vmem>>, vector<1x2x512xf32>
    %26 = vector.shape_cast %25 : vector<1x2x512xf32> to vector<2x512xf32>
    %c0_30 = arith.constant 0 : index
    %c0_31 = arith.constant 0 : index
    %27 = vector.load %arg14[%c0_30, %c0_31] : memref<2x128xf32, #tpu.memory_space<vmem>>, vector<2x128xf32>
    %cst_32 = arith.constant dense<0.000000e+00> : vector<2x512xf32>
    %28 = tpu.matmul %27, %4, %cst_32 {dimension_numbers = #tpu.dot_dimension_numbers<[1], [0], [0], [1], [0, 0, 1, 1], [], []>} : vector<2x128xf32>, vector<128x512xf32>, vector<2x512xf32> -> vector<2x512xf32>
    %29 = arith.addf %26, %28 : vector<2x512xf32>
    %30 = arith.index_cast %23 : i32 to index
    %c0_33 = arith.constant 0 : index
    %c0_34 = arith.constant 0 : index
    %31 = vector.load %arg11[%30, %c0_33, %c0_34] : memref<8x2x512xf32, #tpu.memory_space<vmem>>, vector<1x2x512xf32>
    %32 = vector.shape_cast %31 : vector<1x2x512xf32> to vector<2x512xf32>
    %c0_35 = arith.constant 0 : index
    %c0_36 = arith.constant 0 : index
    %33 = vector.load %arg16[%c0_35, %c0_36] : memref<2x128xf32, #tpu.memory_space<vmem>>, vector<2x128xf32>
    %cst_37 = arith.constant dense<0.000000e+00> : vector<2x512xf32>
    %34 = tpu.matmul %33, %5, %cst_37 {dimension_numbers = #tpu.dot_dimension_numbers<[1], [0], [0], [1], [0, 0, 1, 1], [], []>} : vector<2x128xf32>, vector<128x512xf32>, vector<2x512xf32> -> vector<2x512xf32>
    %35 = arith.addf %32, %34 : vector<2x512xf32>
    %c0_38 = arith.constant 0 : index
    %c0_39 = arith.constant 0 : index
    %36 = vector.load %arg15[%c0_38, %c0_39] : memref<2x128xf32, #tpu.memory_space<vmem>>, vector<2x128xf32>
    %37 = vector.extract_strided_slice %29 {offsets = [0, 0], sizes = [2, 128], strides = [1, 1]} : vector<2x512xf32> to vector<2x128xf32>
    %38 = arith.negf %37 : vector<2x128xf32>
    %39 = math.exp %38 : vector<2x128xf32>
    %cst_40 = arith.constant 1.000000e+00 : f32
    %40 = vector.broadcast %cst_40 : f32 to vector<2x128xf32>
    %41 = arith.addf %40, %39 : vector<2x128xf32>
    %42 = arith.divf %40, %41 : vector<2x128xf32>
    %43 = vector.extract_strided_slice %29 {offsets = [0, 128], sizes = [2, 128], strides = [1, 1]} : vector<2x512xf32> to vector<2x128xf32>
    %44 = arith.negf %43 : vector<2x128xf32>
    %45 = math.exp %44 : vector<2x128xf32>
    %cst_41 = arith.constant 1.000000e+00 : f32
    %46 = vector.broadcast %cst_41 : f32 to vector<2x128xf32>
    %47 = arith.addf %46, %45 : vector<2x128xf32>
    %48 = arith.divf %46, %47 : vector<2x128xf32>
    %49 = vector.extract_strided_slice %29 {offsets = [0, 256], sizes = [2, 128], strides = [1, 1]} : vector<2x512xf32> to vector<2x128xf32>
    %50 = math.tanh %49 : vector<2x128xf32>
    %51 = vector.extract_strided_slice %29 {offsets = [0, 384], sizes = [2, 128], strides = [1, 1]} : vector<2x512xf32> to vector<2x128xf32>
    %52 = arith.negf %51 : vector<2x128xf32>
    %53 = math.exp %52 : vector<2x128xf32>
    %cst_42 = arith.constant 1.000000e+00 : f32
    %54 = vector.broadcast %cst_42 : f32 to vector<2x128xf32>
    %55 = arith.addf %54, %53 : vector<2x128xf32>
    %56 = arith.divf %54, %55 : vector<2x128xf32>
    %57 = arith.mulf %48, %36 : vector<2x128xf32>
    %58 = arith.mulf %42, %50 : vector<2x128xf32>
    %59 = arith.addf %57, %58 : vector<2x128xf32>
    %60 = math.tanh %59 : vector<2x128xf32>
    %61 = arith.mulf %56, %60 : vector<2x128xf32>
    %c0_43 = arith.constant 0 : index
    %c0_44 = arith.constant 0 : index
    %62 = vector.load %arg17[%c0_43, %c0_44] : memref<2x128xf32, #tpu.memory_space<vmem>>, vector<2x128xf32>
    %63 = vector.extract_strided_slice %35 {offsets = [0, 0], sizes = [2, 128], strides = [1, 1]} : vector<2x512xf32> to vector<2x128xf32>
    %64 = arith.negf %63 : vector<2x128xf32>
    %65 = math.exp %64 : vector<2x128xf32>
    %cst_45 = arith.constant 1.000000e+00 : f32
    %66 = vector.broadcast %cst_45 : f32 to vector<2x128xf32>
    %67 = arith.addf %66, %65 : vector<2x128xf32>
    %68 = arith.divf %66, %67 : vector<2x128xf32>
    %69 = vector.extract_strided_slice %35 {offsets = [0, 128], sizes = [2, 128], strides = [1, 1]} : vector<2x512xf32> to vector<2x128xf32>
    %70 = arith.negf %69 : vector<2x128xf32>
    %71 = math.exp %70 : vector<2x128xf32>
    %cst_46 = arith.constant 1.000000e+00 : f32
    %72 = vector.broadcast %cst_46 : f32 to vector<2x128xf32>
    %73 = arith.addf %72, %71 : vector<2x128xf32>
    %74 = arith.divf %72, %73 : vector<2x128xf32>
    %75 = vector.extract_strided_slice %35 {offsets = [0, 256], sizes = [2, 128], strides = [1, 1]} : vector<2x512xf32> to vector<2x128xf32>
    %76 = math.tanh %75 : vector<2x128xf32>
    %77 = vector.extract_strided_slice %35 {offsets = [0, 384], sizes = [2, 128], strides = [1, 1]} : vector<2x512xf32> to vector<2x128xf32>
    %78 = arith.negf %77 : vector<2x128xf32>
    %79 = math.exp %78 : vector<2x128xf32>
    %cst_47 = arith.constant 1.000000e+00 : f32
    %80 = vector.broadcast %cst_47 : f32 to vector<2x128xf32>
    %81 = arith.addf %80, %79 : vector<2x128xf32>
    %82 = arith.divf %80, %81 : vector<2x128xf32>
    %83 = arith.mulf %74, %62 : vector<2x128xf32>
    %84 = arith.mulf %68, %76 : vector<2x128xf32>
    %85 = arith.addf %83, %84 : vector<2x128xf32>
    %86 = math.tanh %85 : vector<2x128xf32>
    %87 = arith.mulf %82, %86 : vector<2x128xf32>
    %c0_48 = arith.constant 0 : index
    %c0_49 = arith.constant 0 : index
    %88 = vector.load %arg14[%c0_48, %c0_49] : memref<2x128xf32, #tpu.memory_space<vmem>>, vector<2x128xf32>
    tpu.vector_store %arg14[%c0_48, %c0_49], %61 {strides = array<i32>} : memref<2x128xf32, #tpu.memory_space<vmem>>, vector<2x128xf32>,
    %c0_50 = arith.constant 0 : index
    %c0_51 = arith.constant 0 : index
    %89 = vector.load %arg15[%c0_50, %c0_51] : memref<2x128xf32, #tpu.memory_space<vmem>>, vector<2x128xf32>
    tpu.vector_store %arg15[%c0_50, %c0_51], %59 {strides = array<i32>} : memref<2x128xf32, #tpu.memory_space<vmem>>, vector<2x128xf32>,
    %c0_52 = arith.constant 0 : index
    %c0_53 = arith.constant 0 : index
    %90 = vector.load %arg16[%c0_52, %c0_53] : memref<2x128xf32, #tpu.memory_space<vmem>>, vector<2x128xf32>
    tpu.vector_store %arg16[%c0_52, %c0_53], %87 {strides = array<i32>} : memref<2x128xf32, #tpu.memory_space<vmem>>, vector<2x128xf32>,
    %c0_54 = arith.constant 0 : index
    %c0_55 = arith.constant 0 : index
    %91 = vector.load %arg17[%c0_54, %c0_55] : memref<2x128xf32, #tpu.memory_space<vmem>>, vector<2x128xf32>
    tpu.vector_store %arg17[%c0_54, %c0_55], %85 {strides = array<i32>} : memref<2x128xf32, #tpu.memory_space<vmem>>, vector<2x128xf32>,
    %92 = arith.index_cast %c0_i32 : i32 to index
    %c0_56 = arith.constant 0 : index
    %c0_57 = arith.constant 0 : index
    %93 = vector.load %arg12[%92, %c0_56, %c0_57] : memref<8x2x128xf32, #tpu.memory_space<vmem>>, vector<1x2x128xf32>
    %94 = vector.shape_cast %93 : vector<1x2x128xf32> to vector<2x128xf32>
    %95 = vector.shape_cast %61 : vector<2x128xf32> to vector<1x2x128xf32>
    tpu.vector_store %arg12[%92, %c0_56, %c0_57], %95 {strides = array<i32>} : memref<8x2x128xf32, #tpu.memory_space<vmem>>, vector<1x2x128xf32>,
    %96 = arith.index_cast %23 : i32 to index
    %c0_58 = arith.constant 0 : index
    %c0_59 = arith.constant 0 : index
    %97 = vector.load %arg13[%96, %c0_58, %c0_59] : memref<8x2x128xf32, #tpu.memory_space<vmem>>, vector<1x2x128xf32>
    %98 = vector.shape_cast %97 : vector<1x2x128xf32> to vector<2x128xf32>
    %99 = vector.shape_cast %87 : vector<2x128xf32> to vector<1x2x128xf32>
    tpu.vector_store %arg13[%96, %c0_58, %c0_59], %99 {strides = array<i32>} : memref<8x2x128xf32, #tpu.memory_space<vmem>>, vector<1x2x128xf32>,
    %c1_i32 = arith.constant 1 : i32
    %c7_i32_60 = arith.constant 7 : i32
    %100 = arith.subi %c7_i32_60, %c1_i32 : i32
    %101 = arith.index_cast %c1_i32 : i32 to index
    %c0_61 = arith.constant 0 : index
    %c0_62 = arith.constant 0 : index
    %102 = vector.load %arg10[%101, %c0_61, %c0_62] : memref<8x2x512xf32, #tpu.memory_space<vmem>>, vector<1x2x512xf32>
    %103 = vector.shape_cast %102 : vector<1x2x512xf32> to vector<2x512xf32>
    %c0_63 = arith.constant 0 : index
    %c0_64 = arith.constant 0 : index
    %104 = vector.load %arg14[%c0_63, %c0_64] : memref<2x128xf32, #tpu.memory_space<vmem>>, vector<2x128xf32>
    %cst_65 = arith.constant dense<0.000000e+00> : vector<2x512xf32>
    %105 = tpu.matmul %104, %4, %cst_65 {dimension_numbers = #tpu.dot_dimension_numbers<[1], [0], [0], [1], [0, 0, 1, 1], [], []>} : vector<2x128xf32>, vector<128x512xf32>, vector<2x512xf32> -> vector<2x512xf32>
    %106 = arith.addf %103, %105 : vector<2x512xf32>
    %107 = arith.index_cast %100 : i32 to index
    %c0_66 = arith.constant 0 : index
    %c0_67 = arith.constant 0 : index
    %108 = vector.load %arg11[%107, %c0_66, %c0_67] : memref<8x2x512xf32, #tpu.memory_space<vmem>>, vector<1x2x512xf32>
    %109 = vector.shape_cast %108 : vector<1x2x512xf32> to vector<2x512xf32>
    %c0_68 = arith.constant 0 : index
    %c0_69 = arith.constant 0 : index
    %110 = vector.load %arg16[%c0_68, %c0_69] : memref<2x128xf32, #tpu.memory_space<vmem>>, vector<2x128xf32>
    %cst_70 = arith.constant dense<0.000000e+00> : vector<2x512xf32>
    %111 = tpu.matmul %110, %5, %cst_70 {dimension_numbers = #tpu.dot_dimension_numbers<[1], [0], [0], [1], [0, 0, 1, 1], [], []>} : vector<2x128xf32>, vector<128x512xf32>, vector<2x512xf32> -> vector<2x512xf32>
    %112 = arith.addf %109, %111 : vector<2x512xf32>
    %c0_71 = arith.constant 0 : index
    %c0_72 = arith.constant 0 : index
    %113 = vector.load %arg15[%c0_71, %c0_72] : memref<2x128xf32, #tpu.memory_space<vmem>>, vector<2x128xf32>
    %114 = vector.extract_strided_slice %106 {offsets = [0, 0], sizes = [2, 128], strides = [1, 1]} : vector<2x512xf32> to vector<2x128xf32>
    %115 = arith.negf %114 : vector<2x128xf32>
    %116 = math.exp %115 : vector<2x128xf32>
    %cst_73 = arith.constant 1.000000e+00 : f32
    %117 = vector.broadcast %cst_73 : f32 to vector<2x128xf32>
    %118 = arith.addf %117, %116 : vector<2x128xf32>
    %119 = arith.divf %117, %118 : vector<2x128xf32>
    %120 = vector.extract_strided_slice %106 {offsets = [0, 128], sizes = [2, 128], strides = [1, 1]} : vector<2x512xf32> to vector<2x128xf32>
    %121 = arith.negf %120 : vector<2x128xf32>
    %122 = math.exp %121 : vector<2x128xf32>
    %cst_74 = arith.constant 1.000000e+00 : f32
    %123 = vector.broadcast %cst_74 : f32 to vector<2x128xf32>
    %124 = arith.addf %123, %122 : vector<2x128xf32>
    %125 = arith.divf %123, %124 : vector<2x128xf32>
    %126 = vector.extract_strided_slice %106 {offsets = [0, 256], sizes = [2, 128], strides = [1, 1]} : vector<2x512xf32> to vector<2x128xf32>
    %127 = math.tanh %126 : vector<2x128xf32>
    %128 = vector.extract_strided_slice %106 {offsets = [0, 384], sizes = [2, 128], strides = [1, 1]} : vector<2x512xf32> to vector<2x128xf32>
    %129 = arith.negf %128 : vector<2x128xf32>
    %130 = math.exp %129 : vector<2x128xf32>
    %cst_75 = arith.constant 1.000000e+00 : f32
    %131 = vector.broadcast %cst_75 : f32 to vector<2x128xf32>
    %132 = arith.addf %131, %130 : vector<2x128xf32>
    %133 = arith.divf %131, %132 : vector<2x128xf32>
    %134 = arith.mulf %125, %113 : vector<2x128xf32>
    %135 = arith.mulf %119, %127 : vector<2x128xf32>
    %136 = arith.addf %134, %135 : vector<2x128xf32>
    %137 = math.tanh %136 : vector<2x128xf32>
    %138 = arith.mulf %133, %137 : vector<2x128xf32>
    %c0_76 = arith.constant 0 : index
    %c0_77 = arith.constant 0 : index
    %139 = vector.load %arg17[%c0_76, %c0_77] : memref<2x128xf32, #tpu.memory_space<vmem>>, vector<2x128xf32>
    %140 = vector.extract_strided_slice %112 {offsets = [0, 0], sizes = [2, 128], strides = [1, 1]} : vector<2x512xf32> to vector<2x128xf32>
    %141 = arith.negf %140 : vector<2x128xf32>
    %142 = math.exp %141 : vector<2x128xf32>
    %cst_78 = arith.constant 1.000000e+00 : f32
    %143 = vector.broadcast %cst_78 : f32 to vector<2x128xf32>
    %144 = arith.addf %143, %142 : vector<2x128xf32>
    %145 = arith.divf %143, %144 : vector<2x128xf32>
    %146 = vector.extract_strided_slice %112 {offsets = [0, 128], sizes = [2, 128], strides = [1, 1]} : vector<2x512xf32> to vector<2x128xf32>
    %147 = arith.negf %146 : vector<2x128xf32>
    %148 = math.exp %147 : vector<2x128xf32>
    %cst_79 = arith.constant 1.000000e+00 : f32
    %149 = vector.broadcast %cst_79 : f32 to vector<2x128xf32>
    %150 = arith.addf %149, %148 : vector<2x128xf32>
    %151 = arith.divf %149, %150 : vector<2x128xf32>
    %152 = vector.extract_strided_slice %112 {offsets = [0, 256], sizes = [2, 128], strides = [1, 1]} : vector<2x512xf32> to vector<2x128xf32>
    %153 = math.tanh %152 : vector<2x128xf32>
    %154 = vector.extract_strided_slice %112 {offsets = [0, 384], sizes = [2, 128], strides = [1, 1]} : vector<2x512xf32> to vector<2x128xf32>
    %155 = arith.negf %154 : vector<2x128xf32>
    %156 = math.exp %155 : vector<2x128xf32>
    %cst_80 = arith.constant 1.000000e+00 : f32
    %157 = vector.broadcast %cst_80 : f32 to vector<2x128xf32>
    %158 = arith.addf %157, %156 : vector<2x128xf32>
    %159 = arith.divf %157, %158 : vector<2x128xf32>
    %160 = arith.mulf %151, %139 : vector<2x128xf32>
    %161 = arith.mulf %145, %153 : vector<2x128xf32>
    %162 = arith.addf %160, %161 : vector<2x128xf32>
    %163 = math.tanh %162 : vector<2x128xf32>
    %164 = arith.mulf %159, %163 : vector<2x128xf32>
    %c0_81 = arith.constant 0 : index
    %c0_82 = arith.constant 0 : index
    %165 = vector.load %arg14[%c0_81, %c0_82] : memref<2x128xf32, #tpu.memory_space<vmem>>, vector<2x128xf32>
    tpu.vector_store %arg14[%c0_81, %c0_82], %138 {strides = array<i32>} : memref<2x128xf32, #tpu.memory_space<vmem>>, vector<2x128xf32>,
    %c0_83 = arith.constant 0 : index
    %c0_84 = arith.constant 0 : index
    %166 = vector.load %arg15[%c0_83, %c0_84] : memref<2x128xf32, #tpu.memory_space<vmem>>, vector<2x128xf32>
    tpu.vector_store %arg15[%c0_83, %c0_84], %136 {strides = array<i32>} : memref<2x128xf32, #tpu.memory_space<vmem>>, vector<2x128xf32>,
    %c0_85 = arith.constant 0 : index
    %c0_86 = arith.constant 0 : index
    %167 = vector.load %arg16[%c0_85, %c0_86] : memref<2x128xf32, #tpu.memory_space<vmem>>, vector<2x128xf32>
    tpu.vector_store %arg16[%c0_85, %c0_86], %164 {strides = array<i32>} : memref<2x128xf32, #tpu.memory_space<vmem>>, vector<2x128xf32>,
    %c0_87 = arith.constant 0 : index
    %c0_88 = arith.constant 0 : index
    %168 = vector.load %arg17[%c0_87, %c0_88] : memref<2x128xf32, #tpu.memory_space<vmem>>, vector<2x128xf32>
    tpu.vector_store %arg17[%c0_87, %c0_88], %162 {strides = array<i32>} : memref<2x128xf32, #tpu.memory_space<vmem>>, vector<2x128xf32>,
    %169 = arith.index_cast %c1_i32 : i32 to index
    %c0_89 = arith.constant 0 : index
    %c0_90 = arith.constant 0 : index
    %170 = vector.load %arg12[%169, %c0_89, %c0_90] : memref<8x2x128xf32, #tpu.memory_space<vmem>>, vector<1x2x128xf32>
    %171 = vector.shape_cast %170 : vector<1x2x128xf32> to vector<2x128xf32>
    %172 = vector.shape_cast %138 : vector<2x128xf32> to vector<1x2x128xf32>
    tpu.vector_store %arg12[%169, %c0_89, %c0_90], %172 {strides = array<i32>} : memref<8x2x128xf32, #tpu.memory_space<vmem>>, vector<1x2x128xf32>,
    %173 = arith.index_cast %100 : i32 to index
    %c0_91 = arith.constant 0 : index
    %c0_92 = arith.constant 0 : index
    %174 = vector.load %arg13[%173, %c0_91, %c0_92] : memref<8x2x128xf32, #tpu.memory_space<vmem>>, vector<1x2x128xf32>
    %175 = vector.shape_cast %174 : vector<1x2x128xf32> to vector<2x128xf32>
    %176 = vector.shape_cast %164 : vector<2x128xf32> to vector<1x2x128xf32>
    tpu.vector_store %arg13[%173, %c0_91, %c0_92], %176 {strides = array<i32>} : memref<8x2x128xf32, #tpu.memory_space<vmem>>, vector<1x2x128xf32>,
    %c2_i32 = arith.constant 2 : i32
    %c7_i32_93 = arith.constant 7 : i32
    %177 = arith.subi %c7_i32_93, %c2_i32 : i32
    %178 = arith.index_cast %c2_i32 : i32 to index
    %c0_94 = arith.constant 0 : index
    %c0_95 = arith.constant 0 : index
    %179 = vector.load %arg10[%178, %c0_94, %c0_95] : memref<8x2x512xf32, #tpu.memory_space<vmem>>, vector<1x2x512xf32>
    %180 = vector.shape_cast %179 : vector<1x2x512xf32> to vector<2x512xf32>
    %c0_96 = arith.constant 0 : index
    %c0_97 = arith.constant 0 : index
    %181 = vector.load %arg14[%c0_96, %c0_97] : memref<2x128xf32, #tpu.memory_space<vmem>>, vector<2x128xf32>
    %cst_98 = arith.constant dense<0.000000e+00> : vector<2x512xf32>
    %182 = tpu.matmul %181, %4, %cst_98 {dimension_numbers = #tpu.dot_dimension_numbers<[1], [0], [0], [1], [0, 0, 1, 1], [], []>} : vector<2x128xf32>, vector<128x512xf32>, vector<2x512xf32> -> vector<2x512xf32>
    %183 = arith.addf %180, %182 : vector<2x512xf32>
    %184 = arith.index_cast %177 : i32 to index
    %c0_99 = arith.constant 0 : index
    %c0_100 = arith.constant 0 : index
    %185 = vector.load %arg11[%184, %c0_99, %c0_100] : memref<8x2x512xf32, #tpu.memory_space<vmem>>, vector<1x2x512xf32>
    %186 = vector.shape_cast %185 : vector<1x2x512xf32> to vector<2x512xf32>
    %c0_101 = arith.constant 0 : index
    %c0_102 = arith.constant 0 : index
    %187 = vector.load %arg16[%c0_101, %c0_102] : memref<2x128xf32, #tpu.memory_space<vmem>>, vector<2x128xf32>
    %cst_103 = arith.constant dense<0.000000e+00> : vector<2x512xf32>
    %188 = tpu.matmul %187, %5, %cst_103 {dimension_numbers = #tpu.dot_dimension_numbers<[1], [0], [0], [1], [0, 0, 1, 1], [], []>} : vector<2x128xf32>, vector<128x512xf32>, vector<2x512xf32> -> vector<2x512xf32>
    %189 = arith.addf %186, %188 : vector<2x512xf32>
    %c0_104 = arith.constant 0 : index
    %c0_105 = arith.constant 0 : index
    %190 = vector.load %arg15[%c0_104, %c0_105] : memref<2x128xf32, #tpu.memory_space<vmem>>, vector<2x128xf32>
    %191 = vector.extract_strided_slice %183 {offsets = [0, 0], sizes = [2, 128], strides = [1, 1]} : vector<2x512xf32> to vector<2x128xf32>
    %192 = arith.negf %191 : vector<2x128xf32>
    %193 = math.exp %192 : vector<2x128xf32>
    %cst_106 = arith.constant 1.000000e+00 : f32
    %194 = vector.broadcast %cst_106 : f32 to vector<2x128xf32>
    %195 = arith.addf %194, %193 : vector<2x128xf32>
    %196 = arith.divf %194, %195 : vector<2x128xf32>
    %197 = vector.extract_strided_slice %183 {offsets = [0, 128], sizes = [2, 128], strides = [1, 1]} : vector<2x512xf32> to vector<2x128xf32>
    %198 = arith.negf %197 : vector<2x128xf32>
    %199 = math.exp %198 : vector<2x128xf32>
    %cst_107 = arith.constant 1.000000e+00 : f32
    %200 = vector.broadcast %cst_107 : f32 to vector<2x128xf32>
    %201 = arith.addf %200, %199 : vector<2x128xf32>
    %202 = arith.divf %200, %201 : vector<2x128xf32>
    %203 = vector.extract_strided_slice %183 {offsets = [0, 256], sizes = [2, 128], strides = [1, 1]} : vector<2x512xf32> to vector<2x128xf32>
    %204 = math.tanh %203 : vector<2x128xf32>
    %205 = vector.extract_strided_slice %183 {offsets = [0, 384], sizes = [2, 128], strides = [1, 1]} : vector<2x512xf32> to vector<2x128xf32>
    %206 = arith.negf %205 : vector<2x128xf32>
    %207 = math.exp %206 : vector<2x128xf32>
    %cst_108 = arith.constant 1.000000e+00 : f32
    %208 = vector.broadcast %cst_108 : f32 to vector<2x128xf32>
    %209 = arith.addf %208, %207 : vector<2x128xf32>
    %210 = arith.divf %208, %209 : vector<2x128xf32>
    %211 = arith.mulf %202, %190 : vector<2x128xf32>
    %212 = arith.mulf %196, %204 : vector<2x128xf32>
    %213 = arith.addf %211, %212 : vector<2x128xf32>
    %214 = math.tanh %213 : vector<2x128xf32>
    %215 = arith.mulf %210, %214 : vector<2x128xf32>
    %c0_109 = arith.constant 0 : index
    %c0_110 = arith.constant 0 : index
    %216 = vector.load %arg17[%c0_109, %c0_110] : memref<2x128xf32, #tpu.memory_space<vmem>>, vector<2x128xf32>
    %217 = vector.extract_strided_slice %189 {offsets = [0, 0], sizes = [2, 128], strides = [1, 1]} : vector<2x512xf32> to vector<2x128xf32>
    %218 = arith.negf %217 : vector<2x128xf32>
    %219 = math.exp %218 : vector<2x128xf32>
    %cst_111 = arith.constant 1.000000e+00 : f32
    %220 = vector.broadcast %cst_111 : f32 to vector<2x128xf32>
    %221 = arith.addf %220, %219 : vector<2x128xf32>
    %222 = arith.divf %220, %221 : vector<2x128xf32>
    %223 = vector.extract_strided_slice %189 {offsets = [0, 128], sizes = [2, 128], strides = [1, 1]} : vector<2x512xf32> to vector<2x128xf32>
    %224 = arith.negf %223 : vector<2x128xf32>
    %225 = math.exp %224 : vector<2x128xf32>
    %cst_112 = arith.constant 1.000000e+00 : f32
    %226 = vector.broadcast %cst_112 : f32 to vector<2x128xf32>
    %227 = arith.addf %226, %225 : vector<2x128xf32>
    %228 = arith.divf %226, %227 : vector<2x128xf32>
    %229 = vector.extract_strided_slice %189 {offsets = [0, 256], sizes = [2, 128], strides = [1, 1]} : vector<2x512xf32> to vector<2x128xf32>
    %230 = math.tanh %229 : vector<2x128xf32>
    %231 = vector.extract_strided_slice %189 {offsets = [0, 384], sizes = [2, 128], strides = [1, 1]} : vector<2x512xf32> to vector<2x128xf32>
    %232 = arith.negf %231 : vector<2x128xf32>
    %233 = math.exp %232 : vector<2x128xf32>
    %cst_113 = arith.constant 1.000000e+00 : f32
    %234 = vector.broadcast %cst_113 : f32 to vector<2x128xf32>
    %235 = arith.addf %234, %233 : vector<2x128xf32>
    %236 = arith.divf %234, %235 : vector<2x128xf32>
    %237 = arith.mulf %228, %216 : vector<2x128xf32>
    %238 = arith.mulf %222, %230 : vector<2x128xf32>
    %239 = arith.addf %237, %238 : vector<2x128xf32>
    %240 = math.tanh %239 : vector<2x128xf32>
    %241 = arith.mulf %236, %240 : vector<2x128xf32>
    %c0_114 = arith.constant 0 : index
    %c0_115 = arith.constant 0 : index
    %242 = vector.load %arg14[%c0_114, %c0_115] : memref<2x128xf32, #tpu.memory_space<vmem>>, vector<2x128xf32>
    tpu.vector_store %arg14[%c0_114, %c0_115], %215 {strides = array<i32>} : memref<2x128xf32, #tpu.memory_space<vmem>>, vector<2x128xf32>,
    %c0_116 = arith.constant 0 : index
    %c0_117 = arith.constant 0 : index
    %243 = vector.load %arg15[%c0_116, %c0_117] : memref<2x128xf32, #tpu.memory_space<vmem>>, vector<2x128xf32>
    tpu.vector_store %arg15[%c0_116, %c0_117], %213 {strides = array<i32>} : memref<2x128xf32, #tpu.memory_space<vmem>>, vector<2x128xf32>,
    %c0_118 = arith.constant 0 : index
    %c0_119 = arith.constant 0 : index
    %244 = vector.load %arg16[%c0_118, %c0_119] : memref<2x128xf32, #tpu.memory_space<vmem>>, vector<2x128xf32>
    tpu.vector_store %arg16[%c0_118, %c0_119], %241 {strides = array<i32>} : memref<2x128xf32, #tpu.memory_space<vmem>>, vector<2x128xf32>,
    %c0_120 = arith.constant 0 : index
    %c0_121 = arith.constant 0 : index
    %245 = vector.load %arg17[%c0_120, %c0_121] : memref<2x128xf32, #tpu.memory_space<vmem>>, vector<2x128xf32>
    tpu.vector_store %arg17[%c0_120, %c0_121], %239 {strides = array<i32>} : memref<2x128xf32, #tpu.memory_space<vmem>>, vector<2x128xf32>,
    %246 = arith.index_cast %c2_i32 : i32 to index
    %c0_122 = arith.constant 0 : index
    %c0_123 = arith.constant 0 : index
    %247 = vector.load %arg12[%246, %c0_122, %c0_123] : memref<8x2x128xf32, #tpu.memory_space<vmem>>, vector<1x2x128xf32>
    %248 = vector.shape_cast %247 : vector<1x2x128xf32> to vector<2x128xf32>
    %249 = vector.shape_cast %215 : vector<2x128xf32> to vector<1x2x128xf32>
    tpu.vector_store %arg12[%246, %c0_122, %c0_123], %249 {strides = array<i32>} : memref<8x2x128xf32, #tpu.memory_space<vmem>>, vector<1x2x128xf32>,
    %250 = arith.index_cast %177 : i32 to index
    %c0_124 = arith.constant 0 : index
    %c0_125 = arith.constant 0 : index
    %251 = vector.load %arg13[%250, %c0_124, %c0_125] : memref<8x2x128xf32, #tpu.memory_space<vmem>>, vector<1x2x128xf32>
    %252 = vector.shape_cast %251 : vector<1x2x128xf32> to vector<2x128xf32>
    %253 = vector.shape_cast %241 : vector<2x128xf32> to vector<1x2x128xf32>
    tpu.vector_store %arg13[%250, %c0_124, %c0_125], %253 {strides = array<i32>} : memref<8x2x128xf32, #tpu.memory_space<vmem>>, vector<1x2x128xf32>,
    %c3_i32 = arith.constant 3 : i32
    %c7_i32_126 = arith.constant 7 : i32
    %254 = arith.subi %c7_i32_126, %c3_i32 : i32
    %255 = arith.index_cast %c3_i32 : i32 to index
    %c0_127 = arith.constant 0 : index
    %c0_128 = arith.constant 0 : index
    %256 = vector.load %arg10[%255, %c0_127, %c0_128] : memref<8x2x512xf32, #tpu.memory_space<vmem>>, vector<1x2x512xf32>
    %257 = vector.shape_cast %256 : vector<1x2x512xf32> to vector<2x512xf32>
    %c0_129 = arith.constant 0 : index
    %c0_130 = arith.constant 0 : index
    %258 = vector.load %arg14[%c0_129, %c0_130] : memref<2x128xf32, #tpu.memory_space<vmem>>, vector<2x128xf32>
    %cst_131 = arith.constant dense<0.000000e+00> : vector<2x512xf32>
    %259 = tpu.matmul %258, %4, %cst_131 {dimension_numbers = #tpu.dot_dimension_numbers<[1], [0], [0], [1], [0, 0, 1, 1], [], []>} : vector<2x128xf32>, vector<128x512xf32>, vector<2x512xf32> -> vector<2x512xf32>
    %260 = arith.addf %257, %259 : vector<2x512xf32>
    %261 = arith.index_cast %254 : i32 to index
    %c0_132 = arith.constant 0 : index
    %c0_133 = arith.constant 0 : index
    %262 = vector.load %arg11[%261, %c0_132, %c0_133] : memref<8x2x512xf32, #tpu.memory_space<vmem>>, vector<1x2x512xf32>
    %263 = vector.shape_cast %262 : vector<1x2x512xf32> to vector<2x512xf32>
    %c0_134 = arith.constant 0 : index
    %c0_135 = arith.constant 0 : index
    %264 = vector.load %arg16[%c0_134, %c0_135] : memref<2x128xf32, #tpu.memory_space<vmem>>, vector<2x128xf32>
    %cst_136 = arith.constant dense<0.000000e+00> : vector<2x512xf32>
    %265 = tpu.matmul %264, %5, %cst_136 {dimension_numbers = #tpu.dot_dimension_numbers<[1], [0], [0], [1], [0, 0, 1, 1], [], []>} : vector<2x128xf32>, vector<128x512xf32>, vector<2x512xf32> -> vector<2x512xf32>
    %266 = arith.addf %263, %265 : vector<2x512xf32>
    %c0_137 = arith.constant 0 : index
    %c0_138 = arith.constant 0 : index
    %267 = vector.load %arg15[%c0_137, %c0_138] : memref<2x128xf32, #tpu.memory_space<vmem>>, vector<2x128xf32>
    %268 = vector.extract_strided_slice %260 {offsets = [0, 0], sizes = [2, 128], strides = [1, 1]} : vector<2x512xf32> to vector<2x128xf32>
    %269 = arith.negf %268 : vector<2x128xf32>
    %270 = math.exp %269 : vector<2x128xf32>
    %cst_139 = arith.constant 1.000000e+00 : f32
    %271 = vector.broadcast %cst_139 : f32 to vector<2x128xf32>
    %272 = arith.addf %271, %270 : vector<2x128xf32>
    %273 = arith.divf %271, %272 : vector<2x128xf32>
    %274 = vector.extract_strided_slice %260 {offsets = [0, 128], sizes = [2, 128], strides = [1, 1]} : vector<2x512xf32> to vector<2x128xf32>
    %275 = arith.negf %274 : vector<2x128xf32>
    %276 = math.exp %275 : vector<2x128xf32>
    %cst_140 = arith.constant 1.000000e+00 : f32
    %277 = vector.broadcast %cst_140 : f32 to vector<2x128xf32>
    %278 = arith.addf %277, %276 : vector<2x128xf32>
    %279 = arith.divf %277, %278 : vector<2x128xf32>
    %280 = vector.extract_strided_slice %260 {offsets = [0, 256], sizes = [2, 128], strides = [1, 1]} : vector<2x512xf32> to vector<2x128xf32>
    %281 = math.tanh %280 : vector<2x128xf32>
    %282 = vector.extract_strided_slice %260 {offsets = [0, 384], sizes = [2, 128], strides = [1, 1]} : vector<2x512xf32> to vector<2x128xf32>
    %283 = arith.negf %282 : vector<2x128xf32>
    %284 = math.exp %283 : vector<2x128xf32>
    %cst_141 = arith.constant 1.000000e+00 : f32
    %285 = vector.broadcast %cst_141 : f32 to vector<2x128xf32>
    %286 = arith.addf %285, %284 : vector<2x128xf32>
    %287 = arith.divf %285, %286 : vector<2x128xf32>
    %288 = arith.mulf %279, %267 : vector<2x128xf32>
    %289 = arith.mulf %273, %281 : vector<2x128xf32>
    %290 = arith.addf %288, %289 : vector<2x128xf32>
    %291 = math.tanh %290 : vector<2x128xf32>
    %292 = arith.mulf %287, %291 : vector<2x128xf32>
    %c0_142 = arith.constant 0 : index
    %c0_143 = arith.constant 0 : index
    %293 = vector.load %arg17[%c0_142, %c0_143] : memref<2x128xf32, #tpu.memory_space<vmem>>, vector<2x128xf32>
    %294 = vector.extract_strided_slice %266 {offsets = [0, 0], sizes = [2, 128], strides = [1, 1]} : vector<2x512xf32> to vector<2x128xf32>
    %295 = arith.negf %294 : vector<2x128xf32>
    %296 = math.exp %295 : vector<2x128xf32>
    %cst_144 = arith.constant 1.000000e+00 : f32
    %297 = vector.broadcast %cst_144 : f32 to vector<2x128xf32>
    %298 = arith.addf %297, %296 : vector<2x128xf32>
    %299 = arith.divf %297, %298 : vector<2x128xf32>
    %300 = vector.extract_strided_slice %266 {offsets = [0, 128], sizes = [2, 128], strides = [1, 1]} : vector<2x512xf32> to vector<2x128xf32>
    %301 = arith.negf %300 : vector<2x128xf32>
    %302 = math.exp %301 : vector<2x128xf32>
    %cst_145 = arith.constant 1.000000e+00 : f32
    %303 = vector.broadcast %cst_145 : f32 to vector<2x128xf32>
    %304 = arith.addf %303, %302 : vector<2x128xf32>
    %305 = arith.divf %303, %304 : vector<2x128xf32>
    %306 = vector.extract_strided_slice %266 {offsets = [0, 256], sizes = [2, 128], strides = [1, 1]} : vector<2x512xf32> to vector<2x128xf32>
    %307 = math.tanh %306 : vector<2x128xf32>
    %308 = vector.extract_strided_slice %266 {offsets = [0, 384], sizes = [2, 128], strides = [1, 1]} : vector<2x512xf32> to vector<2x128xf32>
    %309 = arith.negf %308 : vector<2x128xf32>
    %310 = math.exp %309 : vector<2x128xf32>
    %cst_146 = arith.constant 1.000000e+00 : f32
    %311 = vector.broadcast %cst_146 : f32 to vector<2x128xf32>
    %312 = arith.addf %311, %310 : vector<2x128xf32>
    %313 = arith.divf %311, %312 : vector<2x128xf32>
    %314 = arith.mulf %305, %293 : vector<2x128xf32>
    %315 = arith.mulf %299, %307 : vector<2x128xf32>
    %316 = arith.addf %314, %315 : vector<2x128xf32>
    %317 = math.tanh %316 : vector<2x128xf32>
    %318 = arith.mulf %313, %317 : vector<2x128xf32>
    %c0_147 = arith.constant 0 : index
    %c0_148 = arith.constant 0 : index
    %319 = vector.load %arg14[%c0_147, %c0_148] : memref<2x128xf32, #tpu.memory_space<vmem>>, vector<2x128xf32>
    tpu.vector_store %arg14[%c0_147, %c0_148], %292 {strides = array<i32>} : memref<2x128xf32, #tpu.memory_space<vmem>>, vector<2x128xf32>,
    %c0_149 = arith.constant 0 : index
    %c0_150 = arith.constant 0 : index
    %320 = vector.load %arg15[%c0_149, %c0_150] : memref<2x128xf32, #tpu.memory_space<vmem>>, vector<2x128xf32>
    tpu.vector_store %arg15[%c0_149, %c0_150], %290 {strides = array<i32>} : memref<2x128xf32, #tpu.memory_space<vmem>>, vector<2x128xf32>,
    %c0_151 = arith.constant 0 : index
    %c0_152 = arith.constant 0 : index
    %321 = vector.load %arg16[%c0_151, %c0_152] : memref<2x128xf32, #tpu.memory_space<vmem>>, vector<2x128xf32>
    tpu.vector_store %arg16[%c0_151, %c0_152], %318 {strides = array<i32>} : memref<2x128xf32, #tpu.memory_space<vmem>>, vector<2x128xf32>,
    %c0_153 = arith.constant 0 : index
    %c0_154 = arith.constant 0 : index
    %322 = vector.load %arg17[%c0_153, %c0_154] : memref<2x128xf32, #tpu.memory_space<vmem>>, vector<2x128xf32>
    tpu.vector_store %arg17[%c0_153, %c0_154], %316 {strides = array<i32>} : memref<2x128xf32, #tpu.memory_space<vmem>>, vector<2x128xf32>,
    %323 = arith.index_cast %c3_i32 : i32 to index
    %c0_155 = arith.constant 0 : index
    %c0_156 = arith.constant 0 : index
    %324 = vector.load %arg12[%323, %c0_155, %c0_156] : memref<8x2x128xf32, #tpu.memory_space<vmem>>, vector<1x2x128xf32>
    %325 = vector.shape_cast %324 : vector<1x2x128xf32> to vector<2x128xf32>
    %326 = vector.shape_cast %292 : vector<2x128xf32> to vector<1x2x128xf32>
    tpu.vector_store %arg12[%323, %c0_155, %c0_156], %326 {strides = array<i32>} : memref<8x2x128xf32, #tpu.memory_space<vmem>>, vector<1x2x128xf32>,
    %327 = arith.index_cast %254 : i32 to index
    %c0_157 = arith.constant 0 : index
    %c0_158 = arith.constant 0 : index
    %328 = vector.load %arg13[%327, %c0_157, %c0_158] : memref<8x2x128xf32, #tpu.memory_space<vmem>>, vector<1x2x128xf32>
    %329 = vector.shape_cast %328 : vector<1x2x128xf32> to vector<2x128xf32>
    %330 = vector.shape_cast %318 : vector<2x128xf32> to vector<1x2x128xf32>
    tpu.vector_store %arg13[%327, %c0_157, %c0_158], %330 {strides = array<i32>} : memref<8x2x128xf32, #tpu.memory_space<vmem>>, vector<1x2x128xf32>,
    %c4_i32 = arith.constant 4 : i32
    %c7_i32_159 = arith.constant 7 : i32
    %331 = arith.subi %c7_i32_159, %c4_i32 : i32
    %332 = arith.index_cast %c4_i32 : i32 to index
    %c0_160 = arith.constant 0 : index
    %c0_161 = arith.constant 0 : index
    %333 = vector.load %arg10[%332, %c0_160, %c0_161] : memref<8x2x512xf32, #tpu.memory_space<vmem>>, vector<1x2x512xf32>
    %334 = vector.shape_cast %333 : vector<1x2x512xf32> to vector<2x512xf32>
    %c0_162 = arith.constant 0 : index
    %c0_163 = arith.constant 0 : index
    %335 = vector.load %arg14[%c0_162, %c0_163] : memref<2x128xf32, #tpu.memory_space<vmem>>, vector<2x128xf32>
    %cst_164 = arith.constant dense<0.000000e+00> : vector<2x512xf32>
    %336 = tpu.matmul %335, %4, %cst_164 {dimension_numbers = #tpu.dot_dimension_numbers<[1], [0], [0], [1], [0, 0, 1, 1], [], []>} : vector<2x128xf32>, vector<128x512xf32>, vector<2x512xf32> -> vector<2x512xf32>
    %337 = arith.addf %334, %336 : vector<2x512xf32>
    %338 = arith.index_cast %331 : i32 to index
    %c0_165 = arith.constant 0 : index
    %c0_166 = arith.constant 0 : index
    %339 = vector.load %arg11[%338, %c0_165, %c0_166] : memref<8x2x512xf32, #tpu.memory_space<vmem>>, vector<1x2x512xf32>
    %340 = vector.shape_cast %339 : vector<1x2x512xf32> to vector<2x512xf32>
    %c0_167 = arith.constant 0 : index
    %c0_168 = arith.constant 0 : index
    %341 = vector.load %arg16[%c0_167, %c0_168] : memref<2x128xf32, #tpu.memory_space<vmem>>, vector<2x128xf32>
    %cst_169 = arith.constant dense<0.000000e+00> : vector<2x512xf32>
    %342 = tpu.matmul %341, %5, %cst_169 {dimension_numbers = #tpu.dot_dimension_numbers<[1], [0], [0], [1], [0, 0, 1, 1], [], []>} : vector<2x128xf32>, vector<128x512xf32>, vector<2x512xf32> -> vector<2x512xf32>
    %343 = arith.addf %340, %342 : vector<2x512xf32>
    %c0_170 = arith.constant 0 : index
    %c0_171 = arith.constant 0 : index
    %344 = vector.load %arg15[%c0_170, %c0_171] : memref<2x128xf32, #tpu.memory_space<vmem>>, vector<2x128xf32>
    %345 = vector.extract_strided_slice %337 {offsets = [0, 0], sizes = [2, 128], strides = [1, 1]} : vector<2x512xf32> to vector<2x128xf32>
    %346 = arith.negf %345 : vector<2x128xf32>
    %347 = math.exp %346 : vector<2x128xf32>
    %cst_172 = arith.constant 1.000000e+00 : f32
    %348 = vector.broadcast %cst_172 : f32 to vector<2x128xf32>
    %349 = arith.addf %348, %347 : vector<2x128xf32>
    %350 = arith.divf %348, %349 : vector<2x128xf32>
    %351 = vector.extract_strided_slice %337 {offsets = [0, 128], sizes = [2, 128], strides = [1, 1]} : vector<2x512xf32> to vector<2x128xf32>
    %352 = arith.negf %351 : vector<2x128xf32>
    %353 = math.exp %352 : vector<2x128xf32>
    %cst_173 = arith.constant 1.000000e+00 : f32
    %354 = vector.broadcast %cst_173 : f32 to vector<2x128xf32>
    %355 = arith.addf %354, %353 : vector<2x128xf32>
    %356 = arith.divf %354, %355 : vector<2x128xf32>
    %357 = vector.extract_strided_slice %337 {offsets = [0, 256], sizes = [2, 128], strides = [1, 1]} : vector<2x512xf32> to vector<2x128xf32>
    %358 = math.tanh %357 : vector<2x128xf32>
    %359 = vector.extract_strided_slice %337 {offsets = [0, 384], sizes = [2, 128], strides = [1, 1]} : vector<2x512xf32> to vector<2x128xf32>
    %360 = arith.negf %359 : vector<2x128xf32>
    %361 = math.exp %360 : vector<2x128xf32>
    %cst_174 = arith.constant 1.000000e+00 : f32
    %362 = vector.broadcast %cst_174 : f32 to vector<2x128xf32>
    %363 = arith.addf %362, %361 : vector<2x128xf32>
    %364 = arith.divf %362, %363 : vector<2x128xf32>
    %365 = arith.mulf %356, %344 : vector<2x128xf32>
    %366 = arith.mulf %350, %358 : vector<2x128xf32>
    %367 = arith.addf %365, %366 : vector<2x128xf32>
    %368 = math.tanh %367 : vector<2x128xf32>
    %369 = arith.mulf %364, %368 : vector<2x128xf32>
    %c0_175 = arith.constant 0 : index
    %c0_176 = arith.constant 0 : index
    %370 = vector.load %arg17[%c0_175, %c0_176] : memref<2x128xf32, #tpu.memory_space<vmem>>, vector<2x128xf32>
    %371 = vector.extract_strided_slice %343 {offsets = [0, 0], sizes = [2, 128], strides = [1, 1]} : vector<2x512xf32> to vector<2x128xf32>
    %372 = arith.negf %371 : vector<2x128xf32>
    %373 = math.exp %372 : vector<2x128xf32>
    %cst_177 = arith.constant 1.000000e+00 : f32
    %374 = vector.broadcast %cst_177 : f32 to vector<2x128xf32>
    %375 = arith.addf %374, %373 : vector<2x128xf32>
    %376 = arith.divf %374, %375 : vector<2x128xf32>
    %377 = vector.extract_strided_slice %343 {offsets = [0, 128], sizes = [2, 128], strides = [1, 1]} : vector<2x512xf32> to vector<2x128xf32>
    %378 = arith.negf %377 : vector<2x128xf32>
    %379 = math.exp %378 : vector<2x128xf32>
    %cst_178 = arith.constant 1.000000e+00 : f32
    %380 = vector.broadcast %cst_178 : f32 to vector<2x128xf32>
    %381 = arith.addf %380, %379 : vector<2x128xf32>
    %382 = arith.divf %380, %381 : vector<2x128xf32>
    %383 = vector.extract_strided_slice %343 {offsets = [0, 256], sizes = [2, 128], strides = [1, 1]} : vector<2x512xf32> to vector<2x128xf32>
    %384 = math.tanh %383 : vector<2x128xf32>
    %385 = vector.extract_strided_slice %343 {offsets = [0, 384], sizes = [2, 128], strides = [1, 1]} : vector<2x512xf32> to vector<2x128xf32>
    %386 = arith.negf %385 : vector<2x128xf32>
    %387 = math.exp %386 : vector<2x128xf32>
    %cst_179 = arith.constant 1.000000e+00 : f32
    %388 = vector.broadcast %cst_179 : f32 to vector<2x128xf32>
    %389 = arith.addf %388, %387 : vector<2x128xf32>
    %390 = arith.divf %388, %389 : vector<2x128xf32>
    %391 = arith.mulf %382, %370 : vector<2x128xf32>
    %392 = arith.mulf %376, %384 : vector<2x128xf32>
    %393 = arith.addf %391, %392 : vector<2x128xf32>
    %394 = math.tanh %393 : vector<2x128xf32>
    %395 = arith.mulf %390, %394 : vector<2x128xf32>
    %c0_180 = arith.constant 0 : index
    %c0_181 = arith.constant 0 : index
    %396 = vector.load %arg14[%c0_180, %c0_181] : memref<2x128xf32, #tpu.memory_space<vmem>>, vector<2x128xf32>
    tpu.vector_store %arg14[%c0_180, %c0_181], %369 {strides = array<i32>} : memref<2x128xf32, #tpu.memory_space<vmem>>, vector<2x128xf32>,
    %c0_182 = arith.constant 0 : index
    %c0_183 = arith.constant 0 : index
    %397 = vector.load %arg15[%c0_182, %c0_183] : memref<2x128xf32, #tpu.memory_space<vmem>>, vector<2x128xf32>
    tpu.vector_store %arg15[%c0_182, %c0_183], %367 {strides = array<i32>} : memref<2x128xf32, #tpu.memory_space<vmem>>, vector<2x128xf32>,
    %c0_184 = arith.constant 0 : index
    %c0_185 = arith.constant 0 : index
    %398 = vector.load %arg16[%c0_184, %c0_185] : memref<2x128xf32, #tpu.memory_space<vmem>>, vector<2x128xf32>
    tpu.vector_store %arg16[%c0_184, %c0_185], %395 {strides = array<i32>} : memref<2x128xf32, #tpu.memory_space<vmem>>, vector<2x128xf32>,
    %c0_186 = arith.constant 0 : index
    %c0_187 = arith.constant 0 : index
    %399 = vector.load %arg17[%c0_186, %c0_187] : memref<2x128xf32, #tpu.memory_space<vmem>>, vector<2x128xf32>
    tpu.vector_store %arg17[%c0_186, %c0_187], %393 {strides = array<i32>} : memref<2x128xf32, #tpu.memory_space<vmem>>, vector<2x128xf32>,
    %400 = arith.index_cast %c4_i32 : i32 to index
    %c0_188 = arith.constant 0 : index
    %c0_189 = arith.constant 0 : index
    %401 = vector.load %arg12[%400, %c0_188, %c0_189] : memref<8x2x128xf32, #tpu.memory_space<vmem>>, vector<1x2x128xf32>
    %402 = vector.shape_cast %401 : vector<1x2x128xf32> to vector<2x128xf32>
    %403 = vector.shape_cast %369 : vector<2x128xf32> to vector<1x2x128xf32>
    tpu.vector_store %arg12[%400, %c0_188, %c0_189], %403 {strides = array<i32>} : memref<8x2x128xf32, #tpu.memory_space<vmem>>, vector<1x2x128xf32>,
    %404 = arith.index_cast %331 : i32 to index
    %c0_190 = arith.constant 0 : index
    %c0_191 = arith.constant 0 : index
    %405 = vector.load %arg13[%404, %c0_190, %c0_191] : memref<8x2x128xf32, #tpu.memory_space<vmem>>, vector<1x2x128xf32>
    %406 = vector.shape_cast %405 : vector<1x2x128xf32> to vector<2x128xf32>
    %407 = vector.shape_cast %395 : vector<2x128xf32> to vector<1x2x128xf32>
    tpu.vector_store %arg13[%404, %c0_190, %c0_191], %407 {strides = array<i32>} : memref<8x2x128xf32, #tpu.memory_space<vmem>>, vector<1x2x128xf32>,
    %c5_i32 = arith.constant 5 : i32
    %c7_i32_192 = arith.constant 7 : i32
    %408 = arith.subi %c7_i32_192, %c5_i32 : i32
    %409 = arith.index_cast %c5_i32 : i32 to index
    %c0_193 = arith.constant 0 : index
    %c0_194 = arith.constant 0 : index
    %410 = vector.load %arg10[%409, %c0_193, %c0_194] : memref<8x2x512xf32, #tpu.memory_space<vmem>>, vector<1x2x512xf32>
    %411 = vector.shape_cast %410 : vector<1x2x512xf32> to vector<2x512xf32>
    %c0_195 = arith.constant 0 : index
    %c0_196 = arith.constant 0 : index
    %412 = vector.load %arg14[%c0_195, %c0_196] : memref<2x128xf32, #tpu.memory_space<vmem>>, vector<2x128xf32>
    %cst_197 = arith.constant dense<0.000000e+00> : vector<2x512xf32>
    %413 = tpu.matmul %412, %4, %cst_197 {dimension_numbers = #tpu.dot_dimension_numbers<[1], [0], [0], [1], [0, 0, 1, 1], [], []>} : vector<2x128xf32>, vector<128x512xf32>, vector<2x512xf32> -> vector<2x512xf32>
    %414 = arith.addf %411, %413 : vector<2x512xf32>
    %415 = arith.index_cast %408 : i32 to index
    %c0_198 = arith.constant 0 : index
    %c0_199 = arith.constant 0 : index
    %416 = vector.load %arg11[%415, %c0_198, %c0_199] : memref<8x2x512xf32, #tpu.memory_space<vmem>>, vector<1x2x512xf32>
    %417 = vector.shape_cast %416 : vector<1x2x512xf32> to vector<2x512xf32>
    %c0_200 = arith.constant 0 : index
    %c0_201 = arith.constant 0 : index
    %418 = vector.load %arg16[%c0_200, %c0_201] : memref<2x128xf32, #tpu.memory_space<vmem>>, vector<2x128xf32>
    %cst_202 = arith.constant dense<0.000000e+00> : vector<2x512xf32>
    %419 = tpu.matmul %418, %5, %cst_202 {dimension_numbers = #tpu.dot_dimension_numbers<[1], [0], [0], [1], [0, 0, 1, 1], [], []>} : vector<2x128xf32>, vector<128x512xf32>, vector<2x512xf32> -> vector<2x512xf32>
    %420 = arith.addf %417, %419 : vector<2x512xf32>
    %c0_203 = arith.constant 0 : index
    %c0_204 = arith.constant 0 : index
    %421 = vector.load %arg15[%c0_203, %c0_204] : memref<2x128xf32, #tpu.memory_space<vmem>>, vector<2x128xf32>
    %422 = vector.extract_strided_slice %414 {offsets = [0, 0], sizes = [2, 128], strides = [1, 1]} : vector<2x512xf32> to vector<2x128xf32>
    %423 = arith.negf %422 : vector<2x128xf32>
    %424 = math.exp %423 : vector<2x128xf32>
    %cst_205 = arith.constant 1.000000e+00 : f32
    %425 = vector.broadcast %cst_205 : f32 to vector<2x128xf32>
    %426 = arith.addf %425, %424 : vector<2x128xf32>
    %427 = arith.divf %425, %426 : vector<2x128xf32>
    %428 = vector.extract_strided_slice %414 {offsets = [0, 128], sizes = [2, 128], strides = [1, 1]} : vector<2x512xf32> to vector<2x128xf32>
    %429 = arith.negf %428 : vector<2x128xf32>
    %430 = math.exp %429 : vector<2x128xf32>
    %cst_206 = arith.constant 1.000000e+00 : f32
    %431 = vector.broadcast %cst_206 : f32 to vector<2x128xf32>
    %432 = arith.addf %431, %430 : vector<2x128xf32>
    %433 = arith.divf %431, %432 : vector<2x128xf32>
    %434 = vector.extract_strided_slice %414 {offsets = [0, 256], sizes = [2, 128], strides = [1, 1]} : vector<2x512xf32> to vector<2x128xf32>
    %435 = math.tanh %434 : vector<2x128xf32>
    %436 = vector.extract_strided_slice %414 {offsets = [0, 384], sizes = [2, 128], strides = [1, 1]} : vector<2x512xf32> to vector<2x128xf32>
    %437 = arith.negf %436 : vector<2x128xf32>
    %438 = math.exp %437 : vector<2x128xf32>
    %cst_207 = arith.constant 1.000000e+00 : f32
    %439 = vector.broadcast %cst_207 : f32 to vector<2x128xf32>
    %440 = arith.addf %439, %438 : vector<2x128xf32>
    %441 = arith.divf %439, %440 : vector<2x128xf32>
    %442 = arith.mulf %433, %421 : vector<2x128xf32>
    %443 = arith.mulf %427, %435 : vector<2x128xf32>
    %444 = arith.addf %442, %443 : vector<2x128xf32>
    %445 = math.tanh %444 : vector<2x128xf32>
    %446 = arith.mulf %441, %445 : vector<2x128xf32>
    %c0_208 = arith.constant 0 : index
    %c0_209 = arith.constant 0 : index
    %447 = vector.load %arg17[%c0_208, %c0_209] : memref<2x128xf32, #tpu.memory_space<vmem>>, vector<2x128xf32>
    %448 = vector.extract_strided_slice %420 {offsets = [0, 0], sizes = [2, 128], strides = [1, 1]} : vector<2x512xf32> to vector<2x128xf32>
    %449 = arith.negf %448 : vector<2x128xf32>
    %450 = math.exp %449 : vector<2x128xf32>
    %cst_210 = arith.constant 1.000000e+00 : f32
    %451 = vector.broadcast %cst_210 : f32 to vector<2x128xf32>
    %452 = arith.addf %451, %450 : vector<2x128xf32>
    %453 = arith.divf %451, %452 : vector<2x128xf32>
    %454 = vector.extract_strided_slice %420 {offsets = [0, 128], sizes = [2, 128], strides = [1, 1]} : vector<2x512xf32> to vector<2x128xf32>
    %455 = arith.negf %454 : vector<2x128xf32>
    %456 = math.exp %455 : vector<2x128xf32>
    %cst_211 = arith.constant 1.000000e+00 : f32
    %457 = vector.broadcast %cst_211 : f32 to vector<2x128xf32>
    %458 = arith.addf %457, %456 : vector<2x128xf32>
    %459 = arith.divf %457, %458 : vector<2x128xf32>
    %460 = vector.extract_strided_slice %420 {offsets = [0, 256], sizes = [2, 128], strides = [1, 1]} : vector<2x512xf32> to vector<2x128xf32>
    %461 = math.tanh %460 : vector<2x128xf32>
    %462 = vector.extract_strided_slice %420 {offsets = [0, 384], sizes = [2, 128], strides = [1, 1]} : vector<2x512xf32> to vector<2x128xf32>
    %463 = arith.negf %462 : vector<2x128xf32>
    %464 = math.exp %463 : vector<2x128xf32>
    %cst_212 = arith.constant 1.000000e+00 : f32
    %465 = vector.broadcast %cst_212 : f32 to vector<2x128xf32>
    %466 = arith.addf %465, %464 : vector<2x128xf32>
    %467 = arith.divf %465, %466 : vector<2x128xf32>
    %468 = arith.mulf %459, %447 : vector<2x128xf32>
    %469 = arith.mulf %453, %461 : vector<2x128xf32>
    %470 = arith.addf %468, %469 : vector<2x128xf32>
    %471 = math.tanh %470 : vector<2x128xf32>
    %472 = arith.mulf %467, %471 : vector<2x128xf32>
    %c0_213 = arith.constant 0 : index
    %c0_214 = arith.constant 0 : index
    %473 = vector.load %arg14[%c0_213, %c0_214] : memref<2x128xf32, #tpu.memory_space<vmem>>, vector<2x128xf32>
    tpu.vector_store %arg14[%c0_213, %c0_214], %446 {strides = array<i32>} : memref<2x128xf32, #tpu.memory_space<vmem>>, vector<2x128xf32>,
    %c0_215 = arith.constant 0 : index
    %c0_216 = arith.constant 0 : index
    %474 = vector.load %arg15[%c0_215, %c0_216] : memref<2x128xf32, #tpu.memory_space<vmem>>, vector<2x128xf32>
    tpu.vector_store %arg15[%c0_215, %c0_216], %444 {strides = array<i32>} : memref<2x128xf32, #tpu.memory_space<vmem>>, vector<2x128xf32>,
    %c0_217 = arith.constant 0 : index
    %c0_218 = arith.constant 0 : index
    %475 = vector.load %arg16[%c0_217, %c0_218] : memref<2x128xf32, #tpu.memory_space<vmem>>, vector<2x128xf32>
    tpu.vector_store %arg16[%c0_217, %c0_218], %472 {strides = array<i32>} : memref<2x128xf32, #tpu.memory_space<vmem>>, vector<2x128xf32>,
    %c0_219 = arith.constant 0 : index
    %c0_220 = arith.constant 0 : index
    %476 = vector.load %arg17[%c0_219, %c0_220] : memref<2x128xf32, #tpu.memory_space<vmem>>, vector<2x128xf32>
    tpu.vector_store %arg17[%c0_219, %c0_220], %470 {strides = array<i32>} : memref<2x128xf32, #tpu.memory_space<vmem>>, vector<2x128xf32>,
    %477 = arith.index_cast %c5_i32 : i32 to index
    %c0_221 = arith.constant 0 : index
    %c0_222 = arith.constant 0 : index
    %478 = vector.load %arg12[%477, %c0_221, %c0_222] : memref<8x2x128xf32, #tpu.memory_space<vmem>>, vector<1x2x128xf32>
    %479 = vector.shape_cast %478 : vector<1x2x128xf32> to vector<2x128xf32>
    %480 = vector.shape_cast %446 : vector<2x128xf32> to vector<1x2x128xf32>
    tpu.vector_store %arg12[%477, %c0_221, %c0_222], %480 {strides = array<i32>} : memref<8x2x128xf32, #tpu.memory_space<vmem>>, vector<1x2x128xf32>,
    %481 = arith.index_cast %408 : i32 to index
    %c0_223 = arith.constant 0 : index
    %c0_224 = arith.constant 0 : index
    %482 = vector.load %arg13[%481, %c0_223, %c0_224] : memref<8x2x128xf32, #tpu.memory_space<vmem>>, vector<1x2x128xf32>
    %483 = vector.shape_cast %482 : vector<1x2x128xf32> to vector<2x128xf32>
    %484 = vector.shape_cast %472 : vector<2x128xf32> to vector<1x2x128xf32>
    tpu.vector_store %arg13[%481, %c0_223, %c0_224], %484 {strides = array<i32>} : memref<8x2x128xf32, #tpu.memory_space<vmem>>, vector<1x2x128xf32>,
    %c6_i32 = arith.constant 6 : i32
    %c7_i32_225 = arith.constant 7 : i32
    %485 = arith.subi %c7_i32_225, %c6_i32 : i32
    %486 = arith.index_cast %c6_i32 : i32 to index
    %c0_226 = arith.constant 0 : index
    %c0_227 = arith.constant 0 : index
    %487 = vector.load %arg10[%486, %c0_226, %c0_227] : memref<8x2x512xf32, #tpu.memory_space<vmem>>, vector<1x2x512xf32>
    %488 = vector.shape_cast %487 : vector<1x2x512xf32> to vector<2x512xf32>
    %c0_228 = arith.constant 0 : index
    %c0_229 = arith.constant 0 : index
    %489 = vector.load %arg14[%c0_228, %c0_229] : memref<2x128xf32, #tpu.memory_space<vmem>>, vector<2x128xf32>
    %cst_230 = arith.constant dense<0.000000e+00> : vector<2x512xf32>
    %490 = tpu.matmul %489, %4, %cst_230 {dimension_numbers = #tpu.dot_dimension_numbers<[1], [0], [0], [1], [0, 0, 1, 1], [], []>} : vector<2x128xf32>, vector<128x512xf32>, vector<2x512xf32> -> vector<2x512xf32>
    %491 = arith.addf %488, %490 : vector<2x512xf32>
    %492 = arith.index_cast %485 : i32 to index
    %c0_231 = arith.constant 0 : index
    %c0_232 = arith.constant 0 : index
    %493 = vector.load %arg11[%492, %c0_231, %c0_232] : memref<8x2x512xf32, #tpu.memory_space<vmem>>, vector<1x2x512xf32>
    %494 = vector.shape_cast %493 : vector<1x2x512xf32> to vector<2x512xf32>
    %c0_233 = arith.constant 0 : index
    %c0_234 = arith.constant 0 : index
    %495 = vector.load %arg16[%c0_233, %c0_234] : memref<2x128xf32, #tpu.memory_space<vmem>>, vector<2x128xf32>
    %cst_235 = arith.constant dense<0.000000e+00> : vector<2x512xf32>
    %496 = tpu.matmul %495, %5, %cst_235 {dimension_numbers = #tpu.dot_dimension_numbers<[1], [0], [0], [1], [0, 0, 1, 1], [], []>} : vector<2x128xf32>, vector<128x512xf32>, vector<2x512xf32> -> vector<2x512xf32>
    %497 = arith.addf %494, %496 : vector<2x512xf32>
    %c0_236 = arith.constant 0 : index
    %c0_237 = arith.constant 0 : index
    %498 = vector.load %arg15[%c0_236, %c0_237] : memref<2x128xf32, #tpu.memory_space<vmem>>, vector<2x128xf32>
    %499 = vector.extract_strided_slice %491 {offsets = [0, 0], sizes = [2, 128], strides = [1, 1]} : vector<2x512xf32> to vector<2x128xf32>
    %500 = arith.negf %499 : vector<2x128xf32>
    %501 = math.exp %500 : vector<2x128xf32>
    %cst_238 = arith.constant 1.000000e+00 : f32
    %502 = vector.broadcast %cst_238 : f32 to vector<2x128xf32>
    %503 = arith.addf %502, %501 : vector<2x128xf32>
    %504 = arith.divf %502, %503 : vector<2x128xf32>
    %505 = vector.extract_strided_slice %491 {offsets = [0, 128], sizes = [2, 128], strides = [1, 1]} : vector<2x512xf32> to vector<2x128xf32>
    %506 = arith.negf %505 : vector<2x128xf32>
    %507 = math.exp %506 : vector<2x128xf32>
    %cst_239 = arith.constant 1.000000e+00 : f32
    %508 = vector.broadcast %cst_239 : f32 to vector<2x128xf32>
    %509 = arith.addf %508, %507 : vector<2x128xf32>
    %510 = arith.divf %508, %509 : vector<2x128xf32>
    %511 = vector.extract_strided_slice %491 {offsets = [0, 256], sizes = [2, 128], strides = [1, 1]} : vector<2x512xf32> to vector<2x128xf32>
    %512 = math.tanh %511 : vector<2x128xf32>
    %513 = vector.extract_strided_slice %491 {offsets = [0, 384], sizes = [2, 128], strides = [1, 1]} : vector<2x512xf32> to vector<2x128xf32>
    %514 = arith.negf %513 : vector<2x128xf32>
    %515 = math.exp %514 : vector<2x128xf32>
    %cst_240 = arith.constant 1.000000e+00 : f32
    %516 = vector.broadcast %cst_240 : f32 to vector<2x128xf32>
    %517 = arith.addf %516, %515 : vector<2x128xf32>
    %518 = arith.divf %516, %517 : vector<2x128xf32>
    %519 = arith.mulf %510, %498 : vector<2x128xf32>
    %520 = arith.mulf %504, %512 : vector<2x128xf32>
    %521 = arith.addf %519, %520 : vector<2x128xf32>
    %522 = math.tanh %521 : vector<2x128xf32>
    %523 = arith.mulf %518, %522 : vector<2x128xf32>
    %c0_241 = arith.constant 0 : index
    %c0_242 = arith.constant 0 : index
    %524 = vector.load %arg17[%c0_241, %c0_242] : memref<2x128xf32, #tpu.memory_space<vmem>>, vector<2x128xf32>
    %525 = vector.extract_strided_slice %497 {offsets = [0, 0], sizes = [2, 128], strides = [1, 1]} : vector<2x512xf32> to vector<2x128xf32>
    %526 = arith.negf %525 : vector<2x128xf32>
    %527 = math.exp %526 : vector<2x128xf32>
    %cst_243 = arith.constant 1.000000e+00 : f32
    %528 = vector.broadcast %cst_243 : f32 to vector<2x128xf32>
    %529 = arith.addf %528, %527 : vector<2x128xf32>
    %530 = arith.divf %528, %529 : vector<2x128xf32>
    %531 = vector.extract_strided_slice %497 {offsets = [0, 128], sizes = [2, 128], strides = [1, 1]} : vector<2x512xf32> to vector<2x128xf32>
    %532 = arith.negf %531 : vector<2x128xf32>
    %533 = math.exp %532 : vector<2x128xf32>
    %cst_244 = arith.constant 1.000000e+00 : f32
    %534 = vector.broadcast %cst_244 : f32 to vector<2x128xf32>
    %535 = arith.addf %534, %533 : vector<2x128xf32>
    %536 = arith.divf %534, %535 : vector<2x128xf32>
    %537 = vector.extract_strided_slice %497 {offsets = [0, 256], sizes = [2, 128], strides = [1, 1]} : vector<2x512xf32> to vector<2x128xf32>
    %538 = math.tanh %537 : vector<2x128xf32>
    %539 = vector.extract_strided_slice %497 {offsets = [0, 384], sizes = [2, 128], strides = [1, 1]} : vector<2x512xf32> to vector<2x128xf32>
    %540 = arith.negf %539 : vector<2x128xf32>
    %541 = math.exp %540 : vector<2x128xf32>
    %cst_245 = arith.constant 1.000000e+00 : f32
    %542 = vector.broadcast %cst_245 : f32 to vector<2x128xf32>
    %543 = arith.addf %542, %541 : vector<2x128xf32>
    %544 = arith.divf %542, %543 : vector<2x128xf32>
    %545 = arith.mulf %536, %524 : vector<2x128xf32>
    %546 = arith.mulf %530, %538 : vector<2x128xf32>
    %547 = arith.addf %545, %546 : vector<2x128xf32>
    %548 = math.tanh %547 : vector<2x128xf32>
    %549 = arith.mulf %544, %548 : vector<2x128xf32>
    %c0_246 = arith.constant 0 : index
    %c0_247 = arith.constant 0 : index
    %550 = vector.load %arg14[%c0_246, %c0_247] : memref<2x128xf32, #tpu.memory_space<vmem>>, vector<2x128xf32>
    tpu.vector_store %arg14[%c0_246, %c0_247], %523 {strides = array<i32>} : memref<2x128xf32, #tpu.memory_space<vmem>>, vector<2x128xf32>,
    %c0_248 = arith.constant 0 : index
    %c0_249 = arith.constant 0 : index
    %551 = vector.load %arg15[%c0_248, %c0_249] : memref<2x128xf32, #tpu.memory_space<vmem>>, vector<2x128xf32>
    tpu.vector_store %arg15[%c0_248, %c0_249], %521 {strides = array<i32>} : memref<2x128xf32, #tpu.memory_space<vmem>>, vector<2x128xf32>,
    %c0_250 = arith.constant 0 : index
    %c0_251 = arith.constant 0 : index
    %552 = vector.load %arg16[%c0_250, %c0_251] : memref<2x128xf32, #tpu.memory_space<vmem>>, vector<2x128xf32>
    tpu.vector_store %arg16[%c0_250, %c0_251], %549 {strides = array<i32>} : memref<2x128xf32, #tpu.memory_space<vmem>>, vector<2x128xf32>,
    %c0_252 = arith.constant 0 : index
    %c0_253 = arith.constant 0 : index
    %553 = vector.load %arg17[%c0_252, %c0_253] : memref<2x128xf32, #tpu.memory_space<vmem>>, vector<2x128xf32>
    tpu.vector_store %arg17[%c0_252, %c0_253], %547 {strides = array<i32>} : memref<2x128xf32, #tpu.memory_space<vmem>>, vector<2x128xf32>,
    %554 = arith.index_cast %c6_i32 : i32 to index
    %c0_254 = arith.constant 0 : index
    %c0_255 = arith.constant 0 : index
    %555 = vector.load %arg12[%554, %c0_254, %c0_255] : memref<8x2x128xf32, #tpu.memory_space<vmem>>, vector<1x2x128xf32>
    %556 = vector.shape_cast %555 : vector<1x2x128xf32> to vector<2x128xf32>
    %557 = vector.shape_cast %523 : vector<2x128xf32> to vector<1x2x128xf32>
    tpu.vector_store %arg12[%554, %c0_254, %c0_255], %557 {strides = array<i32>} : memref<8x2x128xf32, #tpu.memory_space<vmem>>, vector<1x2x128xf32>,
    %558 = arith.index_cast %485 : i32 to index
    %c0_256 = arith.constant 0 : index
    %c0_257 = arith.constant 0 : index
    %559 = vector.load %arg13[%558, %c0_256, %c0_257] : memref<8x2x128xf32, #tpu.memory_space<vmem>>, vector<1x2x128xf32>
    %560 = vector.shape_cast %559 : vector<1x2x128xf32> to vector<2x128xf32>
    %561 = vector.shape_cast %549 : vector<2x128xf32> to vector<1x2x128xf32>
    tpu.vector_store %arg13[%558, %c0_256, %c0_257], %561 {strides = array<i32>} : memref<8x2x128xf32, #tpu.memory_space<vmem>>, vector<1x2x128xf32>,
    %c7_i32_258 = arith.constant 7 : i32
    %c7_i32_259 = arith.constant 7 : i32
    %562 = arith.subi %c7_i32_259, %c7_i32_258 : i32
    %563 = arith.index_cast %c7_i32_258 : i32 to index
    %c0_260 = arith.constant 0 : index
    %c0_261 = arith.constant 0 : index
    %564 = vector.load %arg10[%563, %c0_260, %c0_261] : memref<8x2x512xf32, #tpu.memory_space<vmem>>, vector<1x2x512xf32>
    %565 = vector.shape_cast %564 : vector<1x2x512xf32> to vector<2x512xf32>
    %c0_262 = arith.constant 0 : index
    %c0_263 = arith.constant 0 : index
    %566 = vector.load %arg14[%c0_262, %c0_263] : memref<2x128xf32, #tpu.memory_space<vmem>>, vector<2x128xf32>
    %cst_264 = arith.constant dense<0.000000e+00> : vector<2x512xf32>
    %567 = tpu.matmul %566, %4, %cst_264 {dimension_numbers = #tpu.dot_dimension_numbers<[1], [0], [0], [1], [0, 0, 1, 1], [], []>} : vector<2x128xf32>, vector<128x512xf32>, vector<2x512xf32> -> vector<2x512xf32>
    %568 = arith.addf %565, %567 : vector<2x512xf32>
    %569 = arith.index_cast %562 : i32 to index
    %c0_265 = arith.constant 0 : index
    %c0_266 = arith.constant 0 : index
    %570 = vector.load %arg11[%569, %c0_265, %c0_266] : memref<8x2x512xf32, #tpu.memory_space<vmem>>, vector<1x2x512xf32>
    %571 = vector.shape_cast %570 : vector<1x2x512xf32> to vector<2x512xf32>
    %c0_267 = arith.constant 0 : index
    %c0_268 = arith.constant 0 : index
    %572 = vector.load %arg16[%c0_267, %c0_268] : memref<2x128xf32, #tpu.memory_space<vmem>>, vector<2x128xf32>
    %cst_269 = arith.constant dense<0.000000e+00> : vector<2x512xf32>
    %573 = tpu.matmul %572, %5, %cst_269 {dimension_numbers = #tpu.dot_dimension_numbers<[1], [0], [0], [1], [0, 0, 1, 1], [], []>} : vector<2x128xf32>, vector<128x512xf32>, vector<2x512xf32> -> vector<2x512xf32>
    %574 = arith.addf %571, %573 : vector<2x512xf32>
    %c0_270 = arith.constant 0 : index
    %c0_271 = arith.constant 0 : index
    %575 = vector.load %arg15[%c0_270, %c0_271] : memref<2x128xf32, #tpu.memory_space<vmem>>, vector<2x128xf32>
    %576 = vector.extract_strided_slice %568 {offsets = [0, 0], sizes = [2, 128], strides = [1, 1]} : vector<2x512xf32> to vector<2x128xf32>
    %577 = arith.negf %576 : vector<2x128xf32>
    %578 = math.exp %577 : vector<2x128xf32>
    %cst_272 = arith.constant 1.000000e+00 : f32
    %579 = vector.broadcast %cst_272 : f32 to vector<2x128xf32>
    %580 = arith.addf %579, %578 : vector<2x128xf32>
    %581 = arith.divf %579, %580 : vector<2x128xf32>
    %582 = vector.extract_strided_slice %568 {offsets = [0, 128], sizes = [2, 128], strides = [1, 1]} : vector<2x512xf32> to vector<2x128xf32>
    %583 = arith.negf %582 : vector<2x128xf32>
    %584 = math.exp %583 : vector<2x128xf32>
    %cst_273 = arith.constant 1.000000e+00 : f32
    %585 = vector.broadcast %cst_273 : f32 to vector<2x128xf32>
    %586 = arith.addf %585, %584 : vector<2x128xf32>
    %587 = arith.divf %585, %586 : vector<2x128xf32>
    %588 = vector.extract_strided_slice %568 {offsets = [0, 256], sizes = [2, 128], strides = [1, 1]} : vector<2x512xf32> to vector<2x128xf32>
    %589 = math.tanh %588 : vector<2x128xf32>
    %590 = vector.extract_strided_slice %568 {offsets = [0, 384], sizes = [2, 128], strides = [1, 1]} : vector<2x512xf32> to vector<2x128xf32>
    %591 = arith.negf %590 : vector<2x128xf32>
    %592 = math.exp %591 : vector<2x128xf32>
    %cst_274 = arith.constant 1.000000e+00 : f32
    %593 = vector.broadcast %cst_274 : f32 to vector<2x128xf32>
    %594 = arith.addf %593, %592 : vector<2x128xf32>
    %595 = arith.divf %593, %594 : vector<2x128xf32>
    %596 = arith.mulf %587, %575 : vector<2x128xf32>
    %597 = arith.mulf %581, %589 : vector<2x128xf32>
    %598 = arith.addf %596, %597 : vector<2x128xf32>
    %599 = math.tanh %598 : vector<2x128xf32>
    %600 = arith.mulf %595, %599 : vector<2x128xf32>
    %c0_275 = arith.constant 0 : index
    %c0_276 = arith.constant 0 : index
    %601 = vector.load %arg17[%c0_275, %c0_276] : memref<2x128xf32, #tpu.memory_space<vmem>>, vector<2x128xf32>
    %602 = vector.extract_strided_slice %574 {offsets = [0, 0], sizes = [2, 128], strides = [1, 1]} : vector<2x512xf32> to vector<2x128xf32>
    %603 = arith.negf %602 : vector<2x128xf32>
    %604 = math.exp %603 : vector<2x128xf32>
    %cst_277 = arith.constant 1.000000e+00 : f32
    %605 = vector.broadcast %cst_277 : f32 to vector<2x128xf32>
    %606 = arith.addf %605, %604 : vector<2x128xf32>
    %607 = arith.divf %605, %606 : vector<2x128xf32>
    %608 = vector.extract_strided_slice %574 {offsets = [0, 128], sizes = [2, 128], strides = [1, 1]} : vector<2x512xf32> to vector<2x128xf32>
    %609 = arith.negf %608 : vector<2x128xf32>
    %610 = math.exp %609 : vector<2x128xf32>
    %cst_278 = arith.constant 1.000000e+00 : f32
    %611 = vector.broadcast %cst_278 : f32 to vector<2x128xf32>
    %612 = arith.addf %611, %610 : vector<2x128xf32>
    %613 = arith.divf %611, %612 : vector<2x128xf32>
    %614 = vector.extract_strided_slice %574 {offsets = [0, 256], sizes = [2, 128], strides = [1, 1]} : vector<2x512xf32> to vector<2x128xf32>
    %615 = math.tanh %614 : vector<2x128xf32>
    %616 = vector.extract_strided_slice %574 {offsets = [0, 384], sizes = [2, 128], strides = [1, 1]} : vector<2x512xf32> to vector<2x128xf32>
    %617 = arith.negf %616 : vector<2x128xf32>
    %618 = math.exp %617 : vector<2x128xf32>
    %cst_279 = arith.constant 1.000000e+00 : f32
    %619 = vector.broadcast %cst_279 : f32 to vector<2x128xf32>
    %620 = arith.addf %619, %618 : vector<2x128xf32>
    %621 = arith.divf %619, %620 : vector<2x128xf32>
    %622 = arith.mulf %613, %601 : vector<2x128xf32>
    %623 = arith.mulf %607, %615 : vector<2x128xf32>
    %624 = arith.addf %622, %623 : vector<2x128xf32>
    %625 = math.tanh %624 : vector<2x128xf32>
    %626 = arith.mulf %621, %625 : vector<2x128xf32>
    %c0_280 = arith.constant 0 : index
    %c0_281 = arith.constant 0 : index
    %627 = vector.load %arg14[%c0_280, %c0_281] : memref<2x128xf32, #tpu.memory_space<vmem>>, vector<2x128xf32>
    tpu.vector_store %arg14[%c0_280, %c0_281], %600 {strides = array<i32>} : memref<2x128xf32, #tpu.memory_space<vmem>>, vector<2x128xf32>,
    %c0_282 = arith.constant 0 : index
    %c0_283 = arith.constant 0 : index
    %628 = vector.load %arg15[%c0_282, %c0_283] : memref<2x128xf32, #tpu.memory_space<vmem>>, vector<2x128xf32>
    tpu.vector_store %arg15[%c0_282, %c0_283], %598 {strides = array<i32>} : memref<2x128xf32, #tpu.memory_space<vmem>>, vector<2x128xf32>,
    %c0_284 = arith.constant 0 : index
    %c0_285 = arith.constant 0 : index
    %629 = vector.load %arg16[%c0_284, %c0_285] : memref<2x128xf32, #tpu.memory_space<vmem>>, vector<2x128xf32>
    tpu.vector_store %arg16[%c0_284, %c0_285], %626 {strides = array<i32>} : memref<2x128xf32, #tpu.memory_space<vmem>>, vector<2x128xf32>,
    %c0_286 = arith.constant 0 : index
    %c0_287 = arith.constant 0 : index
    %630 = vector.load %arg17[%c0_286, %c0_287] : memref<2x128xf32, #tpu.memory_space<vmem>>, vector<2x128xf32>
    tpu.vector_store %arg17[%c0_286, %c0_287], %624 {strides = array<i32>} : memref<2x128xf32, #tpu.memory_space<vmem>>, vector<2x128xf32>,
    %631 = arith.index_cast %c7_i32_258 : i32 to index
    %c0_288 = arith.constant 0 : index
    %c0_289 = arith.constant 0 : index
    %632 = vector.load %arg12[%631, %c0_288, %c0_289] : memref<8x2x128xf32, #tpu.memory_space<vmem>>, vector<1x2x128xf32>
    %633 = vector.shape_cast %632 : vector<1x2x128xf32> to vector<2x128xf32>
    %634 = vector.shape_cast %600 : vector<2x128xf32> to vector<1x2x128xf32>
    tpu.vector_store %arg12[%631, %c0_288, %c0_289], %634 {strides = array<i32>} : memref<8x2x128xf32, #tpu.memory_space<vmem>>, vector<1x2x128xf32>,
    %635 = arith.index_cast %562 : i32 to index
    %c0_290 = arith.constant 0 : index
    %c0_291 = arith.constant 0 : index
    %636 = vector.load %arg13[%635, %c0_290, %c0_291] : memref<8x2x128xf32, #tpu.memory_space<vmem>>, vector<1x2x128xf32>
    %637 = vector.shape_cast %636 : vector<1x2x128xf32> to vector<2x128xf32>
    %638 = vector.shape_cast %626 : vector<2x128xf32> to vector<1x2x128xf32>
    tpu.vector_store %arg13[%635, %c0_290, %c0_291], %638 {strides = array<i32>} : memref<8x2x128xf32, #tpu.memory_space<vmem>>, vector<1x2x128xf32>,
    %c8_i32 = arith.constant 8 : i32
    %c0_292 = arith.constant 0 : index
    %c0_293 = arith.constant 0 : index
    %c0_294 = arith.constant 0 : index
    %639 = vector.load %arg12[%c0_292, %c0_293, %c0_294] : memref<8x2x128xf32, #tpu.memory_space<vmem>>, vector<8x2x128xf32>
    %c0_295 = arith.constant 0 : index
    %c0_296 = arith.constant 0 : index
    %c0_297 = arith.constant 0 : index
    %640 = vector.load %arg13[%c0_295, %c0_296, %c0_297] : memref<8x2x128xf32, #tpu.memory_space<vmem>>, vector<8x2x128xf32>
    %641 = tpu.concatenate %639, %640 in 2 : vector<8x2x128xf32>, vector<8x2x128xf32> -> vector<8x2x256xf32>
    %642 = vector.shape_cast %641 : vector<8x2x256xf32> to vector<16x256xf32>
    %c0_298 = arith.constant 0 : index
    %c0_299 = arith.constant 0 : index
    %643 = vector.load %arg5[%c0_298, %c0_299] : memref<256x1024xf32, #tpu.memory_space<vmem>>, vector<256x1024xf32>
    %c0_300 = arith.constant 0 : index
    %c0_301 = arith.constant 0 : index
    %644 = vector.load %arg8[%c0_300, %c0_301] : memref<1x1024xf32, #tpu.memory_space<vmem>>, vector<1x1024xf32>
    %c0_302 = arith.constant 0 : index
    %c0_303 = arith.constant 0 : index
    %645 = vector.load %arg6[%c0_302, %c0_303] : memref<128x512xf32, #tpu.memory_space<vmem>>, vector<128x512xf32>
    %c0_304 = arith.constant 0 : index
    %c0_305 = arith.constant 0 : index
    %646 = vector.load %arg7[%c0_304, %c0_305] : memref<128x512xf32, #tpu.memory_space<vmem>>, vector<128x512xf32>
    %cst_306 = arith.constant dense<0.000000e+00> : vector<16x1024xf32>
    %647 = tpu.matmul %642, %643, %cst_306 {dimension_numbers = #tpu.dot_dimension_numbers<[1], [0], [0], [1], [0, 0, 1, 1], [], []>} : vector<16x256xf32>, vector<256x1024xf32>, vector<16x1024xf32> -> vector<16x1024xf32>
    %648 = vector.broadcast %644 : vector<1x1024xf32> to vector<16x1024xf32>
    %649 = arith.addf %647, %648 : vector<16x1024xf32>
    %650 = vector.extract_strided_slice %649 {offsets = [0, 0], sizes = [16, 512], strides = [1, 1]} : vector<16x1024xf32> to vector<16x512xf32>
    %651 = vector.shape_cast %650 : vector<16x512xf32> to vector<8x2x512xf32>
    %c0_307 = arith.constant 0 : index
    %c0_308 = arith.constant 0 : index
    %c0_309 = arith.constant 0 : index
    %652 = vector.load %arg10[%c0_307, %c0_308, %c0_309] : memref<8x2x512xf32, #tpu.memory_space<vmem>>, vector<8x2x512xf32>
    tpu.vector_store %arg10[%c0_307, %c0_308, %c0_309], %651 {strides = array<i32>} : memref<8x2x512xf32, #tpu.memory_space<vmem>>, vector<8x2x512xf32>,
    %653 = vector.extract_strided_slice %649 {offsets = [0, 512], sizes = [16, 512], strides = [1, 1]} : vector<16x1024xf32> to vector<16x512xf32>
    %654 = vector.shape_cast %653 : vector<16x512xf32> to vector<8x2x512xf32>
    %c0_310 = arith.constant 0 : index
    %c0_311 = arith.constant 0 : index
    %c0_312 = arith.constant 0 : index
    %655 = vector.load %arg11[%c0_310, %c0_311, %c0_312] : memref<8x2x512xf32, #tpu.memory_space<vmem>>, vector<8x2x512xf32>
    tpu.vector_store %arg11[%c0_310, %c0_311, %c0_312], %654 {strides = array<i32>} : memref<8x2x512xf32, #tpu.memory_space<vmem>>, vector<8x2x512xf32>,
    %cst_313 = arith.constant 0.000000e+00 : f32
    %656 = vector.broadcast %cst_313 : f32 to vector<2x128xf32>
    %c0_314 = arith.constant 0 : index
    %c0_315 = arith.constant 0 : index
    %657 = vector.load %arg14[%c0_314, %c0_315] : memref<2x128xf32, #tpu.memory_space<vmem>>, vector<2x128xf32>
    tpu.vector_store %arg14[%c0_314, %c0_315], %656 {strides = array<i32>} : memref<2x128xf32, #tpu.memory_space<vmem>>, vector<2x128xf32>,
    %cst_316 = arith.constant 0.000000e+00 : f32
    %658 = vector.broadcast %cst_316 : f32 to vector<2x128xf32>
    %c0_317 = arith.constant 0 : index
    %c0_318 = arith.constant 0 : index
    %659 = vector.load %arg15[%c0_317, %c0_318] : memref<2x128xf32, #tpu.memory_space<vmem>>, vector<2x128xf32>
    tpu.vector_store %arg15[%c0_317, %c0_318], %658 {strides = array<i32>} : memref<2x128xf32, #tpu.memory_space<vmem>>, vector<2x128xf32>,
    %cst_319 = arith.constant 0.000000e+00 : f32
    %660 = vector.broadcast %cst_319 : f32 to vector<2x128xf32>
    %c0_320 = arith.constant 0 : index
    %c0_321 = arith.constant 0 : index
    %661 = vector.load %arg16[%c0_320, %c0_321] : memref<2x128xf32, #tpu.memory_space<vmem>>, vector<2x128xf32>
    tpu.vector_store %arg16[%c0_320, %c0_321], %660 {strides = array<i32>} : memref<2x128xf32, #tpu.memory_space<vmem>>, vector<2x128xf32>,
    %cst_322 = arith.constant 0.000000e+00 : f32
    %662 = vector.broadcast %cst_322 : f32 to vector<2x128xf32>
    %c0_323 = arith.constant 0 : index
    %c0_324 = arith.constant 0 : index
    %663 = vector.load %arg17[%c0_323, %c0_324] : memref<2x128xf32, #tpu.memory_space<vmem>>, vector<2x128xf32>
    tpu.vector_store %arg17[%c0_323, %c0_324], %662 {strides = array<i32>} : memref<2x128xf32, #tpu.memory_space<vmem>>, vector<2x128xf32>,
    %c0_i32_325 = arith.constant 0 : i32
    %c7_i32_326 = arith.constant 7 : i32
    %664 = arith.subi %c7_i32_326, %c0_i32_325 : i32
    %665 = arith.index_cast %c0_i32_325 : i32 to index
    %c0_327 = arith.constant 0 : index
    %c0_328 = arith.constant 0 : index
    %666 = vector.load %arg10[%665, %c0_327, %c0_328] : memref<8x2x512xf32, #tpu.memory_space<vmem>>, vector<1x2x512xf32>
    %667 = vector.shape_cast %666 : vector<1x2x512xf32> to vector<2x512xf32>
    %c0_329 = arith.constant 0 : index
    %c0_330 = arith.constant 0 : index
    %668 = vector.load %arg14[%c0_329, %c0_330] : memref<2x128xf32, #tpu.memory_space<vmem>>, vector<2x128xf32>
    %cst_331 = arith.constant dense<0.000000e+00> : vector<2x512xf32>
    %669 = tpu.matmul %668, %645, %cst_331 {dimension_numbers = #tpu.dot_dimension_numbers<[1], [0], [0], [1], [0, 0, 1, 1], [], []>} : vector<2x128xf32>, vector<128x512xf32>, vector<2x512xf32> -> vector<2x512xf32>
    %670 = arith.addf %667, %669 : vector<2x512xf32>
    %671 = arith.index_cast %664 : i32 to index
    %c0_332 = arith.constant 0 : index
    %c0_333 = arith.constant 0 : index
    %672 = vector.load %arg11[%671, %c0_332, %c0_333] : memref<8x2x512xf32, #tpu.memory_space<vmem>>, vector<1x2x512xf32>
    %673 = vector.shape_cast %672 : vector<1x2x512xf32> to vector<2x512xf32>
    %c0_334 = arith.constant 0 : index
    %c0_335 = arith.constant 0 : index
    %674 = vector.load %arg16[%c0_334, %c0_335] : memref<2x128xf32, #tpu.memory_space<vmem>>, vector<2x128xf32>
    %cst_336 = arith.constant dense<0.000000e+00> : vector<2x512xf32>
    %675 = tpu.matmul %674, %646, %cst_336 {dimension_numbers = #tpu.dot_dimension_numbers<[1], [0], [0], [1], [0, 0, 1, 1], [], []>} : vector<2x128xf32>, vector<128x512xf32>, vector<2x512xf32> -> vector<2x512xf32>
    %676 = arith.addf %673, %675 : vector<2x512xf32>
    %c0_337 = arith.constant 0 : index
    %c0_338 = arith.constant 0 : index
    %677 = vector.load %arg15[%c0_337, %c0_338] : memref<2x128xf32, #tpu.memory_space<vmem>>, vector<2x128xf32>
    %678 = vector.extract_strided_slice %670 {offsets = [0, 0], sizes = [2, 128], strides = [1, 1]} : vector<2x512xf32> to vector<2x128xf32>
    %679 = arith.negf %678 : vector<2x128xf32>
    %680 = math.exp %679 : vector<2x128xf32>
    %cst_339 = arith.constant 1.000000e+00 : f32
    %681 = vector.broadcast %cst_339 : f32 to vector<2x128xf32>
    %682 = arith.addf %681, %680 : vector<2x128xf32>
    %683 = arith.divf %681, %682 : vector<2x128xf32>
    %684 = vector.extract_strided_slice %670 {offsets = [0, 128], sizes = [2, 128], strides = [1, 1]} : vector<2x512xf32> to vector<2x128xf32>
    %685 = arith.negf %684 : vector<2x128xf32>
    %686 = math.exp %685 : vector<2x128xf32>
    %cst_340 = arith.constant 1.000000e+00 : f32
    %687 = vector.broadcast %cst_340 : f32 to vector<2x128xf32>
    %688 = arith.addf %687, %686 : vector<2x128xf32>
    %689 = arith.divf %687, %688 : vector<2x128xf32>
    %690 = vector.extract_strided_slice %670 {offsets = [0, 256], sizes = [2, 128], strides = [1, 1]} : vector<2x512xf32> to vector<2x128xf32>
    %691 = math.tanh %690 : vector<2x128xf32>
    %692 = vector.extract_strided_slice %670 {offsets = [0, 384], sizes = [2, 128], strides = [1, 1]} : vector<2x512xf32> to vector<2x128xf32>
    %693 = arith.negf %692 : vector<2x128xf32>
    %694 = math.exp %693 : vector<2x128xf32>
    %cst_341 = arith.constant 1.000000e+00 : f32
    %695 = vector.broadcast %cst_341 : f32 to vector<2x128xf32>
    %696 = arith.addf %695, %694 : vector<2x128xf32>
    %697 = arith.divf %695, %696 : vector<2x128xf32>
    %698 = arith.mulf %689, %677 : vector<2x128xf32>
    %699 = arith.mulf %683, %691 : vector<2x128xf32>
    %700 = arith.addf %698, %699 : vector<2x128xf32>
    %701 = math.tanh %700 : vector<2x128xf32>
    %702 = arith.mulf %697, %701 : vector<2x128xf32>
    %c0_342 = arith.constant 0 : index
    %c0_343 = arith.constant 0 : index
    %703 = vector.load %arg17[%c0_342, %c0_343] : memref<2x128xf32, #tpu.memory_space<vmem>>, vector<2x128xf32>
    %704 = vector.extract_strided_slice %676 {offsets = [0, 0], sizes = [2, 128], strides = [1, 1]} : vector<2x512xf32> to vector<2x128xf32>
    %705 = arith.negf %704 : vector<2x128xf32>
    %706 = math.exp %705 : vector<2x128xf32>
    %cst_344 = arith.constant 1.000000e+00 : f32
    %707 = vector.broadcast %cst_344 : f32 to vector<2x128xf32>
    %708 = arith.addf %707, %706 : vector<2x128xf32>
    %709 = arith.divf %707, %708 : vector<2x128xf32>
    %710 = vector.extract_strided_slice %676 {offsets = [0, 128], sizes = [2, 128], strides = [1, 1]} : vector<2x512xf32> to vector<2x128xf32>
    %711 = arith.negf %710 : vector<2x128xf32>
    %712 = math.exp %711 : vector<2x128xf32>
    %cst_345 = arith.constant 1.000000e+00 : f32
    %713 = vector.broadcast %cst_345 : f32 to vector<2x128xf32>
    %714 = arith.addf %713, %712 : vector<2x128xf32>
    %715 = arith.divf %713, %714 : vector<2x128xf32>
    %716 = vector.extract_strided_slice %676 {offsets = [0, 256], sizes = [2, 128], strides = [1, 1]} : vector<2x512xf32> to vector<2x128xf32>
    %717 = math.tanh %716 : vector<2x128xf32>
    %718 = vector.extract_strided_slice %676 {offsets = [0, 384], sizes = [2, 128], strides = [1, 1]} : vector<2x512xf32> to vector<2x128xf32>
    %719 = arith.negf %718 : vector<2x128xf32>
    %720 = math.exp %719 : vector<2x128xf32>
    %cst_346 = arith.constant 1.000000e+00 : f32
    %721 = vector.broadcast %cst_346 : f32 to vector<2x128xf32>
    %722 = arith.addf %721, %720 : vector<2x128xf32>
    %723 = arith.divf %721, %722 : vector<2x128xf32>
    %724 = arith.mulf %715, %703 : vector<2x128xf32>
    %725 = arith.mulf %709, %717 : vector<2x128xf32>
    %726 = arith.addf %724, %725 : vector<2x128xf32>
    %727 = math.tanh %726 : vector<2x128xf32>
    %728 = arith.mulf %723, %727 : vector<2x128xf32>
    %c0_347 = arith.constant 0 : index
    %c0_348 = arith.constant 0 : index
    %729 = vector.load %arg14[%c0_347, %c0_348] : memref<2x128xf32, #tpu.memory_space<vmem>>, vector<2x128xf32>
    tpu.vector_store %arg14[%c0_347, %c0_348], %702 {strides = array<i32>} : memref<2x128xf32, #tpu.memory_space<vmem>>, vector<2x128xf32>,
    %c0_349 = arith.constant 0 : index
    %c0_350 = arith.constant 0 : index
    %730 = vector.load %arg15[%c0_349, %c0_350] : memref<2x128xf32, #tpu.memory_space<vmem>>, vector<2x128xf32>
    tpu.vector_store %arg15[%c0_349, %c0_350], %700 {strides = array<i32>} : memref<2x128xf32, #tpu.memory_space<vmem>>, vector<2x128xf32>,
    %c0_351 = arith.constant 0 : index
    %c0_352 = arith.constant 0 : index
    %731 = vector.load %arg16[%c0_351, %c0_352] : memref<2x128xf32, #tpu.memory_space<vmem>>, vector<2x128xf32>
    tpu.vector_store %arg16[%c0_351, %c0_352], %728 {strides = array<i32>} : memref<2x128xf32, #tpu.memory_space<vmem>>, vector<2x128xf32>,
    %c0_353 = arith.constant 0 : index
    %c0_354 = arith.constant 0 : index
    %732 = vector.load %arg17[%c0_353, %c0_354] : memref<2x128xf32, #tpu.memory_space<vmem>>, vector<2x128xf32>
    tpu.vector_store %arg17[%c0_353, %c0_354], %726 {strides = array<i32>} : memref<2x128xf32, #tpu.memory_space<vmem>>, vector<2x128xf32>,
    %733 = arith.index_cast %c0_i32_325 : i32 to index
    %c0_355 = arith.constant 0 : index
    %c0_356 = arith.constant 0 : index
    %734 = vector.load %arg12[%733, %c0_355, %c0_356] : memref<8x2x128xf32, #tpu.memory_space<vmem>>, vector<1x2x128xf32>
    %735 = vector.shape_cast %734 : vector<1x2x128xf32> to vector<2x128xf32>
    %736 = vector.shape_cast %702 : vector<2x128xf32> to vector<1x2x128xf32>
    tpu.vector_store %arg12[%733, %c0_355, %c0_356], %736 {strides = array<i32>} : memref<8x2x128xf32, #tpu.memory_space<vmem>>, vector<1x2x128xf32>,
    %737 = arith.index_cast %664 : i32 to index
    %c0_357 = arith.constant 0 : index
    %c0_358 = arith.constant 0 : index
    %738 = vector.load %arg13[%737, %c0_357, %c0_358] : memref<8x2x128xf32, #tpu.memory_space<vmem>>, vector<1x2x128xf32>
    %739 = vector.shape_cast %738 : vector<1x2x128xf32> to vector<2x128xf32>
    %740 = vector.shape_cast %728 : vector<2x128xf32> to vector<1x2x128xf32>
    tpu.vector_store %arg13[%737, %c0_357, %c0_358], %740 {strides = array<i32>} : memref<8x2x128xf32, #tpu.memory_space<vmem>>, vector<1x2x128xf32>,
    %c1_i32_359 = arith.constant 1 : i32
    %c7_i32_360 = arith.constant 7 : i32
    %741 = arith.subi %c7_i32_360, %c1_i32_359 : i32
    %742 = arith.index_cast %c1_i32_359 : i32 to index
    %c0_361 = arith.constant 0 : index
    %c0_362 = arith.constant 0 : index
    %743 = vector.load %arg10[%742, %c0_361, %c0_362] : memref<8x2x512xf32, #tpu.memory_space<vmem>>, vector<1x2x512xf32>
    %744 = vector.shape_cast %743 : vector<1x2x512xf32> to vector<2x512xf32>
    %c0_363 = arith.constant 0 : index
    %c0_364 = arith.constant 0 : index
    %745 = vector.load %arg14[%c0_363, %c0_364] : memref<2x128xf32, #tpu.memory_space<vmem>>, vector<2x128xf32>
    %cst_365 = arith.constant dense<0.000000e+00> : vector<2x512xf32>
    %746 = tpu.matmul %745, %645, %cst_365 {dimension_numbers = #tpu.dot_dimension_numbers<[1], [0], [0], [1], [0, 0, 1, 1], [], []>} : vector<2x128xf32>, vector<128x512xf32>, vector<2x512xf32> -> vector<2x512xf32>
    %747 = arith.addf %744, %746 : vector<2x512xf32>
    %748 = arith.index_cast %741 : i32 to index
    %c0_366 = arith.constant 0 : index
    %c0_367 = arith.constant 0 : index
    %749 = vector.load %arg11[%748, %c0_366, %c0_367] : memref<8x2x512xf32, #tpu.memory_space<vmem>>, vector<1x2x512xf32>
    %750 = vector.shape_cast %749 : vector<1x2x512xf32> to vector<2x512xf32>
    %c0_368 = arith.constant 0 : index
    %c0_369 = arith.constant 0 : index
    %751 = vector.load %arg16[%c0_368, %c0_369] : memref<2x128xf32, #tpu.memory_space<vmem>>, vector<2x128xf32>
    %cst_370 = arith.constant dense<0.000000e+00> : vector<2x512xf32>
    %752 = tpu.matmul %751, %646, %cst_370 {dimension_numbers = #tpu.dot_dimension_numbers<[1], [0], [0], [1], [0, 0, 1, 1], [], []>} : vector<2x128xf32>, vector<128x512xf32>, vector<2x512xf32> -> vector<2x512xf32>
    %753 = arith.addf %750, %752 : vector<2x512xf32>
    %c0_371 = arith.constant 0 : index
    %c0_372 = arith.constant 0 : index
    %754 = vector.load %arg15[%c0_371, %c0_372] : memref<2x128xf32, #tpu.memory_space<vmem>>, vector<2x128xf32>
    %755 = vector.extract_strided_slice %747 {offsets = [0, 0], sizes = [2, 128], strides = [1, 1]} : vector<2x512xf32> to vector<2x128xf32>
    %756 = arith.negf %755 : vector<2x128xf32>
    %757 = math.exp %756 : vector<2x128xf32>
    %cst_373 = arith.constant 1.000000e+00 : f32
    %758 = vector.broadcast %cst_373 : f32 to vector<2x128xf32>
    %759 = arith.addf %758, %757 : vector<2x128xf32>
    %760 = arith.divf %758, %759 : vector<2x128xf32>
    %761 = vector.extract_strided_slice %747 {offsets = [0, 128], sizes = [2, 128], strides = [1, 1]} : vector<2x512xf32> to vector<2x128xf32>
    %762 = arith.negf %761 : vector<2x128xf32>
    %763 = math.exp %762 : vector<2x128xf32>
    %cst_374 = arith.constant 1.000000e+00 : f32
    %764 = vector.broadcast %cst_374 : f32 to vector<2x128xf32>
    %765 = arith.addf %764, %763 : vector<2x128xf32>
    %766 = arith.divf %764, %765 : vector<2x128xf32>
    %767 = vector.extract_strided_slice %747 {offsets = [0, 256], sizes = [2, 128], strides = [1, 1]} : vector<2x512xf32> to vector<2x128xf32>
    %768 = math.tanh %767 : vector<2x128xf32>
    %769 = vector.extract_strided_slice %747 {offsets = [0, 384], sizes = [2, 128], strides = [1, 1]} : vector<2x512xf32> to vector<2x128xf32>
    %770 = arith.negf %769 : vector<2x128xf32>
    %771 = math.exp %770 : vector<2x128xf32>
    %cst_375 = arith.constant 1.000000e+00 : f32
    %772 = vector.broadcast %cst_375 : f32 to vector<2x128xf32>
    %773 = arith.addf %772, %771 : vector<2x128xf32>
    %774 = arith.divf %772, %773 : vector<2x128xf32>
    %775 = arith.mulf %766, %754 : vector<2x128xf32>
    %776 = arith.mulf %760, %768 : vector<2x128xf32>
    %777 = arith.addf %775, %776 : vector<2x128xf32>
    %778 = math.tanh %777 : vector<2x128xf32>
    %779 = arith.mulf %774, %778 : vector<2x128xf32>
    %c0_376 = arith.constant 0 : index
    %c0_377 = arith.constant 0 : index
    %780 = vector.load %arg17[%c0_376, %c0_377] : memref<2x128xf32, #tpu.memory_space<vmem>>, vector<2x128xf32>
    %781 = vector.extract_strided_slice %753 {offsets = [0, 0], sizes = [2, 128], strides = [1, 1]} : vector<2x512xf32> to vector<2x128xf32>
    %782 = arith.negf %781 : vector<2x128xf32>
    %783 = math.exp %782 : vector<2x128xf32>
    %cst_378 = arith.constant 1.000000e+00 : f32
    %784 = vector.broadcast %cst_378 : f32 to vector<2x128xf32>
    %785 = arith.addf %784, %783 : vector<2x128xf32>
    %786 = arith.divf %784, %785 : vector<2x128xf32>
    %787 = vector.extract_strided_slice %753 {offsets = [0, 128], sizes = [2, 128], strides = [1, 1]} : vector<2x512xf32> to vector<2x128xf32>
    %788 = arith.negf %787 : vector<2x128xf32>
    %789 = math.exp %788 : vector<2x128xf32>
    %cst_379 = arith.constant 1.000000e+00 : f32
    %790 = vector.broadcast %cst_379 : f32 to vector<2x128xf32>
    %791 = arith.addf %790, %789 : vector<2x128xf32>
    %792 = arith.divf %790, %791 : vector<2x128xf32>
    %793 = vector.extract_strided_slice %753 {offsets = [0, 256], sizes = [2, 128], strides = [1, 1]} : vector<2x512xf32> to vector<2x128xf32>
    %794 = math.tanh %793 : vector<2x128xf32>
    %795 = vector.extract_strided_slice %753 {offsets = [0, 384], sizes = [2, 128], strides = [1, 1]} : vector<2x512xf32> to vector<2x128xf32>
    %796 = arith.negf %795 : vector<2x128xf32>
    %797 = math.exp %796 : vector<2x128xf32>
    %cst_380 = arith.constant 1.000000e+00 : f32
    %798 = vector.broadcast %cst_380 : f32 to vector<2x128xf32>
    %799 = arith.addf %798, %797 : vector<2x128xf32>
    %800 = arith.divf %798, %799 : vector<2x128xf32>
    %801 = arith.mulf %792, %780 : vector<2x128xf32>
    %802 = arith.mulf %786, %794 : vector<2x128xf32>
    %803 = arith.addf %801, %802 : vector<2x128xf32>
    %804 = math.tanh %803 : vector<2x128xf32>
    %805 = arith.mulf %800, %804 : vector<2x128xf32>
    %c0_381 = arith.constant 0 : index
    %c0_382 = arith.constant 0 : index
    %806 = vector.load %arg14[%c0_381, %c0_382] : memref<2x128xf32, #tpu.memory_space<vmem>>, vector<2x128xf32>
    tpu.vector_store %arg14[%c0_381, %c0_382], %779 {strides = array<i32>} : memref<2x128xf32, #tpu.memory_space<vmem>>, vector<2x128xf32>,
    %c0_383 = arith.constant 0 : index
    %c0_384 = arith.constant 0 : index
    %807 = vector.load %arg15[%c0_383, %c0_384] : memref<2x128xf32, #tpu.memory_space<vmem>>, vector<2x128xf32>
    tpu.vector_store %arg15[%c0_383, %c0_384], %777 {strides = array<i32>} : memref<2x128xf32, #tpu.memory_space<vmem>>, vector<2x128xf32>,
    %c0_385 = arith.constant 0 : index
    %c0_386 = arith.constant 0 : index
    %808 = vector.load %arg16[%c0_385, %c0_386] : memref<2x128xf32, #tpu.memory_space<vmem>>, vector<2x128xf32>
    tpu.vector_store %arg16[%c0_385, %c0_386], %805 {strides = array<i32>} : memref<2x128xf32, #tpu.memory_space<vmem>>, vector<2x128xf32>,
    %c0_387 = arith.constant 0 : index
    %c0_388 = arith.constant 0 : index
    %809 = vector.load %arg17[%c0_387, %c0_388] : memref<2x128xf32, #tpu.memory_space<vmem>>, vector<2x128xf32>
    tpu.vector_store %arg17[%c0_387, %c0_388], %803 {strides = array<i32>} : memref<2x128xf32, #tpu.memory_space<vmem>>, vector<2x128xf32>,
    %810 = arith.index_cast %c1_i32_359 : i32 to index
    %c0_389 = arith.constant 0 : index
    %c0_390 = arith.constant 0 : index
    %811 = vector.load %arg12[%810, %c0_389, %c0_390] : memref<8x2x128xf32, #tpu.memory_space<vmem>>, vector<1x2x128xf32>
    %812 = vector.shape_cast %811 : vector<1x2x128xf32> to vector<2x128xf32>
    %813 = vector.shape_cast %779 : vector<2x128xf32> to vector<1x2x128xf32>
    tpu.vector_store %arg12[%810, %c0_389, %c0_390], %813 {strides = array<i32>} : memref<8x2x128xf32, #tpu.memory_space<vmem>>, vector<1x2x128xf32>,
    %814 = arith.index_cast %741 : i32 to index
    %c0_391 = arith.constant 0 : index
    %c0_392 = arith.constant 0 : index
    %815 = vector.load %arg13[%814, %c0_391, %c0_392] : memref<8x2x128xf32, #tpu.memory_space<vmem>>, vector<1x2x128xf32>
    %816 = vector.shape_cast %815 : vector<1x2x128xf32> to vector<2x128xf32>
    %817 = vector.shape_cast %805 : vector<2x128xf32> to vector<1x2x128xf32>
    tpu.vector_store %arg13[%814, %c0_391, %c0_392], %817 {strides = array<i32>} : memref<8x2x128xf32, #tpu.memory_space<vmem>>, vector<1x2x128xf32>,
    %c2_i32_393 = arith.constant 2 : i32
    %c7_i32_394 = arith.constant 7 : i32
    %818 = arith.subi %c7_i32_394, %c2_i32_393 : i32
    %819 = arith.index_cast %c2_i32_393 : i32 to index
    %c0_395 = arith.constant 0 : index
    %c0_396 = arith.constant 0 : index
    %820 = vector.load %arg10[%819, %c0_395, %c0_396] : memref<8x2x512xf32, #tpu.memory_space<vmem>>, vector<1x2x512xf32>
    %821 = vector.shape_cast %820 : vector<1x2x512xf32> to vector<2x512xf32>
    %c0_397 = arith.constant 0 : index
    %c0_398 = arith.constant 0 : index
    %822 = vector.load %arg14[%c0_397, %c0_398] : memref<2x128xf32, #tpu.memory_space<vmem>>, vector<2x128xf32>
    %cst_399 = arith.constant dense<0.000000e+00> : vector<2x512xf32>
    %823 = tpu.matmul %822, %645, %cst_399 {dimension_numbers = #tpu.dot_dimension_numbers<[1], [0], [0], [1], [0, 0, 1, 1], [], []>} : vector<2x128xf32>, vector<128x512xf32>, vector<2x512xf32> -> vector<2x512xf32>
    %824 = arith.addf %821, %823 : vector<2x512xf32>
    %825 = arith.index_cast %818 : i32 to index
    %c0_400 = arith.constant 0 : index
    %c0_401 = arith.constant 0 : index
    %826 = vector.load %arg11[%825, %c0_400, %c0_401] : memref<8x2x512xf32, #tpu.memory_space<vmem>>, vector<1x2x512xf32>
    %827 = vector.shape_cast %826 : vector<1x2x512xf32> to vector<2x512xf32>
    %c0_402 = arith.constant 0 : index
    %c0_403 = arith.constant 0 : index
    %828 = vector.load %arg16[%c0_402, %c0_403] : memref<2x128xf32, #tpu.memory_space<vmem>>, vector<2x128xf32>
    %cst_404 = arith.constant dense<0.000000e+00> : vector<2x512xf32>
    %829 = tpu.matmul %828, %646, %cst_404 {dimension_numbers = #tpu.dot_dimension_numbers<[1], [0], [0], [1], [0, 0, 1, 1], [], []>} : vector<2x128xf32>, vector<128x512xf32>, vector<2x512xf32> -> vector<2x512xf32>
    %830 = arith.addf %827, %829 : vector<2x512xf32>
    %c0_405 = arith.constant 0 : index
    %c0_406 = arith.constant 0 : index
    %831 = vector.load %arg15[%c0_405, %c0_406] : memref<2x128xf32, #tpu.memory_space<vmem>>, vector<2x128xf32>
    %832 = vector.extract_strided_slice %824 {offsets = [0, 0], sizes = [2, 128], strides = [1, 1]} : vector<2x512xf32> to vector<2x128xf32>
    %833 = arith.negf %832 : vector<2x128xf32>
    %834 = math.exp %833 : vector<2x128xf32>
    %cst_407 = arith.constant 1.000000e+00 : f32
    %835 = vector.broadcast %cst_407 : f32 to vector<2x128xf32>
    %836 = arith.addf %835, %834 : vector<2x128xf32>
    %837 = arith.divf %835, %836 : vector<2x128xf32>
    %838 = vector.extract_strided_slice %824 {offsets = [0, 128], sizes = [2, 128], strides = [1, 1]} : vector<2x512xf32> to vector<2x128xf32>
    %839 = arith.negf %838 : vector<2x128xf32>
    %840 = math.exp %839 : vector<2x128xf32>
    %cst_408 = arith.constant 1.000000e+00 : f32
    %841 = vector.broadcast %cst_408 : f32 to vector<2x128xf32>
    %842 = arith.addf %841, %840 : vector<2x128xf32>
    %843 = arith.divf %841, %842 : vector<2x128xf32>
    %844 = vector.extract_strided_slice %824 {offsets = [0, 256], sizes = [2, 128], strides = [1, 1]} : vector<2x512xf32> to vector<2x128xf32>
    %845 = math.tanh %844 : vector<2x128xf32>
    %846 = vector.extract_strided_slice %824 {offsets = [0, 384], sizes = [2, 128], strides = [1, 1]} : vector<2x512xf32> to vector<2x128xf32>
    %847 = arith.negf %846 : vector<2x128xf32>
    %848 = math.exp %847 : vector<2x128xf32>
    %cst_409 = arith.constant 1.000000e+00 : f32
    %849 = vector.broadcast %cst_409 : f32 to vector<2x128xf32>
    %850 = arith.addf %849, %848 : vector<2x128xf32>
    %851 = arith.divf %849, %850 : vector<2x128xf32>
    %852 = arith.mulf %843, %831 : vector<2x128xf32>
    %853 = arith.mulf %837, %845 : vector<2x128xf32>
    %854 = arith.addf %852, %853 : vector<2x128xf32>
    %855 = math.tanh %854 : vector<2x128xf32>
    %856 = arith.mulf %851, %855 : vector<2x128xf32>
    %c0_410 = arith.constant 0 : index
    %c0_411 = arith.constant 0 : index
    %857 = vector.load %arg17[%c0_410, %c0_411] : memref<2x128xf32, #tpu.memory_space<vmem>>, vector<2x128xf32>
    %858 = vector.extract_strided_slice %830 {offsets = [0, 0], sizes = [2, 128], strides = [1, 1]} : vector<2x512xf32> to vector<2x128xf32>
    %859 = arith.negf %858 : vector<2x128xf32>
    %860 = math.exp %859 : vector<2x128xf32>
    %cst_412 = arith.constant 1.000000e+00 : f32
    %861 = vector.broadcast %cst_412 : f32 to vector<2x128xf32>
    %862 = arith.addf %861, %860 : vector<2x128xf32>
    %863 = arith.divf %861, %862 : vector<2x128xf32>
    %864 = vector.extract_strided_slice %830 {offsets = [0, 128], sizes = [2, 128], strides = [1, 1]} : vector<2x512xf32> to vector<2x128xf32>
    %865 = arith.negf %864 : vector<2x128xf32>
    %866 = math.exp %865 : vector<2x128xf32>
    %cst_413 = arith.constant 1.000000e+00 : f32
    %867 = vector.broadcast %cst_413 : f32 to vector<2x128xf32>
    %868 = arith.addf %867, %866 : vector<2x128xf32>
    %869 = arith.divf %867, %868 : vector<2x128xf32>
    %870 = vector.extract_strided_slice %830 {offsets = [0, 256], sizes = [2, 128], strides = [1, 1]} : vector<2x512xf32> to vector<2x128xf32>
    %871 = math.tanh %870 : vector<2x128xf32>
    %872 = vector.extract_strided_slice %830 {offsets = [0, 384], sizes = [2, 128], strides = [1, 1]} : vector<2x512xf32> to vector<2x128xf32>
    %873 = arith.negf %872 : vector<2x128xf32>
    %874 = math.exp %873 : vector<2x128xf32>
    %cst_414 = arith.constant 1.000000e+00 : f32
    %875 = vector.broadcast %cst_414 : f32 to vector<2x128xf32>
    %876 = arith.addf %875, %874 : vector<2x128xf32>
    %877 = arith.divf %875, %876 : vector<2x128xf32>
    %878 = arith.mulf %869, %857 : vector<2x128xf32>
    %879 = arith.mulf %863, %871 : vector<2x128xf32>
    %880 = arith.addf %878, %879 : vector<2x128xf32>
    %881 = math.tanh %880 : vector<2x128xf32>
    %882 = arith.mulf %877, %881 : vector<2x128xf32>
    %c0_415 = arith.constant 0 : index
    %c0_416 = arith.constant 0 : index
    %883 = vector.load %arg14[%c0_415, %c0_416] : memref<2x128xf32, #tpu.memory_space<vmem>>, vector<2x128xf32>
    tpu.vector_store %arg14[%c0_415, %c0_416], %856 {strides = array<i32>} : memref<2x128xf32, #tpu.memory_space<vmem>>, vector<2x128xf32>,
    %c0_417 = arith.constant 0 : index
    %c0_418 = arith.constant 0 : index
    %884 = vector.load %arg15[%c0_417, %c0_418] : memref<2x128xf32, #tpu.memory_space<vmem>>, vector<2x128xf32>
    tpu.vector_store %arg15[%c0_417, %c0_418], %854 {strides = array<i32>} : memref<2x128xf32, #tpu.memory_space<vmem>>, vector<2x128xf32>,
    %c0_419 = arith.constant 0 : index
    %c0_420 = arith.constant 0 : index
    %885 = vector.load %arg16[%c0_419, %c0_420] : memref<2x128xf32, #tpu.memory_space<vmem>>, vector<2x128xf32>
    tpu.vector_store %arg16[%c0_419, %c0_420], %882 {strides = array<i32>} : memref<2x128xf32, #tpu.memory_space<vmem>>, vector<2x128xf32>,
    %c0_421 = arith.constant 0 : index
    %c0_422 = arith.constant 0 : index
    %886 = vector.load %arg17[%c0_421, %c0_422] : memref<2x128xf32, #tpu.memory_space<vmem>>, vector<2x128xf32>
    tpu.vector_store %arg17[%c0_421, %c0_422], %880 {strides = array<i32>} : memref<2x128xf32, #tpu.memory_space<vmem>>, vector<2x128xf32>,
    %887 = arith.index_cast %c2_i32_393 : i32 to index
    %c0_423 = arith.constant 0 : index
    %c0_424 = arith.constant 0 : index
    %888 = vector.load %arg12[%887, %c0_423, %c0_424] : memref<8x2x128xf32, #tpu.memory_space<vmem>>, vector<1x2x128xf32>
    %889 = vector.shape_cast %888 : vector<1x2x128xf32> to vector<2x128xf32>
    %890 = vector.shape_cast %856 : vector<2x128xf32> to vector<1x2x128xf32>
    tpu.vector_store %arg12[%887, %c0_423, %c0_424], %890 {strides = array<i32>} : memref<8x2x128xf32, #tpu.memory_space<vmem>>, vector<1x2x128xf32>,
    %891 = arith.index_cast %818 : i32 to index
    %c0_425 = arith.constant 0 : index
    %c0_426 = arith.constant 0 : index
    %892 = vector.load %arg13[%891, %c0_425, %c0_426] : memref<8x2x128xf32, #tpu.memory_space<vmem>>, vector<1x2x128xf32>
    %893 = vector.shape_cast %892 : vector<1x2x128xf32> to vector<2x128xf32>
    %894 = vector.shape_cast %882 : vector<2x128xf32> to vector<1x2x128xf32>
    tpu.vector_store %arg13[%891, %c0_425, %c0_426], %894 {strides = array<i32>} : memref<8x2x128xf32, #tpu.memory_space<vmem>>, vector<1x2x128xf32>,
    %c3_i32_427 = arith.constant 3 : i32
    %c7_i32_428 = arith.constant 7 : i32
    %895 = arith.subi %c7_i32_428, %c3_i32_427 : i32
    %896 = arith.index_cast %c3_i32_427 : i32 to index
    %c0_429 = arith.constant 0 : index
    %c0_430 = arith.constant 0 : index
    %897 = vector.load %arg10[%896, %c0_429, %c0_430] : memref<8x2x512xf32, #tpu.memory_space<vmem>>, vector<1x2x512xf32>
    %898 = vector.shape_cast %897 : vector<1x2x512xf32> to vector<2x512xf32>
    %c0_431 = arith.constant 0 : index
    %c0_432 = arith.constant 0 : index
    %899 = vector.load %arg14[%c0_431, %c0_432] : memref<2x128xf32, #tpu.memory_space<vmem>>, vector<2x128xf32>
    %cst_433 = arith.constant dense<0.000000e+00> : vector<2x512xf32>
    %900 = tpu.matmul %899, %645, %cst_433 {dimension_numbers = #tpu.dot_dimension_numbers<[1], [0], [0], [1], [0, 0, 1, 1], [], []>} : vector<2x128xf32>, vector<128x512xf32>, vector<2x512xf32> -> vector<2x512xf32>
    %901 = arith.addf %898, %900 : vector<2x512xf32>
    %902 = arith.index_cast %895 : i32 to index
    %c0_434 = arith.constant 0 : index
    %c0_435 = arith.constant 0 : index
    %903 = vector.load %arg11[%902, %c0_434, %c0_435] : memref<8x2x512xf32, #tpu.memory_space<vmem>>, vector<1x2x512xf32>
    %904 = vector.shape_cast %903 : vector<1x2x512xf32> to vector<2x512xf32>
    %c0_436 = arith.constant 0 : index
    %c0_437 = arith.constant 0 : index
    %905 = vector.load %arg16[%c0_436, %c0_437] : memref<2x128xf32, #tpu.memory_space<vmem>>, vector<2x128xf32>
    %cst_438 = arith.constant dense<0.000000e+00> : vector<2x512xf32>
    %906 = tpu.matmul %905, %646, %cst_438 {dimension_numbers = #tpu.dot_dimension_numbers<[1], [0], [0], [1], [0, 0, 1, 1], [], []>} : vector<2x128xf32>, vector<128x512xf32>, vector<2x512xf32> -> vector<2x512xf32>
    %907 = arith.addf %904, %906 : vector<2x512xf32>
    %c0_439 = arith.constant 0 : index
    %c0_440 = arith.constant 0 : index
    %908 = vector.load %arg15[%c0_439, %c0_440] : memref<2x128xf32, #tpu.memory_space<vmem>>, vector<2x128xf32>
    %909 = vector.extract_strided_slice %901 {offsets = [0, 0], sizes = [2, 128], strides = [1, 1]} : vector<2x512xf32> to vector<2x128xf32>
    %910 = arith.negf %909 : vector<2x128xf32>
    %911 = math.exp %910 : vector<2x128xf32>
    %cst_441 = arith.constant 1.000000e+00 : f32
    %912 = vector.broadcast %cst_441 : f32 to vector<2x128xf32>
    %913 = arith.addf %912, %911 : vector<2x128xf32>
    %914 = arith.divf %912, %913 : vector<2x128xf32>
    %915 = vector.extract_strided_slice %901 {offsets = [0, 128], sizes = [2, 128], strides = [1, 1]} : vector<2x512xf32> to vector<2x128xf32>
    %916 = arith.negf %915 : vector<2x128xf32>
    %917 = math.exp %916 : vector<2x128xf32>
    %cst_442 = arith.constant 1.000000e+00 : f32
    %918 = vector.broadcast %cst_442 : f32 to vector<2x128xf32>
    %919 = arith.addf %918, %917 : vector<2x128xf32>
    %920 = arith.divf %918, %919 : vector<2x128xf32>
    %921 = vector.extract_strided_slice %901 {offsets = [0, 256], sizes = [2, 128], strides = [1, 1]} : vector<2x512xf32> to vector<2x128xf32>
    %922 = math.tanh %921 : vector<2x128xf32>
    %923 = vector.extract_strided_slice %901 {offsets = [0, 384], sizes = [2, 128], strides = [1, 1]} : vector<2x512xf32> to vector<2x128xf32>
    %924 = arith.negf %923 : vector<2x128xf32>
    %925 = math.exp %924 : vector<2x128xf32>
    %cst_443 = arith.constant 1.000000e+00 : f32
    %926 = vector.broadcast %cst_443 : f32 to vector<2x128xf32>
    %927 = arith.addf %926, %925 : vector<2x128xf32>
    %928 = arith.divf %926, %927 : vector<2x128xf32>
    %929 = arith.mulf %920, %908 : vector<2x128xf32>
    %930 = arith.mulf %914, %922 : vector<2x128xf32>
    %931 = arith.addf %929, %930 : vector<2x128xf32>
    %932 = math.tanh %931 : vector<2x128xf32>
    %933 = arith.mulf %928, %932 : vector<2x128xf32>
    %c0_444 = arith.constant 0 : index
    %c0_445 = arith.constant 0 : index
    %934 = vector.load %arg17[%c0_444, %c0_445] : memref<2x128xf32, #tpu.memory_space<vmem>>, vector<2x128xf32>
    %935 = vector.extract_strided_slice %907 {offsets = [0, 0], sizes = [2, 128], strides = [1, 1]} : vector<2x512xf32> to vector<2x128xf32>
    %936 = arith.negf %935 : vector<2x128xf32>
    %937 = math.exp %936 : vector<2x128xf32>
    %cst_446 = arith.constant 1.000000e+00 : f32
    %938 = vector.broadcast %cst_446 : f32 to vector<2x128xf32>
    %939 = arith.addf %938, %937 : vector<2x128xf32>
    %940 = arith.divf %938, %939 : vector<2x128xf32>
    %941 = vector.extract_strided_slice %907 {offsets = [0, 128], sizes = [2, 128], strides = [1, 1]} : vector<2x512xf32> to vector<2x128xf32>
    %942 = arith.negf %941 : vector<2x128xf32>
    %943 = math.exp %942 : vector<2x128xf32>
    %cst_447 = arith.constant 1.000000e+00 : f32
    %944 = vector.broadcast %cst_447 : f32 to vector<2x128xf32>
    %945 = arith.addf %944, %943 : vector<2x128xf32>
    %946 = arith.divf %944, %945 : vector<2x128xf32>
    %947 = vector.extract_strided_slice %907 {offsets = [0, 256], sizes = [2, 128], strides = [1, 1]} : vector<2x512xf32> to vector<2x128xf32>
    %948 = math.tanh %947 : vector<2x128xf32>
    %949 = vector.extract_strided_slice %907 {offsets = [0, 384], sizes = [2, 128], strides = [1, 1]} : vector<2x512xf32> to vector<2x128xf32>
    %950 = arith.negf %949 : vector<2x128xf32>
    %951 = math.exp %950 : vector<2x128xf32>
    %cst_448 = arith.constant 1.000000e+00 : f32
    %952 = vector.broadcast %cst_448 : f32 to vector<2x128xf32>
    %953 = arith.addf %952, %951 : vector<2x128xf32>
    %954 = arith.divf %952, %953 : vector<2x128xf32>
    %955 = arith.mulf %946, %934 : vector<2x128xf32>
    %956 = arith.mulf %940, %948 : vector<2x128xf32>
    %957 = arith.addf %955, %956 : vector<2x128xf32>
    %958 = math.tanh %957 : vector<2x128xf32>
    %959 = arith.mulf %954, %958 : vector<2x128xf32>
    %c0_449 = arith.constant 0 : index
    %c0_450 = arith.constant 0 : index
    %960 = vector.load %arg14[%c0_449, %c0_450] : memref<2x128xf32, #tpu.memory_space<vmem>>, vector<2x128xf32>
    tpu.vector_store %arg14[%c0_449, %c0_450], %933 {strides = array<i32>} : memref<2x128xf32, #tpu.memory_space<vmem>>, vector<2x128xf32>,
    %c0_451 = arith.constant 0 : index
    %c0_452 = arith.constant 0 : index
    %961 = vector.load %arg15[%c0_451, %c0_452] : memref<2x128xf32, #tpu.memory_space<vmem>>, vector<2x128xf32>
    tpu.vector_store %arg15[%c0_451, %c0_452], %931 {strides = array<i32>} : memref<2x128xf32, #tpu.memory_space<vmem>>, vector<2x128xf32>,
    %c0_453 = arith.constant 0 : index
    %c0_454 = arith.constant 0 : index
    %962 = vector.load %arg16[%c0_453, %c0_454] : memref<2x128xf32, #tpu.memory_space<vmem>>, vector<2x128xf32>
    tpu.vector_store %arg16[%c0_453, %c0_454], %959 {strides = array<i32>} : memref<2x128xf32, #tpu.memory_space<vmem>>, vector<2x128xf32>,
    %c0_455 = arith.constant 0 : index
    %c0_456 = arith.constant 0 : index
    %963 = vector.load %arg17[%c0_455, %c0_456] : memref<2x128xf32, #tpu.memory_space<vmem>>, vector<2x128xf32>
    tpu.vector_store %arg17[%c0_455, %c0_456], %957 {strides = array<i32>} : memref<2x128xf32, #tpu.memory_space<vmem>>, vector<2x128xf32>,
    %964 = arith.index_cast %c3_i32_427 : i32 to index
    %c0_457 = arith.constant 0 : index
    %c0_458 = arith.constant 0 : index
    %965 = vector.load %arg12[%964, %c0_457, %c0_458] : memref<8x2x128xf32, #tpu.memory_space<vmem>>, vector<1x2x128xf32>
    %966 = vector.shape_cast %965 : vector<1x2x128xf32> to vector<2x128xf32>
    %967 = vector.shape_cast %933 : vector<2x128xf32> to vector<1x2x128xf32>
    tpu.vector_store %arg12[%964, %c0_457, %c0_458], %967 {strides = array<i32>} : memref<8x2x128xf32, #tpu.memory_space<vmem>>, vector<1x2x128xf32>,
    %968 = arith.index_cast %895 : i32 to index
    %c0_459 = arith.constant 0 : index
    %c0_460 = arith.constant 0 : index
    %969 = vector.load %arg13[%968, %c0_459, %c0_460] : memref<8x2x128xf32, #tpu.memory_space<vmem>>, vector<1x2x128xf32>
    %970 = vector.shape_cast %969 : vector<1x2x128xf32> to vector<2x128xf32>
    %971 = vector.shape_cast %959 : vector<2x128xf32> to vector<1x2x128xf32>
    tpu.vector_store %arg13[%968, %c0_459, %c0_460], %971 {strides = array<i32>} : memref<8x2x128xf32, #tpu.memory_space<vmem>>, vector<1x2x128xf32>,
    %c4_i32_461 = arith.constant 4 : i32
    %c7_i32_462 = arith.constant 7 : i32
    %972 = arith.subi %c7_i32_462, %c4_i32_461 : i32
    %973 = arith.index_cast %c4_i32_461 : i32 to index
    %c0_463 = arith.constant 0 : index
    %c0_464 = arith.constant 0 : index
    %974 = vector.load %arg10[%973, %c0_463, %c0_464] : memref<8x2x512xf32, #tpu.memory_space<vmem>>, vector<1x2x512xf32>
    %975 = vector.shape_cast %974 : vector<1x2x512xf32> to vector<2x512xf32>
    %c0_465 = arith.constant 0 : index
    %c0_466 = arith.constant 0 : index
    %976 = vector.load %arg14[%c0_465, %c0_466] : memref<2x128xf32, #tpu.memory_space<vmem>>, vector<2x128xf32>
    %cst_467 = arith.constant dense<0.000000e+00> : vector<2x512xf32>
    %977 = tpu.matmul %976, %645, %cst_467 {dimension_numbers = #tpu.dot_dimension_numbers<[1], [0], [0], [1], [0, 0, 1, 1], [], []>} : vector<2x128xf32>, vector<128x512xf32>, vector<2x512xf32> -> vector<2x512xf32>
    %978 = arith.addf %975, %977 : vector<2x512xf32>
    %979 = arith.index_cast %972 : i32 to index
    %c0_468 = arith.constant 0 : index
    %c0_469 = arith.constant 0 : index
    %980 = vector.load %arg11[%979, %c0_468, %c0_469] : memref<8x2x512xf32, #tpu.memory_space<vmem>>, vector<1x2x512xf32>
    %981 = vector.shape_cast %980 : vector<1x2x512xf32> to vector<2x512xf32>
    %c0_470 = arith.constant 0 : index
    %c0_471 = arith.constant 0 : index
    %982 = vector.load %arg16[%c0_470, %c0_471] : memref<2x128xf32, #tpu.memory_space<vmem>>, vector<2x128xf32>
    %cst_472 = arith.constant dense<0.000000e+00> : vector<2x512xf32>
    %983 = tpu.matmul %982, %646, %cst_472 {dimension_numbers = #tpu.dot_dimension_numbers<[1], [0], [0], [1], [0, 0, 1, 1], [], []>} : vector<2x128xf32>, vector<128x512xf32>, vector<2x512xf32> -> vector<2x512xf32>
    %984 = arith.addf %981, %983 : vector<2x512xf32>
    %c0_473 = arith.constant 0 : index
    %c0_474 = arith.constant 0 : index
    %985 = vector.load %arg15[%c0_473, %c0_474] : memref<2x128xf32, #tpu.memory_space<vmem>>, vector<2x128xf32>
    %986 = vector.extract_strided_slice %978 {offsets = [0, 0], sizes = [2, 128], strides = [1, 1]} : vector<2x512xf32> to vector<2x128xf32>
    %987 = arith.negf %986 : vector<2x128xf32>
    %988 = math.exp %987 : vector<2x128xf32>
    %cst_475 = arith.constant 1.000000e+00 : f32
    %989 = vector.broadcast %cst_475 : f32 to vector<2x128xf32>
    %990 = arith.addf %989, %988 : vector<2x128xf32>
    %991 = arith.divf %989, %990 : vector<2x128xf32>
    %992 = vector.extract_strided_slice %978 {offsets = [0, 128], sizes = [2, 128], strides = [1, 1]} : vector<2x512xf32> to vector<2x128xf32>
    %993 = arith.negf %992 : vector<2x128xf32>
    %994 = math.exp %993 : vector<2x128xf32>
    %cst_476 = arith.constant 1.000000e+00 : f32
    %995 = vector.broadcast %cst_476 : f32 to vector<2x128xf32>
    %996 = arith.addf %995, %994 : vector<2x128xf32>
    %997 = arith.divf %995, %996 : vector<2x128xf32>
    %998 = vector.extract_strided_slice %978 {offsets = [0, 256], sizes = [2, 128], strides = [1, 1]} : vector<2x512xf32> to vector<2x128xf32>
    %999 = math.tanh %998 : vector<2x128xf32>
    %1000 = vector.extract_strided_slice %978 {offsets = [0, 384], sizes = [2, 128], strides = [1, 1]} : vector<2x512xf32> to vector<2x128xf32>
    %1001 = arith.negf %1000 : vector<2x128xf32>
    %1002 = math.exp %1001 : vector<2x128xf32>
    %cst_477 = arith.constant 1.000000e+00 : f32
    %1003 = vector.broadcast %cst_477 : f32 to vector<2x128xf32>
    %1004 = arith.addf %1003, %1002 : vector<2x128xf32>
    %1005 = arith.divf %1003, %1004 : vector<2x128xf32>
    %1006 = arith.mulf %997, %985 : vector<2x128xf32>
    %1007 = arith.mulf %991, %999 : vector<2x128xf32>
    %1008 = arith.addf %1006, %1007 : vector<2x128xf32>
    %1009 = math.tanh %1008 : vector<2x128xf32>
    %1010 = arith.mulf %1005, %1009 : vector<2x128xf32>
    %c0_478 = arith.constant 0 : index
    %c0_479 = arith.constant 0 : index
    %1011 = vector.load %arg17[%c0_478, %c0_479] : memref<2x128xf32, #tpu.memory_space<vmem>>, vector<2x128xf32>
    %1012 = vector.extract_strided_slice %984 {offsets = [0, 0], sizes = [2, 128], strides = [1, 1]} : vector<2x512xf32> to vector<2x128xf32>
    %1013 = arith.negf %1012 : vector<2x128xf32>
    %1014 = math.exp %1013 : vector<2x128xf32>
    %cst_480 = arith.constant 1.000000e+00 : f32
    %1015 = vector.broadcast %cst_480 : f32 to vector<2x128xf32>
    %1016 = arith.addf %1015, %1014 : vector<2x128xf32>
    %1017 = arith.divf %1015, %1016 : vector<2x128xf32>
    %1018 = vector.extract_strided_slice %984 {offsets = [0, 128], sizes = [2, 128], strides = [1, 1]} : vector<2x512xf32> to vector<2x128xf32>
    %1019 = arith.negf %1018 : vector<2x128xf32>
    %1020 = math.exp %1019 : vector<2x128xf32>
    %cst_481 = arith.constant 1.000000e+00 : f32
    %1021 = vector.broadcast %cst_481 : f32 to vector<2x128xf32>
    %1022 = arith.addf %1021, %1020 : vector<2x128xf32>
    %1023 = arith.divf %1021, %1022 : vector<2x128xf32>
    %1024 = vector.extract_strided_slice %984 {offsets = [0, 256], sizes = [2, 128], strides = [1, 1]} : vector<2x512xf32> to vector<2x128xf32>
    %1025 = math.tanh %1024 : vector<2x128xf32>
    %1026 = vector.extract_strided_slice %984 {offsets = [0, 384], sizes = [2, 128], strides = [1, 1]} : vector<2x512xf32> to vector<2x128xf32>
    %1027 = arith.negf %1026 : vector<2x128xf32>
    %1028 = math.exp %1027 : vector<2x128xf32>
    %cst_482 = arith.constant 1.000000e+00 : f32
    %1029 = vector.broadcast %cst_482 : f32 to vector<2x128xf32>
    %1030 = arith.addf %1029, %1028 : vector<2x128xf32>
    %1031 = arith.divf %1029, %1030 : vector<2x128xf32>
    %1032 = arith.mulf %1023, %1011 : vector<2x128xf32>
    %1033 = arith.mulf %1017, %1025 : vector<2x128xf32>
    %1034 = arith.addf %1032, %1033 : vector<2x128xf32>
    %1035 = math.tanh %1034 : vector<2x128xf32>
    %1036 = arith.mulf %1031, %1035 : vector<2x128xf32>
    %c0_483 = arith.constant 0 : index
    %c0_484 = arith.constant 0 : index
    %1037 = vector.load %arg14[%c0_483, %c0_484] : memref<2x128xf32, #tpu.memory_space<vmem>>, vector<2x128xf32>
    tpu.vector_store %arg14[%c0_483, %c0_484], %1010 {strides = array<i32>} : memref<2x128xf32, #tpu.memory_space<vmem>>, vector<2x128xf32>,
    %c0_485 = arith.constant 0 : index
    %c0_486 = arith.constant 0 : index
    %1038 = vector.load %arg15[%c0_485, %c0_486] : memref<2x128xf32, #tpu.memory_space<vmem>>, vector<2x128xf32>
    tpu.vector_store %arg15[%c0_485, %c0_486], %1008 {strides = array<i32>} : memref<2x128xf32, #tpu.memory_space<vmem>>, vector<2x128xf32>,
    %c0_487 = arith.constant 0 : index
    %c0_488 = arith.constant 0 : index
    %1039 = vector.load %arg16[%c0_487, %c0_488] : memref<2x128xf32, #tpu.memory_space<vmem>>, vector<2x128xf32>
    tpu.vector_store %arg16[%c0_487, %c0_488], %1036 {strides = array<i32>} : memref<2x128xf32, #tpu.memory_space<vmem>>, vector<2x128xf32>,
    %c0_489 = arith.constant 0 : index
    %c0_490 = arith.constant 0 : index
    %1040 = vector.load %arg17[%c0_489, %c0_490] : memref<2x128xf32, #tpu.memory_space<vmem>>, vector<2x128xf32>
    tpu.vector_store %arg17[%c0_489, %c0_490], %1034 {strides = array<i32>} : memref<2x128xf32, #tpu.memory_space<vmem>>, vector<2x128xf32>,
    %1041 = arith.index_cast %c4_i32_461 : i32 to index
    %c0_491 = arith.constant 0 : index
    %c0_492 = arith.constant 0 : index
    %1042 = vector.load %arg12[%1041, %c0_491, %c0_492] : memref<8x2x128xf32, #tpu.memory_space<vmem>>, vector<1x2x128xf32>
    %1043 = vector.shape_cast %1042 : vector<1x2x128xf32> to vector<2x128xf32>
    %1044 = vector.shape_cast %1010 : vector<2x128xf32> to vector<1x2x128xf32>
    tpu.vector_store %arg12[%1041, %c0_491, %c0_492], %1044 {strides = array<i32>} : memref<8x2x128xf32, #tpu.memory_space<vmem>>, vector<1x2x128xf32>,
    %1045 = arith.index_cast %972 : i32 to index
    %c0_493 = arith.constant 0 : index
    %c0_494 = arith.constant 0 : index
    %1046 = vector.load %arg13[%1045, %c0_493, %c0_494] : memref<8x2x128xf32, #tpu.memory_space<vmem>>, vector<1x2x128xf32>
    %1047 = vector.shape_cast %1046 : vector<1x2x128xf32> to vector<2x128xf32>
    %1048 = vector.shape_cast %1036 : vector<2x128xf32> to vector<1x2x128xf32>
    tpu.vector_store %arg13[%1045, %c0_493, %c0_494], %1048 {strides = array<i32>} : memref<8x2x128xf32, #tpu.memory_space<vmem>>, vector<1x2x128xf32>,
    %c5_i32_495 = arith.constant 5 : i32
    %c7_i32_496 = arith.constant 7 : i32
    %1049 = arith.subi %c7_i32_496, %c5_i32_495 : i32
    %1050 = arith.index_cast %c5_i32_495 : i32 to index
    %c0_497 = arith.constant 0 : index
    %c0_498 = arith.constant 0 : index
    %1051 = vector.load %arg10[%1050, %c0_497, %c0_498] : memref<8x2x512xf32, #tpu.memory_space<vmem>>, vector<1x2x512xf32>
    %1052 = vector.shape_cast %1051 : vector<1x2x512xf32> to vector<2x512xf32>
    %c0_499 = arith.constant 0 : index
    %c0_500 = arith.constant 0 : index
    %1053 = vector.load %arg14[%c0_499, %c0_500] : memref<2x128xf32, #tpu.memory_space<vmem>>, vector<2x128xf32>
    %cst_501 = arith.constant dense<0.000000e+00> : vector<2x512xf32>
    %1054 = tpu.matmul %1053, %645, %cst_501 {dimension_numbers = #tpu.dot_dimension_numbers<[1], [0], [0], [1], [0, 0, 1, 1], [], []>} : vector<2x128xf32>, vector<128x512xf32>, vector<2x512xf32> -> vector<2x512xf32>
    %1055 = arith.addf %1052, %1054 : vector<2x512xf32>
    %1056 = arith.index_cast %1049 : i32 to index
    %c0_502 = arith.constant 0 : index
    %c0_503 = arith.constant 0 : index
    %1057 = vector.load %arg11[%1056, %c0_502, %c0_503] : memref<8x2x512xf32, #tpu.memory_space<vmem>>, vector<1x2x512xf32>
    %1058 = vector.shape_cast %1057 : vector<1x2x512xf32> to vector<2x512xf32>
    %c0_504 = arith.constant 0 : index
    %c0_505 = arith.constant 0 : index
    %1059 = vector.load %arg16[%c0_504, %c0_505] : memref<2x128xf32, #tpu.memory_space<vmem>>, vector<2x128xf32>
    %cst_506 = arith.constant dense<0.000000e+00> : vector<2x512xf32>
    %1060 = tpu.matmul %1059, %646, %cst_506 {dimension_numbers = #tpu.dot_dimension_numbers<[1], [0], [0], [1], [0, 0, 1, 1], [], []>} : vector<2x128xf32>, vector<128x512xf32>, vector<2x512xf32> -> vector<2x512xf32>
    %1061 = arith.addf %1058, %1060 : vector<2x512xf32>
    %c0_507 = arith.constant 0 : index
    %c0_508 = arith.constant 0 : index
    %1062 = vector.load %arg15[%c0_507, %c0_508] : memref<2x128xf32, #tpu.memory_space<vmem>>, vector<2x128xf32>
    %1063 = vector.extract_strided_slice %1055 {offsets = [0, 0], sizes = [2, 128], strides = [1, 1]} : vector<2x512xf32> to vector<2x128xf32>
    %1064 = arith.negf %1063 : vector<2x128xf32>
    %1065 = math.exp %1064 : vector<2x128xf32>
    %cst_509 = arith.constant 1.000000e+00 : f32
    %1066 = vector.broadcast %cst_509 : f32 to vector<2x128xf32>
    %1067 = arith.addf %1066, %1065 : vector<2x128xf32>
    %1068 = arith.divf %1066, %1067 : vector<2x128xf32>
    %1069 = vector.extract_strided_slice %1055 {offsets = [0, 128], sizes = [2, 128], strides = [1, 1]} : vector<2x512xf32> to vector<2x128xf32>
    %1070 = arith.negf %1069 : vector<2x128xf32>
    %1071 = math.exp %1070 : vector<2x128xf32>
    %cst_510 = arith.constant 1.000000e+00 : f32
    %1072 = vector.broadcast %cst_510 : f32 to vector<2x128xf32>
    %1073 = arith.addf %1072, %1071 : vector<2x128xf32>
    %1074 = arith.divf %1072, %1073 : vector<2x128xf32>
    %1075 = vector.extract_strided_slice %1055 {offsets = [0, 256], sizes = [2, 128], strides = [1, 1]} : vector<2x512xf32> to vector<2x128xf32>
    %1076 = math.tanh %1075 : vector<2x128xf32>
    %1077 = vector.extract_strided_slice %1055 {offsets = [0, 384], sizes = [2, 128], strides = [1, 1]} : vector<2x512xf32> to vector<2x128xf32>
    %1078 = arith.negf %1077 : vector<2x128xf32>
    %1079 = math.exp %1078 : vector<2x128xf32>
    %cst_511 = arith.constant 1.000000e+00 : f32
    %1080 = vector.broadcast %cst_511 : f32 to vector<2x128xf32>
    %1081 = arith.addf %1080, %1079 : vector<2x128xf32>
    %1082 = arith.divf %1080, %1081 : vector<2x128xf32>
    %1083 = arith.mulf %1074, %1062 : vector<2x128xf32>
    %1084 = arith.mulf %1068, %1076 : vector<2x128xf32>
    %1085 = arith.addf %1083, %1084 : vector<2x128xf32>
    %1086 = math.tanh %1085 : vector<2x128xf32>
    %1087 = arith.mulf %1082, %1086 : vector<2x128xf32>
    %c0_512 = arith.constant 0 : index
    %c0_513 = arith.constant 0 : index
    %1088 = vector.load %arg17[%c0_512, %c0_513] : memref<2x128xf32, #tpu.memory_space<vmem>>, vector<2x128xf32>
    %1089 = vector.extract_strided_slice %1061 {offsets = [0, 0], sizes = [2, 128], strides = [1, 1]} : vector<2x512xf32> to vector<2x128xf32>
    %1090 = arith.negf %1089 : vector<2x128xf32>
    %1091 = math.exp %1090 : vector<2x128xf32>
    %cst_514 = arith.constant 1.000000e+00 : f32
    %1092 = vector.broadcast %cst_514 : f32 to vector<2x128xf32>
    %1093 = arith.addf %1092, %1091 : vector<2x128xf32>
    %1094 = arith.divf %1092, %1093 : vector<2x128xf32>
    %1095 = vector.extract_strided_slice %1061 {offsets = [0, 128], sizes = [2, 128], strides = [1, 1]} : vector<2x512xf32> to vector<2x128xf32>
    %1096 = arith.negf %1095 : vector<2x128xf32>
    %1097 = math.exp %1096 : vector<2x128xf32>
    %cst_515 = arith.constant 1.000000e+00 : f32
    %1098 = vector.broadcast %cst_515 : f32 to vector<2x128xf32>
    %1099 = arith.addf %1098, %1097 : vector<2x128xf32>
    %1100 = arith.divf %1098, %1099 : vector<2x128xf32>
    %1101 = vector.extract_strided_slice %1061 {offsets = [0, 256], sizes = [2, 128], strides = [1, 1]} : vector<2x512xf32> to vector<2x128xf32>
    %1102 = math.tanh %1101 : vector<2x128xf32>
    %1103 = vector.extract_strided_slice %1061 {offsets = [0, 384], sizes = [2, 128], strides = [1, 1]} : vector<2x512xf32> to vector<2x128xf32>
    %1104 = arith.negf %1103 : vector<2x128xf32>
    %1105 = math.exp %1104 : vector<2x128xf32>
    %cst_516 = arith.constant 1.000000e+00 : f32
    %1106 = vector.broadcast %cst_516 : f32 to vector<2x128xf32>
    %1107 = arith.addf %1106, %1105 : vector<2x128xf32>
    %1108 = arith.divf %1106, %1107 : vector<2x128xf32>
    %1109 = arith.mulf %1100, %1088 : vector<2x128xf32>
    %1110 = arith.mulf %1094, %1102 : vector<2x128xf32>
    %1111 = arith.addf %1109, %1110 : vector<2x128xf32>
    %1112 = math.tanh %1111 : vector<2x128xf32>
    %1113 = arith.mulf %1108, %1112 : vector<2x128xf32>
    %c0_517 = arith.constant 0 : index
    %c0_518 = arith.constant 0 : index
    %1114 = vector.load %arg14[%c0_517, %c0_518] : memref<2x128xf32, #tpu.memory_space<vmem>>, vector<2x128xf32>
    tpu.vector_store %arg14[%c0_517, %c0_518], %1087 {strides = array<i32>} : memref<2x128xf32, #tpu.memory_space<vmem>>, vector<2x128xf32>,
    %c0_519 = arith.constant 0 : index
    %c0_520 = arith.constant 0 : index
    %1115 = vector.load %arg15[%c0_519, %c0_520] : memref<2x128xf32, #tpu.memory_space<vmem>>, vector<2x128xf32>
    tpu.vector_store %arg15[%c0_519, %c0_520], %1085 {strides = array<i32>} : memref<2x128xf32, #tpu.memory_space<vmem>>, vector<2x128xf32>,
    %c0_521 = arith.constant 0 : index
    %c0_522 = arith.constant 0 : index
    %1116 = vector.load %arg16[%c0_521, %c0_522] : memref<2x128xf32, #tpu.memory_space<vmem>>, vector<2x128xf32>
    tpu.vector_store %arg16[%c0_521, %c0_522], %1113 {strides = array<i32>} : memref<2x128xf32, #tpu.memory_space<vmem>>, vector<2x128xf32>,
    %c0_523 = arith.constant 0 : index
    %c0_524 = arith.constant 0 : index
    %1117 = vector.load %arg17[%c0_523, %c0_524] : memref<2x128xf32, #tpu.memory_space<vmem>>, vector<2x128xf32>
    tpu.vector_store %arg17[%c0_523, %c0_524], %1111 {strides = array<i32>} : memref<2x128xf32, #tpu.memory_space<vmem>>, vector<2x128xf32>,
    %1118 = arith.index_cast %c5_i32_495 : i32 to index
    %c0_525 = arith.constant 0 : index
    %c0_526 = arith.constant 0 : index
    %1119 = vector.load %arg12[%1118, %c0_525, %c0_526] : memref<8x2x128xf32, #tpu.memory_space<vmem>>, vector<1x2x128xf32>
    %1120 = vector.shape_cast %1119 : vector<1x2x128xf32> to vector<2x128xf32>
    %1121 = vector.shape_cast %1087 : vector<2x128xf32> to vector<1x2x128xf32>
    tpu.vector_store %arg12[%1118, %c0_525, %c0_526], %1121 {strides = array<i32>} : memref<8x2x128xf32, #tpu.memory_space<vmem>>, vector<1x2x128xf32>,
    %1122 = arith.index_cast %1049 : i32 to index
    %c0_527 = arith.constant 0 : index
    %c0_528 = arith.constant 0 : index
    %1123 = vector.load %arg13[%1122, %c0_527, %c0_528] : memref<8x2x128xf32, #tpu.memory_space<vmem>>, vector<1x2x128xf32>
    %1124 = vector.shape_cast %1123 : vector<1x2x128xf32> to vector<2x128xf32>
    %1125 = vector.shape_cast %1113 : vector<2x128xf32> to vector<1x2x128xf32>
    tpu.vector_store %arg13[%1122, %c0_527, %c0_528], %1125 {strides = array<i32>} : memref<8x2x128xf32, #tpu.memory_space<vmem>>, vector<1x2x128xf32>,
    %c6_i32_529 = arith.constant 6 : i32
    %c7_i32_530 = arith.constant 7 : i32
    %1126 = arith.subi %c7_i32_530, %c6_i32_529 : i32
    %1127 = arith.index_cast %c6_i32_529 : i32 to index
    %c0_531 = arith.constant 0 : index
    %c0_532 = arith.constant 0 : index
    %1128 = vector.load %arg10[%1127, %c0_531, %c0_532] : memref<8x2x512xf32, #tpu.memory_space<vmem>>, vector<1x2x512xf32>
    %1129 = vector.shape_cast %1128 : vector<1x2x512xf32> to vector<2x512xf32>
    %c0_533 = arith.constant 0 : index
    %c0_534 = arith.constant 0 : index
    %1130 = vector.load %arg14[%c0_533, %c0_534] : memref<2x128xf32, #tpu.memory_space<vmem>>, vector<2x128xf32>
    %cst_535 = arith.constant dense<0.000000e+00> : vector<2x512xf32>
    %1131 = tpu.matmul %1130, %645, %cst_535 {dimension_numbers = #tpu.dot_dimension_numbers<[1], [0], [0], [1], [0, 0, 1, 1], [], []>} : vector<2x128xf32>, vector<128x512xf32>, vector<2x512xf32> -> vector<2x512xf32>
    %1132 = arith.addf %1129, %1131 : vector<2x512xf32>
    %1133 = arith.index_cast %1126 : i32 to index
    %c0_536 = arith.constant 0 : index
    %c0_537 = arith.constant 0 : index
    %1134 = vector.load %arg11[%1133, %c0_536, %c0_537] : memref<8x2x512xf32, #tpu.memory_space<vmem>>, vector<1x2x512xf32>
    %1135 = vector.shape_cast %1134 : vector<1x2x512xf32> to vector<2x512xf32>
    %c0_538 = arith.constant 0 : index
    %c0_539 = arith.constant 0 : index
    %1136 = vector.load %arg16[%c0_538, %c0_539] : memref<2x128xf32, #tpu.memory_space<vmem>>, vector<2x128xf32>
    %cst_540 = arith.constant dense<0.000000e+00> : vector<2x512xf32>
    %1137 = tpu.matmul %1136, %646, %cst_540 {dimension_numbers = #tpu.dot_dimension_numbers<[1], [0], [0], [1], [0, 0, 1, 1], [], []>} : vector<2x128xf32>, vector<128x512xf32>, vector<2x512xf32> -> vector<2x512xf32>
    %1138 = arith.addf %1135, %1137 : vector<2x512xf32>
    %c0_541 = arith.constant 0 : index
    %c0_542 = arith.constant 0 : index
    %1139 = vector.load %arg15[%c0_541, %c0_542] : memref<2x128xf32, #tpu.memory_space<vmem>>, vector<2x128xf32>
    %1140 = vector.extract_strided_slice %1132 {offsets = [0, 0], sizes = [2, 128], strides = [1, 1]} : vector<2x512xf32> to vector<2x128xf32>
    %1141 = arith.negf %1140 : vector<2x128xf32>
    %1142 = math.exp %1141 : vector<2x128xf32>
    %cst_543 = arith.constant 1.000000e+00 : f32
    %1143 = vector.broadcast %cst_543 : f32 to vector<2x128xf32>
    %1144 = arith.addf %1143, %1142 : vector<2x128xf32>
    %1145 = arith.divf %1143, %1144 : vector<2x128xf32>
    %1146 = vector.extract_strided_slice %1132 {offsets = [0, 128], sizes = [2, 128], strides = [1, 1]} : vector<2x512xf32> to vector<2x128xf32>
    %1147 = arith.negf %1146 : vector<2x128xf32>
    %1148 = math.exp %1147 : vector<2x128xf32>
    %cst_544 = arith.constant 1.000000e+00 : f32
    %1149 = vector.broadcast %cst_544 : f32 to vector<2x128xf32>
    %1150 = arith.addf %1149, %1148 : vector<2x128xf32>
    %1151 = arith.divf %1149, %1150 : vector<2x128xf32>
    %1152 = vector.extract_strided_slice %1132 {offsets = [0, 256], sizes = [2, 128], strides = [1, 1]} : vector<2x512xf32> to vector<2x128xf32>
    %1153 = math.tanh %1152 : vector<2x128xf32>
    %1154 = vector.extract_strided_slice %1132 {offsets = [0, 384], sizes = [2, 128], strides = [1, 1]} : vector<2x512xf32> to vector<2x128xf32>
    %1155 = arith.negf %1154 : vector<2x128xf32>
    %1156 = math.exp %1155 : vector<2x128xf32>
    %cst_545 = arith.constant 1.000000e+00 : f32
    %1157 = vector.broadcast %cst_545 : f32 to vector<2x128xf32>
    %1158 = arith.addf %1157, %1156 : vector<2x128xf32>
    %1159 = arith.divf %1157, %1158 : vector<2x128xf32>
    %1160 = arith.mulf %1151, %1139 : vector<2x128xf32>
    %1161 = arith.mulf %1145, %1153 : vector<2x128xf32>
    %1162 = arith.addf %1160, %1161 : vector<2x128xf32>
    %1163 = math.tanh %1162 : vector<2x128xf32>
    %1164 = arith.mulf %1159, %1163 : vector<2x128xf32>
    %c0_546 = arith.constant 0 : index
    %c0_547 = arith.constant 0 : index
    %1165 = vector.load %arg17[%c0_546, %c0_547] : memref<2x128xf32, #tpu.memory_space<vmem>>, vector<2x128xf32>
    %1166 = vector.extract_strided_slice %1138 {offsets = [0, 0], sizes = [2, 128], strides = [1, 1]} : vector<2x512xf32> to vector<2x128xf32>
    %1167 = arith.negf %1166 : vector<2x128xf32>
    %1168 = math.exp %1167 : vector<2x128xf32>
    %cst_548 = arith.constant 1.000000e+00 : f32
    %1169 = vector.broadcast %cst_548 : f32 to vector<2x128xf32>
    %1170 = arith.addf %1169, %1168 : vector<2x128xf32>
    %1171 = arith.divf %1169, %1170 : vector<2x128xf32>
    %1172 = vector.extract_strided_slice %1138 {offsets = [0, 128], sizes = [2, 128], strides = [1, 1]} : vector<2x512xf32> to vector<2x128xf32>
    %1173 = arith.negf %1172 : vector<2x128xf32>
    %1174 = math.exp %1173 : vector<2x128xf32>
    %cst_549 = arith.constant 1.000000e+00 : f32
    %1175 = vector.broadcast %cst_549 : f32 to vector<2x128xf32>
    %1176 = arith.addf %1175, %1174 : vector<2x128xf32>
    %1177 = arith.divf %1175, %1176 : vector<2x128xf32>
    %1178 = vector.extract_strided_slice %1138 {offsets = [0, 256], sizes = [2, 128], strides = [1, 1]} : vector<2x512xf32> to vector<2x128xf32>
    %1179 = math.tanh %1178 : vector<2x128xf32>
    %1180 = vector.extract_strided_slice %1138 {offsets = [0, 384], sizes = [2, 128], strides = [1, 1]} : vector<2x512xf32> to vector<2x128xf32>
    %1181 = arith.negf %1180 : vector<2x128xf32>
    %1182 = math.exp %1181 : vector<2x128xf32>
    %cst_550 = arith.constant 1.000000e+00 : f32
    %1183 = vector.broadcast %cst_550 : f32 to vector<2x128xf32>
    %1184 = arith.addf %1183, %1182 : vector<2x128xf32>
    %1185 = arith.divf %1183, %1184 : vector<2x128xf32>
    %1186 = arith.mulf %1177, %1165 : vector<2x128xf32>
    %1187 = arith.mulf %1171, %1179 : vector<2x128xf32>
    %1188 = arith.addf %1186, %1187 : vector<2x128xf32>
    %1189 = math.tanh %1188 : vector<2x128xf32>
    %1190 = arith.mulf %1185, %1189 : vector<2x128xf32>
    %c0_551 = arith.constant 0 : index
    %c0_552 = arith.constant 0 : index
    %1191 = vector.load %arg14[%c0_551, %c0_552] : memref<2x128xf32, #tpu.memory_space<vmem>>, vector<2x128xf32>
    tpu.vector_store %arg14[%c0_551, %c0_552], %1164 {strides = array<i32>} : memref<2x128xf32, #tpu.memory_space<vmem>>, vector<2x128xf32>,
    %c0_553 = arith.constant 0 : index
    %c0_554 = arith.constant 0 : index
    %1192 = vector.load %arg15[%c0_553, %c0_554] : memref<2x128xf32, #tpu.memory_space<vmem>>, vector<2x128xf32>
    tpu.vector_store %arg15[%c0_553, %c0_554], %1162 {strides = array<i32>} : memref<2x128xf32, #tpu.memory_space<vmem>>, vector<2x128xf32>,
    %c0_555 = arith.constant 0 : index
    %c0_556 = arith.constant 0 : index
    %1193 = vector.load %arg16[%c0_555, %c0_556] : memref<2x128xf32, #tpu.memory_space<vmem>>, vector<2x128xf32>
    tpu.vector_store %arg16[%c0_555, %c0_556], %1190 {strides = array<i32>} : memref<2x128xf32, #tpu.memory_space<vmem>>, vector<2x128xf32>,
    %c0_557 = arith.constant 0 : index
    %c0_558 = arith.constant 0 : index
    %1194 = vector.load %arg17[%c0_557, %c0_558] : memref<2x128xf32, #tpu.memory_space<vmem>>, vector<2x128xf32>
    tpu.vector_store %arg17[%c0_557, %c0_558], %1188 {strides = array<i32>} : memref<2x128xf32, #tpu.memory_space<vmem>>, vector<2x128xf32>,
    %1195 = arith.index_cast %c6_i32_529 : i32 to index
    %c0_559 = arith.constant 0 : index
    %c0_560 = arith.constant 0 : index
    %1196 = vector.load %arg12[%1195, %c0_559, %c0_560] : memref<8x2x128xf32, #tpu.memory_space<vmem>>, vector<1x2x128xf32>
    %1197 = vector.shape_cast %1196 : vector<1x2x128xf32> to vector<2x128xf32>
    %1198 = vector.shape_cast %1164 : vector<2x128xf32> to vector<1x2x128xf32>
    tpu.vector_store %arg12[%1195, %c0_559, %c0_560], %1198 {strides = array<i32>} : memref<8x2x128xf32, #tpu.memory_space<vmem>>, vector<1x2x128xf32>,
    %1199 = arith.index_cast %1126 : i32 to index
    %c0_561 = arith.constant 0 : index
    %c0_562 = arith.constant 0 : index
    %1200 = vector.load %arg13[%1199, %c0_561, %c0_562] : memref<8x2x128xf32, #tpu.memory_space<vmem>>, vector<1x2x128xf32>
    %1201 = vector.shape_cast %1200 : vector<1x2x128xf32> to vector<2x128xf32>
    %1202 = vector.shape_cast %1190 : vector<2x128xf32> to vector<1x2x128xf32>
    tpu.vector_store %arg13[%1199, %c0_561, %c0_562], %1202 {strides = array<i32>} : memref<8x2x128xf32, #tpu.memory_space<vmem>>, vector<1x2x128xf32>,
    %c7_i32_563 = arith.constant 7 : i32
    %c7_i32_564 = arith.constant 7 : i32
    %1203 = arith.subi %c7_i32_564, %c7_i32_563 : i32
    %1204 = arith.index_cast %c7_i32_563 : i32 to index
    %c0_565 = arith.constant 0 : index
    %c0_566 = arith.constant 0 : index
    %1205 = vector.load %arg10[%1204, %c0_565, %c0_566] : memref<8x2x512xf32, #tpu.memory_space<vmem>>, vector<1x2x512xf32>
    %1206 = vector.shape_cast %1205 : vector<1x2x512xf32> to vector<2x512xf32>
    %c0_567 = arith.constant 0 : index
    %c0_568 = arith.constant 0 : index
    %1207 = vector.load %arg14[%c0_567, %c0_568] : memref<2x128xf32, #tpu.memory_space<vmem>>, vector<2x128xf32>
    %cst_569 = arith.constant dense<0.000000e+00> : vector<2x512xf32>
    %1208 = tpu.matmul %1207, %645, %cst_569 {dimension_numbers = #tpu.dot_dimension_numbers<[1], [0], [0], [1], [0, 0, 1, 1], [], []>} : vector<2x128xf32>, vector<128x512xf32>, vector<2x512xf32> -> vector<2x512xf32>
    %1209 = arith.addf %1206, %1208 : vector<2x512xf32>
    %1210 = arith.index_cast %1203 : i32 to index
    %c0_570 = arith.constant 0 : index
    %c0_571 = arith.constant 0 : index
    %1211 = vector.load %arg11[%1210, %c0_570, %c0_571] : memref<8x2x512xf32, #tpu.memory_space<vmem>>, vector<1x2x512xf32>
    %1212 = vector.shape_cast %1211 : vector<1x2x512xf32> to vector<2x512xf32>
    %c0_572 = arith.constant 0 : index
    %c0_573 = arith.constant 0 : index
    %1213 = vector.load %arg16[%c0_572, %c0_573] : memref<2x128xf32, #tpu.memory_space<vmem>>, vector<2x128xf32>
    %cst_574 = arith.constant dense<0.000000e+00> : vector<2x512xf32>
    %1214 = tpu.matmul %1213, %646, %cst_574 {dimension_numbers = #tpu.dot_dimension_numbers<[1], [0], [0], [1], [0, 0, 1, 1], [], []>} : vector<2x128xf32>, vector<128x512xf32>, vector<2x512xf32> -> vector<2x512xf32>
    %1215 = arith.addf %1212, %1214 : vector<2x512xf32>
    %c0_575 = arith.constant 0 : index
    %c0_576 = arith.constant 0 : index
    %1216 = vector.load %arg15[%c0_575, %c0_576] : memref<2x128xf32, #tpu.memory_space<vmem>>, vector<2x128xf32>
    %1217 = vector.extract_strided_slice %1209 {offsets = [0, 0], sizes = [2, 128], strides = [1, 1]} : vector<2x512xf32> to vector<2x128xf32>
    %1218 = arith.negf %1217 : vector<2x128xf32>
    %1219 = math.exp %1218 : vector<2x128xf32>
    %cst_577 = arith.constant 1.000000e+00 : f32
    %1220 = vector.broadcast %cst_577 : f32 to vector<2x128xf32>
    %1221 = arith.addf %1220, %1219 : vector<2x128xf32>
    %1222 = arith.divf %1220, %1221 : vector<2x128xf32>
    %1223 = vector.extract_strided_slice %1209 {offsets = [0, 128], sizes = [2, 128], strides = [1, 1]} : vector<2x512xf32> to vector<2x128xf32>
    %1224 = arith.negf %1223 : vector<2x128xf32>
    %1225 = math.exp %1224 : vector<2x128xf32>
    %cst_578 = arith.constant 1.000000e+00 : f32
    %1226 = vector.broadcast %cst_578 : f32 to vector<2x128xf32>
    %1227 = arith.addf %1226, %1225 : vector<2x128xf32>
    %1228 = arith.divf %1226, %1227 : vector<2x128xf32>
    %1229 = vector.extract_strided_slice %1209 {offsets = [0, 256], sizes = [2, 128], strides = [1, 1]} : vector<2x512xf32> to vector<2x128xf32>
    %1230 = math.tanh %1229 : vector<2x128xf32>
    %1231 = vector.extract_strided_slice %1209 {offsets = [0, 384], sizes = [2, 128], strides = [1, 1]} : vector<2x512xf32> to vector<2x128xf32>
    %1232 = arith.negf %1231 : vector<2x128xf32>
    %1233 = math.exp %1232 : vector<2x128xf32>
    %cst_579 = arith.constant 1.000000e+00 : f32
    %1234 = vector.broadcast %cst_579 : f32 to vector<2x128xf32>
    %1235 = arith.addf %1234, %1233 : vector<2x128xf32>
    %1236 = arith.divf %1234, %1235 : vector<2x128xf32>
    %1237 = arith.mulf %1228, %1216 : vector<2x128xf32>
    %1238 = arith.mulf %1222, %1230 : vector<2x128xf32>
    %1239 = arith.addf %1237, %1238 : vector<2x128xf32>
    %1240 = math.tanh %1239 : vector<2x128xf32>
    %1241 = arith.mulf %1236, %1240 : vector<2x128xf32>
    %c0_580 = arith.constant 0 : index
    %c0_581 = arith.constant 0 : index
    %1242 = vector.load %arg17[%c0_580, %c0_581] : memref<2x128xf32, #tpu.memory_space<vmem>>, vector<2x128xf32>
    %1243 = vector.extract_strided_slice %1215 {offsets = [0, 0], sizes = [2, 128], strides = [1, 1]} : vector<2x512xf32> to vector<2x128xf32>
    %1244 = arith.negf %1243 : vector<2x128xf32>
    %1245 = math.exp %1244 : vector<2x128xf32>
    %cst_582 = arith.constant 1.000000e+00 : f32
    %1246 = vector.broadcast %cst_582 : f32 to vector<2x128xf32>
    %1247 = arith.addf %1246, %1245 : vector<2x128xf32>
    %1248 = arith.divf %1246, %1247 : vector<2x128xf32>
    %1249 = vector.extract_strided_slice %1215 {offsets = [0, 128], sizes = [2, 128], strides = [1, 1]} : vector<2x512xf32> to vector<2x128xf32>
    %1250 = arith.negf %1249 : vector<2x128xf32>
    %1251 = math.exp %1250 : vector<2x128xf32>
    %cst_583 = arith.constant 1.000000e+00 : f32
    %1252 = vector.broadcast %cst_583 : f32 to vector<2x128xf32>
    %1253 = arith.addf %1252, %1251 : vector<2x128xf32>
    %1254 = arith.divf %1252, %1253 : vector<2x128xf32>
    %1255 = vector.extract_strided_slice %1215 {offsets = [0, 256], sizes = [2, 128], strides = [1, 1]} : vector<2x512xf32> to vector<2x128xf32>
    %1256 = math.tanh %1255 : vector<2x128xf32>
    %1257 = vector.extract_strided_slice %1215 {offsets = [0, 384], sizes = [2, 128], strides = [1, 1]} : vector<2x512xf32> to vector<2x128xf32>
    %1258 = arith.negf %1257 : vector<2x128xf32>
    %1259 = math.exp %1258 : vector<2x128xf32>
    %cst_584 = arith.constant 1.000000e+00 : f32
    %1260 = vector.broadcast %cst_584 : f32 to vector<2x128xf32>
    %1261 = arith.addf %1260, %1259 : vector<2x128xf32>
    %1262 = arith.divf %1260, %1261 : vector<2x128xf32>
    %1263 = arith.mulf %1254, %1242 : vector<2x128xf32>
    %1264 = arith.mulf %1248, %1256 : vector<2x128xf32>
    %1265 = arith.addf %1263, %1264 : vector<2x128xf32>
    %1266 = math.tanh %1265 : vector<2x128xf32>
    %1267 = arith.mulf %1262, %1266 : vector<2x128xf32>
    %c0_585 = arith.constant 0 : index
    %c0_586 = arith.constant 0 : index
    %1268 = vector.load %arg14[%c0_585, %c0_586] : memref<2x128xf32, #tpu.memory_space<vmem>>, vector<2x128xf32>
    tpu.vector_store %arg14[%c0_585, %c0_586], %1241 {strides = array<i32>} : memref<2x128xf32, #tpu.memory_space<vmem>>, vector<2x128xf32>,
    %c0_587 = arith.constant 0 : index
    %c0_588 = arith.constant 0 : index
    %1269 = vector.load %arg15[%c0_587, %c0_588] : memref<2x128xf32, #tpu.memory_space<vmem>>, vector<2x128xf32>
    tpu.vector_store %arg15[%c0_587, %c0_588], %1239 {strides = array<i32>} : memref<2x128xf32, #tpu.memory_space<vmem>>, vector<2x128xf32>,
    %c0_589 = arith.constant 0 : index
    %c0_590 = arith.constant 0 : index
    %1270 = vector.load %arg16[%c0_589, %c0_590] : memref<2x128xf32, #tpu.memory_space<vmem>>, vector<2x128xf32>
    tpu.vector_store %arg16[%c0_589, %c0_590], %1267 {strides = array<i32>} : memref<2x128xf32, #tpu.memory_space<vmem>>, vector<2x128xf32>,
    %c0_591 = arith.constant 0 : index
    %c0_592 = arith.constant 0 : index
    %1271 = vector.load %arg17[%c0_591, %c0_592] : memref<2x128xf32, #tpu.memory_space<vmem>>, vector<2x128xf32>
    tpu.vector_store %arg17[%c0_591, %c0_592], %1265 {strides = array<i32>} : memref<2x128xf32, #tpu.memory_space<vmem>>, vector<2x128xf32>,
    %1272 = arith.index_cast %c7_i32_563 : i32 to index
    %c0_593 = arith.constant 0 : index
    %c0_594 = arith.constant 0 : index
    %1273 = vector.load %arg12[%1272, %c0_593, %c0_594] : memref<8x2x128xf32, #tpu.memory_space<vmem>>, vector<1x2x128xf32>
    %1274 = vector.shape_cast %1273 : vector<1x2x128xf32> to vector<2x128xf32>
    %1275 = vector.shape_cast %1241 : vector<2x128xf32> to vector<1x2x128xf32>
    tpu.vector_store %arg12[%1272, %c0_593, %c0_594], %1275 {strides = array<i32>} : memref<8x2x128xf32, #tpu.memory_space<vmem>>, vector<1x2x128xf32>,
    %1276 = arith.index_cast %1203 : i32 to index
    %c0_595 = arith.constant 0 : index
    %c0_596 = arith.constant 0 : index
    %1277 = vector.load %arg13[%1276, %c0_595, %c0_596] : memref<8x2x128xf32, #tpu.memory_space<vmem>>, vector<1x2x128xf32>
    %1278 = vector.shape_cast %1277 : vector<1x2x128xf32> to vector<2x128xf32>
    %1279 = vector.shape_cast %1267 : vector<2x128xf32> to vector<1x2x128xf32>
    tpu.vector_store %arg13[%1276, %c0_595, %c0_596], %1279 {strides = array<i32>} : memref<8x2x128xf32, #tpu.memory_space<vmem>>, vector<1x2x128xf32>,
    %c8_i32_597 = arith.constant 8 : i32
    %c0_598 = arith.constant 0 : index
    %c0_599 = arith.constant 0 : index
    %c0_600 = arith.constant 0 : index
    %1280 = vector.load %arg12[%c0_598, %c0_599, %c0_600] : memref<8x2x128xf32, #tpu.memory_space<vmem>>, vector<8x2x128xf32>
    %c0_601 = arith.constant 0 : index
    %c0_602 = arith.constant 0 : index
    %c0_603 = arith.constant 0 : index
    %1281 = vector.load %arg13[%c0_601, %c0_602, %c0_603] : memref<8x2x128xf32, #tpu.memory_space<vmem>>, vector<8x2x128xf32>
    %1282 = tpu.concatenate %1280, %1281 in 2 : vector<8x2x128xf32>, vector<8x2x128xf32> -> vector<8x2x256xf32>
    %c0_604 = arith.constant 0 : index
    %c0_605 = arith.constant 0 : index
    %c0_606 = arith.constant 0 : index
    %1283 = vector.load %arg9[%c0_604, %c0_605, %c0_606] : memref<8x2x256xf32, #tpu.memory_space<vmem>>, vector<8x2x256xf32>
    tpu.vector_store %arg9[%c0_604, %c0_605, %c0_606], %1282 {strides = array<i32>} : memref<8x2x256xf32, #tpu.memory_space<vmem>>, vector<8x2x256xf32>,
    return
  }
}

</mosaic_0001>

<llo_original>
// kernel: entity_model_forward.3
$region0: #{entity_model_forward.3}
  #allocation0 [shape = 'u32[]', space=smem, size = 0x4, offset = 0x4, fixed_abs, tag = 'smem constant byte address 0x4 - core index']
  #allocation1 [shape = 'u32[72,128]{1,0:T(1,128)}', space=vmem, size = 0x9000, scoped, tag = 'internal scratch']
  %s0 = inlined_call_operand.vmem [shape: f32[2,8,768], index: 0, kind: input, shape index: {}]
  %s1 = inlined_call_operand.vmem [shape: f32[2,8,256], index: 1, kind: input, shape index: {}]
  %s2 = inlined_call_operand.vmem [shape: f32[768,64], index: 2, kind: input, shape index: {}]
  %s3 = inlined_call_operand.vmem [shape: f32[256,64], index: 3, kind: input, shape index: {}]
  %s4 = inlined_call_operand.vmem [shape: f32[1,64], index: 4, kind: input, shape index: {}]
  %s5 = inlined_call_operand.vmem [shape: f32[5,32], index: 5, kind: input, shape index: {}]
  %s6 = inlined_call_operand.hbm [shape: f32[2,5,8,8], index: 6, kind: output, shape index: {}]
  %s7 = sld [smem:[#allocation0]]
  $region57: #{entity_model_forward.3} parent=0
    _
  %s9 = ssub.s32 1, %s7
  %s10 = scalar_select 0, %s9, %s7
  $region1: #{entity_model_forward.3} parent=0
    #allocation2 [shape = 'u8[40960]{0}', space=vmem, size = 0xa000, scoped, tag = 'output window, operand 0']
    #allocation3 [shape = 's32[2]{0}', space=sflag, size = 0x8, scoped, tag = 'scoped memory for entity_model_forward.3']
    %11 = vsyncpa [#allocation3], 0
    %s12 = scalar_lea.sflag [#allocation3], 1
    %13 = vsyncpa %s12, 0
    loop: start=0, step=1, limit=4
    $region2: #{entity_model_forward.3} parent=1 // loop_pre_header
      _
    $region3: #{entity_model_forward.3} parent=1 // loop_header
      %s15 = sphi 0, %s19
      %p16 = scmp.ge.s32.totalorder %s15, 4
      %s25 = sphi 0, %s27
      %s28 = sphi 0, %s25
      %s29 = sphi 0, %s28
      %s45 = sphi 0, %s29
      %s51 = sphi 0, %s53
      %s54 = sphi 0, %s51
      %s55 = sphi 0, %s54
      %s71 = sphi 0, %s55
      %s75 = sphi 0, %s75
      %s77 = sphi 0, %s75
      %s78 = sphi 0, %s77
      %s92 = sphi 0, %s78
      %s96 = sphi 0, %s96
      %s98 = sphi 0, %s96
      %s99 = sphi 0, %s98
      %s113 = sphi 0, %s99
      %s117 = sphi 0, %s117
      %s119 = sphi 0, %s117
      %s120 = sphi 0, %s119
      %s134 = sphi 0, %s120
      %s138 = sphi 0, %s138
      %s140 = sphi 0, %s138
      %s141 = sphi 0, %s140
      %s155 = sphi 0, %s141
      %s161 = sphi 0, %s163
      %s164 = sphi 0, %s161
      %s165 = sphi 0, %s164
      %s181 = sphi 0, %s165
    $region4: #{entity_model_forward.3} parent=1 // loop_header_branch
      %18 = sbr.rel (%p16) target = $region8
    $region5: #{entity_model_forward.3} parent=1 // loop_body
      %s20 = ssub.s32 %s15, 1
      %s21 = ssub.s32 %s15, 2
      %s22 = sadd.s32 %s15, 1
      %s23 = ssub.s32 %s15, %s22
      %p24 = scmp.eq.s32.totalorder %s23, 0
      %s26 = sadd.s32 %s25, 1
      %s27 = scalar_select %p24, %s25, %s26
      %p30 = pneg %p24
      %p31 = scmp.eq.s32.totalorder %s15, 1
      %p32 = por %p30, %p31
      %p33 = scmp.ne.s32.totalorder %s25, %s28
      %p34 = scmp.eq.s32.totalorder %s15, 0
      %p35 = por %p33, %p34
      %p36 = scmp.ne.s32.totalorder %s25, %s28
      %p37 = scmp.eq.s32.totalorder %s20, 1
      %p38 = por %p36, %p37
      %p39 = scmp.ne.s32.totalorder %s28, %s29
      %p40 = scmp.eq.s32.totalorder %s20, 0
      %p41 = por %p39, %p40
      %p42 = scmp.ne.s32.totalorder %s28, %s29
      %p43 = scmp.eq.s32.totalorder %s21, 1
      %p44 = por %p42, %p43
      %p46 = scmp.ne.s32.totalorder %s29, %s45
      %p47 = scmp.eq.s32.totalorder %s21, 0
      %p48 = por %p46, %p47
      %s49 = ssub.s32 %s15, %s22
      %p50 = scmp.eq.s32.totalorder %s49, 0
      %s52 = sadd.s32 %s51, 1
      %s53 = scalar_select %p50, %s51, %s52
      %p56 = pneg %p50
      %p57 = scmp.eq.s32.totalorder %s15, 1
      %p58 = por %p56, %p57
      %p59 = scmp.ne.s32.totalorder %s51, %s54
      %p60 = scmp.eq.s32.totalorder %s15, 0
      %p61 = por %p59, %p60
      %p62 = scmp.ne.s32.totalorder %s51, %s54
      %p63 = scmp.eq.s32.totalorder %s20, 1
      %p64 = por %p62, %p63
      %p65 = scmp.ne.s32.totalorder %s54, %s55
      %p66 = scmp.eq.s32.totalorder %s20, 0
      %p67 = por %p65, %p66
      %p68 = scmp.ne.s32.totalorder %s54, %s55
      %p69 = scmp.eq.s32.totalorder %s21, 1
      %p70 = por %p68, %p69
      %p72 = scmp.ne.s32.totalorder %s55, %s71
      %p73 = scmp.eq.s32.totalorder %s21, 0
      %p74 = por %p72, %p73
      %s76 = sadd.s32 %s75, 1
      %p79 = scmp.eq.s32.totalorder %s15, 1
      %p80 = scmp.ne.s32.totalorder %s75, %s77
      %p81 = scmp.eq.s32.totalorder %s15, 0
      %p82 = por %p80, %p81
      %p83 = scmp.ne.s32.totalorder %s75, %s77
      %p84 = scmp.eq.s32.totalorder %s20, 1
      %p85 = por %p83, %p84
      %p86 = scmp.ne.s32.totalorder %s77, %s78
      %p87 = scmp.eq.s32.totalorder %s20, 0
      %p88 = por %p86, %p87
      %p89 = scmp.ne.s32.totalorder %s77, %s78
      %p90 = scmp.eq.s32.totalorder %s21, 1
      %p91 = por %p89, %p90
      %p93 = scmp.ne.s32.totalorder %s78, %s92
      %p94 = scmp.eq.s32.totalorder %s21, 0
      %p95 = por %p93, %p94
      %s97 = sadd.s32 %s96, 1
      %p100 = scmp.eq.s32.totalorder %s15, 1
      %p101 = scmp.ne.s32.totalorder %s96, %s98
      %p102 = scmp.eq.s32.totalorder %s15, 0
      %p103 = por %p101, %p102
      %p104 = scmp.ne.s32.totalorder %s96, %s98
      %p105 = scmp.eq.s32.totalorder %s20, 1
      %p106 = por %p104, %p105
      %p107 = scmp.ne.s32.totalorder %s98, %s99
      %p108 = scmp.eq.s32.totalorder %s20, 0
      %p109 = por %p107, %p108
      %p110 = scmp.ne.s32.totalorder %s98, %s99
      %p111 = scmp.eq.s32.totalorder %s21, 1
      %p112 = por %p110, %p111
      %p114 = scmp.ne.s32.totalorder %s99, %s113
      %p115 = scmp.eq.s32.totalorder %s21, 0
      %p116 = por %p114, %p115
      %s118 = sadd.s32 %s117, 1
      %p121 = scmp.eq.s32.totalorder %s15, 1
      %p122 = scmp.ne.s32.totalorder %s117, %s119
      %p123 = scmp.eq.s32.totalorder %s15, 0
      %p124 = por %p122, %p123
      %p125 = scmp.ne.s32.totalorder %s117, %s119
      %p126 = scmp.eq.s32.totalorder %s20, 1
      %p127 = por %p125, %p126
      %p128 = scmp.ne.s32.totalorder %s119, %s120
      %p129 = scmp.eq.s32.totalorder %s20, 0
      %p130 = por %p128, %p129
      %p131 = scmp.ne.s32.totalorder %s119, %s120
      %p132 = scmp.eq.s32.totalorder %s21, 1
      %p133 = por %p131, %p132
      %p135 = scmp.ne.s32.totalorder %s120, %s134
      %p136 = scmp.eq.s32.totalorder %s21, 0
      %p137 = por %p135, %p136
      %s139 = sadd.s32 %s138, 1
      %p142 = scmp.eq.s32.totalorder %s15, 1
      %p143 = scmp.ne.s32.totalorder %s138, %s140
      %p144 = scmp.eq.s32.totalorder %s15, 0
      %p145 = por %p143, %p144
      %p146 = scmp.ne.s32.totalorder %s138, %s140
      %p147 = scmp.eq.s32.totalorder %s20, 1
      %p148 = por %p146, %p147
      %p149 = scmp.ne.s32.totalorder %s140, %s141
      %p150 = scmp.eq.s32.totalorder %s20, 0
      %p151 = por %p149, %p150
      %p152 = scmp.ne.s32.totalorder %s140, %s141
      %p153 = scmp.eq.s32.totalorder %s21, 1
      %p154 = por %p152, %p153
      %p156 = scmp.ne.s32.totalorder %s141, %s155
      %p157 = scmp.eq.s32.totalorder %s21, 0
      %p158 = por %p156, %p157
      %s159 = ssub.s32 %s15, %s22
      %p160 = scmp.eq.s32.totalorder %s159, 0
      %s162 = sadd.s32 %s161, 1
      %s163 = scalar_select %p160, %s161, %s162
      %p166 = pneg %p160
      %p167 = scmp.eq.s32.totalorder %s15, 1
      %p168 = por %p166, %p167
      %p169 = scmp.ne.s32.totalorder %s161, %s164
      %p170 = scmp.eq.s32.totalorder %s15, 0
      %p171 = por %p169, %p170
      %p172 = scmp.ne.s32.totalorder %s161, %s164
      %p173 = scmp.eq.s32.totalorder %s20, 1
      %p174 = por %p172, %p173
      %p175 = scmp.ne.s32.totalorder %s164, %s165
      %p176 = scmp.eq.s32.totalorder %s20, 0
      %p177 = por %p175, %p176
      %p178 = scmp.ne.s32.totalorder %s164, %s165
      %p179 = scmp.eq.s32.totalorder %s21, 1
      %p180 = por %p178, %p179
      %p182 = scmp.ne.s32.totalorder %s165, %s181
      %p183 = scmp.eq.s32.totalorder %s21, 0
      %p184 = por %p182, %p183
      %p185 = scmp.le.s32.totalorder 1, %s15
      %p186 = scmp.lt.s32.totalorder %s15, 3
      %p187 = pnand %p185, %p186
      %p188 = pneg %p187
      // Predicated region
      $region9: #{entity_model_forward.3} parent=5 // pred_check
        _
      $region10: #{entity_model_forward.3} parent=5 // pred_check_branch
        %190 = sbr.rel (%p187) target = $region12
      $region11: #{entity_model_forward.3} parent=5 // pred_region
        %s191 = ssub.s32 %s15, 1
        // Predicated region
        $region13: #{entity_model_forward.3} parent=11 // pred_check
          %p192 = pneg %p88
        $region14: #{entity_model_forward.3} parent=11 // pred_check_branch
          %194 = sbr.rel (%p192) target = $region16
        $region15: #{entity_model_forward.3} parent=11 // pred_region
          _
        $region16: #{entity_model_forward.3} parent=11 // pred_fallthru
          _
        // Predicated region
        $region17: #{entity_model_forward.3} parent=11 // pred_check
          %p195 = pneg %p109
        $region18: #{entity_model_forward.3} parent=11 // pred_check_branch
          %197 = sbr.rel (%p195) target = $region20
        $region19: #{entity_model_forward.3} parent=11 // pred_region
          _
        $region20: #{entity_model_forward.3} parent=11 // pred_fallthru
          _
        // Predicated region
        $region21: #{entity_model_forward.3} parent=11 // pred_check
          %p198 = pneg %p130
        $region22: #{entity_model_forward.3} parent=11 // pred_check_branch
          %200 = sbr.rel (%p198) target = $region24
        $region23: #{entity_model_forward.3} parent=11 // pred_region
          _
        $region24: #{entity_model_forward.3} parent=11 // pred_fallthru
          _
        // Predicated region
        $region25: #{entity_model_forward.3} parent=11 // pred_check
          %p201 = pneg %p151
        $region26: #{entity_model_forward.3} parent=11 // pred_check_branch
          %203 = sbr.rel (%p201) target = $region28
        $region27: #{entity_model_forward.3} parent=11 // pred_region
          _
        $region28: #{entity_model_forward.3} parent=11 // pred_fallthru
          _
      $region12: #{entity_model_forward.3} parent=5 // pred_fallthru
        _
      %p204 = scmp.lt.s32.totalorder %s15, 2
      // Predicated region
      $region29: #{entity_model_forward.3} parent=5 // pred_check
        %p205 = pneg %p204
      $region30: #{entity_model_forward.3} parent=5 // pred_check_branch
        %207 = sbr.rel (%p205) target = $region32
      $region31: #{entity_model_forward.3} parent=5 // pred_region
        // Predicated region
        $region33: #{entity_model_forward.3} parent=31 // pred_check
          %p208 = pneg %p35
        $region34: #{entity_model_forward.3} parent=31 // pred_check_branch
          %210 = sbr.rel (%p208) target = $region36
        $region35: #{entity_model_forward.3} parent=31 // pred_region
          %p211 = scmp.lt.s32.totalorder %s15, 1
          %s212 = scalar_select %p211, %s15, 1
          %s213 = smul.addr %s212, 6
          %s214 = smul.addr %s213, 8
          %s215 = scalar_lea.vmem %s0, %s214
        $region36: #{entity_model_forward.3} parent=31 // pred_fallthru
          _
        // Predicated region
        $region37: #{entity_model_forward.3} parent=31 // pred_check
          %p216 = pneg %p61
        $region38: #{entity_model_forward.3} parent=31 // pred_check_branch
          %218 = sbr.rel (%p216) target = $region40
        $region39: #{entity_model_forward.3} parent=31 // pred_region
          %p219 = scmp.lt.s32.totalorder %s15, 1
          %s220 = scalar_select %p219, %s15, 1
          %s221 = smul.addr %s220, 2
          %s222 = smul.addr %s221, 8
          %s223 = scalar_lea.vmem %s1, %s222
        $region40: #{entity_model_forward.3} parent=31 // pred_fallthru
          _
      $region32: #{entity_model_forward.3} parent=5 // pred_fallthru
        _
      %p224 = scmp.le.s32.totalorder 1, %s15
      %p225 = scmp.lt.s32.totalorder %s15, 3
      %p226 = pnand %p224, %p225
      %p227 = pneg %p226
      // Predicated region
      $region41: #{entity_model_forward.3} parent=5 // pred_check
        _
      $region42: #{entity_model_forward.3} parent=5 // pred_check_branch
        %229 = sbr.rel (%p226) target = $region44
      $region43: #{entity_model_forward.3} parent=5 // pred_region
        %s230 = ssub.s32 %s15, 1
        %p231 = scmp.lt.s32.totalorder %s20, 1
        %s232 = scalar_select %p231, %s20, 1
        %s233 = smul.addr %s232, 6
        %s234 = smul.addr %s233, 8
        %s235 = scalar_lea.vmem %s0, %s234
        %p236 = pneg %p41
        %p237 = pneg %p38
        %p238 = scmp.lt.s32.totalorder %s20, 1
        %s239 = scalar_select %p238, %s20, 1
        %s240 = smul.addr %s239, 2
        %s241 = smul.addr %s240, 8
        %s242 = scalar_lea.vmem %s1, %s241
        %p243 = pneg %p67
        %p244 = pneg %p64
        %p245 = pneg %p88
        %p246 = pneg %p85
        %p247 = pneg %p109
        %p248 = pneg %p106
        %p249 = pneg %p130
        %p250 = pneg %p127
        %p251 = pneg %p151
        %p252 = pneg %p148
        %p253 = pneg %p177
        %p254 = pneg %p174
        %s255 = sand.u32 %s164, 1
        %s256 = scalar_lea.sflag [#allocation3], %s255
        %s257 = sand.u32 %s164, 1
        %s258 = smul.addr %s257, 40
        %s259 = scalar_lea.vmem [#allocation2], %s258
        %p260 = scmp.lt.s32.totalorder %s20, 1
        %s261 = scalar_select %p260, %s20, 1
        %s262 = smul.addr %s261, 6
        %s263 = smul.addr %s262, 8
        %s264 = scalar_lea.vmem %s0, %s263
        %p265 = scmp.lt.s32.totalorder %s20, 1
        %s266 = scalar_select %p265, %s20, 1
        %s267 = smul.addr %s266, 2
        %s268 = smul.addr %s267, 8
        %s269 = scalar_lea.vmem %s1, %s268
        %v270 = vld [vmem:[%s264] sm:$0xff]
        %v271 = vld [vmem:[%s264 + $0x8] sm:$0xff]
        %v272 = vld [vmem:[%s264 + $0x10] sm:$0xff]
        %v273 = vld [vmem:[%s264 + $0x18] sm:$0xff]
        %v274 = vld [vmem:[%s264 + $0x20] sm:$0xff]
        %v275 = vld [vmem:[%s264 + $0x28] sm:$0xff]
        %v276 = vld [vmem:[%s2] sm:$0xff]
        %v277 = vld [vmem:[%s2 + $0x8] sm:$0xff]
        %v278 = vld [vmem:[%s2 + $0x10] sm:$0xff]
        %v279 = vld [vmem:[%s2 + $0x18] sm:$0xff]
        %v280 = vld [vmem:[%s2 + $0x20] sm:$0xff]
        %v281 = vld [vmem:[%s2 + $0x28] sm:$0xff]
        %v282 = vld [vmem:[%s2 + $0x30] sm:$0xff]
        %v283 = vld [vmem:[%s2 + $0x38] sm:$0xff]
        %v284 = vld [vmem:[%s2 + $0x40] sm:$0xff]
        %v285 = vld [vmem:[%s2 + $0x48] sm:$0xff]
        %v286 = vld [vmem:[%s2 + $0x50] sm:$0xff]
        %v287 = vld [vmem:[%s2 + $0x58] sm:$0xff]
        %v288 = vld [vmem:[%s2 + $0x60] sm:$0xff]
        %v289 = vld [vmem:[%s2 + $0x68] sm:$0xff]
        %v290 = vld [vmem:[%s2 + $0x70] sm:$0xff]
        %v291 = vld [vmem:[%s2 + $0x78] sm:$0xff]
        %v292 = vld [vmem:[%s2 + $0x80] sm:$0xff]
        %v293 = vld [vmem:[%s2 + $0x88] sm:$0xff]
        %v294 = vld [vmem:[%s2 + $0x90] sm:$0xff]
        %v295 = vld [vmem:[%s2 + $0x98] sm:$0xff]
        %v296 = vld [vmem:[%s2 + $0xa0] sm:$0xff]
        %v297 = vld [vmem:[%s2 + $0xa8] sm:$0xff]
        %v298 = vld [vmem:[%s2 + $0xb0] sm:$0xff]
        %v299 = vld [vmem:[%s2 + $0xb8] sm:$0xff]
        %v300 = vld [vmem:[%s2 + $0xc0] sm:$0xff]
        %v301 = vld [vmem:[%s2 + $0xc8] sm:$0xff]
        %v302 = vld [vmem:[%s2 + $0xd0] sm:$0xff]
        %v303 = vld [vmem:[%s2 + $0xd8] sm:$0xff]
        %v304 = vld [vmem:[%s2 + $0xe0] sm:$0xff]
        %v305 = vld [vmem:[%s2 + $0xe8] sm:$0xff]
        %v306 = vld [vmem:[%s2 + $0xf0] sm:$0xff]
        %v307 = vld [vmem:[%s2 + $0xf8] sm:$0xff]
        %v308 = vld [vmem:[%s2 + $0x100] sm:$0xff]
        %v309 = vld [vmem:[%s2 + $0x108] sm:$0xff]
        %v310 = vld [vmem:[%s2 + $0x110] sm:$0xff]
        %v311 = vld [vmem:[%s2 + $0x118] sm:$0xff]
        %v312 = vld [vmem:[%s2 + $0x120] sm:$0xff]
        %v313 = vld [vmem:[%s2 + $0x128] sm:$0xff]
        %v314 = vld [vmem:[%s2 + $0x130] sm:$0xff]
        %v315 = vld [vmem:[%s2 + $0x138] sm:$0xff]
        %v316 = vld [vmem:[%s2 + $0x140] sm:$0xff]
        %v317 = vld [vmem:[%s2 + $0x148] sm:$0xff]
        %v318 = vld [vmem:[%s2 + $0x150] sm:$0xff]
        %v319 = vld [vmem:[%s2 + $0x158] sm:$0xff]
        %v320 = vld [vmem:[%s2 + $0x160] sm:$0xff]
        %v321 = vld [vmem:[%s2 + $0x168] sm:$0xff]
        %v322 = vld [vmem:[%s2 + $0x170] sm:$0xff]
        %v323 = vld [vmem:[%s2 + $0x178] sm:$0xff]
        %v324 = vld [vmem:[%s2 + $0x180] sm:$0xff]
        %v325 = vld [vmem:[%s2 + $0x188] sm:$0xff]
        %v326 = vld [vmem:[%s2 + $0x190] sm:$0xff]
        %v327 = vld [vmem:[%s2 + $0x198] sm:$0xff]
        %v328 = vld [vmem:[%s2 + $0x1a0] sm:$0xff]
        %v329 = vld [vmem:[%s2 + $0x1a8] sm:$0xff]
        %v330 = vld [vmem:[%s2 + $0x1b0] sm:$0xff]
        %v331 = vld [vmem:[%s2 + $0x1b8] sm:$0xff]
        %v332 = vld [vmem:[%s2 + $0x1c0] sm:$0xff]
        %v333 = vld [vmem:[%s2 + $0x1c8] sm:$0xff]
        %v334 = vld [vmem:[%s2 + $0x1d0] sm:$0xff]
        %v335 = vld [vmem:[%s2 + $0x1d8] sm:$0xff]
        %v336 = vld [vmem:[%s2 + $0x1e0] sm:$0xff]
        %v337 = vld [vmem:[%s2 + $0x1e8] sm:$0xff]
        %v338 = vld [vmem:[%s2 + $0x1f0] sm:$0xff]
        %v339 = vld [vmem:[%s2 + $0x1f8] sm:$0xff]
        %v340 = vld [vmem:[%s2 + $0x200] sm:$0xff]
        %v341 = vld [vmem:[%s2 + $0x208] sm:$0xff]
        %v342 = vld [vmem:[%s2 + $0x210] sm:$0xff]
        %v343 = vld [vmem:[%s2 + $0x218] sm:$0xff]
        %v344 = vld [vmem:[%s2 + $0x220] sm:$0xff]
        %v345 = vld [vmem:[%s2 + $0x228] sm:$0xff]
        %v346 = vld [vmem:[%s2 + $0x230] sm:$0xff]
        %v347 = vld [vmem:[%s2 + $0x238] sm:$0xff]
        %v348 = vld [vmem:[%s2 + $0x240] sm:$0xff]
        %v349 = vld [vmem:[%s2 + $0x248] sm:$0xff]
        %v350 = vld [vmem:[%s2 + $0x250] sm:$0xff]
        %v351 = vld [vmem:[%s2 + $0x258] sm:$0xff]
        %v352 = vld [vmem:[%s2 + $0x260] sm:$0xff]
        %v353 = vld [vmem:[%s2 + $0x268] sm:$0xff]
        %v354 = vld [vmem:[%s2 + $0x270] sm:$0xff]
        %v355 = vld [vmem:[%s2 + $0x278] sm:$0xff]
        %v356 = vld [vmem:[%s2 + $0x280] sm:$0xff]
        %v357 = vld [vmem:[%s2 + $0x288] sm:$0xff]
        %v358 = vld [vmem:[%s2 + $0x290] sm:$0xff]
        %v359 = vld [vmem:[%s2 + $0x298] sm:$0xff]
        %v360 = vld [vmem:[%s2 + $0x2a0] sm:$0xff]
        %v361 = vld [vmem:[%s2 + $0x2a8] sm:$0xff]
        %v362 = vld [vmem:[%s2 + $0x2b0] sm:$0xff]
        %v363 = vld [vmem:[%s2 + $0x2b8] sm:$0xff]
        %v364 = vld [vmem:[%s2 + $0x2c0] sm:$0xff]
        %v365 = vld [vmem:[%s2 + $0x2c8] sm:$0xff]
        %v366 = vld [vmem:[%s2 + $0x2d0] sm:$0xff]
        %v367 = vld [vmem:[%s2 + $0x2d8] sm:$0xff]
        %v368 = vld [vmem:[%s2 + $0x2e0] sm:$0xff]
        %v369 = vld [vmem:[%s2 + $0x2e8] sm:$0xff]
        %v370 = vld [vmem:[%s2 + $0x2f0] sm:$0xff]
        %v371 = vld [vmem:[%s2 + $0x2f8] sm:$0xff]
        %v372 = vld [vmem:[%s269] sm:$0xff]
        %v373 = vld [vmem:[%s269 + $0x8] sm:$0xff]
        %v374 = vld [vmem:[%s3] sm:$0xff]
        %v375 = vld [vmem:[%s3 + $0x8] sm:$0xff]
        %v376 = vld [vmem:[%s3 + $0x10] sm:$0xff]
        %v377 = vld [vmem:[%s3 + $0x18] sm:$0xff]
        %v378 = vld [vmem:[%s3 + $0x20] sm:$0xff]
        %v379 = vld [vmem:[%s3 + $0x28] sm:$0xff]
        %v380 = vld [vmem:[%s3 + $0x30] sm:$0xff]
        %v381 = vld [vmem:[%s3 + $0x38] sm:$0xff]
        %v382 = vld [vmem:[%s3 + $0x40] sm:$0xff]
        %v383 = vld [vmem:[%s3 + $0x48] sm:$0xff]
        %v384 = vld [vmem:[%s3 + $0x50] sm:$0xff]
        %v385 = vld [vmem:[%s3 + $0x58] sm:$0xff]
        %v386 = vld [vmem:[%s3 + $0x60] sm:$0xff]
        %v387 = vld [vmem:[%s3 + $0x68] sm:$0xff]
        %v388 = vld [vmem:[%s3 + $0x70] sm:$0xff]
        %v389 = vld [vmem:[%s3 + $0x78] sm:$0xff]
        %v390 = vld [vmem:[%s3 + $0x80] sm:$0xff]
        %v391 = vld [vmem:[%s3 + $0x88] sm:$0xff]
        %v392 = vld [vmem:[%s3 + $0x90] sm:$0xff]
        %v393 = vld [vmem:[%s3 + $0x98] sm:$0xff]
        %v394 = vld [vmem:[%s3 + $0xa0] sm:$0xff]
        %v395 = vld [vmem:[%s3 + $0xa8] sm:$0xff]
        %v396 = vld [vmem:[%s3 + $0xb0] sm:$0xff]
        %v397 = vld [vmem:[%s3 + $0xb8] sm:$0xff]
        %v398 = vld [vmem:[%s3 + $0xc0] sm:$0xff]
        %v399 = vld [vmem:[%s3 + $0xc8] sm:$0xff]
        %v400 = vld [vmem:[%s3 + $0xd0] sm:$0xff]
        %v401 = vld [vmem:[%s3 + $0xd8] sm:$0xff]
        %v402 = vld [vmem:[%s3 + $0xe0] sm:$0xff]
        %v403 = vld [vmem:[%s3 + $0xe8] sm:$0xff]
        %v404 = vld [vmem:[%s3 + $0xf0] sm:$0xff]
        %v405 = vld [vmem:[%s3 + $0xf8] sm:$0xff]
        %406 = vmatpush.msra.mxu0 %v389
        %407 = vmatpush.msra.mxu0 %v388
        %408 = vmatpush.msra.mxu0 %v387
        %409 = vmatpush.msra.mxu0 %v386
        %410 = vmatpush.msra.mxu0 %v385
        %411 = vmatpush.msra.mxu0 %v384
        %412 = vmatpush.msra.mxu0 %v383
        %413 = vmatpush.msra.mxu0 %v382
        %414 = vmatpush.msra.mxu0 %v381
        %415 = vmatpush.msra.mxu0 %v380
        %416 = vmatpush.msra.mxu0 %v379
        %417 = vmatpush.msra.mxu0 %v378
        %418 = vmatpush.msra.mxu0 %v377
        %419 = vmatpush.msra.mxu0 %v376
        %420 = vmatpush.msra.mxu0 %v375
        %421 = vmatpush.msra.mxu0 %v374
        %422 = vmatmul.f32.gmra.mxu0 %v372
        %v423 = vpop.f32.mrf.mxu0
        %v424 = vadd.f32 0.0, %v423
        %425 = vdwg.mxu0
        %426 = vmatpush.msra.mxu0 %v405
        %427 = vmatpush.msra.mxu0 %v404
        %428 = vmatpush.msra.mxu0 %v403
        %429 = vmatpush.msra.mxu0 %v402
        %430 = vmatpush.msra.mxu0 %v401
        %431 = vmatpush.msra.mxu0 %v400
        %432 = vmatpush.msra.mxu0 %v399
        %433 = vmatpush.msra.mxu0 %v398
        %434 = vmatpush.msra.mxu0 %v397
        %435 = vmatpush.msra.mxu0 %v396
        %436 = vmatpush.msra.mxu0 %v395
        %437 = vmatpush.msra.mxu0 %v394
        %438 = vmatpush.msra.mxu0 %v393
        %439 = vmatpush.msra.mxu0 %v392
        %440 = vmatpush.msra.mxu0 %v391
        %441 = vmatpush.msra.mxu0 %v390
        %442 = vmatmul.f32.gmra.mxu0 %v373
        %v443 = vpop.f32.mrf.mxu0
        %v444 = vadd.f32 %v424, %v443
        %445 = vdwg.mxu0
        %446 = vmatpush.msra.mxu0 %v291
        %447 = vmatpush.msra.mxu0 %v290
        %448 = vmatpush.msra.mxu0 %v289
        %449 = vmatpush.msra.mxu0 %v288
        %450 = vmatpush.msra.mxu0 %v287
        %451 = vmatpush.msra.mxu0 %v286
        %452 = vmatpush.msra.mxu0 %v285
        %453 = vmatpush.msra.mxu0 %v284
        %454 = vmatpush.msra.mxu0 %v283
        %455 = vmatpush.msra.mxu0 %v282
        %456 = vmatpush.msra.mxu0 %v281
        %457 = vmatpush.msra.mxu0 %v280
        %458 = vmatpush.msra.mxu0 %v279
        %459 = vmatpush.msra.mxu0 %v278
        %460 = vmatpush.msra.mxu0 %v277
        %461 = vmatpush.msra.mxu0 %v276
        %462 = vmatmul.f32.gmra.mxu0 %v270
        %v463 = vpop.f32.mrf.mxu0
        %v464 = vadd.f32 %v444, %v463
        %465 = vdwg.mxu0
        %466 = vmatpush.msra.mxu0 %v307
        %467 = vmatpush.msra.mxu0 %v306
        %468 = vmatpush.msra.mxu0 %v305
        %469 = vmatpush.msra.mxu0 %v304
        %470 = vmatpush.msra.mxu0 %v303
        %471 = vmatpush.msra.mxu0 %v302
        %472 = vmatpush.msra.mxu0 %v301
        %473 = vmatpush.msra.mxu0 %v300
        %474 = vmatpush.msra.mxu0 %v299
        %475 = vmatpush.msra.mxu0 %v298
        %476 = vmatpush.msra.mxu0 %v297
        %477 = vmatpush.msra.mxu0 %v296
        %478 = vmatpush.msra.mxu0 %v295
        %479 = vmatpush.msra.mxu0 %v294
        %480 = vmatpush.msra.mxu0 %v293
        %481 = vmatpush.msra.mxu0 %v292
        %482 = vmatmul.f32.gmra.mxu0 %v271
        %v483 = vpop.f32.mrf.mxu0
        %v484 = vadd.f32 %v464, %v483
        %485 = vdwg.mxu0
        %486 = vmatpush.msra.mxu0 %v323
        %487 = vmatpush.msra.mxu0 %v322
        %488 = vmatpush.msra.mxu0 %v321
        %489 = vmatpush.msra.mxu0 %v320
        %490 = vmatpush.msra.mxu0 %v319
        %491 = vmatpush.msra.mxu0 %v318
        %492 = vmatpush.msra.mxu0 %v317
        %493 = vmatpush.msra.mxu0 %v316
        %494 = vmatpush.msra.mxu0 %v315
        %495 = vmatpush.msra.mxu0 %v314
        %496 = vmatpush.msra.mxu0 %v313
        %497 = vmatpush.msra.mxu0 %v312
        %498 = vmatpush.msra.mxu0 %v311
        %499 = vmatpush.msra.mxu0 %v310
        %500 = vmatpush.msra.mxu0 %v309
        %501 = vmatpush.msra.mxu0 %v308
        %502 = vmatmul.f32.gmra.mxu0 %v272
        %v503 = vpop.f32.mrf.mxu0
        %v504 = vadd.f32 %v484, %v503
        %505 = vdwg.mxu0
        %506 = vmatpush.msra.mxu0 %v339
        %507 = vmatpush.msra.mxu0 %v338
        %508 = vmatpush.msra.mxu0 %v337
        %509 = vmatpush.msra.mxu0 %v336
        %510 = vmatpush.msra.mxu0 %v335
        %511 = vmatpush.msra.mxu0 %v334
        %512 = vmatpush.msra.mxu0 %v333
        %513 = vmatpush.msra.mxu0 %v332
        %514 = vmatpush.msra.mxu0 %v331
        %515 = vmatpush.msra.mxu0 %v330
        %516 = vmatpush.msra.mxu0 %v329
        %517 = vmatpush.msra.mxu0 %v328
        %518 = vmatpush.msra.mxu0 %v327
        %519 = vmatpush.msra.mxu0 %v326
        %520 = vmatpush.msra.mxu0 %v325
        %521 = vmatpush.msra.mxu0 %v324
        %522 = vmatmul.f32.gmra.mxu0 %v273
        %v523 = vpop.f32.mrf.mxu0
        %v524 = vadd.f32 %v504, %v523
        %525 = vdwg.mxu0
        %526 = vmatpush.msra.mxu0 %v355
        %527 = vmatpush.msra.mxu0 %v354
        %528 = vmatpush.msra.mxu0 %v353
        %529 = vmatpush.msra.mxu0 %v352
        %530 = vmatpush.msra.mxu0 %v351
        %531 = vmatpush.msra.mxu0 %v350
        %532 = vmatpush.msra.mxu0 %v349
        %533 = vmatpush.msra.mxu0 %v348
        %534 = vmatpush.msra.mxu0 %v347
        %535 = vmatpush.msra.mxu0 %v346
        %536 = vmatpush.msra.mxu0 %v345
        %537 = vmatpush.msra.mxu0 %v344
        %538 = vmatpush.msra.mxu0 %v343
        %539 = vmatpush.msra.mxu0 %v342
        %540 = vmatpush.msra.mxu0 %v341
        %541 = vmatpush.msra.mxu0 %v340
        %542 = vmatmul.f32.gmra.mxu0 %v274
        %v543 = vpop.f32.mrf.mxu0
        %v544 = vadd.f32 %v524, %v543
        %545 = vdwg.mxu0
        %546 = vmatpush.msra.mxu0 %v371
        %547 = vmatpush.msra.mxu0 %v370
        %548 = vmatpush.msra.mxu0 %v369
        %549 = vmatpush.msra.mxu0 %v368
        %550 = vmatpush.msra.mxu0 %v367
        %551 = vmatpush.msra.mxu0 %v366
        %552 = vmatpush.msra.mxu0 %v365
        %553 = vmatpush.msra.mxu0 %v364
        %554 = vmatpush.msra.mxu0 %v363
        %555 = vmatpush.msra.mxu0 %v362
        %556 = vmatpush.msra.mxu0 %v361
        %557 = vmatpush.msra.mxu0 %v360
        %558 = vmatpush.msra.mxu0 %v359
        %559 = vmatpush.msra.mxu0 %v358
        %560 = vmatpush.msra.mxu0 %v357
        %561 = vmatpush.msra.mxu0 %v356
        %562 = vmatmul.f32.gmra.mxu0 %v275
        %v563 = vpop.f32.mrf.mxu0
        %v564 = vadd.f32 %v544, %v563
        %565 = vdwg.mxu0
        %v566 = vld [vmem:[%s4] sm:$0x1]
        %v568 = vperm.slane %v566, 0
        %v570 = vadd.f32 %v564, %v568
        %v571 = vld [vmem:[%s5] sm:$0x1f]
        %v573 = vrot.slane %v571, 1
        %v574 = vrot.slane %v571, 2
        %v575 = vrot.slane %v571, 3
        %v576 = vrot.slane %v571, 4
        %v577 = vperm.slane %v571, 0
        %v578 = vperm.slane %v573, 0
        %v579 = vperm.slane %v574, 0
        %v580 = vperm.slane %v575, 0
        %v581 = vperm.slane %v576, 0
        %v587 = vmul.f32 %v577, %v570
        %v588 = vmul.f32 %v578, %v570
        %v589 = vmul.f32 %v579, %v570
        %v590 = vmul.f32 %v580, %v570
        %v591 = vmul.f32 %v581, %v570
        %593 = vrot.lane.b32.xlu0 %v570, 96
        %v594 = vpop.permute.xlu0 %593
        %vm595 = vcmask 261120
        %v597 = vsel %vm595, %v587, 0
        %v600 = vsel %vm595, %v588, 0
        %v603 = vsel %vm595, %v589, 0
        %v606 = vsel %vm595, %v590, 0
        %v609 = vsel %vm595, %v591, 0
        %v611 = vsel %vm595, %v594, 0
        %613 = vmatpush.xpose.msra.mxu0 0.0
        %614 = vmatpush.xpose.msra.mxu0 0.0
        %615 = vmatpush.xpose.msra.mxu0 0.0
        %616 = vmatpush.xpose.msra.mxu0 0.0
        %617 = vmatpush.xpose.msra.mxu0 0.0
        %618 = vmatpush.xpose.msra.mxu0 0.0
        %619 = vmatpush.xpose.msra.mxu0 0.0
        %620 = vmatpush.xpose.msra.mxu0 0.0
        %621 = vmatpush.xpose.msra.mxu0 0.0
        %622 = vmatpush.xpose.msra.mxu0 0.0
        %623 = vmatpush.xpose.msra.mxu0 0.0
        %624 = vmatpush.xpose.msra.mxu0 0.0
        %625 = vmatpush.xpose.msra.mxu0 0.0
        %626 = vmatpush.xpose.msra.mxu0 0.0
        %627 = vmatpush.xpose.msra.mxu0 0.0
        %628 = vmatpush.xpose.msra.mxu0 %v611
        %629 = vmatmul.f32.gmra.mxu0 %v597
        %v630 = vpop.f32.mrf.mxu0
        %v631 = vadd.f32 0.0, %v630
        %632 = vmatmul.f32.gmra.mxu0 %v600
        %v633 = vpop.f32.mrf.mxu0
        %v634 = vadd.f32 0.0, %v633
        %635 = vmatmul.f32.gmra.mxu0 %v603
        %v636 = vpop.f32.mrf.mxu0
        %v637 = vadd.f32 0.0, %v636
        %638 = vmatmul.f32.gmra.mxu0 %v606
        %v639 = vpop.f32.mrf.mxu0
        %v640 = vadd.f32 0.0, %v639
        %641 = vmatmul.f32.gmra.mxu0 %v609
        %v642 = vpop.f32.mrf.mxu0
        %v643 = vadd.f32 0.0, %v642
        %644 = vdwg.mxu0
        %vm645 = vcmask 64512
        %646 = vst.msk [vmem:[%s259] sm:$0xff] %vm645, %v631
        %647 = vst.msk [vmem:[%s259 + $0x8] sm:$0xff] %vm645, %v634
        %648 = vst.msk [vmem:[%s259 + $0x10] sm:$0xff] %vm645, %v637
        %649 = vst.msk [vmem:[%s259 + $0x18] sm:$0xff] %vm645, %v640
        %650 = vst.msk [vmem:[%s259 + $0x20] sm:$0xff] %vm645, %v643
        %s651 = sand.u32 %s164, 1
        %s652 = scalar_lea.sflag [#allocation3], %s651
        %s653 = sand.u32 %s164, 1
        %s654 = smul.addr %s653, 40
        %s655 = scalar_lea.vmem [#allocation2], %s654
        // Predicated region
        $region45: #{entity_model_forward.3} parent=43 // pred_check
          %p656 = pneg %p174
        $region46: #{entity_model_forward.3} parent=43 // pred_check_branch
          %658 = sbr.rel (%p656) target = $region48
        $region47: #{entity_model_forward.3} parent=43 // pred_region
          %660 = vsyncadd %s652, 0
          %s661 = smul.addr %s20, 5
          %s662 = smul.addr %s661, 8
          %s663 = scalar_lea.hbm %s6, %s662
          %s664 = sshll.u32 %s655, 4
          %s665 = int_to_ptr.vmem [resolvable:$true] %s664
          %s666 = sshll.u32 %s663, 4
          %s667 = int_to_ptr.hbm [resolvable:$true] %s666
          %672 = dma.vmem_to_hbm [thread:$0]  %s665, 640, %s667, %s652, 128, 128, 8
        $region48: #{entity_model_forward.3} parent=43 // pred_fallthru
          _
      $region44: #{entity_model_forward.3} parent=5 // pred_fallthru
        _
      %p673 = scmp.le.s32.totalorder 2, %s15
      // Predicated region
      $region49: #{entity_model_forward.3} parent=5 // pred_check
        %p674 = pneg %p673
      $region50: #{entity_model_forward.3} parent=5 // pred_check_branch
        %676 = sbr.rel (%p674) target = $region52
      $region51: #{entity_model_forward.3} parent=5 // pred_region
        %s677 = ssub.s32 %s15, 2
        // Predicated region
        $region53: #{entity_model_forward.3} parent=51 // pred_check
          %p678 = pneg %p180
        $region54: #{entity_model_forward.3} parent=51 // pred_check_branch
          %680 = sbr.rel (%p678) target = $region56
        $region55: #{entity_model_forward.3} parent=51 // pred_region
          %s681 = sand.u32 %s165, 1
          %s682 = scalar_lea.sflag [#allocation3], %s681
          %s683 = sand.u32 %s165, 1
          %s684 = smul.addr %s683, 40
          %s685 = scalar_lea.vmem [#allocation2], %s684
          %687 = dma.done %s682, 640
        $region56: #{entity_model_forward.3} parent=51 // pred_fallthru
          _
      $region52: #{entity_model_forward.3} parent=5 // pred_fallthru
        _
    $region6: #{entity_model_forward.3} parent=1 // loop_footer
      %s19 = sadd.s32 1, %s15
    $region7: #{entity_model_forward.3} parent=1 // loop_footer_branch
      %14 = sbr.rel target = $region3
    $region8: #{entity_model_forward.3} parent=1 // loop_exit
      _
    %688 = vsyncpa [#allocation3], 1
    %s689 = scalar_lea.sflag [#allocation3], 1
    %690 = vsyncpa %s689, 1

// kernel: entity_model_forward.2
$region0: #{entity_model_forward.2}
  #allocation0 [shape = 'u32[]', space=smem, size = 0x4, offset = 0x4, fixed_abs, tag = 'smem constant byte address 0x4 - core index']
  #allocation1 [shape = 'u32[72,128]{1,0:T(1,128)}', space=vmem, size = 0x9000, scoped, tag = 'internal scratch']
  #allocation2 [shape = 'f32[8,2,512]{2,1,0:T(2,128)}', space=vmem, size = 0x8000, scoped, tag = 'scratch operand']
  #allocation3 [shape = 'f32[8,2,512]{2,1,0:T(2,128)}', space=vmem, size = 0x8000, scoped, tag = 'scratch operand']
  #allocation4 [shape = 'f32[8,2,128]{2,1,0:T(2,128)}', space=vmem, size = 0x2000, scoped, tag = 'scratch operand']
  #allocation5 [shape = 'f32[8,2,128]{2,1,0:T(2,128)}', space=vmem, size = 0x2000, scoped, tag = 'scratch operand']
  #allocation6 [shape = 'f32[2,128]{1,0:T(2,128)}', space=vmem, size = 0x400, scoped, tag = 'scratch operand']
  #allocation7 [shape = 'f32[2,128]{1,0:T(2,128)}', space=vmem, size = 0x400, scoped, tag = 'scratch operand']
  #allocation8 [shape = 'f32[2,128]{1,0:T(2,128)}', space=vmem, size = 0x400, scoped, tag = 'scratch operand']
  #allocation9 [shape = 'f32[2,128]{1,0:T(2,128)}', space=vmem, size = 0x400, scoped, tag = 'scratch operand']
  %s0 = inlined_call_operand.vmem [shape: f32[8,2,16], index: 0, kind: input, shape index: {}]
  %s1 = inlined_call_operand.vmem [shape: f32[16,1024], index: 1, kind: input, shape index: {}]
  %s2 = inlined_call_operand.vmem [shape: f32[128,512], index: 2, kind: input, shape index: {}]
  %s3 = inlined_call_operand.vmem [shape: f32[128,512], index: 3, kind: input, shape index: {}]
  %s4 = inlined_call_operand.vmem [shape: f32[1,1024], index: 4, kind: input, shape index: {}]
  %s5 = inlined_call_operand.vmem [shape: f32[256,1024], index: 5, kind: input, shape index: {}]
  %s6 = inlined_call_operand.vmem [shape: f32[128,512], index: 6, kind: input, shape index: {}]
  %s7 = inlined_call_operand.vmem [shape: f32[128,512], index: 7, kind: input, shape index: {}]
  %s8 = inlined_call_operand.vmem [shape: f32[1,1024], index: 8, kind: input, shape index: {}]
  %s9 = inlined_call_operand.vmem [shape: f32[8,2,256], index: 9, kind: output, shape index: {}]
  %s10 = sld [smem:[#allocation0]]
  $region46: #{entity_model_forward.2} parent=0
    _
  %s12 = ssub.s32 1, %s10
  %s13 = scalar_select 0, %s12, %s10
  // Predicated region
  $region2: #{entity_model_forward.2} parent=0 // pred_check
    _
  $region3: #{entity_model_forward.2} parent=0 // pred_check_branch
    %15 = sbr.rel (0) target = $region5
  $region4: #{entity_model_forward.2} parent=0 // pred_region
    _
  $region5: #{entity_model_forward.2} parent=0 // pred_fallthru
    _
  // Predicated region
  $region6: #{entity_model_forward.2} parent=0 // pred_check
    _
  $region7: #{entity_model_forward.2} parent=0 // pred_check_branch
    %17 = sbr.rel (0) target = $region9
  $region8: #{entity_model_forward.2} parent=0 // pred_region
    _
  $region9: #{entity_model_forward.2} parent=0 // pred_fallthru
    _
  // Predicated region
  $region10: #{entity_model_forward.2} parent=0 // pred_check
    _
  $region11: #{entity_model_forward.2} parent=0 // pred_check_branch
    %19 = sbr.rel (0) target = $region13
  $region12: #{entity_model_forward.2} parent=0 // pred_region
    _
  $region13: #{entity_model_forward.2} parent=0 // pred_fallthru
    _
  // Predicated region
  $region14: #{entity_model_forward.2} parent=0 // pred_check
    _
  $region15: #{entity_model_forward.2} parent=0 // pred_check_branch
    %21 = sbr.rel (0) target = $region17
  $region16: #{entity_model_forward.2} parent=0 // pred_region
    _
  $region17: #{entity_model_forward.2} parent=0 // pred_fallthru
    _
  // Predicated region
  $region18: #{entity_model_forward.2} parent=0 // pred_check
    _
  $region19: #{entity_model_forward.2} parent=0 // pred_check_branch
    %23 = sbr.rel (0) target = $region21
  $region20: #{entity_model_forward.2} parent=0 // pred_region
    _
  $region21: #{entity_model_forward.2} parent=0 // pred_fallthru
    _
  // Predicated region
  $region22: #{entity_model_forward.2} parent=0 // pred_check
    _
  $region23: #{entity_model_forward.2} parent=0 // pred_check_branch
    %25 = sbr.rel (0) target = $region25
  $region24: #{entity_model_forward.2} parent=0 // pred_region
    _
  $region25: #{entity_model_forward.2} parent=0 // pred_fallthru
    _
  // Predicated region
  $region26: #{entity_model_forward.2} parent=0 // pred_check
    _
  $region27: #{entity_model_forward.2} parent=0 // pred_check_branch
    %27 = sbr.rel (0) target = $region29
  $region28: #{entity_model_forward.2} parent=0 // pred_region
    _
  $region29: #{entity_model_forward.2} parent=0 // pred_fallthru
    _
  // Predicated region
  $region30: #{entity_model_forward.2} parent=0 // pred_check
    _
  $region31: #{entity_model_forward.2} parent=0 // pred_check_branch
    %29 = sbr.rel (0) target = $region33
  $region32: #{entity_model_forward.2} parent=0 // pred_region
    _
  $region33: #{entity_model_forward.2} parent=0 // pred_fallthru
    _
  // Predicated region
  $region34: #{entity_model_forward.2} parent=0 // pred_check
    _
  $region35: #{entity_model_forward.2} parent=0 // pred_check_branch
    %31 = sbr.rel (0) target = $region37
  $region36: #{entity_model_forward.2} parent=0 // pred_region
    _
  $region37: #{entity_model_forward.2} parent=0 // pred_fallthru
    _
  %v32 = vld [vmem:[%s0] sm:$0x3]
  %v33 = vld [vmem:[%s0 + $0x2] sm:$0x3]
  %v34 = vld [vmem:[%s0 + $0x4] sm:$0x3]
  %v35 = vld [vmem:[%s0 + $0x6] sm:$0x3]
  %v36 = vld [vmem:[%s0 + $0x8] sm:$0x3]
  %v37 = vld [vmem:[%s0 + $0xa] sm:$0x3]
  %v38 = vld [vmem:[%s0 + $0xc] sm:$0x3]
  %v39 = vld [vmem:[%s0 + $0xe] sm:$0x3]
  %v40 = vld [vmem:[%s1] sm:$0xff]
  %v41 = vld [vmem:[%s1 + $0x8] sm:$0xff]
  %v42 = vld [vmem:[%s1 + $0x10] sm:$0xff]
  %v43 = vld [vmem:[%s1 + $0x18] sm:$0xff]
  %v44 = vld [vmem:[%s1 + $0x20] sm:$0xff]
  %v45 = vld [vmem:[%s1 + $0x28] sm:$0xff]
  %v46 = vld [vmem:[%s1 + $0x30] sm:$0xff]
  %v47 = vld [vmem:[%s1 + $0x38] sm:$0xff]
  %v48 = vld [vmem:[%s1 + $0x40] sm:$0xff]
  %v49 = vld [vmem:[%s1 + $0x48] sm:$0xff]
  %v50 = vld [vmem:[%s1 + $0x50] sm:$0xff]
  %v51 = vld [vmem:[%s1 + $0x58] sm:$0xff]
  %v52 = vld [vmem:[%s1 + $0x60] sm:$0xff]
  %v53 = vld [vmem:[%s1 + $0x68] sm:$0xff]
  %v54 = vld [vmem:[%s1 + $0x70] sm:$0xff]
  %v55 = vld [vmem:[%s1 + $0x78] sm:$0xff]
  %v56 = vld [vmem:[%s4] sm:$0xff]
  %v57 = vld [vmem:[%s2] sm:$0xff]
  %v58 = vld [vmem:[%s2 + $0x8] sm:$0xff]
  %v59 = vld [vmem:[%s2 + $0x10] sm:$0xff]
  %v60 = vld [vmem:[%s2 + $0x18] sm:$0xff]
  %v61 = vld [vmem:[%s2 + $0x20] sm:$0xff]
  %v62 = vld [vmem:[%s2 + $0x28] sm:$0xff]
  %v63 = vld [vmem:[%s2 + $0x30] sm:$0xff]
  %v64 = vld [vmem:[%s2 + $0x38] sm:$0xff]
  %v65 = vld [vmem:[%s2 + $0x40] sm:$0xff]
  %v66 = vld [vmem:[%s2 + $0x48] sm:$0xff]
  %v67 = vld [vmem:[%s2 + $0x50] sm:$0xff]
  %v68 = vld [vmem:[%s2 + $0x58] sm:$0xff]
  %v69 = vld [vmem:[%s2 + $0x60] sm:$0xff]
  %v70 = vld [vmem:[%s2 + $0x68] sm:$0xff]
  %v71 = vld [vmem:[%s2 + $0x70] sm:$0xff]
  %v72 = vld [vmem:[%s2 + $0x78] sm:$0xff]
  %v73 = vld [vmem:[%s2 + $0x80] sm:$0xff]
  %v74 = vld [vmem:[%s2 + $0x88] sm:$0xff]
  %v75 = vld [vmem:[%s2 + $0x90] sm:$0xff]
  %v76 = vld [vmem:[%s2 + $0x98] sm:$0xff]
  %v77 = vld [vmem:[%s2 + $0xa0] sm:$0xff]
  %v78 = vld [vmem:[%s2 + $0xa8] sm:$0xff]
  %v79 = vld [vmem:[%s2 + $0xb0] sm:$0xff]
  %v80 = vld [vmem:[%s2 + $0xb8] sm:$0xff]
  %v81 = vld [vmem:[%s2 + $0xc0] sm:$0xff]
  %v82 = vld [vmem:[%s2 + $0xc8] sm:$0xff]
  %v83 = vld [vmem:[%s2 + $0xd0] sm:$0xff]
  %v84 = vld [vmem:[%s2 + $0xd8] sm:$0xff]
  %v85 = vld [vmem:[%s2 + $0xe0] sm:$0xff]
  %v86 = vld [vmem:[%s2 + $0xe8] sm:$0xff]
  %v87 = vld [vmem:[%s2 + $0xf0] sm:$0xff]
  %v88 = vld [vmem:[%s2 + $0xf8] sm:$0xff]
  %v89 = vld [vmem:[%s2 + $0x100] sm:$0xff]
  %v90 = vld [vmem:[%s2 + $0x108] sm:$0xff]
  %v91 = vld [vmem:[%s2 + $0x110] sm:$0xff]
  %v92 = vld [vmem:[%s2 + $0x118] sm:$0xff]
  %v93 = vld [vmem:[%s2 + $0x120] sm:$0xff]
  %v94 = vld [vmem:[%s2 + $0x128] sm:$0xff]
  %v95 = vld [vmem:[%s2 + $0x130] sm:$0xff]
  %v96 = vld [vmem:[%s2 + $0x138] sm:$0xff]
  %v97 = vld [vmem:[%s2 + $0x140] sm:$0xff]
  %v98 = vld [vmem:[%s2 + $0x148] sm:$0xff]
  %v99 = vld [vmem:[%s2 + $0x150] sm:$0xff]
  %v100 = vld [vmem:[%s2 + $0x158] sm:$0xff]
  %v101 = vld [vmem:[%s2 + $0x160] sm:$0xff]
  %v102 = vld [vmem:[%s2 + $0x168] sm:$0xff]
  %v103 = vld [vmem:[%s2 + $0x170] sm:$0xff]
  %v104 = vld [vmem:[%s2 + $0x178] sm:$0xff]
  %v105 = vld [vmem:[%s2 + $0x180] sm:$0xff]
  %v106 = vld [vmem:[%s2 + $0x188] sm:$0xff]
  %v107 = vld [vmem:[%s2 + $0x190] sm:$0xff]
  %v108 = vld [vmem:[%s2 + $0x198] sm:$0xff]
  %v109 = vld [vmem:[%s2 + $0x1a0] sm:$0xff]
  %v110 = vld [vmem:[%s2 + $0x1a8] sm:$0xff]
  %v111 = vld [vmem:[%s2 + $0x1b0] sm:$0xff]
  %v112 = vld [vmem:[%s2 + $0x1b8] sm:$0xff]
  %v113 = vld [vmem:[%s2 + $0x1c0] sm:$0xff]
  %v114 = vld [vmem:[%s2 + $0x1c8] sm:$0xff]
  %v115 = vld [vmem:[%s2 + $0x1d0] sm:$0xff]
  %v116 = vld [vmem:[%s2 + $0x1d8] sm:$0xff]
  %v117 = vld [vmem:[%s2 + $0x1e0] sm:$0xff]
  %v118 = vld [vmem:[%s2 + $0x1e8] sm:$0xff]
  %v119 = vld [vmem:[%s2 + $0x1f0] sm:$0xff]
  %v120 = vld [vmem:[%s2 + $0x1f8] sm:$0xff]
  %v121 = vld [vmem:[%s3] sm:$0xff]
  %v122 = vld [vmem:[%s3 + $0x8] sm:$0xff]
  %v123 = vld [vmem:[%s3 + $0x10] sm:$0xff]
  %v124 = vld [vmem:[%s3 + $0x18] sm:$0xff]
  %v125 = vld [vmem:[%s3 + $0x20] sm:$0xff]
  %v126 = vld [vmem:[%s3 + $0x28] sm:$0xff]
  %v127 = vld [vmem:[%s3 + $0x30] sm:$0xff]
  %v128 = vld [vmem:[%s3 + $0x38] sm:$0xff]
  %v129 = vld [vmem:[%s3 + $0x40] sm:$0xff]
  %v130 = vld [vmem:[%s3 + $0x48] sm:$0xff]
  %v131 = vld [vmem:[%s3 + $0x50] sm:$0xff]
  %v132 = vld [vmem:[%s3 + $0x58] sm:$0xff]
  %v133 = vld [vmem:[%s3 + $0x60] sm:$0xff]
  %v134 = vld [vmem:[%s3 + $0x68] sm:$0xff]
  %v135 = vld [vmem:[%s3 + $0x70] sm:$0xff]
  %v136 = vld [vmem:[%s3 + $0x78] sm:$0xff]
  %v137 = vld [vmem:[%s3 + $0x80] sm:$0xff]
  %v138 = vld [vmem:[%s3 + $0x88] sm:$0xff]
  %v139 = vld [vmem:[%s3 + $0x90] sm:$0xff]
  %v140 = vld [vmem:[%s3 + $0x98] sm:$0xff]
  %v141 = vld [vmem:[%s3 + $0xa0] sm:$0xff]
  %v142 = vld [vmem:[%s3 + $0xa8] sm:$0xff]
  %v143 = vld [vmem:[%s3 + $0xb0] sm:$0xff]
  %v144 = vld [vmem:[%s3 + $0xb8] sm:$0xff]
  %v145 = vld [vmem:[%s3 + $0xc0] sm:$0xff]
  %v146 = vld [vmem:[%s3 + $0xc8] sm:$0xff]
  %v147 = vld [vmem:[%s3 + $0xd0] sm:$0xff]
  %v148 = vld [vmem:[%s3 + $0xd8] sm:$0xff]
  %v149 = vld [vmem:[%s3 + $0xe0] sm:$0xff]
  %v150 = vld [vmem:[%s3 + $0xe8] sm:$0xff]
  %v151 = vld [vmem:[%s3 + $0xf0] sm:$0xff]
  %v152 = vld [vmem:[%s3 + $0xf8] sm:$0xff]
  %v153 = vld [vmem:[%s3 + $0x100] sm:$0xff]
  %v154 = vld [vmem:[%s3 + $0x108] sm:$0xff]
  %v155 = vld [vmem:[%s3 + $0x110] sm:$0xff]
  %v156 = vld [vmem:[%s3 + $0x118] sm:$0xff]
  %v157 = vld [vmem:[%s3 + $0x120] sm:$0xff]
  %v158 = vld [vmem:[%s3 + $0x128] sm:$0xff]
  %v159 = vld [vmem:[%s3 + $0x130] sm:$0xff]
  %v160 = vld [vmem:[%s3 + $0x138] sm:$0xff]
  %v161 = vld [vmem:[%s3 + $0x140] sm:$0xff]
  %v162 = vld [vmem:[%s3 + $0x148] sm:$0xff]
  %v163 = vld [vmem:[%s3 + $0x150] sm:$0xff]
  %v164 = vld [vmem:[%s3 + $0x158] sm:$0xff]
  %v165 = vld [vmem:[%s3 + $0x160] sm:$0xff]
  %v166 = vld [vmem:[%s3 + $0x168] sm:$0xff]
  %v167 = vld [vmem:[%s3 + $0x170] sm:$0xff]
  %v168 = vld [vmem:[%s3 + $0x178] sm:$0xff]
  %v169 = vld [vmem:[%s3 + $0x180] sm:$0xff]
  %v170 = vld [vmem:[%s3 + $0x188] sm:$0xff]
  %v171 = vld [vmem:[%s3 + $0x190] sm:$0xff]
  %v172 = vld [vmem:[%s3 + $0x198] sm:$0xff]
  %v173 = vld [vmem:[%s3 + $0x1a0] sm:$0xff]
  %v174 = vld [vmem:[%s3 + $0x1a8] sm:$0xff]
  %v175 = vld [vmem:[%s3 + $0x1b0] sm:$0xff]
  %v176 = vld [vmem:[%s3 + $0x1b8] sm:$0xff]
  %v177 = vld [vmem:[%s3 + $0x1c0] sm:$0xff]
  %v178 = vld [vmem:[%s3 + $0x1c8] sm:$0xff]
  %v179 = vld [vmem:[%s3 + $0x1d0] sm:$0xff]
  %v180 = vld [vmem:[%s3 + $0x1d8] sm:$0xff]
  %v181 = vld [vmem:[%s3 + $0x1e0] sm:$0xff]
  %v182 = vld [vmem:[%s3 + $0x1e8] sm:$0xff]
  %v183 = vld [vmem:[%s3 + $0x1f0] sm:$0xff]
  %v184 = vld [vmem:[%s3 + $0x1f8] sm:$0xff]
  %v186 = vperm.slane %v56, 0
  %v187 = vperm.slane %v56, 1
  %v188 = vperm.slane %v56, 2
  %v189 = vperm.slane %v56, 3
  %v190 = vperm.slane %v56, 4
  %v191 = vperm.slane %v56, 5
  %v192 = vperm.slane %v56, 6
  %v193 = vperm.slane %v56, 7
  %210 = vst [vmem:[#allocation1] ss:$4 sm:$0xff] %v32
  %s211 = scalar_lea.vmem [#allocation1], 1
  %212 = vst [vmem:[%s211] ss:$4 sm:$0xff] %v33
  %s213 = scalar_lea.vmem [#allocation1], 2
  %214 = vst [vmem:[%s213] ss:$4 sm:$0xff] %v34
  %s215 = scalar_lea.vmem [#allocation1], 3
  %216 = vst [vmem:[%s215] ss:$4 sm:$0xff] %v35
  %s217 = scalar_lea.vmem [#allocation1], 32
  %218 = vst [vmem:[%s217] ss:$4 sm:$0xff] %v36
  %s219 = scalar_lea.vmem [#allocation1], 33
  %220 = vst [vmem:[%s219] ss:$4 sm:$0xff] %v37
  %s221 = scalar_lea.vmem [#allocation1], 34
  %222 = vst [vmem:[%s221] ss:$4 sm:$0xff] %v38
  %s223 = scalar_lea.vmem [#allocation1], 35
  %224 = vst [vmem:[%s223] ss:$4 sm:$0xff] %v39
  %v225 = vld.sshfl [vmem:[#allocation1] sm:$0xff pattern:$0x73625140]
  %v226 = vld.sshfl [vmem:[#allocation1 + $0x20] sm:$0xff pattern:$0x73625140]
  %vm227 = vcmask 130048
  %v228 = vsel %vm227, %v225, 0
  %v230 = vsel %vm227, %v226, 0
  %232 = vmatpush.msra.mxu0 0.0
  %233 = vmatpush.msra.mxu0 0.0
  %234 = vmatpush.msra.mxu0 0.0
  %235 = vmatpush.msra.mxu0 0.0
  %236 = vmatpush.msra.mxu0 0.0
  %237 = vmatpush.msra.mxu0 0.0
  %238 = vmatpush.msra.mxu0 0.0
  %239 = vmatpush.msra.mxu0 0.0
  %240 = vmatpush.msra.mxu0 0.0
  %241 = vmatpush.msra.mxu0 0.0
  %242 = vmatpush.msra.mxu0 0.0
  %243 = vmatpush.msra.mxu0 0.0
  %244 = vmatpush.msra.mxu0 0.0
  %245 = vmatpush.msra.mxu0 0.0
  %246 = vmatpush.msra.mxu0 %v48
  %247 = vmatpush.msra.mxu0 %v40
  %248 = vmatmul.f32.gmra.mxu0 %v228
  %v249 = vpop.f32.mrf.mxu0
  %v250 = vadd.f32 %v186, %v249
  %251 = vmatmul.f32.gmra.mxu0 %v230
  %v252 = vpop.f32.mrf.mxu0
  %v253 = vadd.f32 %v186, %v252
  %254 = vdwg.mxu0
  %255 = vmatpush.msra.mxu0 0.0
  %256 = vmatpush.msra.mxu0 0.0
  %257 = vmatpush.msra.mxu0 0.0
  %258 = vmatpush.msra.mxu0 0.0
  %259 = vmatpush.msra.mxu0 0.0
  %260 = vmatpush.msra.mxu0 0.0
  %261 = vmatpush.msra.mxu0 0.0
  %262 = vmatpush.msra.mxu0 0.0
  %263 = vmatpush.msra.mxu0 0.0
  %264 = vmatpush.msra.mxu0 0.0
  %265 = vmatpush.msra.mxu0 0.0
  %266 = vmatpush.msra.mxu0 0.0
  %267 = vmatpush.msra.mxu0 0.0
  %268 = vmatpush.msra.mxu0 0.0
  %269 = vmatpush.msra.mxu0 %v49
  %270 = vmatpush.msra.mxu0 %v41
  %271 = vmatmul.f32.gmra.mxu0 %v228
  %v272 = vpop.f32.mrf.mxu0
  %v273 = vadd.f32 %v187, %v272
  %274 = vmatmul.f32.gmra.mxu0 %v230
  %v275 = vpop.f32.mrf.mxu0
  %v276 = vadd.f32 %v187, %v275
  %277 = vdwg.mxu0
  %278 = vmatpush.msra.mxu0 0.0
  %279 = vmatpush.msra.mxu0 0.0
  %280 = vmatpush.msra.mxu0 0.0
  %281 = vmatpush.msra.mxu0 0.0
  %282 = vmatpush.msra.mxu0 0.0
  %283 = vmatpush.msra.mxu0 0.0
  %284 = vmatpush.msra.mxu0 0.0
  %285 = vmatpush.msra.mxu0 0.0
  %286 = vmatpush.msra.mxu0 0.0
  %287 = vmatpush.msra.mxu0 0.0
  %288 = vmatpush.msra.mxu0 0.0
  %289 = vmatpush.msra.mxu0 0.0
  %290 = vmatpush.msra.mxu0 0.0
  %291 = vmatpush.msra.mxu0 0.0
  %292 = vmatpush.msra.mxu0 %v50
  %293 = vmatpush.msra.mxu0 %v42
  %294 = vmatmul.f32.gmra.mxu0 %v228
  %v295 = vpop.f32.mrf.mxu0
  %v296 = vadd.f32 %v188, %v295
  %297 = vmatmul.f32.gmra.mxu0 %v230
  %v298 = vpop.f32.mrf.mxu0
  %v299 = vadd.f32 %v188, %v298
  %300 = vdwg.mxu0
  %301 = vmatpush.msra.mxu0 0.0
  %302 = vmatpush.msra.mxu0 0.0
  %303 = vmatpush.msra.mxu0 0.0
  %304 = vmatpush.msra.mxu0 0.0
  %305 = vmatpush.msra.mxu0 0.0
  %306 = vmatpush.msra.mxu0 0.0
  %307 = vmatpush.msra.mxu0 0.0
  %308 = vmatpush.msra.mxu0 0.0
  %309 = vmatpush.msra.mxu0 0.0
  %310 = vmatpush.msra.mxu0 0.0
  %311 = vmatpush.msra.mxu0 0.0
  %312 = vmatpush.msra.mxu0 0.0
  %313 = vmatpush.msra.mxu0 0.0
  %314 = vmatpush.msra.mxu0 0.0
  %315 = vmatpush.msra.mxu0 %v51
  %316 = vmatpush.msra.mxu0 %v43
  %317 = vmatmul.f32.gmra.mxu0 %v228
  %v318 = vpop.f32.mrf.mxu0
  %v319 = vadd.f32 %v189, %v318
  %320 = vmatmul.f32.gmra.mxu0 %v230
  %v321 = vpop.f32.mrf.mxu0
  %v322 = vadd.f32 %v189, %v321
  %323 = vdwg.mxu0
  %324 = vmatpush.msra.mxu0 0.0
  %325 = vmatpush.msra.mxu0 0.0
  %326 = vmatpush.msra.mxu0 0.0
  %327 = vmatpush.msra.mxu0 0.0
  %328 = vmatpush.msra.mxu0 0.0
  %329 = vmatpush.msra.mxu0 0.0
  %330 = vmatpush.msra.mxu0 0.0
  %331 = vmatpush.msra.mxu0 0.0
  %332 = vmatpush.msra.mxu0 0.0
  %333 = vmatpush.msra.mxu0 0.0
  %334 = vmatpush.msra.mxu0 0.0
  %335 = vmatpush.msra.mxu0 0.0
  %336 = vmatpush.msra.mxu0 0.0
  %337 = vmatpush.msra.mxu0 0.0
  %338 = vmatpush.msra.mxu0 %v52
  %339 = vmatpush.msra.mxu0 %v44
  %340 = vmatmul.f32.gmra.mxu0 %v228
  %v341 = vpop.f32.mrf.mxu0
  %v342 = vadd.f32 %v190, %v341
  %343 = vmatmul.f32.gmra.mxu0 %v230
  %v344 = vpop.f32.mrf.mxu0
  %v345 = vadd.f32 %v190, %v344
  %346 = vdwg.mxu0
  %347 = vmatpush.msra.mxu0 0.0
  %348 = vmatpush.msra.mxu0 0.0
  %349 = vmatpush.msra.mxu0 0.0
  %350 = vmatpush.msra.mxu0 0.0
  %351 = vmatpush.msra.mxu0 0.0
  %352 = vmatpush.msra.mxu0 0.0
  %353 = vmatpush.msra.mxu0 0.0
  %354 = vmatpush.msra.mxu0 0.0
  %355 = vmatpush.msra.mxu0 0.0
  %356 = vmatpush.msra.mxu0 0.0
  %357 = vmatpush.msra.mxu0 0.0
  %358 = vmatpush.msra.mxu0 0.0
  %359 = vmatpush.msra.mxu0 0.0
  %360 = vmatpush.msra.mxu0 0.0
  %361 = vmatpush.msra.mxu0 %v53
  %362 = vmatpush.msra.mxu0 %v45
  %363 = vmatmul.f32.gmra.mxu0 %v228
  %v364 = vpop.f32.mrf.mxu0
  %v365 = vadd.f32 %v191, %v364
  %366 = vmatmul.f32.gmra.mxu0 %v230
  %v367 = vpop.f32.mrf.mxu0
  %v368 = vadd.f32 %v191, %v367
  %369 = vdwg.mxu0
  %370 = vmatpush.msra.mxu0 0.0
  %371 = vmatpush.msra.mxu0 0.0
  %372 = vmatpush.msra.mxu0 0.0
  %373 = vmatpush.msra.mxu0 0.0
  %374 = vmatpush.msra.mxu0 0.0
  %375 = vmatpush.msra.mxu0 0.0
  %376 = vmatpush.msra.mxu0 0.0
  %377 = vmatpush.msra.mxu0 0.0
  %378 = vmatpush.msra.mxu0 0.0
  %379 = vmatpush.msra.mxu0 0.0
  %380 = vmatpush.msra.mxu0 0.0
  %381 = vmatpush.msra.mxu0 0.0
  %382 = vmatpush.msra.mxu0 0.0
  %383 = vmatpush.msra.mxu0 0.0
  %384 = vmatpush.msra.mxu0 %v54
  %385 = vmatpush.msra.mxu0 %v46
  %386 = vmatmul.f32.gmra.mxu0 %v228
  %v387 = vpop.f32.mrf.mxu0
  %v388 = vadd.f32 %v192, %v387
  %389 = vmatmul.f32.gmra.mxu0 %v230
  %v390 = vpop.f32.mrf.mxu0
  %v391 = vadd.f32 %v192, %v390
  %392 = vdwg.mxu0
  %393 = vmatpush.msra.mxu0 0.0
  %394 = vmatpush.msra.mxu0 0.0
  %395 = vmatpush.msra.mxu0 0.0
  %396 = vmatpush.msra.mxu0 0.0
  %397 = vmatpush.msra.mxu0 0.0
  %398 = vmatpush.msra.mxu0 0.0
  %399 = vmatpush.msra.mxu0 0.0
  %400 = vmatpush.msra.mxu0 0.0
  %401 = vmatpush.msra.mxu0 0.0
  %402 = vmatpush.msra.mxu0 0.0
  %403 = vmatpush.msra.mxu0 0.0
  %404 = vmatpush.msra.mxu0 0.0
  %405 = vmatpush.msra.mxu0 0.0
  %406 = vmatpush.msra.mxu0 0.0
  %407 = vmatpush.msra.mxu0 %v55
  %408 = vmatpush.msra.mxu0 %v47
  %409 = vmatmul.f32.gmra.mxu0 %v228
  %v410 = vpop.f32.mrf.mxu0
  %v411 = vadd.f32 %v193, %v410
  %412 = vmatmul.f32.gmra.mxu0 %v230
  %v413 = vpop.f32.mrf.mxu0
  %v414 = vadd.f32 %v193, %v413
  %415 = vdwg.mxu0
  %v424 = vrot.slane %v273, 6
  %v425 = vrot.slane %v296, 4
  %v426 = vrot.slane %v319, 2
  %v427 = vrot.slane %v276, 6
  %v428 = vrot.slane %v299, 4
  %v429 = vrot.slane %v322, 2
  %vm430 = vcmask 1041408
  %v431 = vsel %vm430, %v250, %v424
  %vm432 = vcmask 1045508
  %v433 = vsel %vm432, %v425, %v426
  %vm434 = vcmask 1043456
  %v435 = vsel %vm434, %v431, %v433
  %vm436 = vcmask 1043458
  %v437 = vsel %vm436, %v250, %v424
  %vm438 = vcmask 1045504
  %v439 = vsel %vm438, %v426, %v425
  %vm440 = vcmask 1045506
  %v441 = vsel %vm440, %v437, %v439
  %v442 = vrot.slane %v441, 2
  %v443 = vsel %vm432, %v250, %v424
  %v444 = vsel %vm430, %v425, %v426
  %v445 = vsel %vm434, %v444, %v443
  %v446 = vrot.slane %v445, 4
  %v447 = vsel %vm438, %v424, %v250
  %v448 = vsel %vm436, %v425, %v426
  %v449 = vsel %vm440, %v448, %v447
  %v450 = vrot.slane %v449, 6
  %v451 = vsel %vm430, %v253, %v427
  %v452 = vsel %vm432, %v428, %v429
  %v453 = vsel %vm434, %v451, %v452
  %v454 = vsel %vm436, %v253, %v427
  %v455 = vsel %vm438, %v429, %v428
  %v456 = vsel %vm440, %v454, %v455
  %v457 = vrot.slane %v456, 2
  %v458 = vsel %vm432, %v253, %v427
  %v459 = vsel %vm430, %v428, %v429
  %v460 = vsel %vm434, %v459, %v458
  %v461 = vrot.slane %v460, 4
  %v462 = vsel %vm438, %v427, %v253
  %v463 = vsel %vm436, %v428, %v429
  %v464 = vsel %vm440, %v463, %v462
  %v465 = vrot.slane %v464, 6
  %474 = vst [vmem:[#allocation2] sm:$0xff] %v435
  %475 = vst [vmem:[#allocation2 + $0x8] sm:$0xff] %v442
  %476 = vst [vmem:[#allocation2 + $0x10] sm:$0xff] %v446
  %477 = vst [vmem:[#allocation2 + $0x18] sm:$0xff] %v450
  %478 = vst [vmem:[#allocation2 + $0x20] sm:$0xff] %v453
  %479 = vst [vmem:[#allocation2 + $0x28] sm:$0xff] %v457
  %480 = vst [vmem:[#allocation2 + $0x30] sm:$0xff] %v461
  %481 = vst [vmem:[#allocation2 + $0x38] sm:$0xff] %v465
  %v490 = vrot.slane %v365, 6
  %v491 = vrot.slane %v388, 4
  %v492 = vrot.slane %v411, 2
  %v493 = vrot.slane %v368, 6
  %v494 = vrot.slane %v391, 4
  %v495 = vrot.slane %v414, 2
  %v496 = vsel %vm430, %v342, %v490
  %v497 = vsel %vm432, %v491, %v492
  %v498 = vsel %vm434, %v496, %v497
  %v499 = vsel %vm436, %v342, %v490
  %v500 = vsel %vm438, %v492, %v491
  %v501 = vsel %vm440, %v499, %v500
  %v502 = vrot.slane %v501, 2
  %v503 = vsel %vm432, %v342, %v490
  %v504 = vsel %vm430, %v491, %v492
  %v505 = vsel %vm434, %v504, %v503
  %v506 = vrot.slane %v505, 4
  %v507 = vsel %vm438, %v490, %v342
  %v508 = vsel %vm436, %v491, %v492
  %v509 = vsel %vm440, %v508, %v507
  %v510 = vrot.slane %v509, 6
  %v511 = vsel %vm430, %v345, %v493
  %v512 = vsel %vm432, %v494, %v495
  %v513 = vsel %vm434, %v511, %v512
  %v514 = vsel %vm436, %v345, %v493
  %v515 = vsel %vm438, %v495, %v494
  %v516 = vsel %vm440, %v514, %v515
  %v517 = vrot.slane %v516, 2
  %v518 = vsel %vm432, %v345, %v493
  %v519 = vsel %vm430, %v494, %v495
  %v520 = vsel %vm434, %v519, %v518
  %v521 = vrot.slane %v520, 4
  %v522 = vsel %vm438, %v493, %v345
  %v523 = vsel %vm436, %v494, %v495
  %v524 = vsel %vm440, %v523, %v522
  %v525 = vrot.slane %v524, 6
  %534 = vst [vmem:[#allocation3] sm:$0xff] %v498
  %535 = vst [vmem:[#allocation3 + $0x8] sm:$0xff] %v502
  %536 = vst [vmem:[#allocation3 + $0x10] sm:$0xff] %v506
  %537 = vst [vmem:[#allocation3 + $0x18] sm:$0xff] %v510
  %538 = vst [vmem:[#allocation3 + $0x20] sm:$0xff] %v513
  %539 = vst [vmem:[#allocation3 + $0x28] sm:$0xff] %v517
  %540 = vst [vmem:[#allocation3 + $0x30] sm:$0xff] %v521
  %541 = vst [vmem:[#allocation3 + $0x38] sm:$0xff] %v525
  %542 = vst [vmem:[#allocation6] sm:$0x3] 0.0
  %543 = vst [vmem:[#allocation7] sm:$0x3] 0.0
  %544 = vst [vmem:[#allocation8] sm:$0x3] 0.0
  %545 = vst [vmem:[#allocation9] sm:$0x3] 0.0
  %v546 = vld [vmem:[#allocation2] sm:$0xff]
  %v547 = vld [vmem:[#allocation6] sm:$0x3]
  %548 = vmatpush.msra.mxu0 %v117
  %549 = vmatpush.msra.mxu0 %v113
  %550 = vmatpush.msra.mxu0 %v109
  %551 = vmatpush.msra.mxu0 %v105
  %552 = vmatpush.msra.mxu0 %v101
  %553 = vmatpush.msra.mxu0 %v97
  %554 = vmatpush.msra.mxu0 %v93
  %555 = vmatpush.msra.mxu0 %v89
  %556 = vmatpush.msra.mxu0 %v85
  %557 = vmatpush.msra.mxu0 %v81
  %558 = vmatpush.msra.mxu0 %v77
  %559 = vmatpush.msra.mxu0 %v73
  %560 = vmatpush.msra.mxu0 %v69
  %561 = vmatpush.msra.mxu0 %v65
  %562 = vmatpush.msra.mxu0 %v61
  %563 = vmatpush.msra.mxu0 %v57
  %564 = vmatmul.f32.gmra.mxu0 %v547
  %v565 = vpop.f32.mrf.mxu0
  %v566 = vadd.f32 0.0, %v565
  %567 = vdwg.mxu0
  %568 = vmatpush.msra.mxu0 %v118
  %569 = vmatpush.msra.mxu0 %v114
  %570 = vmatpush.msra.mxu0 %v110
  %571 = vmatpush.msra.mxu0 %v106
  %572 = vmatpush.msra.mxu0 %v102
  %573 = vmatpush.msra.mxu0 %v98
  %574 = vmatpush.msra.mxu0 %v94
  %575 = vmatpush.msra.mxu0 %v90
  %576 = vmatpush.msra.mxu0 %v86
  %577 = vmatpush.msra.mxu0 %v82
  %578 = vmatpush.msra.mxu0 %v78
  %579 = vmatpush.msra.mxu0 %v74
  %580 = vmatpush.msra.mxu0 %v70
  %581 = vmatpush.msra.mxu0 %v66
  %582 = vmatpush.msra.mxu0 %v62
  %583 = vmatpush.msra.mxu0 %v58
  %584 = vmatmul.f32.gmra.mxu0 %v547
  %v585 = vpop.f32.mrf.mxu0
  %v586 = vadd.f32 0.0, %v585
  %587 = vdwg.mxu0
  %588 = vmatpush.msra.mxu0 %v119
  %589 = vmatpush.msra.mxu0 %v115
  %590 = vmatpush.msra.mxu0 %v111
  %591 = vmatpush.msra.mxu0 %v107
  %592 = vmatpush.msra.mxu0 %v103
  %593 = vmatpush.msra.mxu0 %v99
  %594 = vmatpush.msra.mxu0 %v95
  %595 = vmatpush.msra.mxu0 %v91
  %596 = vmatpush.msra.mxu0 %v87
  %597 = vmatpush.msra.mxu0 %v83
  %598 = vmatpush.msra.mxu0 %v79
  %599 = vmatpush.msra.mxu0 %v75
  %600 = vmatpush.msra.mxu0 %v71
  %601 = vmatpush.msra.mxu0 %v67
  %602 = vmatpush.msra.mxu0 %v63
  %603 = vmatpush.msra.mxu0 %v59
  %604 = vmatmul.f32.gmra.mxu0 %v547
  %v605 = vpop.f32.mrf.mxu0
  %v606 = vadd.f32 0.0, %v605
  %607 = vdwg.mxu0
  %608 = vmatpush.msra.mxu0 %v120
  %609 = vmatpush.msra.mxu0 %v116
  %610 = vmatpush.msra.mxu0 %v112
  %611 = vmatpush.msra.mxu0 %v108
  %612 = vmatpush.msra.mxu0 %v104
  %613 = vmatpush.msra.mxu0 %v100
  %614 = vmatpush.msra.mxu0 %v96
  %615 = vmatpush.msra.mxu0 %v92
  %616 = vmatpush.msra.mxu0 %v88
  %617 = vmatpush.msra.mxu0 %v84
  %618 = vmatpush.msra.mxu0 %v80
  %619 = vmatpush.msra.mxu0 %v76
  %620 = vmatpush.msra.mxu0 %v72
  %621 = vmatpush.msra.mxu0 %v68
  %622 = vmatpush.msra.mxu0 %v64
  %623 = vmatpush.msra.mxu0 %v60
  %624 = vmatmul.f32.gmra.mxu0 %v547
  %v625 = vpop.f32.mrf.mxu0
  %v626 = vadd.f32 0.0, %v625
  %627 = vdwg.mxu0
  %v632 = vrot.slane %v586, 6
  %v633 = vrot.slane %v606, 4
  %v634 = vrot.slane %v626, 2
  %v635 = vsel %vm430, %v566, %v632
  %v636 = vsel %vm432, %v633, %v634
  %v637 = vsel %vm434, %v635, %v636
  %v639 = vadd.f32 %v546, %v637
  %s640 = scalar_lea.vmem [#allocation3], 56
  %v641 = vld [vmem:[%s640] sm:$0xff]
  %v642 = vld [vmem:[#allocation8] sm:$0x3]
  %643 = vmatpush.msra.mxu0 %v181
  %644 = vmatpush.msra.mxu0 %v177
  %645 = vmatpush.msra.mxu0 %v173
  %646 = vmatpush.msra.mxu0 %v169
  %647 = vmatpush.msra.mxu0 %v165
  %648 = vmatpush.msra.mxu0 %v161
  %649 = vmatpush.msra.mxu0 %v157
  %650 = vmatpush.msra.mxu0 %v153
  %651 = vmatpush.msra.mxu0 %v149
  %652 = vmatpush.msra.mxu0 %v145
  %653 = vmatpush.msra.mxu0 %v141
  %654 = vmatpush.msra.mxu0 %v137
  %655 = vmatpush.msra.mxu0 %v133
  %656 = vmatpush.msra.mxu0 %v129
  %657 = vmatpush.msra.mxu0 %v125
  %658 = vmatpush.msra.mxu0 %v121
  %659 = vmatmul.f32.gmra.mxu0 %v642
  %v660 = vpop.f32.mrf.mxu0
  %v661 = vadd.f32 0.0, %v660
  %662 = vdwg.mxu0
  %663 = vmatpush.msra.mxu0 %v182
  %664 = vmatpush.msra.mxu0 %v178
  %665 = vmatpush.msra.mxu0 %v174
  %666 = vmatpush.msra.mxu0 %v170
  %667 = vmatpush.msra.mxu0 %v166
  %668 = vmatpush.msra.mxu0 %v162
  %669 = vmatpush.msra.mxu0 %v158
  %670 = vmatpush.msra.mxu0 %v154
  %671 = vmatpush.msra.mxu0 %v150
  %672 = vmatpush.msra.mxu0 %v146
  %673 = vmatpush.msra.mxu0 %v142
  %674 = vmatpush.msra.mxu0 %v138
  %675 = vmatpush.msra.mxu0 %v134
  %676 = vmatpush.msra.mxu0 %v130
  %677 = vmatpush.msra.mxu0 %v126
  %678 = vmatpush.msra.mxu0 %v122
  %679 = vmatmul.f32.gmra.mxu0 %v642
  %v680 = vpop.f32.mrf.mxu0
  %v681 = vadd.f32 0.0, %v680
  %682 = vdwg.mxu0
  %683 = vmatpush.msra.mxu0 %v183
  %684 = vmatpush.msra.mxu0 %v179
  %685 = vmatpush.msra.mxu0 %v175
  %686 = vmatpush.msra.mxu0 %v171
  %687 = vmatpush.msra.mxu0 %v167
  %688 = vmatpush.msra.mxu0 %v163
  %689 = vmatpush.msra.mxu0 %v159
  %690 = vmatpush.msra.mxu0 %v155
  %691 = vmatpush.msra.mxu0 %v151
  %692 = vmatpush.msra.mxu0 %v147
  %693 = vmatpush.msra.mxu0 %v143
  %694 = vmatpush.msra.mxu0 %v139
  %695 = vmatpush.msra.mxu0 %v135
  %696 = vmatpush.msra.mxu0 %v131
  %697 = vmatpush.msra.mxu0 %v127
  %698 = vmatpush.msra.mxu0 %v123
  %699 = vmatmul.f32.gmra.mxu0 %v642
  %v700 = vpop.f32.mrf.mxu0
  %v701 = vadd.f32 0.0, %v700
  %702 = vdwg.mxu0
  %703 = vmatpush.msra.mxu0 %v184
  %704 = vmatpush.msra.mxu0 %v180
  %705 = vmatpush.msra.mxu0 %v176
  %706 = vmatpush.msra.mxu0 %v172
  %707 = vmatpush.msra.mxu0 %v168
  %708 = vmatpush.msra.mxu0 %v164
  %709 = vmatpush.msra.mxu0 %v160
  %710 = vmatpush.msra.mxu0 %v156
  %711 = vmatpush.msra.mxu0 %v152
  %712 = vmatpush.msra.mxu0 %v148
  %713 = vmatpush.msra.mxu0 %v144
  %714 = vmatpush.msra.mxu0 %v140
  %715 = vmatpush.msra.mxu0 %v136
  %716 = vmatpush.msra.mxu0 %v132
  %717 = vmatpush.msra.mxu0 %v128
  %718 = vmatpush.msra.mxu0 %v124
  %719 = vmatmul.f32.gmra.mxu0 %v642
  %v720 = vpop.f32.mrf.mxu0
  %v721 = vadd.f32 0.0, %v720
  %722 = vdwg.mxu0
  %v727 = vrot.slane %v681, 6
  %v728 = vrot.slane %v701, 4
  %v729 = vrot.slane %v721, 2
  %v730 = vsel %vm430, %v661, %v727
  %v731 = vsel %vm432, %v728, %v729
  %v732 = vsel %vm434, %v730, %v731
  %v734 = vadd.f32 %v641, %v732
  %v735 = vld [vmem:[#allocation7] sm:$0x3]
  %v736 = vxor.u32 %v639, 2147483648
  %v737 = vmul.f32 %v736, 1.442695
  %v738 = vpow.pop %v737
  %v739 = vadd.f32 %v738, 1.0
  %v740 = vrcp.pop %v739
  %v741 = vmul.f32 %v739, %v740
  %v742 = vsub.f32 1.0, %v741
  %v743 = vmul.f32 %v740, %v742
  %v744 = vadd.f32 %v740, %v743
  %vm745 = vweird.f32 %v739
  %vm746 = vweird.f32 %v740
  %vm747 = vmor %vm745, %vm746
  %v748 = vsel %vm747, %v740, %v744
  %v749 = vand.u32 2147483647, %v739
  %vm750 = vcmp.eq.f32.partialorder %v749, 8.507059e+37
  %v751 = vand.u32 %v739, 2147483648
  %v752 = vor.u32 1.1754944e-38, %v751
  %v753 = vsel %vm750, %v752, %v748
  %v754 = vmul.f32 1.0, %v753
  %v756 = vrot.slane %v639, 2
  %v758 = vxor.u32 %v756, 2147483648
  %v759 = vmul.f32 %v758, 1.442695
  %v760 = vpow.pop %v759
  %v761 = vadd.f32 %v760, 1.0
  %v762 = vrcp.pop %v761
  %v763 = vmul.f32 %v761, %v762
  %v764 = vsub.f32 1.0, %v763
  %v765 = vmul.f32 %v762, %v764
  %v766 = vadd.f32 %v762, %v765
  %vm767 = vweird.f32 %v761
  %vm768 = vweird.f32 %v762
  %vm769 = vmor %vm767, %vm768
  %v770 = vsel %vm769, %v762, %v766
  %v771 = vand.u32 2147483647, %v761
  %vm772 = vcmp.eq.f32.partialorder %v771, 8.507059e+37
  %v773 = vand.u32 %v761, 2147483648
  %v774 = vor.u32 1.1754944e-38, %v773
  %v775 = vsel %vm772, %v774, %v770
  %v776 = vmul.f32 1.0, %v775
  %v777 = vrot.slane %v639, 4
  %v779 = vtanh.pop %v777
  %v780 = vrot.slane %v639, 6
  %v782 = vxor.u32 %v780, 2147483648
  %v783 = vmul.f32 %v782, 1.442695
  %v784 = vpow.pop %v783
  %v785 = vadd.f32 %v784, 1.0
  %v786 = vrcp.pop %v785
  %v787 = vmul.f32 %v785, %v786
  %v788 = vsub.f32 1.0, %v787
  %v789 = vmul.f32 %v786, %v788
  %v790 = vadd.f32 %v786, %v789
  %vm791 = vweird.f32 %v785
  %vm792 = vweird.f32 %v786
  %vm793 = vmor %vm791, %vm792
  %v794 = vsel %vm793, %v786, %v790
  %v795 = vand.u32 2147483647, %v785
  %vm796 = vcmp.eq.f32.partialorder %v795, 8.507059e+37
  %v797 = vand.u32 %v785, 2147483648
  %v798 = vor.u32 1.1754944e-38, %v797
  %v799 = vsel %vm796, %v798, %v794
  %v800 = vmul.f32 1.0, %v799
  %v801 = vmul.f32 %v776, %v735
  %v802 = vmul.f32 %v754, %v779
  %v803 = vadd.f32 %v801, %v802
  %v804 = vtanh.pop %v803
  %v805 = vmul.f32 %v800, %v804
  %v806 = vld [vmem:[#allocation9] sm:$0x3]
  %v807 = vxor.u32 %v734, 2147483648
  %v808 = vmul.f32 %v807, 1.442695
  %v809 = vpow.pop %v808
  %v810 = vadd.f32 %v809, 1.0
  %v811 = vrcp.pop %v810
  %v812 = vmul.f32 %v810, %v811
  %v813 = vsub.f32 1.0, %v812
  %v814 = vmul.f32 %v811, %v813
  %v815 = vadd.f32 %v811, %v814
  %vm816 = vweird.f32 %v810
  %vm817 = vweird.f32 %v811
  %vm818 = vmor %vm816, %vm817
  %v819 = vsel %vm818, %v811, %v815
  %v820 = vand.u32 2147483647, %v810
  %vm821 = vcmp.eq.f32.partialorder %v820, 8.507059e+37
  %v822 = vand.u32 %v810, 2147483648
  %v823 = vor.u32 1.1754944e-38, %v822
  %v824 = vsel %vm821, %v823, %v819
  %v825 = vmul.f32 1.0, %v824
  %v827 = vrot.slane %v734, 2
  %v829 = vxor.u32 %v827, 2147483648
  %v830 = vmul.f32 %v829, 1.442695
  %v831 = vpow.pop %v830
  %v832 = vadd.f32 %v831, 1.0
  %v833 = vrcp.pop %v832
  %v834 = vmul.f32 %v832, %v833
  %v835 = vsub.f32 1.0, %v834
  %v836 = vmul.f32 %v833, %v835
  %v837 = vadd.f32 %v833, %v836
  %vm838 = vweird.f32 %v832
  %vm839 = vweird.f32 %v833
  %vm840 = vmor %vm838, %vm839
  %v841 = vsel %vm840, %v833, %v837
  %v842 = vand.u32 2147483647, %v832
  %vm843 = vcmp.eq.f32.partialorder %v842, 8.507059e+37
  %v844 = vand.u32 %v832, 2147483648
  %v845 = vor.u32 1.1754944e-38, %v844
  %v846 = vsel %vm843, %v845, %v841
  %v847 = vmul.f32 1.0, %v846
  %v848 = vrot.slane %v734, 4
  %v850 = vtanh.pop %v848
  %v851 = vrot.slane %v734, 6
  %v853 = vxor.u32 %v851, 2147483648
  %v854 = vmul.f32 %v853, 1.442695
  %v855 = vpow.pop %v854
  %v856 = vadd.f32 %v855, 1.0
  %v857 = vrcp.pop %v856
  %v858 = vmul.f32 %v856, %v857
  %v859 = vsub.f32 1.0, %v858
  %v860 = vmul.f32 %v857, %v859
  %v861 = vadd.f32 %v857, %v860
  %vm862 = vweird.f32 %v856
  %vm863 = vweird.f32 %v857
  %vm864 = vmor %vm862, %vm863
  %v865 = vsel %vm864, %v857, %v861
  %v866 = vand.u32 2147483647, %v856
  %vm867 = vcmp.eq.f32.partialorder %v866, 8.507059e+37
  %v868 = vand.u32 %v856, 2147483648
  %v869 = vor.u32 1.1754944e-38, %v868
  %v870 = vsel %vm867, %v869, %v865
  %v871 = vmul.f32 1.0, %v870
  %v872 = vmul.f32 %v847, %v806
  %v873 = vmul.f32 %v825, %v850
  %v874 = vadd.f32 %v872, %v873
  %v875 = vtanh.pop %v874
  %v876 = vmul.f32 %v871, %v875
  %877 = vst [vmem:[#allocation6] sm:$0x3] %v805
  %878 = vst [vmem:[#allocation7] sm:$0x3] %v803
  %879 = vst [vmem:[#allocation8] sm:$0x3] %v876
  %880 = vst [vmem:[#allocation9] sm:$0x3] %v874
  %881 = vst [vmem:[#allocation4] sm:$0x3] %v805
  %s882 = scalar_lea.vmem [#allocation5], 14
  %883 = vst [vmem:[%s882] sm:$0x3] %v876
  %s884 = scalar_lea.vmem [#allocation2], 8
  %v885 = vld [vmem:[%s884] sm:$0xff]
  %v886 = vld [vmem:[#allocation6] sm:$0x3]
  %887 = vmatpush.msra.mxu0 %v117
  %888 = vmatpush.msra.mxu0 %v113
  %889 = vmatpush.msra.mxu0 %v109
  %890 = vmatpush.msra.mxu0 %v105
  %891 = vmatpush.msra.mxu0 %v101
  %892 = vmatpush.msra.mxu0 %v97
  %893 = vmatpush.msra.mxu0 %v93
  %894 = vmatpush.msra.mxu0 %v89
  %895 = vmatpush.msra.mxu0 %v85
  %896 = vmatpush.msra.mxu0 %v81
  %897 = vmatpush.msra.mxu0 %v77
  %898 = vmatpush.msra.mxu0 %v73
  %899 = vmatpush.msra.mxu0 %v69
  %900 = vmatpush.msra.mxu0 %v65
  %901 = vmatpush.msra.mxu0 %v61
  %902 = vmatpush.msra.mxu0 %v57
  %903 = vmatmul.f32.gmra.mxu0 %v886
  %v904 = vpop.f32.mrf.mxu0
  %v905 = vadd.f32 0.0, %v904
  %906 = vdwg.mxu0
  %907 = vmatpush.msra.mxu0 %v118
  %908 = vmatpush.msra.mxu0 %v114
  %909 = vmatpush.msra.mxu0 %v110
  %910 = vmatpush.msra.mxu0 %v106
  %911 = vmatpush.msra.mxu0 %v102
  %912 = vmatpush.msra.mxu0 %v98
  %913 = vmatpush.msra.mxu0 %v94
  %914 = vmatpush.msra.mxu0 %v90
  %915 = vmatpush.msra.mxu0 %v86
  %916 = vmatpush.msra.mxu0 %v82
  %917 = vmatpush.msra.mxu0 %v78
  %918 = vmatpush.msra.mxu0 %v74
  %919 = vmatpush.msra.mxu0 %v70
  %920 = vmatpush.msra.mxu0 %v66
  %921 = vmatpush.msra.mxu0 %v62
  %922 = vmatpush.msra.mxu0 %v58
  %923 = vmatmul.f32.gmra.mxu0 %v886
  %v924 = vpop.f32.mrf.mxu0
  %v925 = vadd.f32 0.0, %v924
  %926 = vdwg.mxu0
  %927 = vmatpush.msra.mxu0 %v119
  %928 = vmatpush.msra.mxu0 %v115
  %929 = vmatpush.msra.mxu0 %v111
  %930 = vmatpush.msra.mxu0 %v107
  %931 = vmatpush.msra.mxu0 %v103
  %932 = vmatpush.msra.mxu0 %v99
  %933 = vmatpush.msra.mxu0 %v95
  %934 = vmatpush.msra.mxu0 %v91
  %935 = vmatpush.msra.mxu0 %v87
  %936 = vmatpush.msra.mxu0 %v83
  %937 = vmatpush.msra.mxu0 %v79
  %938 = vmatpush.msra.mxu0 %v75
  %939 = vmatpush.msra.mxu0 %v71
  %940 = vmatpush.msra.mxu0 %v67
  %941 = vmatpush.msra.mxu0 %v63
  %942 = vmatpush.msra.mxu0 %v59
  %943 = vmatmul.f32.gmra.mxu0 %v886
  %v944 = vpop.f32.mrf.mxu0
  %v945 = vadd.f32 0.0, %v944
  %946 = vdwg.mxu0
  %947 = vmatpush.msra.mxu0 %v120
  %948 = vmatpush.msra.mxu0 %v116
  %949 = vmatpush.msra.mxu0 %v112
  %950 = vmatpush.msra.mxu0 %v108
  %951 = vmatpush.msra.mxu0 %v104
  %952 = vmatpush.msra.mxu0 %v100
  %953 = vmatpush.msra.mxu0 %v96
  %954 = vmatpush.msra.mxu0 %v92
  %955 = vmatpush.msra.mxu0 %v88
  %956 = vmatpush.msra.mxu0 %v84
  %957 = vmatpush.msra.mxu0 %v80
  %958 = vmatpush.msra.mxu0 %v76
  %959 = vmatpush.msra.mxu0 %v72
  %960 = vmatpush.msra.mxu0 %v68
  %961 = vmatpush.msra.mxu0 %v64
  %962 = vmatpush.msra.mxu0 %v60
  %963 = vmatmul.f32.gmra.mxu0 %v886
  %v964 = vpop.f32.mrf.mxu0
  %v965 = vadd.f32 0.0, %v964
  %966 = vdwg.mxu0
  %v971 = vrot.slane %v925, 6
  %v972 = vrot.slane %v945, 4
  %v973 = vrot.slane %v965, 2
  %v974 = vsel %vm430, %v905, %v971
  %v975 = vsel %vm432, %v972, %v973
  %v976 = vsel %vm434, %v974, %v975
  %v978 = vadd.f32 %v885, %v976
  %s979 = scalar_lea.vmem [#allocation3], 48
  %v980 = vld [vmem:[%s979] sm:$0xff]
  %v981 = vld [vmem:[#allocation8] sm:$0x3]
  %982 = vmatpush.msra.mxu0 %v181
  %983 = vmatpush.msra.mxu0 %v177
  %984 = vmatpush.msra.mxu0 %v173
  %985 = vmatpush.msra.mxu0 %v169
  %986 = vmatpush.msra.mxu0 %v165
  %987 = vmatpush.msra.mxu0 %v161
  %988 = vmatpush.msra.mxu0 %v157
  %989 = vmatpush.msra.mxu0 %v153
  %990 = vmatpush.msra.mxu0 %v149
  %991 = vmatpush.msra.mxu0 %v145
  %992 = vmatpush.msra.mxu0 %v141
  %993 = vmatpush.msra.mxu0 %v137
  %994 = vmatpush.msra.mxu0 %v133
  %995 = vmatpush.msra.mxu0 %v129
  %996 = vmatpush.msra.mxu0 %v125
  %997 = vmatpush.msra.mxu0 %v121
  %998 = vmatmul.f32.gmra.mxu0 %v981
  %v999 = vpop.f32.mrf.mxu0
  %v1000 = vadd.f32 0.0, %v999
  %1001 = vdwg.mxu0
  %1002 = vmatpush.msra.mxu0 %v182
  %1003 = vmatpush.msra.mxu0 %v178
  %1004 = vmatpush.msra.mxu0 %v174
  %1005 = vmatpush.msra.mxu0 %v170
  %1006 = vmatpush.msra.mxu0 %v166
  %1007 = vmatpush.msra.mxu0 %v162
  %1008 = vmatpush.msra.mxu0 %v158
  %1009 = vmatpush.msra.mxu0 %v154
  %1010 = vmatpush.msra.mxu0 %v150
  %1011 = vmatpush.msra.mxu0 %v146
  %1012 = vmatpush.msra.mxu0 %v142
  %1013 = vmatpush.msra.mxu0 %v138
  %1014 = vmatpush.msra.mxu0 %v134
  %1015 = vmatpush.msra.mxu0 %v130
  %1016 = vmatpush.msra.mxu0 %v126
  %1017 = vmatpush.msra.mxu0 %v122
  %1018 = vmatmul.f32.gmra.mxu0 %v981
  %v1019 = vpop.f32.mrf.mxu0
  %v1020 = vadd.f32 0.0, %v1019
  %1021 = vdwg.mxu0
  %1022 = vmatpush.msra.mxu0 %v183
  %1023 = vmatpush.msra.mxu0 %v179
  %1024 = vmatpush.msra.mxu0 %v175
  %1025 = vmatpush.msra.mxu0 %v171
  %1026 = vmatpush.msra.mxu0 %v167
  %1027 = vmatpush.msra.mxu0 %v163
  %1028 = vmatpush.msra.mxu0 %v159
  %1029 = vmatpush.msra.mxu0 %v155
  %1030 = vmatpush.msra.mxu0 %v151
  %1031 = vmatpush.msra.mxu0 %v147
  %1032 = vmatpush.msra.mxu0 %v143
  %1033 = vmatpush.msra.mxu0 %v139
  %1034 = vmatpush.msra.mxu0 %v135
  %1035 = vmatpush.msra.mxu0 %v131
  %1036 = vmatpush.msra.mxu0 %v127
  %1037 = vmatpush.msra.mxu0 %v123
  %1038 = vmatmul.f32.gmra.mxu0 %v981
  %v1039 = vpop.f32.mrf.mxu0
  %v1040 = vadd.f32 0.0, %v1039
  %1041 = vdwg.mxu0
  %1042 = vmatpush.msra.mxu0 %v184
  %1043 = vmatpush.msra.mxu0 %v180
  %1044 = vmatpush.msra.mxu0 %v176
  %1045 = vmatpush.msra.mxu0 %v172
  %1046 = vmatpush.msra.mxu0 %v168
  %1047 = vmatpush.msra.mxu0 %v164
  %1048 = vmatpush.msra.mxu0 %v160
  %1049 = vmatpush.msra.mxu0 %v156
  %1050 = vmatpush.msra.mxu0 %v152
  %1051 = vmatpush.msra.mxu0 %v148
  %1052 = vmatpush.msra.mxu0 %v144
  %1053 = vmatpush.msra.mxu0 %v140
  %1054 = vmatpush.msra.mxu0 %v136
  %1055 = vmatpush.msra.mxu0 %v132
  %1056 = vmatpush.msra.mxu0 %v128
  %1057 = vmatpush.msra.mxu0 %v124
  %1058 = vmatmul.f32.gmra.mxu0 %v981
  %v1059 = vpop.f32.mrf.mxu0
  %v1060 = vadd.f32 0.0, %v1059
  %1061 = vdwg.mxu0
  %v1066 = vrot.slane %v1020, 6
  %v1067 = vrot.slane %v1040, 4
  %v1068 = vrot.slane %v1060, 2
  %v1069 = vsel %vm430, %v1000, %v1066
  %v1070 = vsel %vm432, %v1067, %v1068
  %v1071 = vsel %vm434, %v1069, %v1070
  %v1073 = vadd.f32 %v980, %v1071
  %v1074 = vld [vmem:[#allocation7] sm:$0x3]
  %v1075 = vxor.u32 %v978, 2147483648
  %v1076 = vmul.f32 %v1075, 1.442695
  %v1077 = vpow.pop %v1076
  %v1078 = vadd.f32 %v1077, 1.0
  %v1079 = vrcp.pop %v1078
  %v1080 = vmul.f32 %v1078, %v1079
  %v1081 = vsub.f32 1.0, %v1080
  %v1082 = vmul.f32 %v1079, %v1081
  %v1083 = vadd.f32 %v1079, %v1082
  %vm1084 = vweird.f32 %v1078
  %vm1085 = vweird.f32 %v1079
  %vm1086 = vmor %vm1084, %vm1085
  %v1087 = vsel %vm1086, %v1079, %v1083
  %v1088 = vand.u32 2147483647, %v1078
  %vm1089 = vcmp.eq.f32.partialorder %v1088, 8.507059e+37
  %v1090 = vand.u32 %v1078, 2147483648
  %v1091 = vor.u32 1.1754944e-38, %v1090
  %v1092 = vsel %vm1089, %v1091, %v1087
  %v1093 = vmul.f32 1.0, %v1092
  %v1095 = vrot.slane %v978, 2
  %v1097 = vxor.u32 %v1095, 2147483648
  %v1098 = vmul.f32 %v1097, 1.442695
  %v1099 = vpow.pop %v1098
  %v1100 = vadd.f32 %v1099, 1.0
  %v1101 = vrcp.pop %v1100
  %v1102 = vmul.f32 %v1100, %v1101
  %v1103 = vsub.f32 1.0, %v1102
  %v1104 = vmul.f32 %v1101, %v1103
  %v1105 = vadd.f32 %v1101, %v1104
  %vm1106 = vweird.f32 %v1100
  %vm1107 = vweird.f32 %v1101
  %vm1108 = vmor %vm1106, %vm1107
  %v1109 = vsel %vm1108, %v1101, %v1105
  %v1110 = vand.u32 2147483647, %v1100
  %vm1111 = vcmp.eq.f32.partialorder %v1110, 8.507059e+37
  %v1112 = vand.u32 %v1100, 2147483648
  %v1113 = vor.u32 1.1754944e-38, %v1112
  %v1114 = vsel %vm1111, %v1113, %v1109
  %v1115 = vmul.f32 1.0, %v1114
  %v1116 = vrot.slane %v978, 4
  %v1118 = vtanh.pop %v1116
  %v1119 = vrot.slane %v978, 6
  %v1121 = vxor.u32 %v1119, 2147483648
  %v1122 = vmul.f32 %v1121, 1.442695
  %v1123 = vpow.pop %v1122
  %v1124 = vadd.f32 %v1123, 1.0
  %v1125 = vrcp.pop %v1124
  %v1126 = vmul.f32 %v1124, %v1125
  %v1127 = vsub.f32 1.0, %v1126
  %v1128 = vmul.f32 %v1125, %v1127
  %v1129 = vadd.f32 %v1125, %v1128
  %vm1130 = vweird.f32 %v1124
  %vm1131 = vweird.f32 %v1125
  %vm1132 = vmor %vm1130, %vm1131
  %v1133 = vsel %vm1132, %v1125, %v1129
  %v1134 = vand.u32 2147483647, %v1124
  %vm1135 = vcmp.eq.f32.partialorder %v1134, 8.507059e+37
  %v1136 = vand.u32 %v1124, 2147483648
  %v1137 = vor.u32 1.1754944e-38, %v1136
  %v1138 = vsel %vm1135, %v1137, %v1133
  %v1139 = vmul.f32 1.0, %v1138
  %v1140 = vmul.f32 %v1115, %v1074
  %v1141 = vmul.f32 %v1093, %v1118
  %v1142 = vadd.f32 %v1140, %v1141
  %v1143 = vtanh.pop %v1142
  %v1144 = vmul.f32 %v1139, %v1143
  %v1145 = vld [vmem:[#allocation9] sm:$0x3]
  %v1146 = vxor.u32 %v1073, 2147483648
  %v1147 = vmul.f32 %v1146, 1.442695
  %v1148 = vpow.pop %v1147
  %v1149 = vadd.f32 %v1148, 1.0
  %v1150 = vrcp.pop %v1149
  %v1151 = vmul.f32 %v1149, %v1150
  %v1152 = vsub.f32 1.0, %v1151
  %v1153 = vmul.f32 %v1150, %v1152
  %v1154 = vadd.f32 %v1150, %v1153
  %vm1155 = vweird.f32 %v1149
  %vm1156 = vweird.f32 %v1150
  %vm1157 = vmor %vm1155, %vm1156
  %v1158 = vsel %vm1157, %v1150, %v1154
  %v1159 = vand.u32 2147483647, %v1149
  %vm1160 = vcmp.eq.f32.partialorder %v1159, 8.507059e+37
  %v1161 = vand.u32 %v1149, 2147483648
  %v1162 = vor.u32 1.1754944e-38, %v1161
  %v1163 = vsel %vm1160, %v1162, %v1158
  %v1164 = vmul.f32 1.0, %v1163
  %v1166 = vrot.slane %v1073, 2
  %v1168 = vxor.u32 %v1166, 2147483648
  %v1169 = vmul.f32 %v1168, 1.442695
  %v1170 = vpow.pop %v1169
  %v1171 = vadd.f32 %v1170, 1.0
  %v1172 = vrcp.pop %v1171
  %v1173 = vmul.f32 %v1171, %v1172
  %v1174 = vsub.f32 1.0, %v1173
  %v1175 = vmul.f32 %v1172, %v1174
  %v1176 = vadd.f32 %v1172, %v1175
  %vm1177 = vweird.f32 %v1171
  %vm1178 = vweird.f32 %v1172
  %vm1179 = vmor %vm1177, %vm1178
  %v1180 = vsel %vm1179, %v1172, %v1176
  %v1181 = vand.u32 2147483647, %v1171
  %vm1182 = vcmp.eq.f32.partialorder %v1181, 8.507059e+37
  %v1183 = vand.u32 %v1171, 2147483648
  %v1184 = vor.u32 1.1754944e-38, %v1183
  %v1185 = vsel %vm1182, %v1184, %v1180
  %v1186 = vmul.f32 1.0, %v1185
  %v1187 = vrot.slane %v1073, 4
  %v1189 = vtanh.pop %v1187
  %v1190 = vrot.slane %v1073, 6
  %v1192 = vxor.u32 %v1190, 2147483648
  %v1193 = vmul.f32 %v1192, 1.442695
  %v1194 = vpow.pop %v1193
  %v1195 = vadd.f32 %v1194, 1.0
  %v1196 = vrcp.pop %v1195
  %v1197 = vmul.f32 %v1195, %v1196
  %v1198 = vsub.f32 1.0, %v1197
  %v1199 = vmul.f32 %v1196, %v1198
  %v1200 = vadd.f32 %v1196, %v1199
  %vm1201 = vweird.f32 %v1195
  %vm1202 = vweird.f32 %v1196
  %vm1203 = vmor %vm1201, %vm1202
  %v1204 = vsel %vm1203, %v1196, %v1200
  %v1205 = vand.u32 2147483647, %v1195
  %vm1206 = vcmp.eq.f32.partialorder %v1205, 8.507059e+37
  %v1207 = vand.u32 %v1195, 2147483648
  %v1208 = vor.u32 1.1754944e-38, %v1207
  %v1209 = vsel %vm1206, %v1208, %v1204
  %v1210 = vmul.f32 1.0, %v1209
  %v1211 = vmul.f32 %v1186, %v1145
  %v1212 = vmul.f32 %v1164, %v1189
  %v1213 = vadd.f32 %v1211, %v1212
  %v1214 = vtanh.pop %v1213
  %v1215 = vmul.f32 %v1210, %v1214
  %1216 = vst [vmem:[#allocation6] sm:$0x3] %v1144
  %1217 = vst [vmem:[#allocation7] sm:$0x3] %v1142
  %1218 = vst [vmem:[#allocation8] sm:$0x3] %v1215
  %1219 = vst [vmem:[#allocation9] sm:$0x3] %v1213
  %s1220 = scalar_lea.vmem [#allocation4], 2
  %1221 = vst [vmem:[%s1220] sm:$0x3] %v1144
  %s1222 = scalar_lea.vmem [#allocation5], 12
  %1223 = vst [vmem:[%s1222] sm:$0x3] %v1215
  %s1224 = scalar_lea.vmem [#allocation2], 16
  %v1225 = vld [vmem:[%s1224] sm:$0xff]
  %v1226 = vld [vmem:[#allocation6] sm:$0x3]
  %1227 = vmatpush.msra.mxu0 %v117
  %1228 = vmatpush.msra.mxu0 %v113
  %1229 = vmatpush.msra.mxu0 %v109
  %1230 = vmatpush.msra.mxu0 %v105
  %1231 = vmatpush.msra.mxu0 %v101
  %1232 = vmatpush.msra.mxu0 %v97
  %1233 = vmatpush.msra.mxu0 %v93
  %1234 = vmatpush.msra.mxu0 %v89
  %1235 = vmatpush.msra.mxu0 %v85
  %1236 = vmatpush.msra.mxu0 %v81
  %1237 = vmatpush.msra.mxu0 %v77
  %1238 = vmatpush.msra.mxu0 %v73
  %1239 = vmatpush.msra.mxu0 %v69
  %1240 = vmatpush.msra.mxu0 %v65
  %1241 = vmatpush.msra.mxu0 %v61
  %1242 = vmatpush.msra.mxu0 %v57
  %1243 = vmatmul.f32.gmra.mxu0 %v1226
  %v1244 = vpop.f32.mrf.mxu0
  %v1245 = vadd.f32 0.0, %v1244
  %1246 = vdwg.mxu0
  %1247 = vmatpush.msra.mxu0 %v118
  %1248 = vmatpush.msra.mxu0 %v114
  %1249 = vmatpush.msra.mxu0 %v110
  %1250 = vmatpush.msra.mxu0 %v106
  %1251 = vmatpush.msra.mxu0 %v102
  %1252 = vmatpush.msra.mxu0 %v98
  %1253 = vmatpush.msra.mxu0 %v94
  %1254 = vmatpush.msra.mxu0 %v90
  %1255 = vmatpush.msra.mxu0 %v86
  %1256 = vmatpush.msra.mxu0 %v82
  %1257 = vmatpush.msra.mxu0 %v78
  %1258 = vmatpush.msra.mxu0 %v74
  %1259 = vmatpush.msra.mxu0 %v70
  %1260 = vmatpush.msra.mxu0 %v66
  %1261 = vmatpush.msra.mxu0 %v62
  %1262 = vmatpush.msra.mxu0 %v58
  %1263 = vmatmul.f32.gmra.mxu0 %v1226
  %v1264 = vpop.f32.mrf.mxu0
  %v1265 = vadd.f32 0.0, %v1264
  %1266 = vdwg.mxu0
  %1267 = vmatpush.msra.mxu0 %v119
  %1268 = vmatpush.msra.mxu0 %v115
  %1269 = vmatpush.msra.mxu0 %v111
  %1270 = vmatpush.msra.mxu0 %v107
  %1271 = vmatpush.msra.mxu0 %v103
  %1272 = vmatpush.msra.mxu0 %v99
  %1273 = vmatpush.msra.mxu0 %v95
  %1274 = vmatpush.msra.mxu0 %v91
  %1275 = vmatpush.msra.mxu0 %v87
  %1276 = vmatpush.msra.mxu0 %v83
  %1277 = vmatpush.msra.mxu0 %v79
  %1278 = vmatpush.msra.mxu0 %v75
  %1279 = vmatpush.msra.mxu0 %v71
  %1280 = vmatpush.msra.mxu0 %v67
  %1281 = vmatpush.msra.mxu0 %v63
  %1282 = vmatpush.msra.mxu0 %v59
  %1283 = vmatmul.f32.gmra.mxu0 %v1226
  %v1284 = vpop.f32.mrf.mxu0
  %v1285 = vadd.f32 0.0, %v1284
  %1286 = vdwg.mxu0
  %1287 = vmatpush.msra.mxu0 %v120
  %1288 = vmatpush.msra.mxu0 %v116
  %1289 = vmatpush.msra.mxu0 %v112
  %1290 = vmatpush.msra.mxu0 %v108
  %1291 = vmatpush.msra.mxu0 %v104
  %1292 = vmatpush.msra.mxu0 %v100
  %1293 = vmatpush.msra.mxu0 %v96
  %1294 = vmatpush.msra.mxu0 %v92
  %1295 = vmatpush.msra.mxu0 %v88
  %1296 = vmatpush.msra.mxu0 %v84
  %1297 = vmatpush.msra.mxu0 %v80
  %1298 = vmatpush.msra.mxu0 %v76
  %1299 = vmatpush.msra.mxu0 %v72
  %1300 = vmatpush.msra.mxu0 %v68
  %1301 = vmatpush.msra.mxu0 %v64
  %1302 = vmatpush.msra.mxu0 %v60
  %1303 = vmatmul.f32.gmra.mxu0 %v1226
  %v1304 = vpop.f32.mrf.mxu0
  %v1305 = vadd.f32 0.0, %v1304
  %1306 = vdwg.mxu0
  %v1311 = vrot.slane %v1265, 6
  %v1312 = vrot.slane %v1285, 4
  %v1313 = vrot.slane %v1305, 2
  %v1314 = vsel %vm430, %v1245, %v1311
  %v1315 = vsel %vm432, %v1312, %v1313
  %v1316 = vsel %vm434, %v1314, %v1315
  %v1318 = vadd.f32 %v1225, %v1316
  %s1319 = scalar_lea.vmem [#allocation3], 40
  %v1320 = vld [vmem:[%s1319] sm:$0xff]
  %v1321 = vld [vmem:[#allocation8] sm:$0x3]
  %1322 = vmatpush.msra.mxu0 %v181
  %1323 = vmatpush.msra.mxu0 %v177
  %1324 = vmatpush.msra.mxu0 %v173
  %1325 = vmatpush.msra.mxu0 %v169
  %1326 = vmatpush.msra.mxu0 %v165
  %1327 = vmatpush.msra.mxu0 %v161
  %1328 = vmatpush.msra.mxu0 %v157
  %1329 = vmatpush.msra.mxu0 %v153
  %1330 = vmatpush.msra.mxu0 %v149
  %1331 = vmatpush.msra.mxu0 %v145
  %1332 = vmatpush.msra.mxu0 %v141
  %1333 = vmatpush.msra.mxu0 %v137
  %1334 = vmatpush.msra.mxu0 %v133
  %1335 = vmatpush.msra.mxu0 %v129
  %1336 = vmatpush.msra.mxu0 %v125
  %1337 = vmatpush.msra.mxu0 %v121
  %1338 = vmatmul.f32.gmra.mxu0 %v1321
  %v1339 = vpop.f32.mrf.mxu0
  %v1340 = vadd.f32 0.0, %v1339
  %1341 = vdwg.mxu0
  %1342 = vmatpush.msra.mxu0 %v182
  %1343 = vmatpush.msra.mxu0 %v178
  %1344 = vmatpush.msra.mxu0 %v174
  %1345 = vmatpush.msra.mxu0 %v170
  %1346 = vmatpush.msra.mxu0 %v166
  %1347 = vmatpush.msra.mxu0 %v162
  %1348 = vmatpush.msra.mxu0 %v158
  %1349 = vmatpush.msra.mxu0 %v154
  %1350 = vmatpush.msra.mxu0 %v150
  %1351 = vmatpush.msra.mxu0 %v146
  %1352 = vmatpush.msra.mxu0 %v142
  %1353 = vmatpush.msra.mxu0 %v138
  %1354 = vmatpush.msra.mxu0 %v134
  %1355 = vmatpush.msra.mxu0 %v130
  %1356 = vmatpush.msra.mxu0 %v126
  %1357 = vmatpush.msra.mxu0 %v122
  %1358 = vmatmul.f32.gmra.mxu0 %v1321
  %v1359 = vpop.f32.mrf.mxu0
  %v1360 = vadd.f32 0.0, %v1359
  %1361 = vdwg.mxu0
  %1362 = vmatpush.msra.mxu0 %v183
  %1363 = vmatpush.msra.mxu0 %v179
  %1364 = vmatpush.msra.mxu0 %v175
  %1365 = vmatpush.msra.mxu0 %v171
  %1366 = vmatpush.msra.mxu0 %v167
  %1367 = vmatpush.msra.mxu0 %v163
  %1368 = vmatpush.msra.mxu0 %v159
  %1369 = vmatpush.msra.mxu0 %v155
  %1370 = vmatpush.msra.mxu0 %v151
  %1371 = vmatpush.msra.mxu0 %v147
  %1372 = vmatpush.msra.mxu0 %v143
  %1373 = vmatpush.msra.mxu0 %v139
  %1374 = vmatpush.msra.mxu0 %v135
  %1375 = vmatpush.msra.mxu0 %v131
  %1376 = vmatpush.msra.mxu0 %v127
  %1377 = vmatpush.msra.mxu0 %v123
  %1378 = vmatmul.f32.gmra.mxu0 %v1321
  %v1379 = vpop.f32.mrf.mxu0
  %v1380 = vadd.f32 0.0, %v1379
  %1381 = vdwg.mxu0
  %1382 = vmatpush.msra.mxu0 %v184
  %1383 = vmatpush.msra.mxu0 %v180
  %1384 = vmatpush.msra.mxu0 %v176
  %1385 = vmatpush.msra.mxu0 %v172
  %1386 = vmatpush.msra.mxu0 %v168
  %1387 = vmatpush.msra.mxu0 %v164
  %1388 = vmatpush.msra.mxu0 %v160
  %1389 = vmatpush.msra.mxu0 %v156
  %1390 = vmatpush.msra.mxu0 %v152
  %1391 = vmatpush.msra.mxu0 %v148
  %1392 = vmatpush.msra.mxu0 %v144
  %1393 = vmatpush.msra.mxu0 %v140
  %1394 = vmatpush.msra.mxu0 %v136
  %1395 = vmatpush.msra.mxu0 %v132
  %1396 = vmatpush.msra.mxu0 %v128
  %1397 = vmatpush.msra.mxu0 %v124
  %1398 = vmatmul.f32.gmra.mxu0 %v1321
  %v1399 = vpop.f32.mrf.mxu0
  %v1400 = vadd.f32 0.0, %v1399
  %1401 = vdwg.mxu0
  %v1406 = vrot.slane %v1360, 6
  %v1407 = vrot.slane %v1380, 4
  %v1408 = vrot.slane %v1400, 2
  %v1409 = vsel %vm430, %v1340, %v1406
  %v1410 = vsel %vm432, %v1407, %v1408
  %v1411 = vsel %vm434, %v1409, %v1410
  %v1413 = vadd.f32 %v1320, %v1411
  %v1414 = vld [vmem:[#allocation7] sm:$0x3]
  %v1415 = vxor.u32 %v1318, 2147483648
  %v1416 = vmul.f32 %v1415, 1.442695
  %v1417 = vpow.pop %v1416
  %v1418 = vadd.f32 %v1417, 1.0
  %v1419 = vrcp.pop %v1418
  %v1420 = vmul.f32 %v1418, %v1419
  %v1421 = vsub.f32 1.0, %v1420
  %v1422 = vmul.f32 %v1419, %v1421
  %v1423 = vadd.f32 %v1419, %v1422
  %vm1424 = vweird.f32 %v1418
  %vm1425 = vweird.f32 %v1419
  %vm1426 = vmor %vm1424, %vm1425
  %v1427 = vsel %vm1426, %v1419, %v1423
  %v1428 = vand.u32 2147483647, %v1418
  %vm1429 = vcmp.eq.f32.partialorder %v1428, 8.507059e+37
  %v1430 = vand.u32 %v1418, 2147483648
  %v1431 = vor.u32 1.1754944e-38, %v1430
  %v1432 = vsel %vm1429, %v1431, %v1427
  %v1433 = vmul.f32 1.0, %v1432
  %v1435 = vrot.slane %v1318, 2
  %v1437 = vxor.u32 %v1435, 2147483648
  %v1438 = vmul.f32 %v1437, 1.442695
  %v1439 = vpow.pop %v1438
  %v1440 = vadd.f32 %v1439, 1.0
  %v1441 = vrcp.pop %v1440
  %v1442 = vmul.f32 %v1440, %v1441
  %v1443 = vsub.f32 1.0, %v1442
  %v1444 = vmul.f32 %v1441, %v1443
  %v1445 = vadd.f32 %v1441, %v1444
  %vm1446 = vweird.f32 %v1440
  %vm1447 = vweird.f32 %v1441
  %vm1448 = vmor %vm1446, %vm1447
  %v1449 = vsel %vm1448, %v1441, %v1445
  %v1450 = vand.u32 2147483647, %v1440
  %vm1451 = vcmp.eq.f32.partialorder %v1450, 8.507059e+37
  %v1452 = vand.u32 %v1440, 2147483648
  %v1453 = vor.u32 1.1754944e-38, %v1452
  %v1454 = vsel %vm1451, %v1453, %v1449
  %v1455 = vmul.f32 1.0, %v1454
  %v1456 = vrot.slane %v1318, 4
  %v1458 = vtanh.pop %v1456
  %v1459 = vrot.slane %v1318, 6
  %v1461 = vxor.u32 %v1459, 2147483648
  %v1462 = vmul.f32 %v1461, 1.442695
  %v1463 = vpow.pop %v1462
  %v1464 = vadd.f32 %v1463, 1.0
  %v1465 = vrcp.pop %v1464
  %v1466 = vmul.f32 %v1464, %v1465
  %v1467 = vsub.f32 1.0, %v1466
  %v1468 = vmul.f32 %v1465, %v1467
  %v1469 = vadd.f32 %v1465, %v1468
  %vm1470 = vweird.f32 %v1464
  %vm1471 = vweird.f32 %v1465
  %vm1472 = vmor %vm1470, %vm1471
  %v1473 = vsel %vm1472, %v1465, %v1469
  %v1474 = vand.u32 2147483647, %v1464
  %vm1475 = vcmp.eq.f32.partialorder %v1474, 8.507059e+37
  %v1476 = vand.u32 %v1464, 2147483648
  %v1477 = vor.u32 1.1754944e-38, %v1476
  %v1478 = vsel %vm1475, %v1477, %v1473
  %v1479 = vmul.f32 1.0, %v1478
  %v1480 = vmul.f32 %v1455, %v1414
  %v1481 = vmul.f32 %v1433, %v1458
  %v1482 = vadd.f32 %v1480, %v1481
  %v1483 = vtanh.pop %v1482
  %v1484 = vmul.f32 %v1479, %v1483
  %v1485 = vld [vmem:[#allocation9] sm:$0x3]
  %v1486 = vxor.u32 %v1413, 2147483648
  %v1487 = vmul.f32 %v1486, 1.442695
  %v1488 = vpow.pop %v1487
  %v1489 = vadd.f32 %v1488, 1.0
  %v1490 = vrcp.pop %v1489
  %v1491 = vmul.f32 %v1489, %v1490
  %v1492 = vsub.f32 1.0, %v1491
  %v1493 = vmul.f32 %v1490, %v1492
  %v1494 = vadd.f32 %v1490, %v1493
  %vm1495 = vweird.f32 %v1489
  %vm1496 = vweird.f32 %v1490
  %vm1497 = vmor %vm1495, %vm1496
  %v1498 = vsel %vm1497, %v1490, %v1494
  %v1499 = vand.u32 2147483647, %v1489
  %vm1500 = vcmp.eq.f32.partialorder %v1499, 8.507059e+37
  %v1501 = vand.u32 %v1489, 2147483648
  %v1502 = vor.u32 1.1754944e-38, %v1501
  %v1503 = vsel %vm1500, %v1502, %v1498
  %v1504 = vmul.f32 1.0, %v1503
  %v1506 = vrot.slane %v1413, 2
  %v1508 = vxor.u32 %v1506, 2147483648
  %v1509 = vmul.f32 %v1508, 1.442695
  %v1510 = vpow.pop %v1509
  %v1511 = vadd.f32 %v1510, 1.0
  %v1512 = vrcp.pop %v1511
  %v1513 = vmul.f32 %v1511, %v1512
  %v1514 = vsub.f32 1.0, %v1513
  %v1515 = vmul.f32 %v1512, %v1514
  %v1516 = vadd.f32 %v1512, %v1515
  %vm1517 = vweird.f32 %v1511
  %vm1518 = vweird.f32 %v1512
  %vm1519 = vmor %vm1517, %vm1518
  %v1520 = vsel %vm1519, %v1512, %v1516
  %v1521 = vand.u32 2147483647, %v1511
  %vm1522 = vcmp.eq.f32.partialorder %v1521, 8.507059e+37
  %v1523 = vand.u32 %v1511, 2147483648
  %v1524 = vor.u32 1.1754944e-38, %v1523
  %v1525 = vsel %vm1522, %v1524, %v1520
  %v1526 = vmul.f32 1.0, %v1525
  %v1527 = vrot.slane %v1413, 4
  %v1529 = vtanh.pop %v1527
  %v1530 = vrot.slane %v1413, 6
  %v1532 = vxor.u32 %v1530, 2147483648
  %v1533 = vmul.f32 %v1532, 1.442695
  %v1534 = vpow.pop %v1533
  %v1535 = vadd.f32 %v1534, 1.0
  %v1536 = vrcp.pop %v1535
  %v1537 = vmul.f32 %v1535, %v1536
  %v1538 = vsub.f32 1.0, %v1537
  %v1539 = vmul.f32 %v1536, %v1538
  %v1540 = vadd.f32 %v1536, %v1539
  %vm1541 = vweird.f32 %v1535
  %vm1542 = vweird.f32 %v1536
  %vm1543 = vmor %vm1541, %vm1542
  %v1544 = vsel %vm1543, %v1536, %v1540
  %v1545 = vand.u32 2147483647, %v1535
  %vm1546 = vcmp.eq.f32.partialorder %v1545, 8.507059e+37
  %v1547 = vand.u32 %v1535, 2147483648
  %v1548 = vor.u32 1.1754944e-38, %v1547
  %v1549 = vsel %vm1546, %v1548, %v1544
  %v1550 = vmul.f32 1.0, %v1549
  %v1551 = vmul.f32 %v1526, %v1485
  %v1552 = vmul.f32 %v1504, %v1529
  %v1553 = vadd.f32 %v1551, %v1552
  %v1554 = vtanh.pop %v1553
  %v1555 = vmul.f32 %v1550, %v1554
  %1556 = vst [vmem:[#allocation6] sm:$0x3] %v1484
  %1557 = vst [vmem:[#allocation7] sm:$0x3] %v1482
  %1558 = vst [vmem:[#allocation8] sm:$0x3] %v1555
  %1559 = vst [vmem:[#allocation9] sm:$0x3] %v1553
  %s1560 = scalar_lea.vmem [#allocation4], 4
  %1561 = vst [vmem:[%s1560] sm:$0x3] %v1484
  %s1562 = scalar_lea.vmem [#allocation5], 10
  %1563 = vst [vmem:[%s1562] sm:$0x3] %v1555
  %s1564 = scalar_lea.vmem [#allocation2], 24
  %v1565 = vld [vmem:[%s1564] sm:$0xff]
  %v1566 = vld [vmem:[#allocation6] sm:$0x3]
  %1567 = vmatpush.msra.mxu0 %v117
  %1568 = vmatpush.msra.mxu0 %v113
  %1569 = vmatpush.msra.mxu0 %v109
  %1570 = vmatpush.msra.mxu0 %v105
  %1571 = vmatpush.msra.mxu0 %v101
  %1572 = vmatpush.msra.mxu0 %v97
  %1573 = vmatpush.msra.mxu0 %v93
  %1574 = vmatpush.msra.mxu0 %v89
  %1575 = vmatpush.msra.mxu0 %v85
  %1576 = vmatpush.msra.mxu0 %v81
  %1577 = vmatpush.msra.mxu0 %v77
  %1578 = vmatpush.msra.mxu0 %v73
  %1579 = vmatpush.msra.mxu0 %v69
  %1580 = vmatpush.msra.mxu0 %v65
  %1581 = vmatpush.msra.mxu0 %v61
  %1582 = vmatpush.msra.mxu0 %v57
  %1583 = vmatmul.f32.gmra.mxu0 %v1566
  %v1584 = vpop.f32.mrf.mxu0
  %v1585 = vadd.f32 0.0, %v1584
  %1586 = vdwg.mxu0
  %1587 = vmatpush.msra.mxu0 %v118
  %1588 = vmatpush.msra.mxu0 %v114
  %1589 = vmatpush.msra.mxu0 %v110
  %1590 = vmatpush.msra.mxu0 %v106
  %1591 = vmatpush.msra.mxu0 %v102
  %1592 = vmatpush.msra.mxu0 %v98
  %1593 = vmatpush.msra.mxu0 %v94
  %1594 = vmatpush.msra.mxu0 %v90
  %1595 = vmatpush.msra.mxu0 %v86
  %1596 = vmatpush.msra.mxu0 %v82
  %1597 = vmatpush.msra.mxu0 %v78
  %1598 = vmatpush.msra.mxu0 %v74
  %1599 = vmatpush.msra.mxu0 %v70
  %1600 = vmatpush.msra.mxu0 %v66
  %1601 = vmatpush.msra.mxu0 %v62
  %1602 = vmatpush.msra.mxu0 %v58
  %1603 = vmatmul.f32.gmra.mxu0 %v1566
  %v1604 = vpop.f32.mrf.mxu0
  %v1605 = vadd.f32 0.0, %v1604
  %1606 = vdwg.mxu0
  %1607 = vmatpush.msra.mxu0 %v119
  %1608 = vmatpush.msra.mxu0 %v115
  %1609 = vmatpush.msra.mxu0 %v111
  %1610 = vmatpush.msra.mxu0 %v107
  %1611 = vmatpush.msra.mxu0 %v103
  %1612 = vmatpush.msra.mxu0 %v99
  %1613 = vmatpush.msra.mxu0 %v95
  %1614 = vmatpush.msra.mxu0 %v91
  %1615 = vmatpush.msra.mxu0 %v87
  %1616 = vmatpush.msra.mxu0 %v83
  %1617 = vmatpush.msra.mxu0 %v79
  %1618 = vmatpush.msra.mxu0 %v75
  %1619 = vmatpush.msra.mxu0 %v71
  %1620 = vmatpush.msra.mxu0 %v67
  %1621 = vmatpush.msra.mxu0 %v63
  %1622 = vmatpush.msra.mxu0 %v59
  %1623 = vmatmul.f32.gmra.mxu0 %v1566
  %v1624 = vpop.f32.mrf.mxu0
  %v1625 = vadd.f32 0.0, %v1624
  %1626 = vdwg.mxu0
  %1627 = vmatpush.msra.mxu0 %v120
  %1628 = vmatpush.msra.mxu0 %v116
  %1629 = vmatpush.msra.mxu0 %v112
  %1630 = vmatpush.msra.mxu0 %v108
  %1631 = vmatpush.msra.mxu0 %v104
  %1632 = vmatpush.msra.mxu0 %v100
  %1633 = vmatpush.msra.mxu0 %v96
  %1634 = vmatpush.msra.mxu0 %v92
  %1635 = vmatpush.msra.mxu0 %v88
  %1636 = vmatpush.msra.mxu0 %v84
  %1637 = vmatpush.msra.mxu0 %v80
  %1638 = vmatpush.msra.mxu0 %v76
  %1639 = vmatpush.msra.mxu0 %v72
  %1640 = vmatpush.msra.mxu0 %v68
  %1641 = vmatpush.msra.mxu0 %v64
  %1642 = vmatpush.msra.mxu0 %v60
  %1643 = vmatmul.f32.gmra.mxu0 %v1566
  %v1644 = vpop.f32.mrf.mxu0
  %v1645 = vadd.f32 0.0, %v1644
  %1646 = vdwg.mxu0
  %v1651 = vrot.slane %v1605, 6
  %v1652 = vrot.slane %v1625, 4
  %v1653 = vrot.slane %v1645, 2
  %v1654 = vsel %vm430, %v1585, %v1651
  %v1655 = vsel %vm432, %v1652, %v1653
  %v1656 = vsel %vm434, %v1654, %v1655
  %v1658 = vadd.f32 %v1565, %v1656
  %s1659 = scalar_lea.vmem [#allocation3], 32
  %v1660 = vld [vmem:[%s1659] sm:$0xff]
  %v1661 = vld [vmem:[#allocation8] sm:$0x3]
  %1662 = vmatpush.msra.mxu0 %v181
  %1663 = vmatpush.msra.mxu0 %v177
  %1664 = vmatpush.msra.mxu0 %v173
  %1665 = vmatpush.msra.mxu0 %v169
  %1666 = vmatpush.msra.mxu0 %v165
  %1667 = vmatpush.msra.mxu0 %v161
  %1668 = vmatpush.msra.mxu0 %v157
  %1669 = vmatpush.msra.mxu0 %v153
  %1670 = vmatpush.msra.mxu0 %v149
  %1671 = vmatpush.msra.mxu0 %v145
  %1672 = vmatpush.msra.mxu0 %v141
  %1673 = vmatpush.msra.mxu0 %v137
  %1674 = vmatpush.msra.mxu0 %v133
  %1675 = vmatpush.msra.mxu0 %v129
  %1676 = vmatpush.msra.mxu0 %v125
  %1677 = vmatpush.msra.mxu0 %v121
  %1678 = vmatmul.f32.gmra.mxu0 %v1661
  %v1679 = vpop.f32.mrf.mxu0
  %v1680 = vadd.f32 0.0, %v1679
  %1681 = vdwg.mxu0
  %1682 = vmatpush.msra.mxu0 %v182
  %1683 = vmatpush.msra.mxu0 %v178
  %1684 = vmatpush.msra.mxu0 %v174
  %1685 = vmatpush.msra.mxu0 %v170
  %1686 = vmatpush.msra.mxu0 %v166
  %1687 = vmatpush.msra.mxu0 %v162
  %1688 = vmatpush.msra.mxu0 %v158
  %1689 = vmatpush.msra.mxu0 %v154
  %1690 = vmatpush.msra.mxu0 %v150
  %1691 = vmatpush.msra.mxu0 %v146
  %1692 = vmatpush.msra.mxu0 %v142
  %1693 = vmatpush.msra.mxu0 %v138
  %1694 = vmatpush.msra.mxu0 %v134
  %1695 = vmatpush.msra.mxu0 %v130
  %1696 = vmatpush.msra.mxu0 %v126
  %1697 = vmatpush.msra.mxu0 %v122
  %1698 = vmatmul.f32.gmra.mxu0 %v1661
  %v1699 = vpop.f32.mrf.mxu0
  %v1700 = vadd.f32 0.0, %v1699
  %1701 = vdwg.mxu0
  %1702 = vmatpush.msra.mxu0 %v183
  %1703 = vmatpush.msra.mxu0 %v179
  %1704 = vmatpush.msra.mxu0 %v175
  %1705 = vmatpush.msra.mxu0 %v171
  %1706 = vmatpush.msra.mxu0 %v167
  %1707 = vmatpush.msra.mxu0 %v163
  %1708 = vmatpush.msra.mxu0 %v159
  %1709 = vmatpush.msra.mxu0 %v155
  %1710 = vmatpush.msra.mxu0 %v151
  %1711 = vmatpush.msra.mxu0 %v147
  %1712 = vmatpush.msra.mxu0 %v143
  %1713 = vmatpush.msra.mxu0 %v139
  %1714 = vmatpush.msra.mxu0 %v135
  %1715 = vmatpush.msra.mxu0 %v131
  %1716 = vmatpush.msra.mxu0 %v127
  %1717 = vmatpush.msra.mxu0 %v123
  %1718 = vmatmul.f32.gmra.mxu0 %v1661
  %v1719 = vpop.f32.mrf.mxu0
  %v1720 = vadd.f32 0.0, %v1719
  %1721 = vdwg.mxu0
  %1722 = vmatpush.msra.mxu0 %v184
  %1723 = vmatpush.msra.mxu0 %v180
  %1724 = vmatpush.msra.mxu0 %v176
  %1725 = vmatpush.msra.mxu0 %v172
  %1726 = vmatpush.msra.mxu0 %v168
  %1727 = vmatpush.msra.mxu0 %v164
  %1728 = vmatpush.msra.mxu0 %v160
  %1729 = vmatpush.msra.mxu0 %v156
  %1730 = vmatpush.msra.mxu0 %v152
  %1731 = vmatpush.msra.mxu0 %v148
  %1732 = vmatpush.msra.mxu0 %v144
  %1733 = vmatpush.msra.mxu0 %v140
  %1734 = vmatpush.msra.mxu0 %v136
  %1735 = vmatpush.msra.mxu0 %v132
  %1736 = vmatpush.msra.mxu0 %v128
  %1737 = vmatpush.msra.mxu0 %v124
  %1738 = vmatmul.f32.gmra.mxu0 %v1661
  %v1739 = vpop.f32.mrf.mxu0
  %v1740 = vadd.f32 0.0, %v1739
  %1741 = vdwg.mxu0
  %v1746 = vrot.slane %v1700, 6
  %v1747 = vrot.slane %v1720, 4
  %v1748 = vrot.slane %v1740, 2
  %v1749 = vsel %vm430, %v1680, %v1746
  %v1750 = vsel %vm432, %v1747, %v1748
  %v1751 = vsel %vm434, %v1749, %v1750
  %v1753 = vadd.f32 %v1660, %v1751
  %v1754 = vld [vmem:[#allocation7] sm:$0x3]
  %v1755 = vxor.u32 %v1658, 2147483648
  %v1756 = vmul.f32 %v1755, 1.442695
  %v1757 = vpow.pop %v1756
  %v1758 = vadd.f32 %v1757, 1.0
  %v1759 = vrcp.pop %v1758
  %v1760 = vmul.f32 %v1758, %v1759
  %v1761 = vsub.f32 1.0, %v1760
  %v1762 = vmul.f32 %v1759, %v1761
  %v1763 = vadd.f32 %v1759, %v1762
  %vm1764 = vweird.f32 %v1758
  %vm1765 = vweird.f32 %v1759
  %vm1766 = vmor %vm1764, %vm1765
  %v1767 = vsel %vm1766, %v1759, %v1763
  %v1768 = vand.u32 2147483647, %v1758
  %vm1769 = vcmp.eq.f32.partialorder %v1768, 8.507059e+37
  %v1770 = vand.u32 %v1758, 2147483648
  %v1771 = vor.u32 1.1754944e-38, %v1770
  %v1772 = vsel %vm1769, %v1771, %v1767
  %v1773 = vmul.f32 1.0, %v1772
  %v1775 = vrot.slane %v1658, 2
  %v1777 = vxor.u32 %v1775, 2147483648
  %v1778 = vmul.f32 %v1777, 1.442695
  %v1779 = vpow.pop %v1778
  %v1780 = vadd.f32 %v1779, 1.0
  %v1781 = vrcp.pop %v1780
  %v1782 = vmul.f32 %v1780, %v1781
  %v1783 = vsub.f32 1.0, %v1782
  %v1784 = vmul.f32 %v1781, %v1783
  %v1785 = vadd.f32 %v1781, %v1784
  %vm1786 = vweird.f32 %v1780
  %vm1787 = vweird.f32 %v1781
  %vm1788 = vmor %vm1786, %vm1787
  %v1789 = vsel %vm1788, %v1781, %v1785
  %v1790 = vand.u32 2147483647, %v1780
  %vm1791 = vcmp.eq.f32.partialorder %v1790, 8.507059e+37
  %v1792 = vand.u32 %v1780, 2147483648
  %v1793 = vor.u32 1.1754944e-38, %v1792
  %v1794 = vsel %vm1791, %v1793, %v1789
  %v1795 = vmul.f32 1.0, %v1794
  %v1796 = vrot.slane %v1658, 4
  %v1798 = vtanh.pop %v1796
  %v1799 = vrot.slane %v1658, 6
  %v1801 = vxor.u32 %v1799, 2147483648
  %v1802 = vmul.f32 %v1801, 1.442695
  %v1803 = vpow.pop %v1802
  %v1804 = vadd.f32 %v1803, 1.0
  %v1805 = vrcp.pop %v1804
  %v1806 = vmul.f32 %v1804, %v1805
  %v1807 = vsub.f32 1.0, %v1806
  %v1808 = vmul.f32 %v1805, %v1807
  %v1809 = vadd.f32 %v1805, %v1808
  %vm1810 = vweird.f32 %v1804
  %vm1811 = vweird.f32 %v1805
  %vm1812 = vmor %vm1810, %vm1811
  %v1813 = vsel %vm1812, %v1805, %v1809
  %v1814 = vand.u32 2147483647, %v1804
  %vm1815 = vcmp.eq.f32.partialorder %v1814, 8.507059e+37
  %v1816 = vand.u32 %v1804, 2147483648
  %v1817 = vor.u32 1.1754944e-38, %v1816
  %v1818 = vsel %vm1815, %v1817, %v1813
  %v1819 = vmul.f32 1.0, %v1818
  %v1820 = vmul.f32 %v1795, %v1754
  %v1821 = vmul.f32 %v1773, %v1798
  %v1822 = vadd.f32 %v1820, %v1821
  %v1823 = vtanh.pop %v1822
  %v1824 = vmul.f32 %v1819, %v1823
  %v1825 = vld [vmem:[#allocation9] sm:$0x3]
  %v1826 = vxor.u32 %v1753, 2147483648
  %v1827 = vmul.f32 %v1826, 1.442695
  %v1828 = vpow.pop %v1827
  %v1829 = vadd.f32 %v1828, 1.0
  %v1830 = vrcp.pop %v1829
  %v1831 = vmul.f32 %v1829, %v1830
  %v1832 = vsub.f32 1.0, %v1831
  %v1833 = vmul.f32 %v1830, %v1832
  %v1834 = vadd.f32 %v1830, %v1833
  %vm1835 = vweird.f32 %v1829
  %vm1836 = vweird.f32 %v1830
  %vm1837 = vmor %vm1835, %vm1836
  %v1838 = vsel %vm1837, %v1830, %v1834
  %v1839 = vand.u32 2147483647, %v1829
  %vm1840 = vcmp.eq.f32.partialorder %v1839, 8.507059e+37
  %v1841 = vand.u32 %v1829, 2147483648
  %v1842 = vor.u32 1.1754944e-38, %v1841
  %v1843 = vsel %vm1840, %v1842, %v1838
  %v1844 = vmul.f32 1.0, %v1843
  %v1846 = vrot.slane %v1753, 2
  %v1848 = vxor.u32 %v1846, 2147483648
  %v1849 = vmul.f32 %v1848, 1.442695
  %v1850 = vpow.pop %v1849
  %v1851 = vadd.f32 %v1850, 1.0
  %v1852 = vrcp.pop %v1851
  %v1853 = vmul.f32 %v1851, %v1852
  %v1854 = vsub.f32 1.0, %v1853
  %v1855 = vmul.f32 %v1852, %v1854
  %v1856 = vadd.f32 %v1852, %v1855
  %vm1857 = vweird.f32 %v1851
  %vm1858 = vweird.f32 %v1852
  %vm1859 = vmor %vm1857, %vm1858
  %v1860 = vsel %vm1859, %v1852, %v1856
  %v1861 = vand.u32 2147483647, %v1851
  %vm1862 = vcmp.eq.f32.partialorder %v1861, 8.507059e+37
  %v1863 = vand.u32 %v1851, 2147483648
  %v1864 = vor.u32 1.1754944e-38, %v1863
  %v1865 = vsel %vm1862, %v1864, %v1860
  %v1866 = vmul.f32 1.0, %v1865
  %v1867 = vrot.slane %v1753, 4
  %v1869 = vtanh.pop %v1867
  %v1870 = vrot.slane %v1753, 6
  %v1872 = vxor.u32 %v1870, 2147483648
  %v1873 = vmul.f32 %v1872, 1.442695
  %v1874 = vpow.pop %v1873
  %v1875 = vadd.f32 %v1874, 1.0
  %v1876 = vrcp.pop %v1875
  %v1877 = vmul.f32 %v1875, %v1876
  %v1878 = vsub.f32 1.0, %v1877
  %v1879 = vmul.f32 %v1876, %v1878
  %v1880 = vadd.f32 %v1876, %v1879
  %vm1881 = vweird.f32 %v1875
  %vm1882 = vweird.f32 %v1876
  %vm1883 = vmor %vm1881, %vm1882
  %v1884 = vsel %vm1883, %v1876, %v1880
  %v1885 = vand.u32 2147483647, %v1875
  %vm1886 = vcmp.eq.f32.partialorder %v1885, 8.507059e+37
  %v1887 = vand.u32 %v1875, 2147483648
  %v1888 = vor.u32 1.1754944e-38, %v1887
  %v1889 = vsel %vm1886, %v1888, %v1884
  %v1890 = vmul.f32 1.0, %v1889
  %v1891 = vmul.f32 %v1866, %v1825
  %v1892 = vmul.f32 %v1844, %v1869
  %v1893 = vadd.f32 %v1891, %v1892
  %v1894 = vtanh.pop %v1893
  %v1895 = vmul.f32 %v1890, %v1894
  %1896 = vst [vmem:[#allocation6] sm:$0x3] %v1824
  %1897 = vst [vmem:[#allocation7] sm:$0x3] %v1822
  %1898 = vst [vmem:[#allocation8] sm:$0x3] %v1895
  %1899 = vst [vmem:[#allocation9] sm:$0x3] %v1893
  %s1900 = scalar_lea.vmem [#allocation4], 6
  %1901 = vst [vmem:[%s1900] sm:$0x3] %v1824
  %s1902 = scalar_lea.vmem [#allocation5], 8
  %1903 = vst [vmem:[%s1902] sm:$0x3] %v1895
  %s1904 = scalar_lea.vmem [#allocation2], 32
  %v1905 = vld [vmem:[%s1904] sm:$0xff]
  %v1906 = vld [vmem:[#allocation6] sm:$0x3]
  %1907 = vmatpush.msra.mxu0 %v117
  %1908 = vmatpush.msra.mxu0 %v113
  %1909 = vmatpush.msra.mxu0 %v109
  %1910 = vmatpush.msra.mxu0 %v105
  %1911 = vmatpush.msra.mxu0 %v101
  %1912 = vmatpush.msra.mxu0 %v97
  %1913 = vmatpush.msra.mxu0 %v93
  %1914 = vmatpush.msra.mxu0 %v89
  %1915 = vmatpush.msra.mxu0 %v85
  %1916 = vmatpush.msra.mxu0 %v81
  %1917 = vmatpush.msra.mxu0 %v77
  %1918 = vmatpush.msra.mxu0 %v73
  %1919 = vmatpush.msra.mxu0 %v69
  %1920 = vmatpush.msra.mxu0 %v65
  %1921 = vmatpush.msra.mxu0 %v61
  %1922 = vmatpush.msra.mxu0 %v57
  %1923 = vmatmul.f32.gmra.mxu0 %v1906
  %v1924 = vpop.f32.mrf.mxu0
  %v1925 = vadd.f32 0.0, %v1924
  %1926 = vdwg.mxu0
  %1927 = vmatpush.msra.mxu0 %v118
  %1928 = vmatpush.msra.mxu0 %v114
  %1929 = vmatpush.msra.mxu0 %v110
  %1930 = vmatpush.msra.mxu0 %v106
  %1931 = vmatpush.msra.mxu0 %v102
  %1932 = vmatpush.msra.mxu0 %v98
  %1933 = vmatpush.msra.mxu0 %v94
  %1934 = vmatpush.msra.mxu0 %v90
  %1935 = vmatpush.msra.mxu0 %v86
  %1936 = vmatpush.msra.mxu0 %v82
  %1937 = vmatpush.msra.mxu0 %v78
  %1938 = vmatpush.msra.mxu0 %v74
  %1939 = vmatpush.msra.mxu0 %v70
  %1940 = vmatpush.msra.mxu0 %v66
  %1941 = vmatpush.msra.mxu0 %v62
  %1942 = vmatpush.msra.mxu0 %v58
  %1943 = vmatmul.f32.gmra.mxu0 %v1906
  %v1944 = vpop.f32.mrf.mxu0
  %v1945 = vadd.f32 0.0, %v1944
  %1946 = vdwg.mxu0
  %1947 = vmatpush.msra.mxu0 %v119
  %1948 = vmatpush.msra.mxu0 %v115
  %1949 = vmatpush.msra.mxu0 %v111
  %1950 = vmatpush.msra.mxu0 %v107
  %1951 = vmatpush.msra.mxu0 %v103
  %1952 = vmatpush.msra.mxu0 %v99
  %1953 = vmatpush.msra.mxu0 %v95
  %1954 = vmatpush.msra.mxu0 %v91
  %1955 = vmatpush.msra.mxu0 %v87
  %1956 = vmatpush.msra.mxu0 %v83
  %1957 = vmatpush.msra.mxu0 %v79
  %1958 = vmatpush.msra.mxu0 %v75
  %1959 = vmatpush.msra.mxu0 %v71
  %1960 = vmatpush.msra.mxu0 %v67
  %1961 = vmatpush.msra.mxu0 %v63
  %1962 = vmatpush.msra.mxu0 %v59
  %1963 = vmatmul.f32.gmra.mxu0 %v1906
  %v1964 = vpop.f32.mrf.mxu0
  %v1965 = vadd.f32 0.0, %v1964
  %1966 = vdwg.mxu0
  %1967 = vmatpush.msra.mxu0 %v120
  %1968 = vmatpush.msra.mxu0 %v116
  %1969 = vmatpush.msra.mxu0 %v112
  %1970 = vmatpush.msra.mxu0 %v108
  %1971 = vmatpush.msra.mxu0 %v104
  %1972 = vmatpush.msra.mxu0 %v100
  %1973 = vmatpush.msra.mxu0 %v96
  %1974 = vmatpush.msra.mxu0 %v92
  %1975 = vmatpush.msra.mxu0 %v88
  %1976 = vmatpush.msra.mxu0 %v84
  %1977 = vmatpush.msra.mxu0 %v80
  %1978 = vmatpush.msra.mxu0 %v76
  %1979 = vmatpush.msra.mxu0 %v72
  %1980 = vmatpush.msra.mxu0 %v68
  %1981 = vmatpush.msra.mxu0 %v64
  %1982 = vmatpush.msra.mxu0 %v60
  %1983 = vmatmul.f32.gmra.mxu0 %v1906
  %v1984 = vpop.f32.mrf.mxu0
  %v1985 = vadd.f32 0.0, %v1984
  %1986 = vdwg.mxu0
  %v1991 = vrot.slane %v1945, 6
  %v1992 = vrot.slane %v1965, 4
  %v1993 = vrot.slane %v1985, 2
  %v1994 = vsel %vm430, %v1925, %v1991
  %v1995 = vsel %vm432, %v1992, %v1993
  %v1996 = vsel %vm434, %v1994, %v1995
  %v1998 = vadd.f32 %v1905, %v1996
  %s1999 = scalar_lea.vmem [#allocation3], 24
  %v2000 = vld [vmem:[%s1999] sm:$0xff]
  %v2001 = vld [vmem:[#allocation8] sm:$0x3]
  %2002 = vmatpush.msra.mxu0 %v181
  %2003 = vmatpush.msra.mxu0 %v177
  %2004 = vmatpush.msra.mxu0 %v173
  %2005 = vmatpush.msra.mxu0 %v169
  %2006 = vmatpush.msra.mxu0 %v165
  %2007 = vmatpush.msra.mxu0 %v161
  %2008 = vmatpush.msra.mxu0 %v157
  %2009 = vmatpush.msra.mxu0 %v153
  %2010 = vmatpush.msra.mxu0 %v149
  %2011 = vmatpush.msra.mxu0 %v145
  %2012 = vmatpush.msra.mxu0 %v141
  %2013 = vmatpush.msra.mxu0 %v137
  %2014 = vmatpush.msra.mxu0 %v133
  %2015 = vmatpush.msra.mxu0 %v129
  %2016 = vmatpush.msra.mxu0 %v125
  %2017 = vmatpush.msra.mxu0 %v121
  %2018 = vmatmul.f32.gmra.mxu0 %v2001
  %v2019 = vpop.f32.mrf.mxu0
  %v2020 = vadd.f32 0.0, %v2019
  %2021 = vdwg.mxu0
  %2022 = vmatpush.msra.mxu0 %v182
  %2023 = vmatpush.msra.mxu0 %v178
  %2024 = vmatpush.msra.mxu0 %v174
  %2025 = vmatpush.msra.mxu0 %v170
  %2026 = vmatpush.msra.mxu0 %v166
  %2027 = vmatpush.msra.mxu0 %v162
  %2028 = vmatpush.msra.mxu0 %v158
  %2029 = vmatpush.msra.mxu0 %v154
  %2030 = vmatpush.msra.mxu0 %v150
  %2031 = vmatpush.msra.mxu0 %v146
  %2032 = vmatpush.msra.mxu0 %v142
  %2033 = vmatpush.msra.mxu0 %v138
  %2034 = vmatpush.msra.mxu0 %v134
  %2035 = vmatpush.msra.mxu0 %v130
  %2036 = vmatpush.msra.mxu0 %v126
  %2037 = vmatpush.msra.mxu0 %v122
  %2038 = vmatmul.f32.gmra.mxu0 %v2001
  %v2039 = vpop.f32.mrf.mxu0
  %v2040 = vadd.f32 0.0, %v2039
  %2041 = vdwg.mxu0
  %2042 = vmatpush.msra.mxu0 %v183
  %2043 = vmatpush.msra.mxu0 %v179
  %2044 = vmatpush.msra.mxu0 %v175
  %2045 = vmatpush.msra.mxu0 %v171
  %2046 = vmatpush.msra.mxu0 %v167
  %2047 = vmatpush.msra.mxu0 %v163
  %2048 = vmatpush.msra.mxu0 %v159
  %2049 = vmatpush.msra.mxu0 %v155
  %2050 = vmatpush.msra.mxu0 %v151
  %2051 = vmatpush.msra.mxu0 %v147
  %2052 = vmatpush.msra.mxu0 %v143
  %2053 = vmatpush.msra.mxu0 %v139
  %2054 = vmatpush.msra.mxu0 %v135
  %2055 = vmatpush.msra.mxu0 %v131
  %2056 = vmatpush.msra.mxu0 %v127
  %2057 = vmatpush.msra.mxu0 %v123
  %2058 = vmatmul.f32.gmra.mxu0 %v2001
  %v2059 = vpop.f32.mrf.mxu0
  %v2060 = vadd.f32 0.0, %v2059
  %2061 = vdwg.mxu0
  %2062 = vmatpush.msra.mxu0 %v184
  %2063 = vmatpush.msra.mxu0 %v180
  %2064 = vmatpush.msra.mxu0 %v176
  %2065 = vmatpush.msra.mxu0 %v172
  %2066 = vmatpush.msra.mxu0 %v168
  %2067 = vmatpush.msra.mxu0 %v164
  %2068 = vmatpush.msra.mxu0 %v160
  %2069 = vmatpush.msra.mxu0 %v156
  %2070 = vmatpush.msra.mxu0 %v152
  %2071 = vmatpush.msra.mxu0 %v148
  %2072 = vmatpush.msra.mxu0 %v144
  %2073 = vmatpush.msra.mxu0 %v140
  %2074 = vmatpush.msra.mxu0 %v136
  %2075 = vmatpush.msra.mxu0 %v132
  %2076 = vmatpush.msra.mxu0 %v128
  %2077 = vmatpush.msra.mxu0 %v124
  %2078 = vmatmul.f32.gmra.mxu0 %v2001
  %v2079 = vpop.f32.mrf.mxu0
  %v2080 = vadd.f32 0.0, %v2079
  %2081 = vdwg.mxu0
  %v2086 = vrot.slane %v2040, 6
  %v2087 = vrot.slane %v2060, 4
  %v2088 = vrot.slane %v2080, 2
  %v2089 = vsel %vm430, %v2020, %v2086
  %v2090 = vsel %vm432, %v2087, %v2088
  %v2091 = vsel %vm434, %v2089, %v2090
  %v2093 = vadd.f32 %v2000, %v2091
  %v2094 = vld [vmem:[#allocation7] sm:$0x3]
  %v2095 = vxor.u32 %v1998, 2147483648
  %v2096 = vmul.f32 %v2095, 1.442695
  %v2097 = vpow.pop %v2096
  %v2098 = vadd.f32 %v2097, 1.0
  %v2099 = vrcp.pop %v2098
  %v2100 = vmul.f32 %v2098, %v2099
  %v2101 = vsub.f32 1.0, %v2100
  %v2102 = vmul.f32 %v2099, %v2101
  %v2103 = vadd.f32 %v2099, %v2102
  %vm2104 = vweird.f32 %v2098
  %vm2105 = vweird.f32 %v2099
  %vm2106 = vmor %vm2104, %vm2105
  %v2107 = vsel %vm2106, %v2099, %v2103
  %v2108 = vand.u32 2147483647, %v2098
  %vm2109 = vcmp.eq.f32.partialorder %v2108, 8.507059e+37
  %v2110 = vand.u32 %v2098, 2147483648
  %v2111 = vor.u32 1.1754944e-38, %v2110
  %v2112 = vsel %vm2109, %v2111, %v2107
  %v2113 = vmul.f32 1.0, %v2112
  %v2115 = vrot.slane %v1998, 2
  %v2117 = vxor.u32 %v2115, 2147483648
  %v2118 = vmul.f32 %v2117, 1.442695
  %v2119 = vpow.pop %v2118
  %v2120 = vadd.f32 %v2119, 1.0
  %v2121 = vrcp.pop %v2120
  %v2122 = vmul.f32 %v2120, %v2121
  %v2123 = vsub.f32 1.0, %v2122
  %v2124 = vmul.f32 %v2121, %v2123
  %v2125 = vadd.f32 %v2121, %v2124
  %vm2126 = vweird.f32 %v2120
  %vm2127 = vweird.f32 %v2121
  %vm2128 = vmor %vm2126, %vm2127
  %v2129 = vsel %vm2128, %v2121, %v2125
  %v2130 = vand.u32 2147483647, %v2120
  %vm2131 = vcmp.eq.f32.partialorder %v2130, 8.507059e+37
  %v2132 = vand.u32 %v2120, 2147483648
  %v2133 = vor.u32 1.1754944e-38, %v2132
  %v2134 = vsel %vm2131, %v2133, %v2129
  %v2135 = vmul.f32 1.0, %v2134
  %v2136 = vrot.slane %v1998, 4
  %v2138 = vtanh.pop %v2136
  %v2139 = vrot.slane %v1998, 6
  %v2141 = vxor.u32 %v2139, 2147483648
  %v2142 = vmul.f32 %v2141, 1.442695
  %v2143 = vpow.pop %v2142
  %v2144 = vadd.f32 %v2143, 1.0
  %v2145 = vrcp.pop %v2144
  %v2146 = vmul.f32 %v2144, %v2145
  %v2147 = vsub.f32 1.0, %v2146
  %v2148 = vmul.f32 %v2145, %v2147
  %v2149 = vadd.f32 %v2145, %v2148
  %vm2150 = vweird.f32 %v2144
  %vm2151 = vweird.f32 %v2145
  %vm2152 = vmor %vm2150, %vm2151
  %v2153 = vsel %vm2152, %v2145, %v2149
  %v2154 = vand.u32 2147483647, %v2144
  %vm2155 = vcmp.eq.f32.partialorder %v2154, 8.507059e+37
  %v2156 = vand.u32 %v2144, 2147483648
  %v2157 = vor.u32 1.1754944e-38, %v2156
  %v2158 = vsel %vm2155, %v2157, %v2153
  %v2159 = vmul.f32 1.0, %v2158
  %v2160 = vmul.f32 %v2135, %v2094
  %v2161 = vmul.f32 %v2113, %v2138
  %v2162 = vadd.f32 %v2160, %v2161
  %v2163 = vtanh.pop %v2162
  %v2164 = vmul.f32 %v2159, %v2163
  %v2165 = vld [vmem:[#allocation9] sm:$0x3]
  %v2166 = vxor.u32 %v2093, 2147483648
  %v2167 = vmul.f32 %v2166, 1.442695
  %v2168 = vpow.pop %v2167
  %v2169 = vadd.f32 %v2168, 1.0
  %v2170 = vrcp.pop %v2169
  %v2171 = vmul.f32 %v2169, %v2170
  %v2172 = vsub.f32 1.0, %v2171
  %v2173 = vmul.f32 %v2170, %v2172
  %v2174 = vadd.f32 %v2170, %v2173
  %vm2175 = vweird.f32 %v2169
  %vm2176 = vweird.f32 %v2170
  %vm2177 = vmor %vm2175, %vm2176
  %v2178 = vsel %vm2177, %v2170, %v2174
  %v2179 = vand.u32 2147483647, %v2169
  %vm2180 = vcmp.eq.f32.partialorder %v2179, 8.507059e+37
  %v2181 = vand.u32 %v2169, 2147483648
  %v2182 = vor.u32 1.1754944e-38, %v2181
  %v2183 = vsel %vm2180, %v2182, %v2178
  %v2184 = vmul.f32 1.0, %v2183
  %v2186 = vrot.slane %v2093, 2
  %v2188 = vxor.u32 %v2186, 2147483648
  %v2189 = vmul.f32 %v2188, 1.442695
  %v2190 = vpow.pop %v2189
  %v2191 = vadd.f32 %v2190, 1.0
  %v2192 = vrcp.pop %v2191
  %v2193 = vmul.f32 %v2191, %v2192
  %v2194 = vsub.f32 1.0, %v2193
  %v2195 = vmul.f32 %v2192, %v2194
  %v2196 = vadd.f32 %v2192, %v2195
  %vm2197 = vweird.f32 %v2191
  %vm2198 = vweird.f32 %v2192
  %vm2199 = vmor %vm2197, %vm2198
  %v2200 = vsel %vm2199, %v2192, %v2196
  %v2201 = vand.u32 2147483647, %v2191
  %vm2202 = vcmp.eq.f32.partialorder %v2201, 8.507059e+37
  %v2203 = vand.u32 %v2191, 2147483648
  %v2204 = vor.u32 1.1754944e-38, %v2203
  %v2205 = vsel %vm2202, %v2204, %v2200
  %v2206 = vmul.f32 1.0, %v2205
  %v2207 = vrot.slane %v2093, 4
  %v2209 = vtanh.pop %v2207
  %v2210 = vrot.slane %v2093, 6
  %v2212 = vxor.u32 %v2210, 2147483648
  %v2213 = vmul.f32 %v2212, 1.442695
  %v2214 = vpow.pop %v2213
  %v2215 = vadd.f32 %v2214, 1.0
  %v2216 = vrcp.pop %v2215
  %v2217 = vmul.f32 %v2215, %v2216
  %v2218 = vsub.f32 1.0, %v2217
  %v2219 = vmul.f32 %v2216, %v2218
  %v2220 = vadd.f32 %v2216, %v2219
  %vm2221 = vweird.f32 %v2215
  %vm2222 = vweird.f32 %v2216
  %vm2223 = vmor %vm2221, %vm2222
  %v2224 = vsel %vm2223, %v2216, %v2220
  %v2225 = vand.u32 2147483647, %v2215
  %vm2226 = vcmp.eq.f32.partialorder %v2225, 8.507059e+37
  %v2227 = vand.u32 %v2215, 2147483648
  %v2228 = vor.u32 1.1754944e-38, %v2227
  %v2229 = vsel %vm2226, %v2228, %v2224
  %v2230 = vmul.f32 1.0, %v2229
  %v2231 = vmul.f32 %v2206, %v2165
  %v2232 = vmul.f32 %v2184, %v2209
  %v2233 = vadd.f32 %v2231, %v2232
  %v2234 = vtanh.pop %v2233
  %v2235 = vmul.f32 %v2230, %v2234
  %2236 = vst [vmem:[#allocation6] sm:$0x3] %v2164
  %2237 = vst [vmem:[#allocation7] sm:$0x3] %v2162
  %2238 = vst [vmem:[#allocation8] sm:$0x3] %v2235
  %2239 = vst [vmem:[#allocation9] sm:$0x3] %v2233
  %s2240 = scalar_lea.vmem [#allocation4], 8
  %2241 = vst [vmem:[%s2240] sm:$0x3] %v2164
  %s2242 = scalar_lea.vmem [#allocation5], 6
  %2243 = vst [vmem:[%s2242] sm:$0x3] %v2235
  %s2244 = scalar_lea.vmem [#allocation2], 40
  %v2245 = vld [vmem:[%s2244] sm:$0xff]
  %v2246 = vld [vmem:[#allocation6] sm:$0x3]
  %2247 = vmatpush.msra.mxu0 %v117
  %2248 = vmatpush.msra.mxu0 %v113
  %2249 = vmatpush.msra.mxu0 %v109
  %2250 = vmatpush.msra.mxu0 %v105
  %2251 = vmatpush.msra.mxu0 %v101
  %2252 = vmatpush.msra.mxu0 %v97
  %2253 = vmatpush.msra.mxu0 %v93
  %2254 = vmatpush.msra.mxu0 %v89
  %2255 = vmatpush.msra.mxu0 %v85
  %2256 = vmatpush.msra.mxu0 %v81
  %2257 = vmatpush.msra.mxu0 %v77
  %2258 = vmatpush.msra.mxu0 %v73
  %2259 = vmatpush.msra.mxu0 %v69
  %2260 = vmatpush.msra.mxu0 %v65
  %2261 = vmatpush.msra.mxu0 %v61
  %2262 = vmatpush.msra.mxu0 %v57
  %2263 = vmatmul.f32.gmra.mxu0 %v2246
  %v2264 = vpop.f32.mrf.mxu0
  %v2265 = vadd.f32 0.0, %v2264
  %2266 = vdwg.mxu0
  %2267 = vmatpush.msra.mxu0 %v118
  %2268 = vmatpush.msra.mxu0 %v114
  %2269 = vmatpush.msra.mxu0 %v110
  %2270 = vmatpush.msra.mxu0 %v106
  %2271 = vmatpush.msra.mxu0 %v102
  %2272 = vmatpush.msra.mxu0 %v98
  %2273 = vmatpush.msra.mxu0 %v94
  %2274 = vmatpush.msra.mxu0 %v90
  %2275 = vmatpush.msra.mxu0 %v86
  %2276 = vmatpush.msra.mxu0 %v82
  %2277 = vmatpush.msra.mxu0 %v78
  %2278 = vmatpush.msra.mxu0 %v74
  %2279 = vmatpush.msra.mxu0 %v70
  %2280 = vmatpush.msra.mxu0 %v66
  %2281 = vmatpush.msra.mxu0 %v62
  %2282 = vmatpush.msra.mxu0 %v58
  %2283 = vmatmul.f32.gmra.mxu0 %v2246
  %v2284 = vpop.f32.mrf.mxu0
  %v2285 = vadd.f32 0.0, %v2284
  %2286 = vdwg.mxu0
  %2287 = vmatpush.msra.mxu0 %v119
  %2288 = vmatpush.msra.mxu0 %v115
  %2289 = vmatpush.msra.mxu0 %v111
  %2290 = vmatpush.msra.mxu0 %v107
  %2291 = vmatpush.msra.mxu0 %v103
  %2292 = vmatpush.msra.mxu0 %v99
  %2293 = vmatpush.msra.mxu0 %v95
  %2294 = vmatpush.msra.mxu0 %v91
  %2295 = vmatpush.msra.mxu0 %v87
  %2296 = vmatpush.msra.mxu0 %v83
  %2297 = vmatpush.msra.mxu0 %v79
  %2298 = vmatpush.msra.mxu0 %v75
  %2299 = vmatpush.msra.mxu0 %v71
  %2300 = vmatpush.msra.mxu0 %v67
  %2301 = vmatpush.msra.mxu0 %v63
  %2302 = vmatpush.msra.mxu0 %v59
  %2303 = vmatmul.f32.gmra.mxu0 %v2246
  %v2304 = vpop.f32.mrf.mxu0
  %v2305 = vadd.f32 0.0, %v2304
  %2306 = vdwg.mxu0
  %2307 = vmatpush.msra.mxu0 %v120
  %2308 = vmatpush.msra.mxu0 %v116
  %2309 = vmatpush.msra.mxu0 %v112
  %2310 = vmatpush.msra.mxu0 %v108
  %2311 = vmatpush.msra.mxu0 %v104
  %2312 = vmatpush.msra.mxu0 %v100
  %2313 = vmatpush.msra.mxu0 %v96
  %2314 = vmatpush.msra.mxu0 %v92
  %2315 = vmatpush.msra.mxu0 %v88
  %2316 = vmatpush.msra.mxu0 %v84
  %2317 = vmatpush.msra.mxu0 %v80
  %2318 = vmatpush.msra.mxu0 %v76
  %2319 = vmatpush.msra.mxu0 %v72
  %2320 = vmatpush.msra.mxu0 %v68
  %2321 = vmatpush.msra.mxu0 %v64
  %2322 = vmatpush.msra.mxu0 %v60
  %2323 = vmatmul.f32.gmra.mxu0 %v2246
  %v2324 = vpop.f32.mrf.mxu0
  %v2325 = vadd.f32 0.0, %v2324
  %2326 = vdwg.mxu0
  %v2331 = vrot.slane %v2285, 6
  %v2332 = vrot.slane %v2305, 4
  %v2333 = vrot.slane %v2325, 2
  %v2334 = vsel %vm430, %v2265, %v2331
  %v2335 = vsel %vm432, %v2332, %v2333
  %v2336 = vsel %vm434, %v2334, %v2335
  %v2338 = vadd.f32 %v2245, %v2336
  %s2339 = scalar_lea.vmem [#allocation3], 16
  %v2340 = vld [vmem:[%s2339] sm:$0xff]
  %v2341 = vld [vmem:[#allocation8] sm:$0x3]
  %2342 = vmatpush.msra.mxu0 %v181
  %2343 = vmatpush.msra.mxu0 %v177
  %2344 = vmatpush.msra.mxu0 %v173
  %2345 = vmatpush.msra.mxu0 %v169
  %2346 = vmatpush.msra.mxu0 %v165
  %2347 = vmatpush.msra.mxu0 %v161
  %2348 = vmatpush.msra.mxu0 %v157
  %2349 = vmatpush.msra.mxu0 %v153
  %2350 = vmatpush.msra.mxu0 %v149
  %2351 = vmatpush.msra.mxu0 %v145
  %2352 = vmatpush.msra.mxu0 %v141
  %2353 = vmatpush.msra.mxu0 %v137
  %2354 = vmatpush.msra.mxu0 %v133
  %2355 = vmatpush.msra.mxu0 %v129
  %2356 = vmatpush.msra.mxu0 %v125
  %2357 = vmatpush.msra.mxu0 %v121
  %2358 = vmatmul.f32.gmra.mxu0 %v2341
  %v2359 = vpop.f32.mrf.mxu0
  %v2360 = vadd.f32 0.0, %v2359
  %2361 = vdwg.mxu0
  %2362 = vmatpush.msra.mxu0 %v182
  %2363 = vmatpush.msra.mxu0 %v178
  %2364 = vmatpush.msra.mxu0 %v174
  %2365 = vmatpush.msra.mxu0 %v170
  %2366 = vmatpush.msra.mxu0 %v166
  %2367 = vmatpush.msra.mxu0 %v162
  %2368 = vmatpush.msra.mxu0 %v158
  %2369 = vmatpush.msra.mxu0 %v154
  %2370 = vmatpush.msra.mxu0 %v150
  %2371 = vmatpush.msra.mxu0 %v146
  %2372 = vmatpush.msra.mxu0 %v142
  %2373 = vmatpush.msra.mxu0 %v138
  %2374 = vmatpush.msra.mxu0 %v134
  %2375 = vmatpush.msra.mxu0 %v130
  %2376 = vmatpush.msra.mxu0 %v126
  %2377 = vmatpush.msra.mxu0 %v122
  %2378 = vmatmul.f32.gmra.mxu0 %v2341
  %v2379 = vpop.f32.mrf.mxu0
  %v2380 = vadd.f32 0.0, %v2379
  %2381 = vdwg.mxu0
  %2382 = vmatpush.msra.mxu0 %v183
  %2383 = vmatpush.msra.mxu0 %v179
  %2384 = vmatpush.msra.mxu0 %v175
  %2385 = vmatpush.msra.mxu0 %v171
  %2386 = vmatpush.msra.mxu0 %v167
  %2387 = vmatpush.msra.mxu0 %v163
  %2388 = vmatpush.msra.mxu0 %v159
  %2389 = vmatpush.msra.mxu0 %v155
  %2390 = vmatpush.msra.mxu0 %v151
  %2391 = vmatpush.msra.mxu0 %v147
  %2392 = vmatpush.msra.mxu0 %v143
  %2393 = vmatpush.msra.mxu0 %v139
  %2394 = vmatpush.msra.mxu0 %v135
  %2395 = vmatpush.msra.mxu0 %v131
  %2396 = vmatpush.msra.mxu0 %v127
  %2397 = vmatpush.msra.mxu0 %v123
  %2398 = vmatmul.f32.gmra.mxu0 %v2341
  %v2399 = vpop.f32.mrf.mxu0
  %v2400 = vadd.f32 0.0, %v2399
  %2401 = vdwg.mxu0
  %2402 = vmatpush.msra.mxu0 %v184
  %2403 = vmatpush.msra.mxu0 %v180
  %2404 = vmatpush.msra.mxu0 %v176
  %2405 = vmatpush.msra.mxu0 %v172
  %2406 = vmatpush.msra.mxu0 %v168
  %2407 = vmatpush.msra.mxu0 %v164
  %2408 = vmatpush.msra.mxu0 %v160
  %2409 = vmatpush.msra.mxu0 %v156
  %2410 = vmatpush.msra.mxu0 %v152
  %2411 = vmatpush.msra.mxu0 %v148
  %2412 = vmatpush.msra.mxu0 %v144
  %2413 = vmatpush.msra.mxu0 %v140
  %2414 = vmatpush.msra.mxu0 %v136
  %2415 = vmatpush.msra.mxu0 %v132
  %2416 = vmatpush.msra.mxu0 %v128
  %2417 = vmatpush.msra.mxu0 %v124
  %2418 = vmatmul.f32.gmra.mxu0 %v2341
  %v2419 = vpop.f32.mrf.mxu0
  %v2420 = vadd.f32 0.0, %v2419
  %2421 = vdwg.mxu0
  %v2426 = vrot.slane %v2380, 6
  %v2427 = vrot.slane %v2400, 4
  %v2428 = vrot.slane %v2420, 2
  %v2429 = vsel %vm430, %v2360, %v2426
  %v2430 = vsel %vm432, %v2427, %v2428
  %v2431 = vsel %vm434, %v2429, %v2430
  %v2433 = vadd.f32 %v2340, %v2431
  %v2434 = vld [vmem:[#allocation7] sm:$0x3]
  %v2435 = vxor.u32 %v2338, 2147483648
  %v2436 = vmul.f32 %v2435, 1.442695
  %v2437 = vpow.pop %v2436
  %v2438 = vadd.f32 %v2437, 1.0
  %v2439 = vrcp.pop %v2438
  %v2440 = vmul.f32 %v2438, %v2439
  %v2441 = vsub.f32 1.0, %v2440
  %v2442 = vmul.f32 %v2439, %v2441
  %v2443 = vadd.f32 %v2439, %v2442
  %vm2444 = vweird.f32 %v2438
  %vm2445 = vweird.f32 %v2439
  %vm2446 = vmor %vm2444, %vm2445
  %v2447 = vsel %vm2446, %v2439, %v2443
  %v2448 = vand.u32 2147483647, %v2438
  %vm2449 = vcmp.eq.f32.partialorder %v2448, 8.507059e+37
  %v2450 = vand.u32 %v2438, 2147483648
  %v2451 = vor.u32 1.1754944e-38, %v2450
  %v2452 = vsel %vm2449, %v2451, %v2447
  %v2453 = vmul.f32 1.0, %v2452
  %v2455 = vrot.slane %v2338, 2
  %v2457 = vxor.u32 %v2455, 2147483648
  %v2458 = vmul.f32 %v2457, 1.442695
  %v2459 = vpow.pop %v2458
  %v2460 = vadd.f32 %v2459, 1.0
  %v2461 = vrcp.pop %v2460
  %v2462 = vmul.f32 %v2460, %v2461
  %v2463 = vsub.f32 1.0, %v2462
  %v2464 = vmul.f32 %v2461, %v2463
  %v2465 = vadd.f32 %v2461, %v2464
  %vm2466 = vweird.f32 %v2460
  %vm2467 = vweird.f32 %v2461
  %vm2468 = vmor %vm2466, %vm2467
  %v2469 = vsel %vm2468, %v2461, %v2465
  %v2470 = vand.u32 2147483647, %v2460
  %vm2471 = vcmp.eq.f32.partialorder %v2470, 8.507059e+37
  %v2472 = vand.u32 %v2460, 2147483648
  %v2473 = vor.u32 1.1754944e-38, %v2472
  %v2474 = vsel %vm2471, %v2473, %v2469
  %v2475 = vmul.f32 1.0, %v2474
  %v2476 = vrot.slane %v2338, 4
  %v2478 = vtanh.pop %v2476
  %v2479 = vrot.slane %v2338, 6
  %v2481 = vxor.u32 %v2479, 2147483648
  %v2482 = vmul.f32 %v2481, 1.442695
  %v2483 = vpow.pop %v2482
  %v2484 = vadd.f32 %v2483, 1.0
  %v2485 = vrcp.pop %v2484
  %v2486 = vmul.f32 %v2484, %v2485
  %v2487 = vsub.f32 1.0, %v2486
  %v2488 = vmul.f32 %v2485, %v2487
  %v2489 = vadd.f32 %v2485, %v2488
  %vm2490 = vweird.f32 %v2484
  %vm2491 = vweird.f32 %v2485
  %vm2492 = vmor %vm2490, %vm2491
  %v2493 = vsel %vm2492, %v2485, %v2489
  %v2494 = vand.u32 2147483647, %v2484
  %vm2495 = vcmp.eq.f32.partialorder %v2494, 8.507059e+37
  %v2496 = vand.u32 %v2484, 2147483648
  %v2497 = vor.u32 1.1754944e-38, %v2496
  %v2498 = vsel %vm2495, %v2497, %v2493
  %v2499 = vmul.f32 1.0, %v2498
  %v2500 = vmul.f32 %v2475, %v2434
  %v2501 = vmul.f32 %v2453, %v2478
  %v2502 = vadd.f32 %v2500, %v2501
  %v2503 = vtanh.pop %v2502
  %v2504 = vmul.f32 %v2499, %v2503
  %v2505 = vld [vmem:[#allocation9] sm:$0x3]
  %v2506 = vxor.u32 %v2433, 2147483648
  %v2507 = vmul.f32 %v2506, 1.442695
  %v2508 = vpow.pop %v2507
  %v2509 = vadd.f32 %v2508, 1.0
  %v2510 = vrcp.pop %v2509
  %v2511 = vmul.f32 %v2509, %v2510
  %v2512 = vsub.f32 1.0, %v2511
  %v2513 = vmul.f32 %v2510, %v2512
  %v2514 = vadd.f32 %v2510, %v2513
  %vm2515 = vweird.f32 %v2509
  %vm2516 = vweird.f32 %v2510
  %vm2517 = vmor %vm2515, %vm2516
  %v2518 = vsel %vm2517, %v2510, %v2514
  %v2519 = vand.u32 2147483647, %v2509
  %vm2520 = vcmp.eq.f32.partialorder %v2519, 8.507059e+37
  %v2521 = vand.u32 %v2509, 2147483648
  %v2522 = vor.u32 1.1754944e-38, %v2521
  %v2523 = vsel %vm2520, %v2522, %v2518
  %v2524 = vmul.f32 1.0, %v2523
  %v2526 = vrot.slane %v2433, 2
  %v2528 = vxor.u32 %v2526, 2147483648
  %v2529 = vmul.f32 %v2528, 1.442695
  %v2530 = vpow.pop %v2529
  %v2531 = vadd.f32 %v2530, 1.0
  %v2532 = vrcp.pop %v2531
  %v2533 = vmul.f32 %v2531, %v2532
  %v2534 = vsub.f32 1.0, %v2533
  %v2535 = vmul.f32 %v2532, %v2534
  %v2536 = vadd.f32 %v2532, %v2535
  %vm2537 = vweird.f32 %v2531
  %vm2538 = vweird.f32 %v2532
  %vm2539 = vmor %vm2537, %vm2538
  %v2540 = vsel %vm2539, %v2532, %v2536
  %v2541 = vand.u32 2147483647, %v2531
  %vm2542 = vcmp.eq.f32.partialorder %v2541, 8.507059e+37
  %v2543 = vand.u32 %v2531, 2147483648
  %v2544 = vor.u32 1.1754944e-38, %v2543
  %v2545 = vsel %vm2542, %v2544, %v2540
  %v2546 = vmul.f32 1.0, %v2545
  %v2547 = vrot.slane %v2433, 4
  %v2549 = vtanh.pop %v2547
  %v2550 = vrot.slane %v2433, 6
  %v2552 = vxor.u32 %v2550, 2147483648
  %v2553 = vmul.f32 %v2552, 1.442695
  %v2554 = vpow.pop %v2553
  %v2555 = vadd.f32 %v2554, 1.0
  %v2556 = vrcp.pop %v2555
  %v2557 = vmul.f32 %v2555, %v2556
  %v2558 = vsub.f32 1.0, %v2557
  %v2559 = vmul.f32 %v2556, %v2558
  %v2560 = vadd.f32 %v2556, %v2559
  %vm2561 = vweird.f32 %v2555
  %vm2562 = vweird.f32 %v2556
  %vm2563 = vmor %vm2561, %vm2562
  %v2564 = vsel %vm2563, %v2556, %v2560
  %v2565 = vand.u32 2147483647, %v2555
  %vm2566 = vcmp.eq.f32.partialorder %v2565, 8.507059e+37
  %v2567 = vand.u32 %v2555, 2147483648
  %v2568 = vor.u32 1.1754944e-38, %v2567
  %v2569 = vsel %vm2566, %v2568, %v2564
  %v2570 = vmul.f32 1.0, %v2569
  %v2571 = vmul.f32 %v2546, %v2505
  %v2572 = vmul.f32 %v2524, %v2549
  %v2573 = vadd.f32 %v2571, %v2572
  %v2574 = vtanh.pop %v2573
  %v2575 = vmul.f32 %v2570, %v2574
  %2576 = vst [vmem:[#allocation6] sm:$0x3] %v2504
  %2577 = vst [vmem:[#allocation7] sm:$0x3] %v2502
  %2578 = vst [vmem:[#allocation8] sm:$0x3] %v2575
  %2579 = vst [vmem:[#allocation9] sm:$0x3] %v2573
  %s2580 = scalar_lea.vmem [#allocation4], 10
  %2581 = vst [vmem:[%s2580] sm:$0x3] %v2504
  %s2582 = scalar_lea.vmem [#allocation5], 4
  %2583 = vst [vmem:[%s2582] sm:$0x3] %v2575
  %s2584 = scalar_lea.vmem [#allocation2], 48
  %v2585 = vld [vmem:[%s2584] sm:$0xff]
  %v2586 = vld [vmem:[#allocation6] sm:$0x3]
  %2587 = vmatpush.msra.mxu0 %v117
  %2588 = vmatpush.msra.mxu0 %v113
  %2589 = vmatpush.msra.mxu0 %v109
  %2590 = vmatpush.msra.mxu0 %v105
  %2591 = vmatpush.msra.mxu0 %v101
  %2592 = vmatpush.msra.mxu0 %v97
  %2593 = vmatpush.msra.mxu0 %v93
  %2594 = vmatpush.msra.mxu0 %v89
  %2595 = vmatpush.msra.mxu0 %v85
  %2596 = vmatpush.msra.mxu0 %v81
  %2597 = vmatpush.msra.mxu0 %v77
  %2598 = vmatpush.msra.mxu0 %v73
  %2599 = vmatpush.msra.mxu0 %v69
  %2600 = vmatpush.msra.mxu0 %v65
  %2601 = vmatpush.msra.mxu0 %v61
  %2602 = vmatpush.msra.mxu0 %v57
  %2603 = vmatmul.f32.gmra.mxu0 %v2586
  %v2604 = vpop.f32.mrf.mxu0
  %v2605 = vadd.f32 0.0, %v2604
  %2606 = vdwg.mxu0
  %2607 = vmatpush.msra.mxu0 %v118
  %2608 = vmatpush.msra.mxu0 %v114
  %2609 = vmatpush.msra.mxu0 %v110
  %2610 = vmatpush.msra.mxu0 %v106
  %2611 = vmatpush.msra.mxu0 %v102
  %2612 = vmatpush.msra.mxu0 %v98
  %2613 = vmatpush.msra.mxu0 %v94
  %2614 = vmatpush.msra.mxu0 %v90
  %2615 = vmatpush.msra.mxu0 %v86
  %2616 = vmatpush.msra.mxu0 %v82
  %2617 = vmatpush.msra.mxu0 %v78
  %2618 = vmatpush.msra.mxu0 %v74
  %2619 = vmatpush.msra.mxu0 %v70
  %2620 = vmatpush.msra.mxu0 %v66
  %2621 = vmatpush.msra.mxu0 %v62
  %2622 = vmatpush.msra.mxu0 %v58
  %2623 = vmatmul.f32.gmra.mxu0 %v2586
  %v2624 = vpop.f32.mrf.mxu0
  %v2625 = vadd.f32 0.0, %v2624
  %2626 = vdwg.mxu0
  %2627 = vmatpush.msra.mxu0 %v119
  %2628 = vmatpush.msra.mxu0 %v115
  %2629 = vmatpush.msra.mxu0 %v111
  %2630 = vmatpush.msra.mxu0 %v107
  %2631 = vmatpush.msra.mxu0 %v103
  %2632 = vmatpush.msra.mxu0 %v99
  %2633 = vmatpush.msra.mxu0 %v95
  %2634 = vmatpush.msra.mxu0 %v91
  %2635 = vmatpush.msra.mxu0 %v87
  %2636 = vmatpush.msra.mxu0 %v83
  %2637 = vmatpush.msra.mxu0 %v79
  %2638 = vmatpush.msra.mxu0 %v75
  %2639 = vmatpush.msra.mxu0 %v71
  %2640 = vmatpush.msra.mxu0 %v67
  %2641 = vmatpush.msra.mxu0 %v63
  %2642 = vmatpush.msra.mxu0 %v59
  %2643 = vmatmul.f32.gmra.mxu0 %v2586
  %v2644 = vpop.f32.mrf.mxu0
  %v2645 = vadd.f32 0.0, %v2644
  %2646 = vdwg.mxu0
  %2647 = vmatpush.msra.mxu0 %v120
  %2648 = vmatpush.msra.mxu0 %v116
  %2649 = vmatpush.msra.mxu0 %v112
  %2650 = vmatpush.msra.mxu0 %v108
  %2651 = vmatpush.msra.mxu0 %v104
  %2652 = vmatpush.msra.mxu0 %v100
  %2653 = vmatpush.msra.mxu0 %v96
  %2654 = vmatpush.msra.mxu0 %v92
  %2655 = vmatpush.msra.mxu0 %v88
  %2656 = vmatpush.msra.mxu0 %v84
  %2657 = vmatpush.msra.mxu0 %v80
  %2658 = vmatpush.msra.mxu0 %v76
  %2659 = vmatpush.msra.mxu0 %v72
  %2660 = vmatpush.msra.mxu0 %v68
  %2661 = vmatpush.msra.mxu0 %v64
  %2662 = vmatpush.msra.mxu0 %v60
  %2663 = vmatmul.f32.gmra.mxu0 %v2586
  %v2664 = vpop.f32.mrf.mxu0
  %v2665 = vadd.f32 0.0, %v2664
  %2666 = vdwg.mxu0
  %v2671 = vrot.slane %v2625, 6
  %v2672 = vrot.slane %v2645, 4
  %v2673 = vrot.slane %v2665, 2
  %v2674 = vsel %vm430, %v2605, %v2671
  %v2675 = vsel %vm432, %v2672, %v2673
  %v2676 = vsel %vm434, %v2674, %v2675
  %v2678 = vadd.f32 %v2585, %v2676
  %s2679 = scalar_lea.vmem [#allocation3], 8
  %v2680 = vld [vmem:[%s2679] sm:$0xff]
  %v2681 = vld [vmem:[#allocation8] sm:$0x3]
  %2682 = vmatpush.msra.mxu0 %v181
  %2683 = vmatpush.msra.mxu0 %v177
  %2684 = vmatpush.msra.mxu0 %v173
  %2685 = vmatpush.msra.mxu0 %v169
  %2686 = vmatpush.msra.mxu0 %v165
  %2687 = vmatpush.msra.mxu0 %v161
  %2688 = vmatpush.msra.mxu0 %v157
  %2689 = vmatpush.msra.mxu0 %v153
  %2690 = vmatpush.msra.mxu0 %v149
  %2691 = vmatpush.msra.mxu0 %v145
  %2692 = vmatpush.msra.mxu0 %v141
  %2693 = vmatpush.msra.mxu0 %v137
  %2694 = vmatpush.msra.mxu0 %v133
  %2695 = vmatpush.msra.mxu0 %v129
  %2696 = vmatpush.msra.mxu0 %v125
  %2697 = vmatpush.msra.mxu0 %v121
  %2698 = vmatmul.f32.gmra.mxu0 %v2681
  %v2699 = vpop.f32.mrf.mxu0
  %v2700 = vadd.f32 0.0, %v2699
  %2701 = vdwg.mxu0
  %2702 = vmatpush.msra.mxu0 %v182
  %2703 = vmatpush.msra.mxu0 %v178
  %2704 = vmatpush.msra.mxu0 %v174
  %2705 = vmatpush.msra.mxu0 %v170
  %2706 = vmatpush.msra.mxu0 %v166
  %2707 = vmatpush.msra.mxu0 %v162
  %2708 = vmatpush.msra.mxu0 %v158
  %2709 = vmatpush.msra.mxu0 %v154
  %2710 = vmatpush.msra.mxu0 %v150
  %2711 = vmatpush.msra.mxu0 %v146
  %2712 = vmatpush.msra.mxu0 %v142
  %2713 = vmatpush.msra.mxu0 %v138
  %2714 = vmatpush.msra.mxu0 %v134
  %2715 = vmatpush.msra.mxu0 %v130
  %2716 = vmatpush.msra.mxu0 %v126
  %2717 = vmatpush.msra.mxu0 %v122
  %2718 = vmatmul.f32.gmra.mxu0 %v2681
  %v2719 = vpop.f32.mrf.mxu0
  %v2720 = vadd.f32 0.0, %v2719
  %2721 = vdwg.mxu0
  %2722 = vmatpush.msra.mxu0 %v183
  %2723 = vmatpush.msra.mxu0 %v179
  %2724 = vmatpush.msra.mxu0 %v175
  %2725 = vmatpush.msra.mxu0 %v171
  %2726 = vmatpush.msra.mxu0 %v167
  %2727 = vmatpush.msra.mxu0 %v163
  %2728 = vmatpush.msra.mxu0 %v159
  %2729 = vmatpush.msra.mxu0 %v155
  %2730 = vmatpush.msra.mxu0 %v151
  %2731 = vmatpush.msra.mxu0 %v147
  %2732 = vmatpush.msra.mxu0 %v143
  %2733 = vmatpush.msra.mxu0 %v139
  %2734 = vmatpush.msra.mxu0 %v135
  %2735 = vmatpush.msra.mxu0 %v131
  %2736 = vmatpush.msra.mxu0 %v127
  %2737 = vmatpush.msra.mxu0 %v123
  %2738 = vmatmul.f32.gmra.mxu0 %v2681
  %v2739 = vpop.f32.mrf.mxu0
  %v2740 = vadd.f32 0.0, %v2739
  %2741 = vdwg.mxu0
  %2742 = vmatpush.msra.mxu0 %v184
  %2743 = vmatpush.msra.mxu0 %v180
  %2744 = vmatpush.msra.mxu0 %v176
  %2745 = vmatpush.msra.mxu0 %v172
  %2746 = vmatpush.msra.mxu0 %v168
  %2747 = vmatpush.msra.mxu0 %v164
  %2748 = vmatpush.msra.mxu0 %v160
  %2749 = vmatpush.msra.mxu0 %v156
  %2750 = vmatpush.msra.mxu0 %v152
  %2751 = vmatpush.msra.mxu0 %v148
  %2752 = vmatpush.msra.mxu0 %v144
  %2753 = vmatpush.msra.mxu0 %v140
  %2754 = vmatpush.msra.mxu0 %v136
  %2755 = vmatpush.msra.mxu0 %v132
  %2756 = vmatpush.msra.mxu0 %v128
  %2757 = vmatpush.msra.mxu0 %v124
  %2758 = vmatmul.f32.gmra.mxu0 %v2681
  %v2759 = vpop.f32.mrf.mxu0
  %v2760 = vadd.f32 0.0, %v2759
  %2761 = vdwg.mxu0
  %v2766 = vrot.slane %v2720, 6
  %v2767 = vrot.slane %v2740, 4
  %v2768 = vrot.slane %v2760, 2
  %v2769 = vsel %vm430, %v2700, %v2766
  %v2770 = vsel %vm432, %v2767, %v2768
  %v2771 = vsel %vm434, %v2769, %v2770
  %v2773 = vadd.f32 %v2680, %v2771
  %v2774 = vld [vmem:[#allocation7] sm:$0x3]
  %v2775 = vxor.u32 %v2678, 2147483648
  %v2776 = vmul.f32 %v2775, 1.442695
  %v2777 = vpow.pop %v2776
  %v2778 = vadd.f32 %v2777, 1.0
  %v2779 = vrcp.pop %v2778
  %v2780 = vmul.f32 %v2778, %v2779
  %v2781 = vsub.f32 1.0, %v2780
  %v2782 = vmul.f32 %v2779, %v2781
  %v2783 = vadd.f32 %v2779, %v2782
  %vm2784 = vweird.f32 %v2778
  %vm2785 = vweird.f32 %v2779
  %vm2786 = vmor %vm2784, %vm2785
  %v2787 = vsel %vm2786, %v2779, %v2783
  %v2788 = vand.u32 2147483647, %v2778
  %vm2789 = vcmp.eq.f32.partialorder %v2788, 8.507059e+37
  %v2790 = vand.u32 %v2778, 2147483648
  %v2791 = vor.u32 1.1754944e-38, %v2790
  %v2792 = vsel %vm2789, %v2791, %v2787
  %v2793 = vmul.f32 1.0, %v2792
  %v2795 = vrot.slane %v2678, 2
  %v2797 = vxor.u32 %v2795, 2147483648
  %v2798 = vmul.f32 %v2797, 1.442695
  %v2799 = vpow.pop %v2798
  %v2800 = vadd.f32 %v2799, 1.0
  %v2801 = vrcp.pop %v2800
  %v2802 = vmul.f32 %v2800, %v2801
  %v2803 = vsub.f32 1.0, %v2802
  %v2804 = vmul.f32 %v2801, %v2803
  %v2805 = vadd.f32 %v2801, %v2804
  %vm2806 = vweird.f32 %v2800
  %vm2807 = vweird.f32 %v2801
  %vm2808 = vmor %vm2806, %vm2807
  %v2809 = vsel %vm2808, %v2801, %v2805
  %v2810 = vand.u32 2147483647, %v2800
  %vm2811 = vcmp.eq.f32.partialorder %v2810, 8.507059e+37
  %v2812 = vand.u32 %v2800, 2147483648
  %v2813 = vor.u32 1.1754944e-38, %v2812
  %v2814 = vsel %vm2811, %v2813, %v2809
  %v2815 = vmul.f32 1.0, %v2814
  %v2816 = vrot.slane %v2678, 4
  %v2818 = vtanh.pop %v2816
  %v2819 = vrot.slane %v2678, 6
  %v2821 = vxor.u32 %v2819, 2147483648
  %v2822 = vmul.f32 %v2821, 1.442695
  %v2823 = vpow.pop %v2822
  %v2824 = vadd.f32 %v2823, 1.0
  %v2825 = vrcp.pop %v2824
  %v2826 = vmul.f32 %v2824, %v2825
  %v2827 = vsub.f32 1.0, %v2826
  %v2828 = vmul.f32 %v2825, %v2827
  %v2829 = vadd.f32 %v2825, %v2828
  %vm2830 = vweird.f32 %v2824
  %vm2831 = vweird.f32 %v2825
  %vm2832 = vmor %vm2830, %vm2831
  %v2833 = vsel %vm2832, %v2825, %v2829
  %v2834 = vand.u32 2147483647, %v2824
  %vm2835 = vcmp.eq.f32.partialorder %v2834, 8.507059e+37
  %v2836 = vand.u32 %v2824, 2147483648
  %v2837 = vor.u32 1.1754944e-38, %v2836
  %v2838 = vsel %vm2835, %v2837, %v2833
  %v2839 = vmul.f32 1.0, %v2838
  %v2840 = vmul.f32 %v2815, %v2774
  %v2841 = vmul.f32 %v2793, %v2818
  %v2842 = vadd.f32 %v2840, %v2841
  %v2843 = vtanh.pop %v2842
  %v2844 = vmul.f32 %v2839, %v2843
  %v2845 = vld [vmem:[#allocation9] sm:$0x3]
  %v2846 = vxor.u32 %v2773, 2147483648
  %v2847 = vmul.f32 %v2846, 1.442695
  %v2848 = vpow.pop %v2847
  %v2849 = vadd.f32 %v2848, 1.0
  %v2850 = vrcp.pop %v2849
  %v2851 = vmul.f32 %v2849, %v2850
  %v2852 = vsub.f32 1.0, %v2851
  %v2853 = vmul.f32 %v2850, %v2852
  %v2854 = vadd.f32 %v2850, %v2853
  %vm2855 = vweird.f32 %v2849
  %vm2856 = vweird.f32 %v2850
  %vm2857 = vmor %vm2855, %vm2856
  %v2858 = vsel %vm2857, %v2850, %v2854
  %v2859 = vand.u32 2147483647, %v2849
  %vm2860 = vcmp.eq.f32.partialorder %v2859, 8.507059e+37
  %v2861 = vand.u32 %v2849, 2147483648
  %v2862 = vor.u32 1.1754944e-38, %v2861
  %v2863 = vsel %vm2860, %v2862, %v2858
  %v2864 = vmul.f32 1.0, %v2863
  %v2866 = vrot.slane %v2773, 2
  %v2868 = vxor.u32 %v2866, 2147483648
  %v2869 = vmul.f32 %v2868, 1.442695
  %v2870 = vpow.pop %v2869
  %v2871 = vadd.f32 %v2870, 1.0
  %v2872 = vrcp.pop %v2871
  %v2873 = vmul.f32 %v2871, %v2872
  %v2874 = vsub.f32 1.0, %v2873
  %v2875 = vmul.f32 %v2872, %v2874
  %v2876 = vadd.f32 %v2872, %v2875
  %vm2877 = vweird.f32 %v2871
  %vm2878 = vweird.f32 %v2872
  %vm2879 = vmor %vm2877, %vm2878
  %v2880 = vsel %vm2879, %v2872, %v2876
  %v2881 = vand.u32 2147483647, %v2871
  %vm2882 = vcmp.eq.f32.partialorder %v2881, 8.507059e+37
  %v2883 = vand.u32 %v2871, 2147483648
  %v2884 = vor.u32 1.1754944e-38, %v2883
  %v2885 = vsel %vm2882, %v2884, %v2880
  %v2886 = vmul.f32 1.0, %v2885
  %v2887 = vrot.slane %v2773, 4
  %v2889 = vtanh.pop %v2887
  %v2890 = vrot.slane %v2773, 6
  %v2892 = vxor.u32 %v2890, 2147483648
  %v2893 = vmul.f32 %v2892, 1.442695
  %v2894 = vpow.pop %v2893
  %v2895 = vadd.f32 %v2894, 1.0
  %v2896 = vrcp.pop %v2895
  %v2897 = vmul.f32 %v2895, %v2896
  %v2898 = vsub.f32 1.0, %v2897
  %v2899 = vmul.f32 %v2896, %v2898
  %v2900 = vadd.f32 %v2896, %v2899
  %vm2901 = vweird.f32 %v2895
  %vm2902 = vweird.f32 %v2896
  %vm2903 = vmor %vm2901, %vm2902
  %v2904 = vsel %vm2903, %v2896, %v2900
  %v2905 = vand.u32 2147483647, %v2895
  %vm2906 = vcmp.eq.f32.partialorder %v2905, 8.507059e+37
  %v2907 = vand.u32 %v2895, 2147483648
  %v2908 = vor.u32 1.1754944e-38, %v2907
  %v2909 = vsel %vm2906, %v2908, %v2904
  %v2910 = vmul.f32 1.0, %v2909
  %v2911 = vmul.f32 %v2886, %v2845
  %v2912 = vmul.f32 %v2864, %v2889
  %v2913 = vadd.f32 %v2911, %v2912
  %v2914 = vtanh.pop %v2913
  %v2915 = vmul.f32 %v2910, %v2914
  %2916 = vst [vmem:[#allocation6] sm:$0x3] %v2844
  %2917 = vst [vmem:[#allocation7] sm:$0x3] %v2842
  %2918 = vst [vmem:[#allocation8] sm:$0x3] %v2915
  %2919 = vst [vmem:[#allocation9] sm:$0x3] %v2913
  %s2920 = scalar_lea.vmem [#allocation4], 12
  %2921 = vst [vmem:[%s2920] sm:$0x3] %v2844
  %s2922 = scalar_lea.vmem [#allocation5], 2
  %2923 = vst [vmem:[%s2922] sm:$0x3] %v2915
  %s2924 = scalar_lea.vmem [#allocation2], 56
  %v2925 = vld [vmem:[%s2924] sm:$0xff]
  %v2926 = vld [vmem:[#allocation6] sm:$0x3]
  %2927 = vmatpush.msra.mxu0 %v117
  %2928 = vmatpush.msra.mxu0 %v113
  %2929 = vmatpush.msra.mxu0 %v109
  %2930 = vmatpush.msra.mxu0 %v105
  %2931 = vmatpush.msra.mxu0 %v101
  %2932 = vmatpush.msra.mxu0 %v97
  %2933 = vmatpush.msra.mxu0 %v93
  %2934 = vmatpush.msra.mxu0 %v89
  %2935 = vmatpush.msra.mxu0 %v85
  %2936 = vmatpush.msra.mxu0 %v81
  %2937 = vmatpush.msra.mxu0 %v77
  %2938 = vmatpush.msra.mxu0 %v73
  %2939 = vmatpush.msra.mxu0 %v69
  %2940 = vmatpush.msra.mxu0 %v65
  %2941 = vmatpush.msra.mxu0 %v61
  %2942 = vmatpush.msra.mxu0 %v57
  %2943 = vmatmul.f32.gmra.mxu0 %v2926
  %v2944 = vpop.f32.mrf.mxu0
  %v2945 = vadd.f32 0.0, %v2944
  %2946 = vdwg.mxu0
  %2947 = vmatpush.msra.mxu0 %v118
  %2948 = vmatpush.msra.mxu0 %v114
  %2949 = vmatpush.msra.mxu0 %v110
  %2950 = vmatpush.msra.mxu0 %v106
  %2951 = vmatpush.msra.mxu0 %v102
  %2952 = vmatpush.msra.mxu0 %v98
  %2953 = vmatpush.msra.mxu0 %v94
  %2954 = vmatpush.msra.mxu0 %v90
  %2955 = vmatpush.msra.mxu0 %v86
  %2956 = vmatpush.msra.mxu0 %v82
  %2957 = vmatpush.msra.mxu0 %v78
  %2958 = vmatpush.msra.mxu0 %v74
  %2959 = vmatpush.msra.mxu0 %v70
  %2960 = vmatpush.msra.mxu0 %v66
  %2961 = vmatpush.msra.mxu0 %v62
  %2962 = vmatpush.msra.mxu0 %v58
  %2963 = vmatmul.f32.gmra.mxu0 %v2926
  %v2964 = vpop.f32.mrf.mxu0
  %v2965 = vadd.f32 0.0, %v2964
  %2966 = vdwg.mxu0
  %2967 = vmatpush.msra.mxu0 %v119
  %2968 = vmatpush.msra.mxu0 %v115
  %2969 = vmatpush.msra.mxu0 %v111
  %2970 = vmatpush.msra.mxu0 %v107
  %2971 = vmatpush.msra.mxu0 %v103
  %2972 = vmatpush.msra.mxu0 %v99
  %2973 = vmatpush.msra.mxu0 %v95
  %2974 = vmatpush.msra.mxu0 %v91
  %2975 = vmatpush.msra.mxu0 %v87
  %2976 = vmatpush.msra.mxu0 %v83
  %2977 = vmatpush.msra.mxu0 %v79
  %2978 = vmatpush.msra.mxu0 %v75
  %2979 = vmatpush.msra.mxu0 %v71
  %2980 = vmatpush.msra.mxu0 %v67
  %2981 = vmatpush.msra.mxu0 %v63
  %2982 = vmatpush.msra.mxu0 %v59
  %2983 = vmatmul.f32.gmra.mxu0 %v2926
  %v2984 = vpop.f32.mrf.mxu0
  %v2985 = vadd.f32 0.0, %v2984
  %2986 = vdwg.mxu0
  %2987 = vmatpush.msra.mxu0 %v120
  %2988 = vmatpush.msra.mxu0 %v116
  %2989 = vmatpush.msra.mxu0 %v112
  %2990 = vmatpush.msra.mxu0 %v108
  %2991 = vmatpush.msra.mxu0 %v104
  %2992 = vmatpush.msra.mxu0 %v100
  %2993 = vmatpush.msra.mxu0 %v96
  %2994 = vmatpush.msra.mxu0 %v92
  %2995 = vmatpush.msra.mxu0 %v88
  %2996 = vmatpush.msra.mxu0 %v84
  %2997 = vmatpush.msra.mxu0 %v80
  %2998 = vmatpush.msra.mxu0 %v76
  %2999 = vmatpush.msra.mxu0 %v72
  %3000 = vmatpush.msra.mxu0 %v68
  %3001 = vmatpush.msra.mxu0 %v64
  %3002 = vmatpush.msra.mxu0 %v60
  %3003 = vmatmul.f32.gmra.mxu0 %v2926
  %v3004 = vpop.f32.mrf.mxu0
  %v3005 = vadd.f32 0.0, %v3004
  %3006 = vdwg.mxu0
  %v3011 = vrot.slane %v2965, 6
  %v3012 = vrot.slane %v2985, 4
  %v3013 = vrot.slane %v3005, 2
  %v3014 = vsel %vm430, %v2945, %v3011
  %v3015 = vsel %vm432, %v3012, %v3013
  %v3016 = vsel %vm434, %v3014, %v3015
  %v3018 = vadd.f32 %v2925, %v3016
  %v3019 = vld [vmem:[#allocation3] sm:$0xff]
  %v3020 = vld [vmem:[#allocation8] sm:$0x3]
  %3021 = vmatpush.msra.mxu0 %v181
  %3022 = vmatpush.msra.mxu0 %v177
  %3023 = vmatpush.msra.mxu0 %v173
  %3024 = vmatpush.msra.mxu0 %v169
  %3025 = vmatpush.msra.mxu0 %v165
  %3026 = vmatpush.msra.mxu0 %v161
  %3027 = vmatpush.msra.mxu0 %v157
  %3028 = vmatpush.msra.mxu0 %v153
  %3029 = vmatpush.msra.mxu0 %v149
  %3030 = vmatpush.msra.mxu0 %v145
  %3031 = vmatpush.msra.mxu0 %v141
  %3032 = vmatpush.msra.mxu0 %v137
  %3033 = vmatpush.msra.mxu0 %v133
  %3034 = vmatpush.msra.mxu0 %v129
  %3035 = vmatpush.msra.mxu0 %v125
  %3036 = vmatpush.msra.mxu0 %v121
  %3037 = vmatmul.f32.gmra.mxu0 %v3020
  %v3038 = vpop.f32.mrf.mxu0
  %v3039 = vadd.f32 0.0, %v3038
  %3040 = vdwg.mxu0
  %3041 = vmatpush.msra.mxu0 %v182
  %3042 = vmatpush.msra.mxu0 %v178
  %3043 = vmatpush.msra.mxu0 %v174
  %3044 = vmatpush.msra.mxu0 %v170
  %3045 = vmatpush.msra.mxu0 %v166
  %3046 = vmatpush.msra.mxu0 %v162
  %3047 = vmatpush.msra.mxu0 %v158
  %3048 = vmatpush.msra.mxu0 %v154
  %3049 = vmatpush.msra.mxu0 %v150
  %3050 = vmatpush.msra.mxu0 %v146
  %3051 = vmatpush.msra.mxu0 %v142
  %3052 = vmatpush.msra.mxu0 %v138
  %3053 = vmatpush.msra.mxu0 %v134
  %3054 = vmatpush.msra.mxu0 %v130
  %3055 = vmatpush.msra.mxu0 %v126
  %3056 = vmatpush.msra.mxu0 %v122
  %3057 = vmatmul.f32.gmra.mxu0 %v3020
  %v3058 = vpop.f32.mrf.mxu0
  %v3059 = vadd.f32 0.0, %v3058
  %3060 = vdwg.mxu0
  %3061 = vmatpush.msra.mxu0 %v183
  %3062 = vmatpush.msra.mxu0 %v179
  %3063 = vmatpush.msra.mxu0 %v175
  %3064 = vmatpush.msra.mxu0 %v171
  %3065 = vmatpush.msra.mxu0 %v167
  %3066 = vmatpush.msra.mxu0 %v163
  %3067 = vmatpush.msra.mxu0 %v159
  %3068 = vmatpush.msra.mxu0 %v155
  %3069 = vmatpush.msra.mxu0 %v151
  %3070 = vmatpush.msra.mxu0 %v147
  %3071 = vmatpush.msra.mxu0 %v143
  %3072 = vmatpush.msra.mxu0 %v139
  %3073 = vmatpush.msra.mxu0 %v135
  %3074 = vmatpush.msra.mxu0 %v131
  %3075 = vmatpush.msra.mxu0 %v127
  %3076 = vmatpush.msra.mxu0 %v123
  %3077 = vmatmul.f32.gmra.mxu0 %v3020
  %v3078 = vpop.f32.mrf.mxu0
  %v3079 = vadd.f32 0.0, %v3078
  %3080 = vdwg.mxu0
  %3081 = vmatpush.msra.mxu0 %v184
  %3082 = vmatpush.msra.mxu0 %v180
  %3083 = vmatpush.msra.mxu0 %v176
  %3084 = vmatpush.msra.mxu0 %v172
  %3085 = vmatpush.msra.mxu0 %v168
  %3086 = vmatpush.msra.mxu0 %v164
  %3087 = vmatpush.msra.mxu0 %v160
  %3088 = vmatpush.msra.mxu0 %v156
  %3089 = vmatpush.msra.mxu0 %v152
  %3090 = vmatpush.msra.mxu0 %v148
  %3091 = vmatpush.msra.mxu0 %v144
  %3092 = vmatpush.msra.mxu0 %v140
  %3093 = vmatpush.msra.mxu0 %v136
  %3094 = vmatpush.msra.mxu0 %v132
  %3095 = vmatpush.msra.mxu0 %v128
  %3096 = vmatpush.msra.mxu0 %v124
  %3097 = vmatmul.f32.gmra.mxu0 %v3020
  %v3098 = vpop.f32.mrf.mxu0
  %v3099 = vadd.f32 0.0, %v3098
  %3100 = vdwg.mxu0
  %v3105 = vrot.slane %v3059, 6
  %v3106 = vrot.slane %v3079, 4
  %v3107 = vrot.slane %v3099, 2
  %v3108 = vsel %vm430, %v3039, %v3105
  %v3109 = vsel %vm432, %v3106, %v3107
  %v3110 = vsel %vm434, %v3108, %v3109
  %v3112 = vadd.f32 %v3019, %v3110
  %v3113 = vld [vmem:[#allocation7] sm:$0x3]
  %v3114 = vxor.u32 %v3018, 2147483648
  %v3115 = vmul.f32 %v3114, 1.442695
  %v3116 = vpow.pop %v3115
  %v3117 = vadd.f32 %v3116, 1.0
  %v3118 = vrcp.pop %v3117
  %v3119 = vmul.f32 %v3117, %v3118
  %v3120 = vsub.f32 1.0, %v3119
  %v3121 = vmul.f32 %v3118, %v3120
  %v3122 = vadd.f32 %v3118, %v3121
  %vm3123 = vweird.f32 %v3117
  %vm3124 = vweird.f32 %v3118
  %vm3125 = vmor %vm3123, %vm3124
  %v3126 = vsel %vm3125, %v3118, %v3122
  %v3127 = vand.u32 2147483647, %v3117
  %vm3128 = vcmp.eq.f32.partialorder %v3127, 8.507059e+37
  %v3129 = vand.u32 %v3117, 2147483648
  %v3130 = vor.u32 1.1754944e-38, %v3129
  %v3131 = vsel %vm3128, %v3130, %v3126
  %v3132 = vmul.f32 1.0, %v3131
  %v3134 = vrot.slane %v3018, 2
  %v3136 = vxor.u32 %v3134, 2147483648
  %v3137 = vmul.f32 %v3136, 1.442695
  %v3138 = vpow.pop %v3137
  %v3139 = vadd.f32 %v3138, 1.0
  %v3140 = vrcp.pop %v3139
  %v3141 = vmul.f32 %v3139, %v3140
  %v3142 = vsub.f32 1.0, %v3141
  %v3143 = vmul.f32 %v3140, %v3142
  %v3144 = vadd.f32 %v3140, %v3143
  %vm3145 = vweird.f32 %v3139
  %vm3146 = vweird.f32 %v3140
  %vm3147 = vmor %vm3145, %vm3146
  %v3148 = vsel %vm3147, %v3140, %v3144
  %v3149 = vand.u32 2147483647, %v3139
  %vm3150 = vcmp.eq.f32.partialorder %v3149, 8.507059e+37
  %v3151 = vand.u32 %v3139, 2147483648
  %v3152 = vor.u32 1.1754944e-38, %v3151
  %v3153 = vsel %vm3150, %v3152, %v3148
  %v3154 = vmul.f32 1.0, %v3153
  %v3155 = vrot.slane %v3018, 4
  %v3157 = vtanh.pop %v3155
  %v3158 = vrot.slane %v3018, 6
  %v3160 = vxor.u32 %v3158, 2147483648
  %v3161 = vmul.f32 %v3160, 1.442695
  %v3162 = vpow.pop %v3161
  %v3163 = vadd.f32 %v3162, 1.0
  %v3164 = vrcp.pop %v3163
  %v3165 = vmul.f32 %v3163, %v3164
  %v3166 = vsub.f32 1.0, %v3165
  %v3167 = vmul.f32 %v3164, %v3166
  %v3168 = vadd.f32 %v3164, %v3167
  %vm3169 = vweird.f32 %v3163
  %vm3170 = vweird.f32 %v3164
  %vm3171 = vmor %vm3169, %vm3170
  %v3172 = vsel %vm3171, %v3164, %v3168
  %v3173 = vand.u32 2147483647, %v3163
  %vm3174 = vcmp.eq.f32.partialorder %v3173, 8.507059e+37
  %v3175 = vand.u32 %v3163, 2147483648
  %v3176 = vor.u32 1.1754944e-38, %v3175
  %v3177 = vsel %vm3174, %v3176, %v3172
  %v3178 = vmul.f32 1.0, %v3177
  %v3179 = vmul.f32 %v3154, %v3113
  %v3180 = vmul.f32 %v3132, %v3157
  %v3181 = vadd.f32 %v3179, %v3180
  %v3182 = vtanh.pop %v3181
  %v3183 = vmul.f32 %v3178, %v3182
  %v3184 = vld [vmem:[#allocation9] sm:$0x3]
  %v3185 = vxor.u32 %v3112, 2147483648
  %v3186 = vmul.f32 %v3185, 1.442695
  %v3187 = vpow.pop %v3186
  %v3188 = vadd.f32 %v3187, 1.0
  %v3189 = vrcp.pop %v3188
  %v3190 = vmul.f32 %v3188, %v3189
  %v3191 = vsub.f32 1.0, %v3190
  %v3192 = vmul.f32 %v3189, %v3191
  %v3193 = vadd.f32 %v3189, %v3192
  %vm3194 = vweird.f32 %v3188
  %vm3195 = vweird.f32 %v3189
  %vm3196 = vmor %vm3194, %vm3195
  %v3197 = vsel %vm3196, %v3189, %v3193
  %v3198 = vand.u32 2147483647, %v3188
  %vm3199 = vcmp.eq.f32.partialorder %v3198, 8.507059e+37
  %v3200 = vand.u32 %v3188, 2147483648
  %v3201 = vor.u32 1.1754944e-38, %v3200
  %v3202 = vsel %vm3199, %v3201, %v3197
  %v3203 = vmul.f32 1.0, %v3202
  %v3205 = vrot.slane %v3112, 2
  %v3207 = vxor.u32 %v3205, 2147483648
  %v3208 = vmul.f32 %v3207, 1.442695
  %v3209 = vpow.pop %v3208
  %v3210 = vadd.f32 %v3209, 1.0
  %v3211 = vrcp.pop %v3210
  %v3212 = vmul.f32 %v3210, %v3211
  %v3213 = vsub.f32 1.0, %v3212
  %v3214 = vmul.f32 %v3211, %v3213
  %v3215 = vadd.f32 %v3211, %v3214
  %vm3216 = vweird.f32 %v3210
  %vm3217 = vweird.f32 %v3211
  %vm3218 = vmor %vm3216, %vm3217
  %v3219 = vsel %vm3218, %v3211, %v3215
  %v3220 = vand.u32 2147483647, %v3210
  %vm3221 = vcmp.eq.f32.partialorder %v3220, 8.507059e+37
  %v3222 = vand.u32 %v3210, 2147483648
  %v3223 = vor.u32 1.1754944e-38, %v3222
  %v3224 = vsel %vm3221, %v3223, %v3219
  %v3225 = vmul.f32 1.0, %v3224
  %v3226 = vrot.slane %v3112, 4
  %v3228 = vtanh.pop %v3226
  %v3229 = vrot.slane %v3112, 6
  %v3231 = vxor.u32 %v3229, 2147483648
  %v3232 = vmul.f32 %v3231, 1.442695
  %v3233 = vpow.pop %v3232
  %v3234 = vadd.f32 %v3233, 1.0
  %v3235 = vrcp.pop %v3234
  %v3236 = vmul.f32 %v3234, %v3235
  %v3237 = vsub.f32 1.0, %v3236
  %v3238 = vmul.f32 %v3235, %v3237
  %v3239 = vadd.f32 %v3235, %v3238
  %vm3240 = vweird.f32 %v3234
  %vm3241 = vweird.f32 %v3235
  %vm3242 = vmor %vm3240, %vm3241
  %v3243 = vsel %vm3242, %v3235, %v3239
  %v3244 = vand.u32 2147483647, %v3234
  %vm3245 = vcmp.eq.f32.partialorder %v3244, 8.507059e+37
  %v3246 = vand.u32 %v3234, 2147483648
  %v3247 = vor.u32 1.1754944e-38, %v3246
  %v3248 = vsel %vm3245, %v3247, %v3243
  %v3249 = vmul.f32 1.0, %v3248
  %v3250 = vmul.f32 %v3225, %v3184
  %v3251 = vmul.f32 %v3203, %v3228
  %v3252 = vadd.f32 %v3250, %v3251
  %v3253 = vtanh.pop %v3252
  %v3254 = vmul.f32 %v3249, %v3253
  %3255 = vst [vmem:[#allocation6] sm:$0x3] %v3183
  %3256 = vst [vmem:[#allocation7] sm:$0x3] %v3181
  %3257 = vst [vmem:[#allocation8] sm:$0x3] %v3254
  %3258 = vst [vmem:[#allocation9] sm:$0x3] %v3252
  %s3259 = scalar_lea.vmem [#allocation4], 14
  %3260 = vst [vmem:[%s3259] sm:$0x3] %v3183
  %3261 = vst [vmem:[#allocation5] sm:$0x3] %v3254
  %v3262 = vld [vmem:[#allocation4] sm:$0x3]
  %v3263 = vld [vmem:[#allocation4 + $0x2] sm:$0x3]
  %v3264 = vld [vmem:[#allocation4 + $0x4] sm:$0x3]
  %v3265 = vld [vmem:[#allocation4 + $0x6] sm:$0x3]
  %v3266 = vld [vmem:[#allocation4 + $0x8] sm:$0x3]
  %v3267 = vld [vmem:[#allocation4 + $0xa] sm:$0x3]
  %v3268 = vld [vmem:[#allocation4 + $0xc] sm:$0x3]
  %v3269 = vld [vmem:[#allocation4 + $0xe] sm:$0x3]
  %v3270 = vld [vmem:[#allocation5] sm:$0x3]
  %v3271 = vld [vmem:[#allocation5 + $0x2] sm:$0x3]
  %v3272 = vld [vmem:[#allocation5 + $0x4] sm:$0x3]
  %v3273 = vld [vmem:[#allocation5 + $0x6] sm:$0x3]
  %v3274 = vld [vmem:[#allocation5 + $0x8] sm:$0x3]
  %v3275 = vld [vmem:[#allocation5 + $0xa] sm:$0x3]
  %v3276 = vld [vmem:[#allocation5 + $0xc] sm:$0x3]
  %v3277 = vld [vmem:[#allocation5 + $0xe] sm:$0x3]
  %v3294 = vrot.slane %v3270, 6
  %v3295 = vrot.slane %v3271, 6
  %v3296 = vrot.slane %v3272, 6
  %v3297 = vrot.slane %v3273, 6
  %v3298 = vrot.slane %v3274, 6
  %v3299 = vrot.slane %v3275, 6
  %v3300 = vrot.slane %v3276, 6
  %v3301 = vrot.slane %v3277, 6
  %v3302 = vsel %vm430, %v3262, %v3294
  %v3303 = vsel %vm430, %v3263, %v3295
  %v3304 = vsel %vm430, %v3264, %v3296
  %v3305 = vsel %vm430, %v3265, %v3297
  %v3306 = vsel %vm430, %v3266, %v3298
  %v3307 = vsel %vm430, %v3267, %v3299
  %v3308 = vsel %vm430, %v3268, %v3300
  %v3309 = vsel %vm430, %v3269, %v3301
  %v3310 = vld [vmem:[%s5] sm:$0xff]
  %v3311 = vld [vmem:[%s5 + $0x8] sm:$0xff]
  %v3312 = vld [vmem:[%s5 + $0x10] sm:$0xff]
  %v3313 = vld [vmem:[%s5 + $0x18] sm:$0xff]
  %v3314 = vld [vmem:[%s5 + $0x20] sm:$0xff]
  %v3315 = vld [vmem:[%s5 + $0x28] sm:$0xff]
  %v3316 = vld [vmem:[%s5 + $0x30] sm:$0xff]
  %v3317 = vld [vmem:[%s5 + $0x38] sm:$0xff]
  %v3318 = vld [vmem:[%s5 + $0x40] sm:$0xff]
  %v3319 = vld [vmem:[%s5 + $0x48] sm:$0xff]
  %v3320 = vld [vmem:[%s5 + $0x50] sm:$0xff]
  %v3321 = vld [vmem:[%s5 + $0x58] sm:$0xff]
  %v3322 = vld [vmem:[%s5 + $0x60] sm:$0xff]
  %v3323 = vld [vmem:[%s5 + $0x68] sm:$0xff]
  %v3324 = vld [vmem:[%s5 + $0x70] sm:$0xff]
  %v3325 = vld [vmem:[%s5 + $0x78] sm:$0xff]
  %v3326 = vld [vmem:[%s5 + $0x80] sm:$0xff]
  %v3327 = vld [vmem:[%s5 + $0x88] sm:$0xff]
  %v3328 = vld [vmem:[%s5 + $0x90] sm:$0xff]
  %v3329 = vld [vmem:[%s5 + $0x98] sm:$0xff]
  %v3330 = vld [vmem:[%s5 + $0xa0] sm:$0xff]
  %v3331 = vld [vmem:[%s5 + $0xa8] sm:$0xff]
  %v3332 = vld [vmem:[%s5 + $0xb0] sm:$0xff]
  %v3333 = vld [vmem:[%s5 + $0xb8] sm:$0xff]
  %v3334 = vld [vmem:[%s5 + $0xc0] sm:$0xff]
  %v3335 = vld [vmem:[%s5 + $0xc8] sm:$0xff]
  %v3336 = vld [vmem:[%s5 + $0xd0] sm:$0xff]
  %v3337 = vld [vmem:[%s5 + $0xd8] sm:$0xff]
  %v3338 = vld [vmem:[%s5 + $0xe0] sm:$0xff]
  %v3339 = vld [vmem:[%s5 + $0xe8] sm:$0xff]
  %v3340 = vld [vmem:[%s5 + $0xf0] sm:$0xff]
  %v3341 = vld [vmem:[%s5 + $0xf8] sm:$0xff]
  %v3342 = vld [vmem:[%s5 + $0x100] sm:$0xff]
  %v3343 = vld [vmem:[%s5 + $0x108] sm:$0xff]
  %v3344 = vld [vmem:[%s5 + $0x110] sm:$0xff]
  %v3345 = vld [vmem:[%s5 + $0x118] sm:$0xff]
  %v3346 = vld [vmem:[%s5 + $0x120] sm:$0xff]
  %v3347 = vld [vmem:[%s5 + $0x128] sm:$0xff]
  %v3348 = vld [vmem:[%s5 + $0x130] sm:$0xff]
  %v3349 = vld [vmem:[%s5 + $0x138] sm:$0xff]
  %v3350 = vld [vmem:[%s5 + $0x140] sm:$0xff]
  %v3351 = vld [vmem:[%s5 + $0x148] sm:$0xff]
  %v3352 = vld [vmem:[%s5 + $0x150] sm:$0xff]
  %v3353 = vld [vmem:[%s5 + $0x158] sm:$0xff]
  %v3354 = vld [vmem:[%s5 + $0x160] sm:$0xff]
  %v3355 = vld [vmem:[%s5 + $0x168] sm:$0xff]
  %v3356 = vld [vmem:[%s5 + $0x170] sm:$0xff]
  %v3357 = vld [vmem:[%s5 + $0x178] sm:$0xff]
  %v3358 = vld [vmem:[%s5 + $0x180] sm:$0xff]
  %v3359 = vld [vmem:[%s5 + $0x188] sm:$0xff]
  %v3360 = vld [vmem:[%s5 + $0x190] sm:$0xff]
  %v3361 = vld [vmem:[%s5 + $0x198] sm:$0xff]
  %v3362 = vld [vmem:[%s5 + $0x1a0] sm:$0xff]
  %v3363 = vld [vmem:[%s5 + $0x1a8] sm:$0xff]
  %v3364 = vld [vmem:[%s5 + $0x1b0] sm:$0xff]
  %v3365 = vld [vmem:[%s5 + $0x1b8] sm:$0xff]
  %v3366 = vld [vmem:[%s5 + $0x1c0] sm:$0xff]
  %v3367 = vld [vmem:[%s5 + $0x1c8] sm:$0xff]
  %v3368 = vld [vmem:[%s5 + $0x1d0] sm:$0xff]
  %v3369 = vld [vmem:[%s5 + $0x1d8] sm:$0xff]
  %v3370 = vld [vmem:[%s5 + $0x1e0] sm:$0xff]
  %v3371 = vld [vmem:[%s5 + $0x1e8] sm:$0xff]
  %v3372 = vld [vmem:[%s5 + $0x1f0] sm:$0xff]
  %v3373 = vld [vmem:[%s5 + $0x1f8] sm:$0xff]
  %v3374 = vld [vmem:[%s5 + $0x200] sm:$0xff]
  %v3375 = vld [vmem:[%s5 + $0x208] sm:$0xff]
  %v3376 = vld [vmem:[%s5 + $0x210] sm:$0xff]
  %v3377 = vld [vmem:[%s5 + $0x218] sm:$0xff]
  %v3378 = vld [vmem:[%s5 + $0x220] sm:$0xff]
  %v3379 = vld [vmem:[%s5 + $0x228] sm:$0xff]
  %v3380 = vld [vmem:[%s5 + $0x230] sm:$0xff]
  %v3381 = vld [vmem:[%s5 + $0x238] sm:$0xff]
  %v3382 = vld [vmem:[%s5 + $0x240] sm:$0xff]
  %v3383 = vld [vmem:[%s5 + $0x248] sm:$0xff]
  %v3384 = vld [vmem:[%s5 + $0x250] sm:$0xff]
  %v3385 = vld [vmem:[%s5 + $0x258] sm:$0xff]
  %v3386 = vld [vmem:[%s5 + $0x260] sm:$0xff]
  %v3387 = vld [vmem:[%s5 + $0x268] sm:$0xff]
  %v3388 = vld [vmem:[%s5 + $0x270] sm:$0xff]
  %v3389 = vld [vmem:[%s5 + $0x278] sm:$0xff]
  %v3390 = vld [vmem:[%s5 + $0x280] sm:$0xff]
  %v3391 = vld [vmem:[%s5 + $0x288] sm:$0xff]
  %v3392 = vld [vmem:[%s5 + $0x290] sm:$0xff]
  %v3393 = vld [vmem:[%s5 + $0x298] sm:$0xff]
  %v3394 = vld [vmem:[%s5 + $0x2a0] sm:$0xff]
  %v3395 = vld [vmem:[%s5 + $0x2a8] sm:$0xff]
  %v3396 = vld [vmem:[%s5 + $0x2b0] sm:$0xff]
  %v3397 = vld [vmem:[%s5 + $0x2b8] sm:$0xff]
  %v3398 = vld [vmem:[%s5 + $0x2c0] sm:$0xff]
  %v3399 = vld [vmem:[%s5 + $0x2c8] sm:$0xff]
  %v3400 = vld [vmem:[%s5 + $0x2d0] sm:$0xff]
  %v3401 = vld [vmem:[%s5 + $0x2d8] sm:$0xff]
  %v3402 = vld [vmem:[%s5 + $0x2e0] sm:$0xff]
  %v3403 = vld [vmem:[%s5 + $0x2e8] sm:$0xff]
  %v3404 = vld [vmem:[%s5 + $0x2f0] sm:$0xff]
  %v3405 = vld [vmem:[%s5 + $0x2f8] sm:$0xff]
  %v3406 = vld [vmem:[%s5 + $0x300] sm:$0xff]
  %v3407 = vld [vmem:[%s5 + $0x308] sm:$0xff]
  %v3408 = vld [vmem:[%s5 + $0x310] sm:$0xff]
  %v3409 = vld [vmem:[%s5 + $0x318] sm:$0xff]
  %v3410 = vld [vmem:[%s5 + $0x320] sm:$0xff]
  %v3411 = vld [vmem:[%s5 + $0x328] sm:$0xff]
  %v3412 = vld [vmem:[%s5 + $0x330] sm:$0xff]
  %v3413 = vld [vmem:[%s5 + $0x338] sm:$0xff]
  %v3414 = vld [vmem:[%s5 + $0x340] sm:$0xff]
  %v3415 = vld [vmem:[%s5 + $0x348] sm:$0xff]
  %v3416 = vld [vmem:[%s5 + $0x350] sm:$0xff]
  %v3417 = vld [vmem:[%s5 + $0x358] sm:$0xff]
  %v3418 = vld [vmem:[%s5 + $0x360] sm:$0xff]
  %v3419 = vld [vmem:[%s5 + $0x368] sm:$0xff]
  %v3420 = vld [vmem:[%s5 + $0x370] sm:$0xff]
  %v3421 = vld [vmem:[%s5 + $0x378] sm:$0xff]
  %v3422 = vld [vmem:[%s5 + $0x380] sm:$0xff]
  %v3423 = vld [vmem:[%s5 + $0x388] sm:$0xff]
  %v3424 = vld [vmem:[%s5 + $0x390] sm:$0xff]
  %v3425 = vld [vmem:[%s5 + $0x398] sm:$0xff]
  %v3426 = vld [vmem:[%s5 + $0x3a0] sm:$0xff]
  %v3427 = vld [vmem:[%s5 + $0x3a8] sm:$0xff]
  %v3428 = vld [vmem:[%s5 + $0x3b0] sm:$0xff]
  %v3429 = vld [vmem:[%s5 + $0x3b8] sm:$0xff]
  %v3430 = vld [vmem:[%s5 + $0x3c0] sm:$0xff]
  %v3431 = vld [vmem:[%s5 + $0x3c8] sm:$0xff]
  %v3432 = vld [vmem:[%s5 + $0x3d0] sm:$0xff]
  %v3433 = vld [vmem:[%s5 + $0x3d8] sm:$0xff]
  %v3434 = vld [vmem:[%s5 + $0x3e0] sm:$0xff]
  %v3435 = vld [vmem:[%s5 + $0x3e8] sm:$0xff]
  %v3436 = vld [vmem:[%s5 + $0x3f0] sm:$0xff]
  %v3437 = vld [vmem:[%s5 + $0x3f8] sm:$0xff]
  %v3438 = vld [vmem:[%s5 + $0x400] sm:$0xff]
  %v3439 = vld [vmem:[%s5 + $0x408] sm:$0xff]
  %v3440 = vld [vmem:[%s5 + $0x410] sm:$0xff]
  %v3441 = vld [vmem:[%s5 + $0x418] sm:$0xff]
  %v3442 = vld [vmem:[%s5 + $0x420] sm:$0xff]
  %v3443 = vld [vmem:[%s5 + $0x428] sm:$0xff]
  %v3444 = vld [vmem:[%s5 + $0x430] sm:$0xff]
  %v3445 = vld [vmem:[%s5 + $0x438] sm:$0xff]
  %v3446 = vld [vmem:[%s5 + $0x440] sm:$0xff]
  %v3447 = vld [vmem:[%s5 + $0x448] sm:$0xff]
  %v3448 = vld [vmem:[%s5 + $0x450] sm:$0xff]
  %v3449 = vld [vmem:[%s5 + $0x458] sm:$0xff]
  %v3450 = vld [vmem:[%s5 + $0x460] sm:$0xff]
  %v3451 = vld [vmem:[%s5 + $0x468] sm:$0xff]
  %v3452 = vld [vmem:[%s5 + $0x470] sm:$0xff]
  %v3453 = vld [vmem:[%s5 + $0x478] sm:$0xff]
  %v3454 = vld [vmem:[%s5 + $0x480] sm:$0xff]
  %v3455 = vld [vmem:[%s5 + $0x488] sm:$0xff]
  %v3456 = vld [vmem:[%s5 + $0x490] sm:$0xff]
  %v3457 = vld [vmem:[%s5 + $0x498] sm:$0xff]
  %v3458 = vld [vmem:[%s5 + $0x4a0] sm:$0xff]
  %v3459 = vld [vmem:[%s5 + $0x4a8] sm:$0xff]
  %v3460 = vld [vmem:[%s5 + $0x4b0] sm:$0xff]
  %v3461 = vld [vmem:[%s5 + $0x4b8] sm:$0xff]
  %v3462 = vld [vmem:[%s5 + $0x4c0] sm:$0xff]
  %v3463 = vld [vmem:[%s5 + $0x4c8] sm:$0xff]
  %v3464 = vld [vmem:[%s5 + $0x4d0] sm:$0xff]
  %v3465 = vld [vmem:[%s5 + $0x4d8] sm:$0xff]
  %v3466 = vld [vmem:[%s5 + $0x4e0] sm:$0xff]
  %v3467 = vld [vmem:[%s5 + $0x4e8] sm:$0xff]
  %v3468 = vld [vmem:[%s5 + $0x4f0] sm:$0xff]
  %v3469 = vld [vmem:[%s5 + $0x4f8] sm:$0xff]
  %v3470 = vld [vmem:[%s5 + $0x500] sm:$0xff]
  %v3471 = vld [vmem:[%s5 + $0x508] sm:$0xff]
  %v3472 = vld [vmem:[%s5 + $0x510] sm:$0xff]
  %v3473 = vld [vmem:[%s5 + $0x518] sm:$0xff]
  %v3474 = vld [vmem:[%s5 + $0x520] sm:$0xff]
  %v3475 = vld [vmem:[%s5 + $0x528] sm:$0xff]
  %v3476 = vld [vmem:[%s5 + $0x530] sm:$0xff]
  %v3477 = vld [vmem:[%s5 + $0x538] sm:$0xff]
  %v3478 = vld [vmem:[%s5 + $0x540] sm:$0xff]
  %v3479 = vld [vmem:[%s5 + $0x548] sm:$0xff]
  %v3480 = vld [vmem:[%s5 + $0x550] sm:$0xff]
  %v3481 = vld [vmem:[%s5 + $0x558] sm:$0xff]
  %v3482 = vld [vmem:[%s5 + $0x560] sm:$0xff]
  %v3483 = vld [vmem:[%s5 + $0x568] sm:$0xff]
  %v3484 = vld [vmem:[%s5 + $0x570] sm:$0xff]
  %v3485 = vld [vmem:[%s5 + $0x578] sm:$0xff]
  %v3486 = vld [vmem:[%s5 + $0x580] sm:$0xff]
  %v3487 = vld [vmem:[%s5 + $0x588] sm:$0xff]
  %v3488 = vld [vmem:[%s5 + $0x590] sm:$0xff]
  %v3489 = vld [vmem:[%s5 + $0x598] sm:$0xff]
  %v3490 = vld [vmem:[%s5 + $0x5a0] sm:$0xff]
  %v3491 = vld [vmem:[%s5 + $0x5a8] sm:$0xff]
  %v3492 = vld [vmem:[%s5 + $0x5b0] sm:$0xff]
  %v3493 = vld [vmem:[%s5 + $0x5b8] sm:$0xff]
  %v3494 = vld [vmem:[%s5 + $0x5c0] sm:$0xff]
  %v3495 = vld [vmem:[%s5 + $0x5c8] sm:$0xff]
  %v3496 = vld [vmem:[%s5 + $0x5d0] sm:$0xff]
  %v3497 = vld [vmem:[%s5 + $0x5d8] sm:$0xff]
  %v3498 = vld [vmem:[%s5 + $0x5e0] sm:$0xff]
  %v3499 = vld [vmem:[%s5 + $0x5e8] sm:$0xff]
  %v3500 = vld [vmem:[%s5 + $0x5f0] sm:$0xff]
  %v3501 = vld [vmem:[%s5 + $0x5f8] sm:$0xff]
  %v3502 = vld [vmem:[%s5 + $0x600] sm:$0xff]
  %v3503 = vld [vmem:[%s5 + $0x608] sm:$0xff]
  %v3504 = vld [vmem:[%s5 + $0x610] sm:$0xff]
  %v3505 = vld [vmem:[%s5 + $0x618] sm:$0xff]
  %v3506 = vld [vmem:[%s5 + $0x620] sm:$0xff]
  %v3507 = vld [vmem:[%s5 + $0x628] sm:$0xff]
  %v3508 = vld [vmem:[%s5 + $0x630] sm:$0xff]
  %v3509 = vld [vmem:[%s5 + $0x638] sm:$0xff]
  %v3510 = vld [vmem:[%s5 + $0x640] sm:$0xff]
  %v3511 = vld [vmem:[%s5 + $0x648] sm:$0xff]
  %v3512 = vld [vmem:[%s5 + $0x650] sm:$0xff]
  %v3513 = vld [vmem:[%s5 + $0x658] sm:$0xff]
  %v3514 = vld [vmem:[%s5 + $0x660] sm:$0xff]
  %v3515 = vld [vmem:[%s5 + $0x668] sm:$0xff]
  %v3516 = vld [vmem:[%s5 + $0x670] sm:$0xff]
  %v3517 = vld [vmem:[%s5 + $0x678] sm:$0xff]
  %v3518 = vld [vmem:[%s5 + $0x680] sm:$0xff]
  %v3519 = vld [vmem:[%s5 + $0x688] sm:$0xff]
  %v3520 = vld [vmem:[%s5 + $0x690] sm:$0xff]
  %v3521 = vld [vmem:[%s5 + $0x698] sm:$0xff]
  %v3522 = vld [vmem:[%s5 + $0x6a0] sm:$0xff]
  %v3523 = vld [vmem:[%s5 + $0x6a8] sm:$0xff]
  %v3524 = vld [vmem:[%s5 + $0x6b0] sm:$0xff]
  %v3525 = vld [vmem:[%s5 + $0x6b8] sm:$0xff]
  %v3526 = vld [vmem:[%s5 + $0x6c0] sm:$0xff]
  %v3527 = vld [vmem:[%s5 + $0x6c8] sm:$0xff]
  %v3528 = vld [vmem:[%s5 + $0x6d0] sm:$0xff]
  %v3529 = vld [vmem:[%s5 + $0x6d8] sm:$0xff]
  %v3530 = vld [vmem:[%s5 + $0x6e0] sm:$0xff]
  %v3531 = vld [vmem:[%s5 + $0x6e8] sm:$0xff]
  %v3532 = vld [vmem:[%s5 + $0x6f0] sm:$0xff]
  %v3533 = vld [vmem:[%s5 + $0x6f8] sm:$0xff]
  %v3534 = vld [vmem:[%s5 + $0x700] sm:$0xff]
  %v3535 = vld [vmem:[%s5 + $0x708] sm:$0xff]
  %v3536 = vld [vmem:[%s5 + $0x710] sm:$0xff]
  %v3537 = vld [vmem:[%s5 + $0x718] sm:$0xff]
  %v3538 = vld [vmem:[%s5 + $0x720] sm:$0xff]
  %v3539 = vld [vmem:[%s5 + $0x728] sm:$0xff]
  %v3540 = vld [vmem:[%s5 + $0x730] sm:$0xff]
  %v3541 = vld [vmem:[%s5 + $0x738] sm:$0xff]
  %v3542 = vld [vmem:[%s5 + $0x740] sm:$0xff]
  %v3543 = vld [vmem:[%s5 + $0x748] sm:$0xff]
  %v3544 = vld [vmem:[%s5 + $0x750] sm:$0xff]
  %v3545 = vld [vmem:[%s5 + $0x758] sm:$0xff]
  %v3546 = vld [vmem:[%s5 + $0x760] sm:$0xff]
  %v3547 = vld [vmem:[%s5 + $0x768] sm:$0xff]
  %v3548 = vld [vmem:[%s5 + $0x770] sm:$0xff]
  %v3549 = vld [vmem:[%s5 + $0x778] sm:$0xff]
  %v3550 = vld [vmem:[%s5 + $0x780] sm:$0xff]
  %v3551 = vld [vmem:[%s5 + $0x788] sm:$0xff]
  %v3552 = vld [vmem:[%s5 + $0x790] sm:$0xff]
  %v3553 = vld [vmem:[%s5 + $0x798] sm:$0xff]
  %v3554 = vld [vmem:[%s5 + $0x7a0] sm:$0xff]
  %v3555 = vld [vmem:[%s5 + $0x7a8] sm:$0xff]
  %v3556 = vld [vmem:[%s5 + $0x7b0] sm:$0xff]
  %v3557 = vld [vmem:[%s5 + $0x7b8] sm:$0xff]
  %v3558 = vld [vmem:[%s5 + $0x7c0] sm:$0xff]
  %v3559 = vld [vmem:[%s5 + $0x7c8] sm:$0xff]
  %v3560 = vld [vmem:[%s5 + $0x7d0] sm:$0xff]
  %v3561 = vld [vmem:[%s5 + $0x7d8] sm:$0xff]
  %v3562 = vld [vmem:[%s5 + $0x7e0] sm:$0xff]
  %v3563 = vld [vmem:[%s5 + $0x7e8] sm:$0xff]
  %v3564 = vld [vmem:[%s5 + $0x7f0] sm:$0xff]
  %v3565 = vld [vmem:[%s5 + $0x7f8] sm:$0xff]
  %v3566 = vld [vmem:[%s8] sm:$0xff]
  %v3567 = vld [vmem:[%s6] sm:$0xff]
  %v3568 = vld [vmem:[%s6 + $0x8] sm:$0xff]
  %v3569 = vld [vmem:[%s6 + $0x10] sm:$0xff]
  %v3570 = vld [vmem:[%s6 + $0x18] sm:$0xff]
  %v3571 = vld [vmem:[%s6 + $0x20] sm:$0xff]
  %v3572 = vld [vmem:[%s6 + $0x28] sm:$0xff]
  %v3573 = vld [vmem:[%s6 + $0x30] sm:$0xff]
  %v3574 = vld [vmem:[%s6 + $0x38] sm:$0xff]
  %v3575 = vld [vmem:[%s6 + $0x40] sm:$0xff]
  %v3576 = vld [vmem:[%s6 + $0x48] sm:$0xff]
  %v3577 = vld [vmem:[%s6 + $0x50] sm:$0xff]
  %v3578 = vld [vmem:[%s6 + $0x58] sm:$0xff]
  %v3579 = vld [vmem:[%s6 + $0x60] sm:$0xff]
  %v3580 = vld [vmem:[%s6 + $0x68] sm:$0xff]
  %v3581 = vld [vmem:[%s6 + $0x70] sm:$0xff]
  %v3582 = vld [vmem:[%s6 + $0x78] sm:$0xff]
  %v3583 = vld [vmem:[%s6 + $0x80] sm:$0xff]
  %v3584 = vld [vmem:[%s6 + $0x88] sm:$0xff]
  %v3585 = vld [vmem:[%s6 + $0x90] sm:$0xff]
  %v3586 = vld [vmem:[%s6 + $0x98] sm:$0xff]
  %v3587 = vld [vmem:[%s6 + $0xa0] sm:$0xff]
  %v3588 = vld [vmem:[%s6 + $0xa8] sm:$0xff]
  %v3589 = vld [vmem:[%s6 + $0xb0] sm:$0xff]
  %v3590 = vld [vmem:[%s6 + $0xb8] sm:$0xff]
  %v3591 = vld [vmem:[%s6 + $0xc0] sm:$0xff]
  %v3592 = vld [vmem:[%s6 + $0xc8] sm:$0xff]
  %v3593 = vld [vmem:[%s6 + $0xd0] sm:$0xff]
  %v3594 = vld [vmem:[%s6 + $0xd8] sm:$0xff]
  %v3595 = vld [vmem:[%s6 + $0xe0] sm:$0xff]
  %v3596 = vld [vmem:[%s6 + $0xe8] sm:$0xff]
  %v3597 = vld [vmem:[%s6 + $0xf0] sm:$0xff]
  %v3598 = vld [vmem:[%s6 + $0xf8] sm:$0xff]
  %v3599 = vld [vmem:[%s6 + $0x100] sm:$0xff]
  %v3600 = vld [vmem:[%s6 + $0x108] sm:$0xff]
  %v3601 = vld [vmem:[%s6 + $0x110] sm:$0xff]
  %v3602 = vld [vmem:[%s6 + $0x118] sm:$0xff]
  %v3603 = vld [vmem:[%s6 + $0x120] sm:$0xff]
  %v3604 = vld [vmem:[%s6 + $0x128] sm:$0xff]
  %v3605 = vld [vmem:[%s6 + $0x130] sm:$0xff]
  %v3606 = vld [vmem:[%s6 + $0x138] sm:$0xff]
  %v3607 = vld [vmem:[%s6 + $0x140] sm:$0xff]
  %v3608 = vld [vmem:[%s6 + $0x148] sm:$0xff]
  %v3609 = vld [vmem:[%s6 + $0x150] sm:$0xff]
  %v3610 = vld [vmem:[%s6 + $0x158] sm:$0xff]
  %v3611 = vld [vmem:[%s6 + $0x160] sm:$0xff]
  %v3612 = vld [vmem:[%s6 + $0x168] sm:$0xff]
  %v3613 = vld [vmem:[%s6 + $0x170] sm:$0xff]
  %v3614 = vld [vmem:[%s6 + $0x178] sm:$0xff]
  %v3615 = vld [vmem:[%s6 + $0x180] sm:$0xff]
  %v3616 = vld [vmem:[%s6 + $0x188] sm:$0xff]
  %v3617 = vld [vmem:[%s6 + $0x190] sm:$0xff]
  %v3618 = vld [vmem:[%s6 + $0x198] sm:$0xff]
  %v3619 = vld [vmem:[%s6 + $0x1a0] sm:$0xff]
  %v3620 = vld [vmem:[%s6 + $0x1a8] sm:$0xff]
  %v3621 = vld [vmem:[%s6 + $0x1b0] sm:$0xff]
  %v3622 = vld [vmem:[%s6 + $0x1b8] sm:$0xff]
  %v3623 = vld [vmem:[%s6 + $0x1c0] sm:$0xff]
  %v3624 = vld [vmem:[%s6 + $0x1c8] sm:$0xff]
  %v3625 = vld [vmem:[%s6 + $0x1d0] sm:$0xff]
  %v3626 = vld [vmem:[%s6 + $0x1d8] sm:$0xff]
  %v3627 = vld [vmem:[%s6 + $0x1e0] sm:$0xff]
  %v3628 = vld [vmem:[%s6 + $0x1e8] sm:$0xff]
  %v3629 = vld [vmem:[%s6 + $0x1f0] sm:$0xff]
  %v3630 = vld [vmem:[%s6 + $0x1f8] sm:$0xff]
  %v3631 = vld [vmem:[%s7] sm:$0xff]
  %v3632 = vld [vmem:[%s7 + $0x8] sm:$0xff]
  %v3633 = vld [vmem:[%s7 + $0x10] sm:$0xff]
  %v3634 = vld [vmem:[%s7 + $0x18] sm:$0xff]
  %v3635 = vld [vmem:[%s7 + $0x20] sm:$0xff]
  %v3636 = vld [vmem:[%s7 + $0x28] sm:$0xff]
  %v3637 = vld [vmem:[%s7 + $0x30] sm:$0xff]
  %v3638 = vld [vmem:[%s7 + $0x38] sm:$0xff]
  %v3639 = vld [vmem:[%s7 + $0x40] sm:$0xff]
  %v3640 = vld [vmem:[%s7 + $0x48] sm:$0xff]
  %v3641 = vld [vmem:[%s7 + $0x50] sm:$0xff]
  %v3642 = vld [vmem:[%s7 + $0x58] sm:$0xff]
  %v3643 = vld [vmem:[%s7 + $0x60] sm:$0xff]
  %v3644 = vld [vmem:[%s7 + $0x68] sm:$0xff]
  %v3645 = vld [vmem:[%s7 + $0x70] sm:$0xff]
  %v3646 = vld [vmem:[%s7 + $0x78] sm:$0xff]
  %v3647 = vld [vmem:[%s7 + $0x80] sm:$0xff]
  %v3648 = vld [vmem:[%s7 + $0x88] sm:$0xff]
  %v3649 = vld [vmem:[%s7 + $0x90] sm:$0xff]
  %v3650 = vld [vmem:[%s7 + $0x98] sm:$0xff]
  %v3651 = vld [vmem:[%s7 + $0xa0] sm:$0xff]
  %v3652 = vld [vmem:[%s7 + $0xa8] sm:$0xff]
  %v3653 = vld [vmem:[%s7 + $0xb0] sm:$0xff]
  %v3654 = vld [vmem:[%s7 + $0xb8] sm:$0xff]
  %v3655 = vld [vmem:[%s7 + $0xc0] sm:$0xff]
  %v3656 = vld [vmem:[%s7 + $0xc8] sm:$0xff]
  %v3657 = vld [vmem:[%s7 + $0xd0] sm:$0xff]
  %v3658 = vld [vmem:[%s7 + $0xd8] sm:$0xff]
  %v3659 = vld [vmem:[%s7 + $0xe0] sm:$0xff]
  %v3660 = vld [vmem:[%s7 + $0xe8] sm:$0xff]
  %v3661 = vld [vmem:[%s7 + $0xf0] sm:$0xff]
  %v3662 = vld [vmem:[%s7 + $0xf8] sm:$0xff]
  %v3663 = vld [vmem:[%s7 + $0x100] sm:$0xff]
  %v3664 = vld [vmem:[%s7 + $0x108] sm:$0xff]
  %v3665 = vld [vmem:[%s7 + $0x110] sm:$0xff]
  %v3666 = vld [vmem:[%s7 + $0x118] sm:$0xff]
  %v3667 = vld [vmem:[%s7 + $0x120] sm:$0xff]
  %v3668 = vld [vmem:[%s7 + $0x128] sm:$0xff]
  %v3669 = vld [vmem:[%s7 + $0x130] sm:$0xff]
  %v3670 = vld [vmem:[%s7 + $0x138] sm:$0xff]
  %v3671 = vld [vmem:[%s7 + $0x140] sm:$0xff]
  %v3672 = vld [vmem:[%s7 + $0x148] sm:$0xff]
  %v3673 = vld [vmem:[%s7 + $0x150] sm:$0xff]
  %v3674 = vld [vmem:[%s7 + $0x158] sm:$0xff]
  %v3675 = vld [vmem:[%s7 + $0x160] sm:$0xff]
  %v3676 = vld [vmem:[%s7 + $0x168] sm:$0xff]
  %v3677 = vld [vmem:[%s7 + $0x170] sm:$0xff]
  %v3678 = vld [vmem:[%s7 + $0x178] sm:$0xff]
  %v3679 = vld [vmem:[%s7 + $0x180] sm:$0xff]
  %v3680 = vld [vmem:[%s7 + $0x188] sm:$0xff]
  %v3681 = vld [vmem:[%s7 + $0x190] sm:$0xff]
  %v3682 = vld [vmem:[%s7 + $0x198] sm:$0xff]
  %v3683 = vld [vmem:[%s7 + $0x1a0] sm:$0xff]
  %v3684 = vld [vmem:[%s7 + $0x1a8] sm:$0xff]
  %v3685 = vld [vmem:[%s7 + $0x1b0] sm:$0xff]
  %v3686 = vld [vmem:[%s7 + $0x1b8] sm:$0xff]
  %v3687 = vld [vmem:[%s7 + $0x1c0] sm:$0xff]
  %v3688 = vld [vmem:[%s7 + $0x1c8] sm:$0xff]
  %v3689 = vld [vmem:[%s7 + $0x1d0] sm:$0xff]
  %v3690 = vld [vmem:[%s7 + $0x1d8] sm:$0xff]
  %v3691 = vld [vmem:[%s7 + $0x1e0] sm:$0xff]
  %v3692 = vld [vmem:[%s7 + $0x1e8] sm:$0xff]
  %v3693 = vld [vmem:[%s7 + $0x1f0] sm:$0xff]
  %v3694 = vld [vmem:[%s7 + $0x1f8] sm:$0xff]
  %v3696 = vperm.slane %v3566, 0
  %v3697 = vperm.slane %v3566, 1
  %v3698 = vperm.slane %v3566, 2
  %v3699 = vperm.slane %v3566, 3
  %v3700 = vperm.slane %v3566, 4
  %v3701 = vperm.slane %v3566, 5
  %v3702 = vperm.slane %v3566, 6
  %v3703 = vperm.slane %v3566, 7
  %3712 = vst [vmem:[#allocation1] ss:$4 sm:$0xff] %v3302
  %s3713 = scalar_lea.vmem [#allocation1], 1
  %3714 = vst [vmem:[%s3713] ss:$4 sm:$0xff] %v3303
  %s3715 = scalar_lea.vmem [#allocation1], 2
  %3716 = vst [vmem:[%s3715] ss:$4 sm:$0xff] %v3304
  %s3717 = scalar_lea.vmem [#allocation1], 3
  %3718 = vst [vmem:[%s3717] ss:$4 sm:$0xff] %v3305
  %s3719 = scalar_lea.vmem [#allocation1], 32
  %3720 = vst [vmem:[%s3719] ss:$4 sm:$0xff] %v3306
  %s3721 = scalar_lea.vmem [#allocation1], 33
  %3722 = vst [vmem:[%s3721] ss:$4 sm:$0xff] %v3307
  %s3723 = scalar_lea.vmem [#allocation1], 34
  %3724 = vst [vmem:[%s3723] ss:$4 sm:$0xff] %v3308
  %s3725 = scalar_lea.vmem [#allocation1], 35
  %3726 = vst [vmem:[%s3725] ss:$4 sm:$0xff] %v3309
  %v3727 = vld.sshfl [vmem:[#allocation1] sm:$0xff pattern:$0x73625140]
  %v3728 = vld.sshfl [vmem:[#allocation1 + $0x8] sm:$0xff pattern:$0x73625140]
  %v3729 = vld.sshfl [vmem:[#allocation1 + $0x20] sm:$0xff pattern:$0x73625140]
  %v3730 = vld.sshfl [vmem:[#allocation1 + $0x28] sm:$0xff pattern:$0x73625140]
  %3735 = vmatpush.msra.mxu0 %v3430
  %3736 = vmatpush.msra.mxu0 %v3422
  %3737 = vmatpush.msra.mxu0 %v3414
  %3738 = vmatpush.msra.mxu0 %v3406
  %3739 = vmatpush.msra.mxu0 %v3398
  %3740 = vmatpush.msra.mxu0 %v3390
  %3741 = vmatpush.msra.mxu0 %v3382
  %3742 = vmatpush.msra.mxu0 %v3374
  %3743 = vmatpush.msra.mxu0 %v3366
  %3744 = vmatpush.msra.mxu0 %v3358
  %3745 = vmatpush.msra.mxu0 %v3350
  %3746 = vmatpush.msra.mxu0 %v3342
  %3747 = vmatpush.msra.mxu0 %v3334
  %3748 = vmatpush.msra.mxu0 %v3326
  %3749 = vmatpush.msra.mxu0 %v3318
  %3750 = vmatpush.msra.mxu0 %v3310
  %3751 = vmatmul.f32.gmra.mxu0 %v3727
  %v3752 = vpop.f32.mrf.mxu0
  %v3753 = vadd.f32 %v3696, %v3752
  %3754 = vmatmul.f32.gmra.mxu0 %v3729
  %v3755 = vpop.f32.mrf.mxu0
  %v3756 = vadd.f32 %v3696, %v3755
  %3757 = vdwg.mxu0
  %3758 = vmatpush.msra.mxu0 %v3558
  %3759 = vmatpush.msra.mxu0 %v3550
  %3760 = vmatpush.msra.mxu0 %v3542
  %3761 = vmatpush.msra.mxu0 %v3534
  %3762 = vmatpush.msra.mxu0 %v3526
  %3763 = vmatpush.msra.mxu0 %v3518
  %3764 = vmatpush.msra.mxu0 %v3510
  %3765 = vmatpush.msra.mxu0 %v3502
  %3766 = vmatpush.msra.mxu0 %v3494
  %3767 = vmatpush.msra.mxu0 %v3486
  %3768 = vmatpush.msra.mxu0 %v3478
  %3769 = vmatpush.msra.mxu0 %v3470
  %3770 = vmatpush.msra.mxu0 %v3462
  %3771 = vmatpush.msra.mxu0 %v3454
  %3772 = vmatpush.msra.mxu0 %v3446
  %3773 = vmatpush.msra.mxu0 %v3438
  %3774 = vmatmul.f32.gmra.mxu0 %v3728
  %v3775 = vpop.f32.mrf.mxu0
  %v3776 = vadd.f32 %v3753, %v3775
  %3777 = vmatmul.f32.gmra.mxu0 %v3730
  %v3778 = vpop.f32.mrf.mxu0
  %v3779 = vadd.f32 %v3756, %v3778
  %3780 = vdwg.mxu0
  %3781 = vmatpush.msra.mxu0 %v3431
  %3782 = vmatpush.msra.mxu0 %v3423
  %3783 = vmatpush.msra.mxu0 %v3415
  %3784 = vmatpush.msra.mxu0 %v3407
  %3785 = vmatpush.msra.mxu0 %v3399
  %3786 = vmatpush.msra.mxu0 %v3391
  %3787 = vmatpush.msra.mxu0 %v3383
  %3788 = vmatpush.msra.mxu0 %v3375
  %3789 = vmatpush.msra.mxu0 %v3367
  %3790 = vmatpush.msra.mxu0 %v3359
  %3791 = vmatpush.msra.mxu0 %v3351
  %3792 = vmatpush.msra.mxu0 %v3343
  %3793 = vmatpush.msra.mxu0 %v3335
  %3794 = vmatpush.msra.mxu0 %v3327
  %3795 = vmatpush.msra.mxu0 %v3319
  %3796 = vmatpush.msra.mxu0 %v3311
  %3797 = vmatmul.f32.gmra.mxu0 %v3727
  %v3798 = vpop.f32.mrf.mxu0
  %v3799 = vadd.f32 %v3697, %v3798
  %3800 = vmatmul.f32.gmra.mxu0 %v3729
  %v3801 = vpop.f32.mrf.mxu0
  %v3802 = vadd.f32 %v3697, %v3801
  %3803 = vdwg.mxu0
  %3804 = vmatpush.msra.mxu0 %v3559
  %3805 = vmatpush.msra.mxu0 %v3551
  %3806 = vmatpush.msra.mxu0 %v3543
  %3807 = vmatpush.msra.mxu0 %v3535
  %3808 = vmatpush.msra.mxu0 %v3527
  %3809 = vmatpush.msra.mxu0 %v3519
  %3810 = vmatpush.msra.mxu0 %v3511
  %3811 = vmatpush.msra.mxu0 %v3503
  %3812 = vmatpush.msra.mxu0 %v3495
  %3813 = vmatpush.msra.mxu0 %v3487
  %3814 = vmatpush.msra.mxu0 %v3479
  %3815 = vmatpush.msra.mxu0 %v3471
  %3816 = vmatpush.msra.mxu0 %v3463
  %3817 = vmatpush.msra.mxu0 %v3455
  %3818 = vmatpush.msra.mxu0 %v3447
  %3819 = vmatpush.msra.mxu0 %v3439
  %3820 = vmatmul.f32.gmra.mxu0 %v3728
  %v3821 = vpop.f32.mrf.mxu0
  %v3822 = vadd.f32 %v3799, %v3821
  %3823 = vmatmul.f32.gmra.mxu0 %v3730
  %v3824 = vpop.f32.mrf.mxu0
  %v3825 = vadd.f32 %v3802, %v3824
  %3826 = vdwg.mxu0
  %3827 = vmatpush.msra.mxu0 %v3432
  %3828 = vmatpush.msra.mxu0 %v3424
  %3829 = vmatpush.msra.mxu0 %v3416
  %3830 = vmatpush.msra.mxu0 %v3408
  %3831 = vmatpush.msra.mxu0 %v3400
  %3832 = vmatpush.msra.mxu0 %v3392
  %3833 = vmatpush.msra.mxu0 %v3384
  %3834 = vmatpush.msra.mxu0 %v3376
  %3835 = vmatpush.msra.mxu0 %v3368
  %3836 = vmatpush.msra.mxu0 %v3360
  %3837 = vmatpush.msra.mxu0 %v3352
  %3838 = vmatpush.msra.mxu0 %v3344
  %3839 = vmatpush.msra.mxu0 %v3336
  %3840 = vmatpush.msra.mxu0 %v3328
  %3841 = vmatpush.msra.mxu0 %v3320
  %3842 = vmatpush.msra.mxu0 %v3312
  %3843 = vmatmul.f32.gmra.mxu0 %v3727
  %v3844 = vpop.f32.mrf.mxu0
  %v3845 = vadd.f32 %v3698, %v3844
  %3846 = vmatmul.f32.gmra.mxu0 %v3729
  %v3847 = vpop.f32.mrf.mxu0
  %v3848 = vadd.f32 %v3698, %v3847
  %3849 = vdwg.mxu0
  %3850 = vmatpush.msra.mxu0 %v3560
  %3851 = vmatpush.msra.mxu0 %v3552
  %3852 = vmatpush.msra.mxu0 %v3544
  %3853 = vmatpush.msra.mxu0 %v3536
  %3854 = vmatpush.msra.mxu0 %v3528
  %3855 = vmatpush.msra.mxu0 %v3520
  %3856 = vmatpush.msra.mxu0 %v3512
  %3857 = vmatpush.msra.mxu0 %v3504
  %3858 = vmatpush.msra.mxu0 %v3496
  %3859 = vmatpush.msra.mxu0 %v3488
  %3860 = vmatpush.msra.mxu0 %v3480
  %3861 = vmatpush.msra.mxu0 %v3472
  %3862 = vmatpush.msra.mxu0 %v3464
  %3863 = vmatpush.msra.mxu0 %v3456
  %3864 = vmatpush.msra.mxu0 %v3448
  %3865 = vmatpush.msra.mxu0 %v3440
  %3866 = vmatmul.f32.gmra.mxu0 %v3728
  %v3867 = vpop.f32.mrf.mxu0
  %v3868 = vadd.f32 %v3845, %v3867
  %3869 = vmatmul.f32.gmra.mxu0 %v3730
  %v3870 = vpop.f32.mrf.mxu0
  %v3871 = vadd.f32 %v3848, %v3870
  %3872 = vdwg.mxu0
  %3873 = vmatpush.msra.mxu0 %v3433
  %3874 = vmatpush.msra.mxu0 %v3425
  %3875 = vmatpush.msra.mxu0 %v3417
  %3876 = vmatpush.msra.mxu0 %v3409
  %3877 = vmatpush.msra.mxu0 %v3401
  %3878 = vmatpush.msra.mxu0 %v3393
  %3879 = vmatpush.msra.mxu0 %v3385
  %3880 = vmatpush.msra.mxu0 %v3377
  %3881 = vmatpush.msra.mxu0 %v3369
  %3882 = vmatpush.msra.mxu0 %v3361
  %3883 = vmatpush.msra.mxu0 %v3353
  %3884 = vmatpush.msra.mxu0 %v3345
  %3885 = vmatpush.msra.mxu0 %v3337
  %3886 = vmatpush.msra.mxu0 %v3329
  %3887 = vmatpush.msra.mxu0 %v3321
  %3888 = vmatpush.msra.mxu0 %v3313
  %3889 = vmatmul.f32.gmra.mxu0 %v3727
  %v3890 = vpop.f32.mrf.mxu0
  %v3891 = vadd.f32 %v3699, %v3890
  %3892 = vmatmul.f32.gmra.mxu0 %v3729
  %v3893 = vpop.f32.mrf.mxu0
  %v3894 = vadd.f32 %v3699, %v3893
  %3895 = vdwg.mxu0
  %3896 = vmatpush.msra.mxu0 %v3561
  %3897 = vmatpush.msra.mxu0 %v3553
  %3898 = vmatpush.msra.mxu0 %v3545
  %3899 = vmatpush.msra.mxu0 %v3537
  %3900 = vmatpush.msra.mxu0 %v3529
  %3901 = vmatpush.msra.mxu0 %v3521
  %3902 = vmatpush.msra.mxu0 %v3513
  %3903 = vmatpush.msra.mxu0 %v3505
  %3904 = vmatpush.msra.mxu0 %v3497
  %3905 = vmatpush.msra.mxu0 %v3489
  %3906 = vmatpush.msra.mxu0 %v3481
  %3907 = vmatpush.msra.mxu0 %v3473
  %3908 = vmatpush.msra.mxu0 %v3465
  %3909 = vmatpush.msra.mxu0 %v3457
  %3910 = vmatpush.msra.mxu0 %v3449
  %3911 = vmatpush.msra.mxu0 %v3441
  %3912 = vmatmul.f32.gmra.mxu0 %v3728
  %v3913 = vpop.f32.mrf.mxu0
  %v3914 = vadd.f32 %v3891, %v3913
  %3915 = vmatmul.f32.gmra.mxu0 %v3730
  %v3916 = vpop.f32.mrf.mxu0
  %v3917 = vadd.f32 %v3894, %v3916
  %3918 = vdwg.mxu0
  %3919 = vmatpush.msra.mxu0 %v3434
  %3920 = vmatpush.msra.mxu0 %v3426
  %3921 = vmatpush.msra.mxu0 %v3418
  %3922 = vmatpush.msra.mxu0 %v3410
  %3923 = vmatpush.msra.mxu0 %v3402
  %3924 = vmatpush.msra.mxu0 %v3394
  %3925 = vmatpush.msra.mxu0 %v3386
  %3926 = vmatpush.msra.mxu0 %v3378
  %3927 = vmatpush.msra.mxu0 %v3370
  %3928 = vmatpush.msra.mxu0 %v3362
  %3929 = vmatpush.msra.mxu0 %v3354
  %3930 = vmatpush.msra.mxu0 %v3346
  %3931 = vmatpush.msra.mxu0 %v3338
  %3932 = vmatpush.msra.mxu0 %v3330
  %3933 = vmatpush.msra.mxu0 %v3322
  %3934 = vmatpush.msra.mxu0 %v3314
  %3935 = vmatmul.f32.gmra.mxu0 %v3727
  %v3936 = vpop.f32.mrf.mxu0
  %v3937 = vadd.f32 %v3700, %v3936
  %3938 = vmatmul.f32.gmra.mxu0 %v3729
  %v3939 = vpop.f32.mrf.mxu0
  %v3940 = vadd.f32 %v3700, %v3939
  %3941 = vdwg.mxu0
  %3942 = vmatpush.msra.mxu0 %v3562
  %3943 = vmatpush.msra.mxu0 %v3554
  %3944 = vmatpush.msra.mxu0 %v3546
  %3945 = vmatpush.msra.mxu0 %v3538
  %3946 = vmatpush.msra.mxu0 %v3530
  %3947 = vmatpush.msra.mxu0 %v3522
  %3948 = vmatpush.msra.mxu0 %v3514
  %3949 = vmatpush.msra.mxu0 %v3506
  %3950 = vmatpush.msra.mxu0 %v3498
  %3951 = vmatpush.msra.mxu0 %v3490
  %3952 = vmatpush.msra.mxu0 %v3482
  %3953 = vmatpush.msra.mxu0 %v3474
  %3954 = vmatpush.msra.mxu0 %v3466
  %3955 = vmatpush.msra.mxu0 %v3458
  %3956 = vmatpush.msra.mxu0 %v3450
  %3957 = vmatpush.msra.mxu0 %v3442
  %3958 = vmatmul.f32.gmra.mxu0 %v3728
  %v3959 = vpop.f32.mrf.mxu0
  %v3960 = vadd.f32 %v3937, %v3959
  %3961 = vmatmul.f32.gmra.mxu0 %v3730
  %v3962 = vpop.f32.mrf.mxu0
  %v3963 = vadd.f32 %v3940, %v3962
  %3964 = vdwg.mxu0
  %3965 = vmatpush.msra.mxu0 %v3435
  %3966 = vmatpush.msra.mxu0 %v3427
  %3967 = vmatpush.msra.mxu0 %v3419
  %3968 = vmatpush.msra.mxu0 %v3411
  %3969 = vmatpush.msra.mxu0 %v3403
  %3970 = vmatpush.msra.mxu0 %v3395
  %3971 = vmatpush.msra.mxu0 %v3387
  %3972 = vmatpush.msra.mxu0 %v3379
  %3973 = vmatpush.msra.mxu0 %v3371
  %3974 = vmatpush.msra.mxu0 %v3363
  %3975 = vmatpush.msra.mxu0 %v3355
  %3976 = vmatpush.msra.mxu0 %v3347
  %3977 = vmatpush.msra.mxu0 %v3339
  %3978 = vmatpush.msra.mxu0 %v3331
  %3979 = vmatpush.msra.mxu0 %v3323
  %3980 = vmatpush.msra.mxu0 %v3315
  %3981 = vmatmul.f32.gmra.mxu0 %v3727
  %v3982 = vpop.f32.mrf.mxu0
  %v3983 = vadd.f32 %v3701, %v3982
  %3984 = vmatmul.f32.gmra.mxu0 %v3729
  %v3985 = vpop.f32.mrf.mxu0
  %v3986 = vadd.f32 %v3701, %v3985
  %3987 = vdwg.mxu0
  %3988 = vmatpush.msra.mxu0 %v3563
  %3989 = vmatpush.msra.mxu0 %v3555
  %3990 = vmatpush.msra.mxu0 %v3547
  %3991 = vmatpush.msra.mxu0 %v3539
  %3992 = vmatpush.msra.mxu0 %v3531
  %3993 = vmatpush.msra.mxu0 %v3523
  %3994 = vmatpush.msra.mxu0 %v3515
  %3995 = vmatpush.msra.mxu0 %v3507
  %3996 = vmatpush.msra.mxu0 %v3499
  %3997 = vmatpush.msra.mxu0 %v3491
  %3998 = vmatpush.msra.mxu0 %v3483
  %3999 = vmatpush.msra.mxu0 %v3475
  %4000 = vmatpush.msra.mxu0 %v3467
  %4001 = vmatpush.msra.mxu0 %v3459
  %4002 = vmatpush.msra.mxu0 %v3451
  %4003 = vmatpush.msra.mxu0 %v3443
  %4004 = vmatmul.f32.gmra.mxu0 %v3728
  %v4005 = vpop.f32.mrf.mxu0
  %v4006 = vadd.f32 %v3983, %v4005
  %4007 = vmatmul.f32.gmra.mxu0 %v3730
  %v4008 = vpop.f32.mrf.mxu0
  %v4009 = vadd.f32 %v3986, %v4008
  %4010 = vdwg.mxu0
  %4011 = vmatpush.msra.mxu0 %v3436
  %4012 = vmatpush.msra.mxu0 %v3428
  %4013 = vmatpush.msra.mxu0 %v3420
  %4014 = vmatpush.msra.mxu0 %v3412
  %4015 = vmatpush.msra.mxu0 %v3404
  %4016 = vmatpush.msra.mxu0 %v3396
  %4017 = vmatpush.msra.mxu0 %v3388
  %4018 = vmatpush.msra.mxu0 %v3380
  %4019 = vmatpush.msra.mxu0 %v3372
  %4020 = vmatpush.msra.mxu0 %v3364
  %4021 = vmatpush.msra.mxu0 %v3356
  %4022 = vmatpush.msra.mxu0 %v3348
  %4023 = vmatpush.msra.mxu0 %v3340
  %4024 = vmatpush.msra.mxu0 %v3332
  %4025 = vmatpush.msra.mxu0 %v3324
  %4026 = vmatpush.msra.mxu0 %v3316
  %4027 = vmatmul.f32.gmra.mxu0 %v3727
  %v4028 = vpop.f32.mrf.mxu0
  %v4029 = vadd.f32 %v3702, %v4028
  %4030 = vmatmul.f32.gmra.mxu0 %v3729
  %v4031 = vpop.f32.mrf.mxu0
  %v4032 = vadd.f32 %v3702, %v4031
  %4033 = vdwg.mxu0
  %4034 = vmatpush.msra.mxu0 %v3564
  %4035 = vmatpush.msra.mxu0 %v3556
  %4036 = vmatpush.msra.mxu0 %v3548
  %4037 = vmatpush.msra.mxu0 %v3540
  %4038 = vmatpush.msra.mxu0 %v3532
  %4039 = vmatpush.msra.mxu0 %v3524
  %4040 = vmatpush.msra.mxu0 %v3516
  %4041 = vmatpush.msra.mxu0 %v3508
  %4042 = vmatpush.msra.mxu0 %v3500
  %4043 = vmatpush.msra.mxu0 %v3492
  %4044 = vmatpush.msra.mxu0 %v3484
  %4045 = vmatpush.msra.mxu0 %v3476
  %4046 = vmatpush.msra.mxu0 %v3468
  %4047 = vmatpush.msra.mxu0 %v3460
  %4048 = vmatpush.msra.mxu0 %v3452
  %4049 = vmatpush.msra.mxu0 %v3444
  %4050 = vmatmul.f32.gmra.mxu0 %v3728
  %v4051 = vpop.f32.mrf.mxu0
  %v4052 = vadd.f32 %v4029, %v4051
  %4053 = vmatmul.f32.gmra.mxu0 %v3730
  %v4054 = vpop.f32.mrf.mxu0
  %v4055 = vadd.f32 %v4032, %v4054
  %4056 = vdwg.mxu0
  %4057 = vmatpush.msra.mxu0 %v3437
  %4058 = vmatpush.msra.mxu0 %v3429
  %4059 = vmatpush.msra.mxu0 %v3421
  %4060 = vmatpush.msra.mxu0 %v3413
  %4061 = vmatpush.msra.mxu0 %v3405
  %4062 = vmatpush.msra.mxu0 %v3397
  %4063 = vmatpush.msra.mxu0 %v3389
  %4064 = vmatpush.msra.mxu0 %v3381
  %4065 = vmatpush.msra.mxu0 %v3373
  %4066 = vmatpush.msra.mxu0 %v3365
  %4067 = vmatpush.msra.mxu0 %v3357
  %4068 = vmatpush.msra.mxu0 %v3349
  %4069 = vmatpush.msra.mxu0 %v3341
  %4070 = vmatpush.msra.mxu0 %v3333
  %4071 = vmatpush.msra.mxu0 %v3325
  %4072 = vmatpush.msra.mxu0 %v3317
  %4073 = vmatmul.f32.gmra.mxu0 %v3727
  %v4074 = vpop.f32.mrf.mxu0
  %v4075 = vadd.f32 %v3703, %v4074
  %4076 = vmatmul.f32.gmra.mxu0 %v3729
  %v4077 = vpop.f32.mrf.mxu0
  %v4078 = vadd.f32 %v3703, %v4077
  %4079 = vdwg.mxu0
  %4080 = vmatpush.msra.mxu0 %v3565
  %4081 = vmatpush.msra.mxu0 %v3557
  %4082 = vmatpush.msra.mxu0 %v3549
  %4083 = vmatpush.msra.mxu0 %v3541
  %4084 = vmatpush.msra.mxu0 %v3533
  %4085 = vmatpush.msra.mxu0 %v3525
  %4086 = vmatpush.msra.mxu0 %v3517
  %4087 = vmatpush.msra.mxu0 %v3509
  %4088 = vmatpush.msra.mxu0 %v3501
  %4089 = vmatpush.msra.mxu0 %v3493
  %4090 = vmatpush.msra.mxu0 %v3485
  %4091 = vmatpush.msra.mxu0 %v3477
  %4092 = vmatpush.msra.mxu0 %v3469
  %4093 = vmatpush.msra.mxu0 %v3461
  %4094 = vmatpush.msra.mxu0 %v3453
  %4095 = vmatpush.msra.mxu0 %v3445
  %4096 = vmatmul.f32.gmra.mxu0 %v3728
  %v4097 = vpop.f32.mrf.mxu0
  %v4098 = vadd.f32 %v4075, %v4097
  %4099 = vmatmul.f32.gmra.mxu0 %v3730
  %v4100 = vpop.f32.mrf.mxu0
  %v4101 = vadd.f32 %v4078, %v4100
  %4102 = vdwg.mxu0
  %v4111 = vrot.slane %v3822, 6
  %v4112 = vrot.slane %v3868, 4
  %v4113 = vrot.slane %v3914, 2
  %v4114 = vrot.slane %v3825, 6
  %v4115 = vrot.slane %v3871, 4
  %v4116 = vrot.slane %v3917, 2
  %v4117 = vsel %vm430, %v3776, %v4111
  %v4118 = vsel %vm432, %v4112, %v4113
  %v4119 = vsel %vm434, %v4117, %v4118
  %v4120 = vsel %vm436, %v3776, %v4111
  %v4121 = vsel %vm438, %v4113, %v4112
  %v4122 = vsel %vm440, %v4120, %v4121
  %v4123 = vrot.slane %v4122, 2
  %v4124 = vsel %vm432, %v3776, %v4111
  %v4125 = vsel %vm430, %v4112, %v4113
  %v4126 = vsel %vm434, %v4125, %v4124
  %v4127 = vrot.slane %v4126, 4
  %v4128 = vsel %vm438, %v4111, %v3776
  %v4129 = vsel %vm436, %v4112, %v4113
  %v4130 = vsel %vm440, %v4129, %v4128
  %v4131 = vrot.slane %v4130, 6
  %v4132 = vsel %vm430, %v3779, %v4114
  %v4133 = vsel %vm432, %v4115, %v4116
  %v4134 = vsel %vm434, %v4132, %v4133
  %v4135 = vsel %vm436, %v3779, %v4114
  %v4136 = vsel %vm438, %v4116, %v4115
  %v4137 = vsel %vm440, %v4135, %v4136
  %v4138 = vrot.slane %v4137, 2
  %v4139 = vsel %vm432, %v3779, %v4114
  %v4140 = vsel %vm430, %v4115, %v4116
  %v4141 = vsel %vm434, %v4140, %v4139
  %v4142 = vrot.slane %v4141, 4
  %v4143 = vsel %vm438, %v4114, %v3779
  %v4144 = vsel %vm436, %v4115, %v4116
  %v4145 = vsel %vm440, %v4144, %v4143
  %v4146 = vrot.slane %v4145, 6
  %4155 = vst [vmem:[#allocation2] sm:$0xff] %v4119
  %4156 = vst [vmem:[#allocation2 + $0x8] sm:$0xff] %v4123
  %4157 = vst [vmem:[#allocation2 + $0x10] sm:$0xff] %v4127
  %4158 = vst [vmem:[#allocation2 + $0x18] sm:$0xff] %v4131
  %4159 = vst [vmem:[#allocation2 + $0x20] sm:$0xff] %v4134
  %4160 = vst [vmem:[#allocation2 + $0x28] sm:$0xff] %v4138
  %4161 = vst [vmem:[#allocation2 + $0x30] sm:$0xff] %v4142
  %4162 = vst [vmem:[#allocation2 + $0x38] sm:$0xff] %v4146
  %v4171 = vrot.slane %v4006, 6
  %v4172 = vrot.slane %v4052, 4
  %v4173 = vrot.slane %v4098, 2
  %v4174 = vrot.slane %v4009, 6
  %v4175 = vrot.slane %v4055, 4
  %v4176 = vrot.slane %v4101, 2
  %v4177 = vsel %vm430, %v3960, %v4171
  %v4178 = vsel %vm432, %v4172, %v4173
  %v4179 = vsel %vm434, %v4177, %v4178
  %v4180 = vsel %vm436, %v3960, %v4171
  %v4181 = vsel %vm438, %v4173, %v4172
  %v4182 = vsel %vm440, %v4180, %v4181
  %v4183 = vrot.slane %v4182, 2
  %v4184 = vsel %vm432, %v3960, %v4171
  %v4185 = vsel %vm430, %v4172, %v4173
  %v4186 = vsel %vm434, %v4185, %v4184
  %v4187 = vrot.slane %v4186, 4
  %v4188 = vsel %vm438, %v4171, %v3960
  %v4189 = vsel %vm436, %v4172, %v4173
  %v4190 = vsel %vm440, %v4189, %v4188
  %v4191 = vrot.slane %v4190, 6
  %v4192 = vsel %vm430, %v3963, %v4174
  %v4193 = vsel %vm432, %v4175, %v4176
  %v4194 = vsel %vm434, %v4192, %v4193
  %v4195 = vsel %vm436, %v3963, %v4174
  %v4196 = vsel %vm438, %v4176, %v4175
  %v4197 = vsel %vm440, %v4195, %v4196
  %v4198 = vrot.slane %v4197, 2
  %v4199 = vsel %vm432, %v3963, %v4174
  %v4200 = vsel %vm430, %v4175, %v4176
  %v4201 = vsel %vm434, %v4200, %v4199
  %v4202 = vrot.slane %v4201, 4
  %v4203 = vsel %vm438, %v4174, %v3963
  %v4204 = vsel %vm436, %v4175, %v4176
  %v4205 = vsel %vm440, %v4204, %v4203
  %v4206 = vrot.slane %v4205, 6
  %4215 = vst [vmem:[#allocation3] sm:$0xff] %v4179
  %4216 = vst [vmem:[#allocation3 + $0x8] sm:$0xff] %v4183
  %4217 = vst [vmem:[#allocation3 + $0x10] sm:$0xff] %v4187
  %4218 = vst [vmem:[#allocation3 + $0x18] sm:$0xff] %v4191
  %4219 = vst [vmem:[#allocation3 + $0x20] sm:$0xff] %v4194
  %4220 = vst [vmem:[#allocation3 + $0x28] sm:$0xff] %v4198
  %4221 = vst [vmem:[#allocation3 + $0x30] sm:$0xff] %v4202
  %4222 = vst [vmem:[#allocation3 + $0x38] sm:$0xff] %v4206
  %4223 = vst [vmem:[#allocation6] sm:$0x3] 0.0
  %4224 = vst [vmem:[#allocation7] sm:$0x3] 0.0
  %4225 = vst [vmem:[#allocation8] sm:$0x3] 0.0
  %4226 = vst [vmem:[#allocation9] sm:$0x3] 0.0
  %v4227 = vld [vmem:[#allocation2] sm:$0xff]
  %v4228 = vld [vmem:[#allocation6] sm:$0x3]
  %4229 = vmatpush.msra.mxu0 %v3627
  %4230 = vmatpush.msra.mxu0 %v3623
  %4231 = vmatpush.msra.mxu0 %v3619
  %4232 = vmatpush.msra.mxu0 %v3615
  %4233 = vmatpush.msra.mxu0 %v3611
  %4234 = vmatpush.msra.mxu0 %v3607
  %4235 = vmatpush.msra.mxu0 %v3603
  %4236 = vmatpush.msra.mxu0 %v3599
  %4237 = vmatpush.msra.mxu0 %v3595
  %4238 = vmatpush.msra.mxu0 %v3591
  %4239 = vmatpush.msra.mxu0 %v3587
  %4240 = vmatpush.msra.mxu0 %v3583
  %4241 = vmatpush.msra.mxu0 %v3579
  %4242 = vmatpush.msra.mxu0 %v3575
  %4243 = vmatpush.msra.mxu0 %v3571
  %4244 = vmatpush.msra.mxu0 %v3567
  %4245 = vmatmul.f32.gmra.mxu0 %v4228
  %v4246 = vpop.f32.mrf.mxu0
  %v4247 = vadd.f32 0.0, %v4246
  %4248 = vdwg.mxu0
  %4249 = vmatpush.msra.mxu0 %v3628
  %4250 = vmatpush.msra.mxu0 %v3624
  %4251 = vmatpush.msra.mxu0 %v3620
  %4252 = vmatpush.msra.mxu0 %v3616
  %4253 = vmatpush.msra.mxu0 %v3612
  %4254 = vmatpush.msra.mxu0 %v3608
  %4255 = vmatpush.msra.mxu0 %v3604
  %4256 = vmatpush.msra.mxu0 %v3600
  %4257 = vmatpush.msra.mxu0 %v3596
  %4258 = vmatpush.msra.mxu0 %v3592
  %4259 = vmatpush.msra.mxu0 %v3588
  %4260 = vmatpush.msra.mxu0 %v3584
  %4261 = vmatpush.msra.mxu0 %v3580
  %4262 = vmatpush.msra.mxu0 %v3576
  %4263 = vmatpush.msra.mxu0 %v3572
  %4264 = vmatpush.msra.mxu0 %v3568
  %4265 = vmatmul.f32.gmra.mxu0 %v4228
  %v4266 = vpop.f32.mrf.mxu0
  %v4267 = vadd.f32 0.0, %v4266
  %4268 = vdwg.mxu0
  %4269 = vmatpush.msra.mxu0 %v3629
  %4270 = vmatpush.msra.mxu0 %v3625
  %4271 = vmatpush.msra.mxu0 %v3621
  %4272 = vmatpush.msra.mxu0 %v3617
  %4273 = vmatpush.msra.mxu0 %v3613
  %4274 = vmatpush.msra.mxu0 %v3609
  %4275 = vmatpush.msra.mxu0 %v3605
  %4276 = vmatpush.msra.mxu0 %v3601
  %4277 = vmatpush.msra.mxu0 %v3597
  %4278 = vmatpush.msra.mxu0 %v3593
  %4279 = vmatpush.msra.mxu0 %v3589
  %4280 = vmatpush.msra.mxu0 %v3585
  %4281 = vmatpush.msra.mxu0 %v3581
  %4282 = vmatpush.msra.mxu0 %v3577
  %4283 = vmatpush.msra.mxu0 %v3573
  %4284 = vmatpush.msra.mxu0 %v3569
  %4285 = vmatmul.f32.gmra.mxu0 %v4228
  %v4286 = vpop.f32.mrf.mxu0
  %v4287 = vadd.f32 0.0, %v4286
  %4288 = vdwg.mxu0
  %4289 = vmatpush.msra.mxu0 %v3630
  %4290 = vmatpush.msra.mxu0 %v3626
  %4291 = vmatpush.msra.mxu0 %v3622
  %4292 = vmatpush.msra.mxu0 %v3618
  %4293 = vmatpush.msra.mxu0 %v3614
  %4294 = vmatpush.msra.mxu0 %v3610
  %4295 = vmatpush.msra.mxu0 %v3606
  %4296 = vmatpush.msra.mxu0 %v3602
  %4297 = vmatpush.msra.mxu0 %v3598
  %4298 = vmatpush.msra.mxu0 %v3594
  %4299 = vmatpush.msra.mxu0 %v3590
  %4300 = vmatpush.msra.mxu0 %v3586
  %4301 = vmatpush.msra.mxu0 %v3582
  %4302 = vmatpush.msra.mxu0 %v3578
  %4303 = vmatpush.msra.mxu0 %v3574
  %4304 = vmatpush.msra.mxu0 %v3570
  %4305 = vmatmul.f32.gmra.mxu0 %v4228
  %v4306 = vpop.f32.mrf.mxu0
  %v4307 = vadd.f32 0.0, %v4306
  %4308 = vdwg.mxu0
  %v4313 = vrot.slane %v4267, 6
  %v4314 = vrot.slane %v4287, 4
  %v4315 = vrot.slane %v4307, 2
  %v4316 = vsel %vm430, %v4247, %v4313
  %v4317 = vsel %vm432, %v4314, %v4315
  %v4318 = vsel %vm434, %v4316, %v4317
  %v4320 = vadd.f32 %v4227, %v4318
  %v4321 = vld [vmem:[%s640] sm:$0xff]
  %v4322 = vld [vmem:[#allocation8] sm:$0x3]
  %4323 = vmatpush.msra.mxu0 %v3691
  %4324 = vmatpush.msra.mxu0 %v3687
  %4325 = vmatpush.msra.mxu0 %v3683
  %4326 = vmatpush.msra.mxu0 %v3679
  %4327 = vmatpush.msra.mxu0 %v3675
  %4328 = vmatpush.msra.mxu0 %v3671
  %4329 = vmatpush.msra.mxu0 %v3667
  %4330 = vmatpush.msra.mxu0 %v3663
  %4331 = vmatpush.msra.mxu0 %v3659
  %4332 = vmatpush.msra.mxu0 %v3655
  %4333 = vmatpush.msra.mxu0 %v3651
  %4334 = vmatpush.msra.mxu0 %v3647
  %4335 = vmatpush.msra.mxu0 %v3643
  %4336 = vmatpush.msra.mxu0 %v3639
  %4337 = vmatpush.msra.mxu0 %v3635
  %4338 = vmatpush.msra.mxu0 %v3631
  %4339 = vmatmul.f32.gmra.mxu0 %v4322
  %v4340 = vpop.f32.mrf.mxu0
  %v4341 = vadd.f32 0.0, %v4340
  %4342 = vdwg.mxu0
  %4343 = vmatpush.msra.mxu0 %v3692
  %4344 = vmatpush.msra.mxu0 %v3688
  %4345 = vmatpush.msra.mxu0 %v3684
  %4346 = vmatpush.msra.mxu0 %v3680
  %4347 = vmatpush.msra.mxu0 %v3676
  %4348 = vmatpush.msra.mxu0 %v3672
  %4349 = vmatpush.msra.mxu0 %v3668
  %4350 = vmatpush.msra.mxu0 %v3664
  %4351 = vmatpush.msra.mxu0 %v3660
  %4352 = vmatpush.msra.mxu0 %v3656
  %4353 = vmatpush.msra.mxu0 %v3652
  %4354 = vmatpush.msra.mxu0 %v3648
  %4355 = vmatpush.msra.mxu0 %v3644
  %4356 = vmatpush.msra.mxu0 %v3640
  %4357 = vmatpush.msra.mxu0 %v3636
  %4358 = vmatpush.msra.mxu0 %v3632
  %4359 = vmatmul.f32.gmra.mxu0 %v4322
  %v4360 = vpop.f32.mrf.mxu0
  %v4361 = vadd.f32 0.0, %v4360
  %4362 = vdwg.mxu0
  %4363 = vmatpush.msra.mxu0 %v3693
  %4364 = vmatpush.msra.mxu0 %v3689
  %4365 = vmatpush.msra.mxu0 %v3685
  %4366 = vmatpush.msra.mxu0 %v3681
  %4367 = vmatpush.msra.mxu0 %v3677
  %4368 = vmatpush.msra.mxu0 %v3673
  %4369 = vmatpush.msra.mxu0 %v3669
  %4370 = vmatpush.msra.mxu0 %v3665
  %4371 = vmatpush.msra.mxu0 %v3661
  %4372 = vmatpush.msra.mxu0 %v3657
  %4373 = vmatpush.msra.mxu0 %v3653
  %4374 = vmatpush.msra.mxu0 %v3649
  %4375 = vmatpush.msra.mxu0 %v3645
  %4376 = vmatpush.msra.mxu0 %v3641
  %4377 = vmatpush.msra.mxu0 %v3637
  %4378 = vmatpush.msra.mxu0 %v3633
  %4379 = vmatmul.f32.gmra.mxu0 %v4322
  %v4380 = vpop.f32.mrf.mxu0
  %v4381 = vadd.f32 0.0, %v4380
  %4382 = vdwg.mxu0
  %4383 = vmatpush.msra.mxu0 %v3694
  %4384 = vmatpush.msra.mxu0 %v3690
  %4385 = vmatpush.msra.mxu0 %v3686
  %4386 = vmatpush.msra.mxu0 %v3682
  %4387 = vmatpush.msra.mxu0 %v3678
  %4388 = vmatpush.msra.mxu0 %v3674
  %4389 = vmatpush.msra.mxu0 %v3670
  %4390 = vmatpush.msra.mxu0 %v3666
  %4391 = vmatpush.msra.mxu0 %v3662
  %4392 = vmatpush.msra.mxu0 %v3658
  %4393 = vmatpush.msra.mxu0 %v3654
  %4394 = vmatpush.msra.mxu0 %v3650
  %4395 = vmatpush.msra.mxu0 %v3646
  %4396 = vmatpush.msra.mxu0 %v3642
  %4397 = vmatpush.msra.mxu0 %v3638
  %4398 = vmatpush.msra.mxu0 %v3634
  %4399 = vmatmul.f32.gmra.mxu0 %v4322
  %v4400 = vpop.f32.mrf.mxu0
  %v4401 = vadd.f32 0.0, %v4400
  %4402 = vdwg.mxu0
  %v4407 = vrot.slane %v4361, 6
  %v4408 = vrot.slane %v4381, 4
  %v4409 = vrot.slane %v4401, 2
  %v4410 = vsel %vm430, %v4341, %v4407
  %v4411 = vsel %vm432, %v4408, %v4409
  %v4412 = vsel %vm434, %v4410, %v4411
  %v4414 = vadd.f32 %v4321, %v4412
  %v4415 = vld [vmem:[#allocation7] sm:$0x3]
  %v4416 = vxor.u32 %v4320, 2147483648
  %v4417 = vmul.f32 %v4416, 1.442695
  %v4418 = vpow.pop %v4417
  %v4419 = vadd.f32 %v4418, 1.0
  %v4420 = vrcp.pop %v4419
  %v4421 = vmul.f32 %v4419, %v4420
  %v4422 = vsub.f32 1.0, %v4421
  %v4423 = vmul.f32 %v4420, %v4422
  %v4424 = vadd.f32 %v4420, %v4423
  %vm4425 = vweird.f32 %v4419
  %vm4426 = vweird.f32 %v4420
  %vm4427 = vmor %vm4425, %vm4426
  %v4428 = vsel %vm4427, %v4420, %v4424
  %v4429 = vand.u32 2147483647, %v4419
  %vm4430 = vcmp.eq.f32.partialorder %v4429, 8.507059e+37
  %v4431 = vand.u32 %v4419, 2147483648
  %v4432 = vor.u32 1.1754944e-38, %v4431
  %v4433 = vsel %vm4430, %v4432, %v4428
  %v4434 = vmul.f32 1.0, %v4433
  %v4436 = vrot.slane %v4320, 2
  %v4438 = vxor.u32 %v4436, 2147483648
  %v4439 = vmul.f32 %v4438, 1.442695
  %v4440 = vpow.pop %v4439
  %v4441 = vadd.f32 %v4440, 1.0
  %v4442 = vrcp.pop %v4441
  %v4443 = vmul.f32 %v4441, %v4442
  %v4444 = vsub.f32 1.0, %v4443
  %v4445 = vmul.f32 %v4442, %v4444
  %v4446 = vadd.f32 %v4442, %v4445
  %vm4447 = vweird.f32 %v4441
  %vm4448 = vweird.f32 %v4442
  %vm4449 = vmor %vm4447, %vm4448
  %v4450 = vsel %vm4449, %v4442, %v4446
  %v4451 = vand.u32 2147483647, %v4441
  %vm4452 = vcmp.eq.f32.partialorder %v4451, 8.507059e+37
  %v4453 = vand.u32 %v4441, 2147483648
  %v4454 = vor.u32 1.1754944e-38, %v4453
  %v4455 = vsel %vm4452, %v4454, %v4450
  %v4456 = vmul.f32 1.0, %v4455
  %v4457 = vrot.slane %v4320, 4
  %v4459 = vtanh.pop %v4457
  %v4460 = vrot.slane %v4320, 6
  %v4462 = vxor.u32 %v4460, 2147483648
  %v4463 = vmul.f32 %v4462, 1.442695
  %v4464 = vpow.pop %v4463
  %v4465 = vadd.f32 %v4464, 1.0
  %v4466 = vrcp.pop %v4465
  %v4467 = vmul.f32 %v4465, %v4466
  %v4468 = vsub.f32 1.0, %v4467
  %v4469 = vmul.f32 %v4466, %v4468
  %v4470 = vadd.f32 %v4466, %v4469
  %vm4471 = vweird.f32 %v4465
  %vm4472 = vweird.f32 %v4466
  %vm4473 = vmor %vm4471, %vm4472
  %v4474 = vsel %vm4473, %v4466, %v4470
  %v4475 = vand.u32 2147483647, %v4465
  %vm4476 = vcmp.eq.f32.partialorder %v4475, 8.507059e+37
  %v4477 = vand.u32 %v4465, 2147483648
  %v4478 = vor.u32 1.1754944e-38, %v4477
  %v4479 = vsel %vm4476, %v4478, %v4474
  %v4480 = vmul.f32 1.0, %v4479
  %v4481 = vmul.f32 %v4456, %v4415
  %v4482 = vmul.f32 %v4434, %v4459
  %v4483 = vadd.f32 %v4481, %v4482
  %v4484 = vtanh.pop %v4483
  %v4485 = vmul.f32 %v4480, %v4484
  %v4486 = vld [vmem:[#allocation9] sm:$0x3]
  %v4487 = vxor.u32 %v4414, 2147483648
  %v4488 = vmul.f32 %v4487, 1.442695
  %v4489 = vpow.pop %v4488
  %v4490 = vadd.f32 %v4489, 1.0
  %v4491 = vrcp.pop %v4490
  %v4492 = vmul.f32 %v4490, %v4491
  %v4493 = vsub.f32 1.0, %v4492
  %v4494 = vmul.f32 %v4491, %v4493
  %v4495 = vadd.f32 %v4491, %v4494
  %vm4496 = vweird.f32 %v4490
  %vm4497 = vweird.f32 %v4491
  %vm4498 = vmor %vm4496, %vm4497
  %v4499 = vsel %vm4498, %v4491, %v4495
  %v4500 = vand.u32 2147483647, %v4490
  %vm4501 = vcmp.eq.f32.partialorder %v4500, 8.507059e+37
  %v4502 = vand.u32 %v4490, 2147483648
  %v4503 = vor.u32 1.1754944e-38, %v4502
  %v4504 = vsel %vm4501, %v4503, %v4499
  %v4505 = vmul.f32 1.0, %v4504
  %v4507 = vrot.slane %v4414, 2
  %v4509 = vxor.u32 %v4507, 2147483648
  %v4510 = vmul.f32 %v4509, 1.442695
  %v4511 = vpow.pop %v4510
  %v4512 = vadd.f32 %v4511, 1.0
  %v4513 = vrcp.pop %v4512
  %v4514 = vmul.f32 %v4512, %v4513
  %v4515 = vsub.f32 1.0, %v4514
  %v4516 = vmul.f32 %v4513, %v4515
  %v4517 = vadd.f32 %v4513, %v4516
  %vm4518 = vweird.f32 %v4512
  %vm4519 = vweird.f32 %v4513
  %vm4520 = vmor %vm4518, %vm4519
  %v4521 = vsel %vm4520, %v4513, %v4517
  %v4522 = vand.u32 2147483647, %v4512
  %vm4523 = vcmp.eq.f32.partialorder %v4522, 8.507059e+37
  %v4524 = vand.u32 %v4512, 2147483648
  %v4525 = vor.u32 1.1754944e-38, %v4524
  %v4526 = vsel %vm4523, %v4525, %v4521
  %v4527 = vmul.f32 1.0, %v4526
  %v4528 = vrot.slane %v4414, 4
  %v4530 = vtanh.pop %v4528
  %v4531 = vrot.slane %v4414, 6
  %v4533 = vxor.u32 %v4531, 2147483648
  %v4534 = vmul.f32 %v4533, 1.442695
  %v4535 = vpow.pop %v4534
  %v4536 = vadd.f32 %v4535, 1.0
  %v4537 = vrcp.pop %v4536
  %v4538 = vmul.f32 %v4536, %v4537
  %v4539 = vsub.f32 1.0, %v4538
  %v4540 = vmul.f32 %v4537, %v4539
  %v4541 = vadd.f32 %v4537, %v4540
  %vm4542 = vweird.f32 %v4536
  %vm4543 = vweird.f32 %v4537
  %vm4544 = vmor %vm4542, %vm4543
  %v4545 = vsel %vm4544, %v4537, %v4541
  %v4546 = vand.u32 2147483647, %v4536
  %vm4547 = vcmp.eq.f32.partialorder %v4546, 8.507059e+37
  %v4548 = vand.u32 %v4536, 2147483648
  %v4549 = vor.u32 1.1754944e-38, %v4548
  %v4550 = vsel %vm4547, %v4549, %v4545
  %v4551 = vmul.f32 1.0, %v4550
  %v4552 = vmul.f32 %v4527, %v4486
  %v4553 = vmul.f32 %v4505, %v4530
  %v4554 = vadd.f32 %v4552, %v4553
  %v4555 = vtanh.pop %v4554
  %v4556 = vmul.f32 %v4551, %v4555
  %4557 = vst [vmem:[#allocation6] sm:$0x3] %v4485
  %4558 = vst [vmem:[#allocation7] sm:$0x3] %v4483
  %4559 = vst [vmem:[#allocation8] sm:$0x3] %v4556
  %4560 = vst [vmem:[#allocation9] sm:$0x3] %v4554
  %4561 = vst [vmem:[#allocation4] sm:$0x3] %v4485
  %4562 = vst [vmem:[%s882] sm:$0x3] %v4556
  %v4563 = vld [vmem:[%s884] sm:$0xff]
  %v4564 = vld [vmem:[#allocation6] sm:$0x3]
  %4565 = vmatpush.msra.mxu0 %v3627
  %4566 = vmatpush.msra.mxu0 %v3623
  %4567 = vmatpush.msra.mxu0 %v3619
  %4568 = vmatpush.msra.mxu0 %v3615
  %4569 = vmatpush.msra.mxu0 %v3611
  %4570 = vmatpush.msra.mxu0 %v3607
  %4571 = vmatpush.msra.mxu0 %v3603
  %4572 = vmatpush.msra.mxu0 %v3599
  %4573 = vmatpush.msra.mxu0 %v3595
  %4574 = vmatpush.msra.mxu0 %v3591
  %4575 = vmatpush.msra.mxu0 %v3587
  %4576 = vmatpush.msra.mxu0 %v3583
  %4577 = vmatpush.msra.mxu0 %v3579
  %4578 = vmatpush.msra.mxu0 %v3575
  %4579 = vmatpush.msra.mxu0 %v3571
  %4580 = vmatpush.msra.mxu0 %v3567
  %4581 = vmatmul.f32.gmra.mxu0 %v4564
  %v4582 = vpop.f32.mrf.mxu0
  %v4583 = vadd.f32 0.0, %v4582
  %4584 = vdwg.mxu0
  %4585 = vmatpush.msra.mxu0 %v3628
  %4586 = vmatpush.msra.mxu0 %v3624
  %4587 = vmatpush.msra.mxu0 %v3620
  %4588 = vmatpush.msra.mxu0 %v3616
  %4589 = vmatpush.msra.mxu0 %v3612
  %4590 = vmatpush.msra.mxu0 %v3608
  %4591 = vmatpush.msra.mxu0 %v3604
  %4592 = vmatpush.msra.mxu0 %v3600
  %4593 = vmatpush.msra.mxu0 %v3596
  %4594 = vmatpush.msra.mxu0 %v3592
  %4595 = vmatpush.msra.mxu0 %v3588
  %4596 = vmatpush.msra.mxu0 %v3584
  %4597 = vmatpush.msra.mxu0 %v3580
  %4598 = vmatpush.msra.mxu0 %v3576
  %4599 = vmatpush.msra.mxu0 %v3572
  %4600 = vmatpush.msra.mxu0 %v3568
  %4601 = vmatmul.f32.gmra.mxu0 %v4564
  %v4602 = vpop.f32.mrf.mxu0
  %v4603 = vadd.f32 0.0, %v4602
  %4604 = vdwg.mxu0
  %4605 = vmatpush.msra.mxu0 %v3629
  %4606 = vmatpush.msra.mxu0 %v3625
  %4607 = vmatpush.msra.mxu0 %v3621
  %4608 = vmatpush.msra.mxu0 %v3617
  %4609 = vmatpush.msra.mxu0 %v3613
  %4610 = vmatpush.msra.mxu0 %v3609
  %4611 = vmatpush.msra.mxu0 %v3605
  %4612 = vmatpush.msra.mxu0 %v3601
  %4613 = vmatpush.msra.mxu0 %v3597
  %4614 = vmatpush.msra.mxu0 %v3593
  %4615 = vmatpush.msra.mxu0 %v3589
  %4616 = vmatpush.msra.mxu0 %v3585
  %4617 = vmatpush.msra.mxu0 %v3581
  %4618 = vmatpush.msra.mxu0 %v3577
  %4619 = vmatpush.msra.mxu0 %v3573
  %4620 = vmatpush.msra.mxu0 %v3569
  %4621 = vmatmul.f32.gmra.mxu0 %v4564
  %v4622 = vpop.f32.mrf.mxu0
  %v4623 = vadd.f32 0.0, %v4622
  %4624 = vdwg.mxu0
  %4625 = vmatpush.msra.mxu0 %v3630
  %4626 = vmatpush.msra.mxu0 %v3626
  %4627 = vmatpush.msra.mxu0 %v3622
  %4628 = vmatpush.msra.mxu0 %v3618
  %4629 = vmatpush.msra.mxu0 %v3614
  %4630 = vmatpush.msra.mxu0 %v3610
  %4631 = vmatpush.msra.mxu0 %v3606
  %4632 = vmatpush.msra.mxu0 %v3602
  %4633 = vmatpush.msra.mxu0 %v3598
  %4634 = vmatpush.msra.mxu0 %v3594
  %4635 = vmatpush.msra.mxu0 %v3590
  %4636 = vmatpush.msra.mxu0 %v3586
  %4637 = vmatpush.msra.mxu0 %v3582
  %4638 = vmatpush.msra.mxu0 %v3578
  %4639 = vmatpush.msra.mxu0 %v3574
  %4640 = vmatpush.msra.mxu0 %v3570
  %4641 = vmatmul.f32.gmra.mxu0 %v4564
  %v4642 = vpop.f32.mrf.mxu0
  %v4643 = vadd.f32 0.0, %v4642
  %4644 = vdwg.mxu0
  %v4649 = vrot.slane %v4603, 6
  %v4650 = vrot.slane %v4623, 4
  %v4651 = vrot.slane %v4643, 2
  %v4652 = vsel %vm430, %v4583, %v4649
  %v4653 = vsel %vm432, %v4650, %v4651
  %v4654 = vsel %vm434, %v4652, %v4653
  %v4656 = vadd.f32 %v4563, %v4654
  %v4657 = vld [vmem:[%s979] sm:$0xff]
  %v4658 = vld [vmem:[#allocation8] sm:$0x3]
  %4659 = vmatpush.msra.mxu0 %v3691
  %4660 = vmatpush.msra.mxu0 %v3687
  %4661 = vmatpush.msra.mxu0 %v3683
  %4662 = vmatpush.msra.mxu0 %v3679
  %4663 = vmatpush.msra.mxu0 %v3675
  %4664 = vmatpush.msra.mxu0 %v3671
  %4665 = vmatpush.msra.mxu0 %v3667
  %4666 = vmatpush.msra.mxu0 %v3663
  %4667 = vmatpush.msra.mxu0 %v3659
  %4668 = vmatpush.msra.mxu0 %v3655
  %4669 = vmatpush.msra.mxu0 %v3651
  %4670 = vmatpush.msra.mxu0 %v3647
  %4671 = vmatpush.msra.mxu0 %v3643
  %4672 = vmatpush.msra.mxu0 %v3639
  %4673 = vmatpush.msra.mxu0 %v3635
  %4674 = vmatpush.msra.mxu0 %v3631
  %4675 = vmatmul.f32.gmra.mxu0 %v4658
  %v4676 = vpop.f32.mrf.mxu0
  %v4677 = vadd.f32 0.0, %v4676
  %4678 = vdwg.mxu0
  %4679 = vmatpush.msra.mxu0 %v3692
  %4680 = vmatpush.msra.mxu0 %v3688
  %4681 = vmatpush.msra.mxu0 %v3684
  %4682 = vmatpush.msra.mxu0 %v3680
  %4683 = vmatpush.msra.mxu0 %v3676
  %4684 = vmatpush.msra.mxu0 %v3672
  %4685 = vmatpush.msra.mxu0 %v3668
  %4686 = vmatpush.msra.mxu0 %v3664
  %4687 = vmatpush.msra.mxu0 %v3660
  %4688 = vmatpush.msra.mxu0 %v3656
  %4689 = vmatpush.msra.mxu0 %v3652
  %4690 = vmatpush.msra.mxu0 %v3648
  %4691 = vmatpush.msra.mxu0 %v3644
  %4692 = vmatpush.msra.mxu0 %v3640
  %4693 = vmatpush.msra.mxu0 %v3636
  %4694 = vmatpush.msra.mxu0 %v3632
  %4695 = vmatmul.f32.gmra.mxu0 %v4658
  %v4696 = vpop.f32.mrf.mxu0
  %v4697 = vadd.f32 0.0, %v4696
  %4698 = vdwg.mxu0
  %4699 = vmatpush.msra.mxu0 %v3693
  %4700 = vmatpush.msra.mxu0 %v3689
  %4701 = vmatpush.msra.mxu0 %v3685
  %4702 = vmatpush.msra.mxu0 %v3681
  %4703 = vmatpush.msra.mxu0 %v3677
  %4704 = vmatpush.msra.mxu0 %v3673
  %4705 = vmatpush.msra.mxu0 %v3669
  %4706 = vmatpush.msra.mxu0 %v3665
  %4707 = vmatpush.msra.mxu0 %v3661
  %4708 = vmatpush.msra.mxu0 %v3657
  %4709 = vmatpush.msra.mxu0 %v3653
  %4710 = vmatpush.msra.mxu0 %v3649
  %4711 = vmatpush.msra.mxu0 %v3645
  %4712 = vmatpush.msra.mxu0 %v3641
  %4713 = vmatpush.msra.mxu0 %v3637
  %4714 = vmatpush.msra.mxu0 %v3633
  %4715 = vmatmul.f32.gmra.mxu0 %v4658
  %v4716 = vpop.f32.mrf.mxu0
  %v4717 = vadd.f32 0.0, %v4716
  %4718 = vdwg.mxu0
  %4719 = vmatpush.msra.mxu0 %v3694
  %4720 = vmatpush.msra.mxu0 %v3690
  %4721 = vmatpush.msra.mxu0 %v3686
  %4722 = vmatpush.msra.mxu0 %v3682
  %4723 = vmatpush.msra.mxu0 %v3678
  %4724 = vmatpush.msra.mxu0 %v3674
  %4725 = vmatpush.msra.mxu0 %v3670
  %4726 = vmatpush.msra.mxu0 %v3666
  %4727 = vmatpush.msra.mxu0 %v3662
  %4728 = vmatpush.msra.mxu0 %v3658
  %4729 = vmatpush.msra.mxu0 %v3654
  %4730 = vmatpush.msra.mxu0 %v3650
  %4731 = vmatpush.msra.mxu0 %v3646
  %4732 = vmatpush.msra.mxu0 %v3642
  %4733 = vmatpush.msra.mxu0 %v3638
  %4734 = vmatpush.msra.mxu0 %v3634
  %4735 = vmatmul.f32.gmra.mxu0 %v4658
  %v4736 = vpop.f32.mrf.mxu0
  %v4737 = vadd.f32 0.0, %v4736
  %4738 = vdwg.mxu0
  %v4743 = vrot.slane %v4697, 6
  %v4744 = vrot.slane %v4717, 4
  %v4745 = vrot.slane %v4737, 2
  %v4746 = vsel %vm430, %v4677, %v4743
  %v4747 = vsel %vm432, %v4744, %v4745
  %v4748 = vsel %vm434, %v4746, %v4747
  %v4750 = vadd.f32 %v4657, %v4748
  %v4751 = vld [vmem:[#allocation7] sm:$0x3]
  %v4752 = vxor.u32 %v4656, 2147483648
  %v4753 = vmul.f32 %v4752, 1.442695
  %v4754 = vpow.pop %v4753
  %v4755 = vadd.f32 %v4754, 1.0
  %v4756 = vrcp.pop %v4755
  %v4757 = vmul.f32 %v4755, %v4756
  %v4758 = vsub.f32 1.0, %v4757
  %v4759 = vmul.f32 %v4756, %v4758
  %v4760 = vadd.f32 %v4756, %v4759
  %vm4761 = vweird.f32 %v4755
  %vm4762 = vweird.f32 %v4756
  %vm4763 = vmor %vm4761, %vm4762
  %v4764 = vsel %vm4763, %v4756, %v4760
  %v4765 = vand.u32 2147483647, %v4755
  %vm4766 = vcmp.eq.f32.partialorder %v4765, 8.507059e+37
  %v4767 = vand.u32 %v4755, 2147483648
  %v4768 = vor.u32 1.1754944e-38, %v4767
  %v4769 = vsel %vm4766, %v4768, %v4764
  %v4770 = vmul.f32 1.0, %v4769
  %v4772 = vrot.slane %v4656, 2
  %v4774 = vxor.u32 %v4772, 2147483648
  %v4775 = vmul.f32 %v4774, 1.442695
  %v4776 = vpow.pop %v4775
  %v4777 = vadd.f32 %v4776, 1.0
  %v4778 = vrcp.pop %v4777
  %v4779 = vmul.f32 %v4777, %v4778
  %v4780 = vsub.f32 1.0, %v4779
  %v4781 = vmul.f32 %v4778, %v4780
  %v4782 = vadd.f32 %v4778, %v4781
  %vm4783 = vweird.f32 %v4777
  %vm4784 = vweird.f32 %v4778
  %vm4785 = vmor %vm4783, %vm4784
  %v4786 = vsel %vm4785, %v4778, %v4782
  %v4787 = vand.u32 2147483647, %v4777
  %vm4788 = vcmp.eq.f32.partialorder %v4787, 8.507059e+37
  %v4789 = vand.u32 %v4777, 2147483648
  %v4790 = vor.u32 1.1754944e-38, %v4789
  %v4791 = vsel %vm4788, %v4790, %v4786
  %v4792 = vmul.f32 1.0, %v4791
  %v4793 = vrot.slane %v4656, 4
  %v4795 = vtanh.pop %v4793
  %v4796 = vrot.slane %v4656, 6
  %v4798 = vxor.u32 %v4796, 2147483648
  %v4799 = vmul.f32 %v4798, 1.442695
  %v4800 = vpow.pop %v4799
  %v4801 = vadd.f32 %v4800, 1.0
  %v4802 = vrcp.pop %v4801
  %v4803 = vmul.f32 %v4801, %v4802
  %v4804 = vsub.f32 1.0, %v4803
  %v4805 = vmul.f32 %v4802, %v4804
  %v4806 = vadd.f32 %v4802, %v4805
  %vm4807 = vweird.f32 %v4801
  %vm4808 = vweird.f32 %v4802
  %vm4809 = vmor %vm4807, %vm4808
  %v4810 = vsel %vm4809, %v4802, %v4806
  %v4811 = vand.u32 2147483647, %v4801
  %vm4812 = vcmp.eq.f32.partialorder %v4811, 8.507059e+37
  %v4813 = vand.u32 %v4801, 2147483648
  %v4814 = vor.u32 1.1754944e-38, %v4813
  %v4815 = vsel %vm4812, %v4814, %v4810
  %v4816 = vmul.f32 1.0, %v4815
  %v4817 = vmul.f32 %v4792, %v4751
  %v4818 = vmul.f32 %v4770, %v4795
  %v4819 = vadd.f32 %v4817, %v4818
  %v4820 = vtanh.pop %v4819
  %v4821 = vmul.f32 %v4816, %v4820
  %v4822 = vld [vmem:[#allocation9] sm:$0x3]
  %v4823 = vxor.u32 %v4750, 2147483648
  %v4824 = vmul.f32 %v4823, 1.442695
  %v4825 = vpow.pop %v4824
  %v4826 = vadd.f32 %v4825, 1.0
  %v4827 = vrcp.pop %v4826
  %v4828 = vmul.f32 %v4826, %v4827
  %v4829 = vsub.f32 1.0, %v4828
  %v4830 = vmul.f32 %v4827, %v4829
  %v4831 = vadd.f32 %v4827, %v4830
  %vm4832 = vweird.f32 %v4826
  %vm4833 = vweird.f32 %v4827
  %vm4834 = vmor %vm4832, %vm4833
  %v4835 = vsel %vm4834, %v4827, %v4831
  %v4836 = vand.u32 2147483647, %v4826
  %vm4837 = vcmp.eq.f32.partialorder %v4836, 8.507059e+37
  %v4838 = vand.u32 %v4826, 2147483648
  %v4839 = vor.u32 1.1754944e-38, %v4838
  %v4840 = vsel %vm4837, %v4839, %v4835
  %v4841 = vmul.f32 1.0, %v4840
  %v4843 = vrot.slane %v4750, 2
  %v4845 = vxor.u32 %v4843, 2147483648
  %v4846 = vmul.f32 %v4845, 1.442695
  %v4847 = vpow.pop %v4846
  %v4848 = vadd.f32 %v4847, 1.0
  %v4849 = vrcp.pop %v4848
  %v4850 = vmul.f32 %v4848, %v4849
  %v4851 = vsub.f32 1.0, %v4850
  %v4852 = vmul.f32 %v4849, %v4851
  %v4853 = vadd.f32 %v4849, %v4852
  %vm4854 = vweird.f32 %v4848
  %vm4855 = vweird.f32 %v4849
  %vm4856 = vmor %vm4854, %vm4855
  %v4857 = vsel %vm4856, %v4849, %v4853
  %v4858 = vand.u32 2147483647, %v4848
  %vm4859 = vcmp.eq.f32.partialorder %v4858, 8.507059e+37
  %v4860 = vand.u32 %v4848, 2147483648
  %v4861 = vor.u32 1.1754944e-38, %v4860
  %v4862 = vsel %vm4859, %v4861, %v4857
  %v4863 = vmul.f32 1.0, %v4862
  %v4864 = vrot.slane %v4750, 4
  %v4866 = vtanh.pop %v4864
  %v4867 = vrot.slane %v4750, 6
  %v4869 = vxor.u32 %v4867, 2147483648
  %v4870 = vmul.f32 %v4869, 1.442695
  %v4871 = vpow.pop %v4870
  %v4872 = vadd.f32 %v4871, 1.0
  %v4873 = vrcp.pop %v4872
  %v4874 = vmul.f32 %v4872, %v4873
  %v4875 = vsub.f32 1.0, %v4874
  %v4876 = vmul.f32 %v4873, %v4875
  %v4877 = vadd.f32 %v4873, %v4876
  %vm4878 = vweird.f32 %v4872
  %vm4879 = vweird.f32 %v4873
  %vm4880 = vmor %vm4878, %vm4879
  %v4881 = vsel %vm4880, %v4873, %v4877
  %v4882 = vand.u32 2147483647, %v4872
  %vm4883 = vcmp.eq.f32.partialorder %v4882, 8.507059e+37
  %v4884 = vand.u32 %v4872, 2147483648
  %v4885 = vor.u32 1.1754944e-38, %v4884
  %v4886 = vsel %vm4883, %v4885, %v4881
  %v4887 = vmul.f32 1.0, %v4886
  %v4888 = vmul.f32 %v4863, %v4822
  %v4889 = vmul.f32 %v4841, %v4866
  %v4890 = vadd.f32 %v4888, %v4889
  %v4891 = vtanh.pop %v4890
  %v4892 = vmul.f32 %v4887, %v4891
  %4893 = vst [vmem:[#allocation6] sm:$0x3] %v4821
  %4894 = vst [vmem:[#allocation7] sm:$0x3] %v4819
  %4895 = vst [vmem:[#allocation8] sm:$0x3] %v4892
  %4896 = vst [vmem:[#allocation9] sm:$0x3] %v4890
  %4897 = vst [vmem:[%s1220] sm:$0x3] %v4821
  %4898 = vst [vmem:[%s1222] sm:$0x3] %v4892
  %v4899 = vld [vmem:[%s1224] sm:$0xff]
  %v4900 = vld [vmem:[#allocation6] sm:$0x3]
  %4901 = vmatpush.msra.mxu0 %v3627
  %4902 = vmatpush.msra.mxu0 %v3623
  %4903 = vmatpush.msra.mxu0 %v3619
  %4904 = vmatpush.msra.mxu0 %v3615
  %4905 = vmatpush.msra.mxu0 %v3611
  %4906 = vmatpush.msra.mxu0 %v3607
  %4907 = vmatpush.msra.mxu0 %v3603
  %4908 = vmatpush.msra.mxu0 %v3599
  %4909 = vmatpush.msra.mxu0 %v3595
  %4910 = vmatpush.msra.mxu0 %v3591
  %4911 = vmatpush.msra.mxu0 %v3587
  %4912 = vmatpush.msra.mxu0 %v3583
  %4913 = vmatpush.msra.mxu0 %v3579
  %4914 = vmatpush.msra.mxu0 %v3575
  %4915 = vmatpush.msra.mxu0 %v3571
  %4916 = vmatpush.msra.mxu0 %v3567
  %4917 = vmatmul.f32.gmra.mxu0 %v4900
  %v4918 = vpop.f32.mrf.mxu0
  %v4919 = vadd.f32 0.0, %v4918
  %4920 = vdwg.mxu0
  %4921 = vmatpush.msra.mxu0 %v3628
  %4922 = vmatpush.msra.mxu0 %v3624
  %4923 = vmatpush.msra.mxu0 %v3620
  %4924 = vmatpush.msra.mxu0 %v3616
  %4925 = vmatpush.msra.mxu0 %v3612
  %4926 = vmatpush.msra.mxu0 %v3608
  %4927 = vmatpush.msra.mxu0 %v3604
  %4928 = vmatpush.msra.mxu0 %v3600
  %4929 = vmatpush.msra.mxu0 %v3596
  %4930 = vmatpush.msra.mxu0 %v3592
  %4931 = vmatpush.msra.mxu0 %v3588
  %4932 = vmatpush.msra.mxu0 %v3584
  %4933 = vmatpush.msra.mxu0 %v3580
  %4934 = vmatpush.msra.mxu0 %v3576
  %4935 = vmatpush.msra.mxu0 %v3572
  %4936 = vmatpush.msra.mxu0 %v3568
  %4937 = vmatmul.f32.gmra.mxu0 %v4900
  %v4938 = vpop.f32.mrf.mxu0
  %v4939 = vadd.f32 0.0, %v4938
  %4940 = vdwg.mxu0
  %4941 = vmatpush.msra.mxu0 %v3629
  %4942 = vmatpush.msra.mxu0 %v3625
  %4943 = vmatpush.msra.mxu0 %v3621
  %4944 = vmatpush.msra.mxu0 %v3617
  %4945 = vmatpush.msra.mxu0 %v3613
  %4946 = vmatpush.msra.mxu0 %v3609
  %4947 = vmatpush.msra.mxu0 %v3605
  %4948 = vmatpush.msra.mxu0 %v3601
  %4949 = vmatpush.msra.mxu0 %v3597
  %4950 = vmatpush.msra.mxu0 %v3593
  %4951 = vmatpush.msra.mxu0 %v3589
  %4952 = vmatpush.msra.mxu0 %v3585
  %4953 = vmatpush.msra.mxu0 %v3581
  %4954 = vmatpush.msra.mxu0 %v3577
  %4955 = vmatpush.msra.mxu0 %v3573
  %4956 = vmatpush.msra.mxu0 %v3569
  %4957 = vmatmul.f32.gmra.mxu0 %v4900
  %v4958 = vpop.f32.mrf.mxu0
  %v4959 = vadd.f32 0.0, %v4958
  %4960 = vdwg.mxu0
  %4961 = vmatpush.msra.mxu0 %v3630
  %4962 = vmatpush.msra.mxu0 %v3626
  %4963 = vmatpush.msra.mxu0 %v3622
  %4964 = vmatpush.msra.mxu0 %v3618
  %4965 = vmatpush.msra.mxu0 %v3614
  %4966 = vmatpush.msra.mxu0 %v3610
  %4967 = vmatpush.msra.mxu0 %v3606
  %4968 = vmatpush.msra.mxu0 %v3602
  %4969 = vmatpush.msra.mxu0 %v3598
  %4970 = vmatpush.msra.mxu0 %v3594
  %4971 = vmatpush.msra.mxu0 %v3590
  %4972 = vmatpush.msra.mxu0 %v3586
  %4973 = vmatpush.msra.mxu0 %v3582
  %4974 = vmatpush.msra.mxu0 %v3578
  %4975 = vmatpush.msra.mxu0 %v3574
  %4976 = vmatpush.msra.mxu0 %v3570
  %4977 = vmatmul.f32.gmra.mxu0 %v4900
  %v4978 = vpop.f32.mrf.mxu0
  %v4979 = vadd.f32 0.0, %v4978
  %4980 = vdwg.mxu0
  %v4985 = vrot.slane %v4939, 6
  %v4986 = vrot.slane %v4959, 4
  %v4987 = vrot.slane %v4979, 2
  %v4988 = vsel %vm430, %v4919, %v4985
  %v4989 = vsel %vm432, %v4986, %v4987
  %v4990 = vsel %vm434, %v4988, %v4989
  %v4992 = vadd.f32 %v4899, %v4990
  %v4993 = vld [vmem:[%s1319] sm:$0xff]
  %v4994 = vld [vmem:[#allocation8] sm:$0x3]
  %4995 = vmatpush.msra.mxu0 %v3691
  %4996 = vmatpush.msra.mxu0 %v3687
  %4997 = vmatpush.msra.mxu0 %v3683
  %4998 = vmatpush.msra.mxu0 %v3679
  %4999 = vmatpush.msra.mxu0 %v3675
  %5000 = vmatpush.msra.mxu0 %v3671
  %5001 = vmatpush.msra.mxu0 %v3667
  %5002 = vmatpush.msra.mxu0 %v3663
  %5003 = vmatpush.msra.mxu0 %v3659
  %5004 = vmatpush.msra.mxu0 %v3655
  %5005 = vmatpush.msra.mxu0 %v3651
  %5006 = vmatpush.msra.mxu0 %v3647
  %5007 = vmatpush.msra.mxu0 %v3643
  %5008 = vmatpush.msra.mxu0 %v3639
  %5009 = vmatpush.msra.mxu0 %v3635
  %5010 = vmatpush.msra.mxu0 %v3631
  %5011 = vmatmul.f32.gmra.mxu0 %v4994
  %v5012 = vpop.f32.mrf.mxu0
  %v5013 = vadd.f32 0.0, %v5012
  %5014 = vdwg.mxu0
  %5015 = vmatpush.msra.mxu0 %v3692
  %5016 = vmatpush.msra.mxu0 %v3688
  %5017 = vmatpush.msra.mxu0 %v3684
  %5018 = vmatpush.msra.mxu0 %v3680
  %5019 = vmatpush.msra.mxu0 %v3676
  %5020 = vmatpush.msra.mxu0 %v3672
  %5021 = vmatpush.msra.mxu0 %v3668
  %5022 = vmatpush.msra.mxu0 %v3664
  %5023 = vmatpush.msra.mxu0 %v3660
  %5024 = vmatpush.msra.mxu0 %v3656
  %5025 = vmatpush.msra.mxu0 %v3652
  %5026 = vmatpush.msra.mxu0 %v3648
  %5027 = vmatpush.msra.mxu0 %v3644
  %5028 = vmatpush.msra.mxu0 %v3640
  %5029 = vmatpush.msra.mxu0 %v3636
  %5030 = vmatpush.msra.mxu0 %v3632
  %5031 = vmatmul.f32.gmra.mxu0 %v4994
  %v5032 = vpop.f32.mrf.mxu0
  %v5033 = vadd.f32 0.0, %v5032
  %5034 = vdwg.mxu0
  %5035 = vmatpush.msra.mxu0 %v3693
  %5036 = vmatpush.msra.mxu0 %v3689
  %5037 = vmatpush.msra.mxu0 %v3685
  %5038 = vmatpush.msra.mxu0 %v3681
  %5039 = vmatpush.msra.mxu0 %v3677
  %5040 = vmatpush.msra.mxu0 %v3673
  %5041 = vmatpush.msra.mxu0 %v3669
  %5042 = vmatpush.msra.mxu0 %v3665
  %5043 = vmatpush.msra.mxu0 %v3661
  %5044 = vmatpush.msra.mxu0 %v3657
  %5045 = vmatpush.msra.mxu0 %v3653
  %5046 = vmatpush.msra.mxu0 %v3649
  %5047 = vmatpush.msra.mxu0 %v3645
  %5048 = vmatpush.msra.mxu0 %v3641
  %5049 = vmatpush.msra.mxu0 %v3637
  %5050 = vmatpush.msra.mxu0 %v3633
  %5051 = vmatmul.f32.gmra.mxu0 %v4994
  %v5052 = vpop.f32.mrf.mxu0
  %v5053 = vadd.f32 0.0, %v5052
  %5054 = vdwg.mxu0
  %5055 = vmatpush.msra.mxu0 %v3694
  %5056 = vmatpush.msra.mxu0 %v3690
  %5057 = vmatpush.msra.mxu0 %v3686
  %5058 = vmatpush.msra.mxu0 %v3682
  %5059 = vmatpush.msra.mxu0 %v3678
  %5060 = vmatpush.msra.mxu0 %v3674
  %5061 = vmatpush.msra.mxu0 %v3670
  %5062 = vmatpush.msra.mxu0 %v3666
  %5063 = vmatpush.msra.mxu0 %v3662
  %5064 = vmatpush.msra.mxu0 %v3658
  %5065 = vmatpush.msra.mxu0 %v3654
  %5066 = vmatpush.msra.mxu0 %v3650
  %5067 = vmatpush.msra.mxu0 %v3646
  %5068 = vmatpush.msra.mxu0 %v3642
  %5069 = vmatpush.msra.mxu0 %v3638
  %5070 = vmatpush.msra.mxu0 %v3634
  %5071 = vmatmul.f32.gmra.mxu0 %v4994
  %v5072 = vpop.f32.mrf.mxu0
  %v5073 = vadd.f32 0.0, %v5072
  %5074 = vdwg.mxu0
  %v5079 = vrot.slane %v5033, 6
  %v5080 = vrot.slane %v5053, 4
  %v5081 = vrot.slane %v5073, 2
  %v5082 = vsel %vm430, %v5013, %v5079
  %v5083 = vsel %vm432, %v5080, %v5081
  %v5084 = vsel %vm434, %v5082, %v5083
  %v5086 = vadd.f32 %v4993, %v5084
  %v5087 = vld [vmem:[#allocation7] sm:$0x3]
  %v5088 = vxor.u32 %v4992, 2147483648
  %v5089 = vmul.f32 %v5088, 1.442695
  %v5090 = vpow.pop %v5089
  %v5091 = vadd.f32 %v5090, 1.0
  %v5092 = vrcp.pop %v5091
  %v5093 = vmul.f32 %v5091, %v5092
  %v5094 = vsub.f32 1.0, %v5093
  %v5095 = vmul.f32 %v5092, %v5094
  %v5096 = vadd.f32 %v5092, %v5095
  %vm5097 = vweird.f32 %v5091
  %vm5098 = vweird.f32 %v5092
  %vm5099 = vmor %vm5097, %vm5098
  %v5100 = vsel %vm5099, %v5092, %v5096
  %v5101 = vand.u32 2147483647, %v5091
  %vm5102 = vcmp.eq.f32.partialorder %v5101, 8.507059e+37
  %v5103 = vand.u32 %v5091, 2147483648
  %v5104 = vor.u32 1.1754944e-38, %v5103
  %v5105 = vsel %vm5102, %v5104, %v5100
  %v5106 = vmul.f32 1.0, %v5105
  %v5108 = vrot.slane %v4992, 2
  %v5110 = vxor.u32 %v5108, 2147483648
  %v5111 = vmul.f32 %v5110, 1.442695
  %v5112 = vpow.pop %v5111
  %v5113 = vadd.f32 %v5112, 1.0
  %v5114 = vrcp.pop %v5113
  %v5115 = vmul.f32 %v5113, %v5114
  %v5116 = vsub.f32 1.0, %v5115
  %v5117 = vmul.f32 %v5114, %v5116
  %v5118 = vadd.f32 %v5114, %v5117
  %vm5119 = vweird.f32 %v5113
  %vm5120 = vweird.f32 %v5114
  %vm5121 = vmor %vm5119, %vm5120
  %v5122 = vsel %vm5121, %v5114, %v5118
  %v5123 = vand.u32 2147483647, %v5113
  %vm5124 = vcmp.eq.f32.partialorder %v5123, 8.507059e+37
  %v5125 = vand.u32 %v5113, 2147483648
  %v5126 = vor.u32 1.1754944e-38, %v5125
  %v5127 = vsel %vm5124, %v5126, %v5122
  %v5128 = vmul.f32 1.0, %v5127
  %v5129 = vrot.slane %v4992, 4
  %v5131 = vtanh.pop %v5129
  %v5132 = vrot.slane %v4992, 6
  %v5134 = vxor.u32 %v5132, 2147483648
  %v5135 = vmul.f32 %v5134, 1.442695
  %v5136 = vpow.pop %v5135
  %v5137 = vadd.f32 %v5136, 1.0
  %v5138 = vrcp.pop %v5137
  %v5139 = vmul.f32 %v5137, %v5138
  %v5140 = vsub.f32 1.0, %v5139
  %v5141 = vmul.f32 %v5138, %v5140
  %v5142 = vadd.f32 %v5138, %v5141
  %vm5143 = vweird.f32 %v5137
  %vm5144 = vweird.f32 %v5138
  %vm5145 = vmor %vm5143, %vm5144
  %v5146 = vsel %vm5145, %v5138, %v5142
  %v5147 = vand.u32 2147483647, %v5137
  %vm5148 = vcmp.eq.f32.partialorder %v5147, 8.507059e+37
  %v5149 = vand.u32 %v5137, 2147483648
  %v5150 = vor.u32 1.1754944e-38, %v5149
  %v5151 = vsel %vm5148, %v5150, %v5146
  %v5152 = vmul.f32 1.0, %v5151
  %v5153 = vmul.f32 %v5128, %v5087
  %v5154 = vmul.f32 %v5106, %v5131
  %v5155 = vadd.f32 %v5153, %v5154
  %v5156 = vtanh.pop %v5155
  %v5157 = vmul.f32 %v5152, %v5156
  %v5158 = vld [vmem:[#allocation9] sm:$0x3]
  %v5159 = vxor.u32 %v5086, 2147483648
  %v5160 = vmul.f32 %v5159, 1.442695
  %v5161 = vpow.pop %v5160
  %v5162 = vadd.f32 %v5161, 1.0
  %v5163 = vrcp.pop %v5162
  %v5164 = vmul.f32 %v5162, %v5163
  %v5165 = vsub.f32 1.0, %v5164
  %v5166 = vmul.f32 %v5163, %v5165
  %v5167 = vadd.f32 %v5163, %v5166
  %vm5168 = vweird.f32 %v5162
  %vm5169 = vweird.f32 %v5163
  %vm5170 = vmor %vm5168, %vm5169
  %v5171 = vsel %vm5170, %v5163, %v5167
  %v5172 = vand.u32 2147483647, %v5162
  %vm5173 = vcmp.eq.f32.partialorder %v5172, 8.507059e+37
  %v5174 = vand.u32 %v5162, 2147483648
  %v5175 = vor.u32 1.1754944e-38, %v5174
  %v5176 = vsel %vm5173, %v5175, %v5171
  %v5177 = vmul.f32 1.0, %v5176
  %v5179 = vrot.slane %v5086, 2
  %v5181 = vxor.u32 %v5179, 2147483648
  %v5182 = vmul.f32 %v5181, 1.442695
  %v5183 = vpow.pop %v5182
  %v5184 = vadd.f32 %v5183, 1.0
  %v5185 = vrcp.pop %v5184
  %v5186 = vmul.f32 %v5184, %v5185
  %v5187 = vsub.f32 1.0, %v5186
  %v5188 = vmul.f32 %v5185, %v5187
  %v5189 = vadd.f32 %v5185, %v5188
  %vm5190 = vweird.f32 %v5184
  %vm5191 = vweird.f32 %v5185
  %vm5192 = vmor %vm5190, %vm5191
  %v5193 = vsel %vm5192, %v5185, %v5189
  %v5194 = vand.u32 2147483647, %v5184
  %vm5195 = vcmp.eq.f32.partialorder %v5194, 8.507059e+37
  %v5196 = vand.u32 %v5184, 2147483648
  %v5197 = vor.u32 1.1754944e-38, %v5196
  %v5198 = vsel %vm5195, %v5197, %v5193
  %v5199 = vmul.f32 1.0, %v5198
  %v5200 = vrot.slane %v5086, 4
  %v5202 = vtanh.pop %v5200
  %v5203 = vrot.slane %v5086, 6
  %v5205 = vxor.u32 %v5203, 2147483648
  %v5206 = vmul.f32 %v5205, 1.442695
  %v5207 = vpow.pop %v5206
  %v5208 = vadd.f32 %v5207, 1.0
  %v5209 = vrcp.pop %v5208
  %v5210 = vmul.f32 %v5208, %v5209
  %v5211 = vsub.f32 1.0, %v5210
  %v5212 = vmul.f32 %v5209, %v5211
  %v5213 = vadd.f32 %v5209, %v5212
  %vm5214 = vweird.f32 %v5208
  %vm5215 = vweird.f32 %v5209
  %vm5216 = vmor %vm5214, %vm5215
  %v5217 = vsel %vm5216, %v5209, %v5213
  %v5218 = vand.u32 2147483647, %v5208
  %vm5219 = vcmp.eq.f32.partialorder %v5218, 8.507059e+37
  %v5220 = vand.u32 %v5208, 2147483648
  %v5221 = vor.u32 1.1754944e-38, %v5220
  %v5222 = vsel %vm5219, %v5221, %v5217
  %v5223 = vmul.f32 1.0, %v5222
  %v5224 = vmul.f32 %v5199, %v5158
  %v5225 = vmul.f32 %v5177, %v5202
  %v5226 = vadd.f32 %v5224, %v5225
  %v5227 = vtanh.pop %v5226
  %v5228 = vmul.f32 %v5223, %v5227
  %5229 = vst [vmem:[#allocation6] sm:$0x3] %v5157
  %5230 = vst [vmem:[#allocation7] sm:$0x3] %v5155
  %5231 = vst [vmem:[#allocation8] sm:$0x3] %v5228
  %5232 = vst [vmem:[#allocation9] sm:$0x3] %v5226
  %5233 = vst [vmem:[%s1560] sm:$0x3] %v5157
  %5234 = vst [vmem:[%s1562] sm:$0x3] %v5228
  %v5235 = vld [vmem:[%s1564] sm:$0xff]
  %v5236 = vld [vmem:[#allocation6] sm:$0x3]
  %5237 = vmatpush.msra.mxu0 %v3627
  %5238 = vmatpush.msra.mxu0 %v3623
  %5239 = vmatpush.msra.mxu0 %v3619
  %5240 = vmatpush.msra.mxu0 %v3615
  %5241 = vmatpush.msra.mxu0 %v3611
  %5242 = vmatpush.msra.mxu0 %v3607
  %5243 = vmatpush.msra.mxu0 %v3603
  %5244 = vmatpush.msra.mxu0 %v3599
  %5245 = vmatpush.msra.mxu0 %v3595
  %5246 = vmatpush.msra.mxu0 %v3591
  %5247 = vmatpush.msra.mxu0 %v3587
  %5248 = vmatpush.msra.mxu0 %v3583
  %5249 = vmatpush.msra.mxu0 %v3579
  %5250 = vmatpush.msra.mxu0 %v3575
  %5251 = vmatpush.msra.mxu0 %v3571
  %5252 = vmatpush.msra.mxu0 %v3567
  %5253 = vmatmul.f32.gmra.mxu0 %v5236
  %v5254 = vpop.f32.mrf.mxu0
  %v5255 = vadd.f32 0.0, %v5254
  %5256 = vdwg.mxu0
  %5257 = vmatpush.msra.mxu0 %v3628
  %5258 = vmatpush.msra.mxu0 %v3624
  %5259 = vmatpush.msra.mxu0 %v3620
  %5260 = vmatpush.msra.mxu0 %v3616
  %5261 = vmatpush.msra.mxu0 %v3612
  %5262 = vmatpush.msra.mxu0 %v3608
  %5263 = vmatpush.msra.mxu0 %v3604
  %5264 = vmatpush.msra.mxu0 %v3600
  %5265 = vmatpush.msra.mxu0 %v3596
  %5266 = vmatpush.msra.mxu0 %v3592
  %5267 = vmatpush.msra.mxu0 %v3588
  %5268 = vmatpush.msra.mxu0 %v3584
  %5269 = vmatpush.msra.mxu0 %v3580
  %5270 = vmatpush.msra.mxu0 %v3576
  %5271 = vmatpush.msra.mxu0 %v3572
  %5272 = vmatpush.msra.mxu0 %v3568
  %5273 = vmatmul.f32.gmra.mxu0 %v5236
  %v5274 = vpop.f32.mrf.mxu0
  %v5275 = vadd.f32 0.0, %v5274
  %5276 = vdwg.mxu0
  %5277 = vmatpush.msra.mxu0 %v3629
  %5278 = vmatpush.msra.mxu0 %v3625
  %5279 = vmatpush.msra.mxu0 %v3621
  %5280 = vmatpush.msra.mxu0 %v3617
  %5281 = vmatpush.msra.mxu0 %v3613
  %5282 = vmatpush.msra.mxu0 %v3609
  %5283 = vmatpush.msra.mxu0 %v3605
  %5284 = vmatpush.msra.mxu0 %v3601
  %5285 = vmatpush.msra.mxu0 %v3597
  %5286 = vmatpush.msra.mxu0 %v3593
  %5287 = vmatpush.msra.mxu0 %v3589
  %5288 = vmatpush.msra.mxu0 %v3585
  %5289 = vmatpush.msra.mxu0 %v3581
  %5290 = vmatpush.msra.mxu0 %v3577
  %5291 = vmatpush.msra.mxu0 %v3573
  %5292 = vmatpush.msra.mxu0 %v3569
  %5293 = vmatmul.f32.gmra.mxu0 %v5236
  %v5294 = vpop.f32.mrf.mxu0
  %v5295 = vadd.f32 0.0, %v5294
  %5296 = vdwg.mxu0
  %5297 = vmatpush.msra.mxu0 %v3630
  %5298 = vmatpush.msra.mxu0 %v3626
  %5299 = vmatpush.msra.mxu0 %v3622
  %5300 = vmatpush.msra.mxu0 %v3618
  %5301 = vmatpush.msra.mxu0 %v3614
  %5302 = vmatpush.msra.mxu0 %v3610
  %5303 = vmatpush.msra.mxu0 %v3606
  %5304 = vmatpush.msra.mxu0 %v3602
  %5305 = vmatpush.msra.mxu0 %v3598
  %5306 = vmatpush.msra.mxu0 %v3594
  %5307 = vmatpush.msra.mxu0 %v3590
  %5308 = vmatpush.msra.mxu0 %v3586
  %5309 = vmatpush.msra.mxu0 %v3582
  %5310 = vmatpush.msra.mxu0 %v3578
  %5311 = vmatpush.msra.mxu0 %v3574
  %5312 = vmatpush.msra.mxu0 %v3570
  %5313 = vmatmul.f32.gmra.mxu0 %v5236
  %v5314 = vpop.f32.mrf.mxu0
  %v5315 = vadd.f32 0.0, %v5314
  %5316 = vdwg.mxu0
  %v5321 = vrot.slane %v5275, 6
  %v5322 = vrot.slane %v5295, 4
  %v5323 = vrot.slane %v5315, 2
  %v5324 = vsel %vm430, %v5255, %v5321
  %v5325 = vsel %vm432, %v5322, %v5323
  %v5326 = vsel %vm434, %v5324, %v5325
  %v5328 = vadd.f32 %v5235, %v5326
  %v5329 = vld [vmem:[%s1659] sm:$0xff]
  %v5330 = vld [vmem:[#allocation8] sm:$0x3]
  %5331 = vmatpush.msra.mxu0 %v3691
  %5332 = vmatpush.msra.mxu0 %v3687
  %5333 = vmatpush.msra.mxu0 %v3683
  %5334 = vmatpush.msra.mxu0 %v3679
  %5335 = vmatpush.msra.mxu0 %v3675
  %5336 = vmatpush.msra.mxu0 %v3671
  %5337 = vmatpush.msra.mxu0 %v3667
  %5338 = vmatpush.msra.mxu0 %v3663
  %5339 = vmatpush.msra.mxu0 %v3659
  %5340 = vmatpush.msra.mxu0 %v3655
  %5341 = vmatpush.msra.mxu0 %v3651
  %5342 = vmatpush.msra.mxu0 %v3647
  %5343 = vmatpush.msra.mxu0 %v3643
  %5344 = vmatpush.msra.mxu0 %v3639
  %5345 = vmatpush.msra.mxu0 %v3635
  %5346 = vmatpush.msra.mxu0 %v3631
  %5347 = vmatmul.f32.gmra.mxu0 %v5330
  %v5348 = vpop.f32.mrf.mxu0
  %v5349 = vadd.f32 0.0, %v5348
  %5350 = vdwg.mxu0
  %5351 = vmatpush.msra.mxu0 %v3692
  %5352 = vmatpush.msra.mxu0 %v3688
  %5353 = vmatpush.msra.mxu0 %v3684
  %5354 = vmatpush.msra.mxu0 %v3680
  %5355 = vmatpush.msra.mxu0 %v3676
  %5356 = vmatpush.msra.mxu0 %v3672
  %5357 = vmatpush.msra.mxu0 %v3668
  %5358 = vmatpush.msra.mxu0 %v3664
  %5359 = vmatpush.msra.mxu0 %v3660
  %5360 = vmatpush.msra.mxu0 %v3656
  %5361 = vmatpush.msra.mxu0 %v3652
  %5362 = vmatpush.msra.mxu0 %v3648
  %5363 = vmatpush.msra.mxu0 %v3644
  %5364 = vmatpush.msra.mxu0 %v3640
  %5365 = vmatpush.msra.mxu0 %v3636
  %5366 = vmatpush.msra.mxu0 %v3632
  %5367 = vmatmul.f32.gmra.mxu0 %v5330
  %v5368 = vpop.f32.mrf.mxu0
  %v5369 = vadd.f32 0.0, %v5368
  %5370 = vdwg.mxu0
  %5371 = vmatpush.msra.mxu0 %v3693
  %5372 = vmatpush.msra.mxu0 %v3689
  %5373 = vmatpush.msra.mxu0 %v3685
  %5374 = vmatpush.msra.mxu0 %v3681
  %5375 = vmatpush.msra.mxu0 %v3677
  %5376 = vmatpush.msra.mxu0 %v3673
  %5377 = vmatpush.msra.mxu0 %v3669
  %5378 = vmatpush.msra.mxu0 %v3665
  %5379 = vmatpush.msra.mxu0 %v3661
  %5380 = vmatpush.msra.mxu0 %v3657
  %5381 = vmatpush.msra.mxu0 %v3653
  %5382 = vmatpush.msra.mxu0 %v3649
  %5383 = vmatpush.msra.mxu0 %v3645
  %5384 = vmatpush.msra.mxu0 %v3641
  %5385 = vmatpush.msra.mxu0 %v3637
  %5386 = vmatpush.msra.mxu0 %v3633
  %5387 = vmatmul.f32.gmra.mxu0 %v5330
  %v5388 = vpop.f32.mrf.mxu0
  %v5389 = vadd.f32 0.0, %v5388
  %5390 = vdwg.mxu0
  %5391 = vmatpush.msra.mxu0 %v3694
  %5392 = vmatpush.msra.mxu0 %v3690
  %5393 = vmatpush.msra.mxu0 %v3686
  %5394 = vmatpush.msra.mxu0 %v3682
  %5395 = vmatpush.msra.mxu0 %v3678
  %5396 = vmatpush.msra.mxu0 %v3674
  %5397 = vmatpush.msra.mxu0 %v3670
  %5398 = vmatpush.msra.mxu0 %v3666
  %5399 = vmatpush.msra.mxu0 %v3662
  %5400 = vmatpush.msra.mxu0 %v3658
  %5401 = vmatpush.msra.mxu0 %v3654
  %5402 = vmatpush.msra.mxu0 %v3650
  %5403 = vmatpush.msra.mxu0 %v3646
  %5404 = vmatpush.msra.mxu0 %v3642
  %5405 = vmatpush.msra.mxu0 %v3638
  %5406 = vmatpush.msra.mxu0 %v3634
  %5407 = vmatmul.f32.gmra.mxu0 %v5330
  %v5408 = vpop.f32.mrf.mxu0
  %v5409 = vadd.f32 0.0, %v5408
  %5410 = vdwg.mxu0
  %v5415 = vrot.slane %v5369, 6
  %v5416 = vrot.slane %v5389, 4
  %v5417 = vrot.slane %v5409, 2
  %v5418 = vsel %vm430, %v5349, %v5415
  %v5419 = vsel %vm432, %v5416, %v5417
  %v5420 = vsel %vm434, %v5418, %v5419
  %v5422 = vadd.f32 %v5329, %v5420
  %v5423 = vld [vmem:[#allocation7] sm:$0x3]
  %v5424 = vxor.u32 %v5328, 2147483648
  %v5425 = vmul.f32 %v5424, 1.442695
  %v5426 = vpow.pop %v5425
  %v5427 = vadd.f32 %v5426, 1.0
  %v5428 = vrcp.pop %v5427
  %v5429 = vmul.f32 %v5427, %v5428
  %v5430 = vsub.f32 1.0, %v5429
  %v5431 = vmul.f32 %v5428, %v5430
  %v5432 = vadd.f32 %v5428, %v5431
  %vm5433 = vweird.f32 %v5427
  %vm5434 = vweird.f32 %v5428
  %vm5435 = vmor %vm5433, %vm5434
  %v5436 = vsel %vm5435, %v5428, %v5432
  %v5437 = vand.u32 2147483647, %v5427
  %vm5438 = vcmp.eq.f32.partialorder %v5437, 8.507059e+37
  %v5439 = vand.u32 %v5427, 2147483648
  %v5440 = vor.u32 1.1754944e-38, %v5439
  %v5441 = vsel %vm5438, %v5440, %v5436
  %v5442 = vmul.f32 1.0, %v5441
  %v5444 = vrot.slane %v5328, 2
  %v5446 = vxor.u32 %v5444, 2147483648
  %v5447 = vmul.f32 %v5446, 1.442695
  %v5448 = vpow.pop %v5447
  %v5449 = vadd.f32 %v5448, 1.0
  %v5450 = vrcp.pop %v5449
  %v5451 = vmul.f32 %v5449, %v5450
  %v5452 = vsub.f32 1.0, %v5451
  %v5453 = vmul.f32 %v5450, %v5452
  %v5454 = vadd.f32 %v5450, %v5453
  %vm5455 = vweird.f32 %v5449
  %vm5456 = vweird.f32 %v5450
  %vm5457 = vmor %vm5455, %vm5456
  %v5458 = vsel %vm5457, %v5450, %v5454
  %v5459 = vand.u32 2147483647, %v5449
  %vm5460 = vcmp.eq.f32.partialorder %v5459, 8.507059e+37
  %v5461 = vand.u32 %v5449, 2147483648
  %v5462 = vor.u32 1.1754944e-38, %v5461
  %v5463 = vsel %vm5460, %v5462, %v5458
  %v5464 = vmul.f32 1.0, %v5463
  %v5465 = vrot.slane %v5328, 4
  %v5467 = vtanh.pop %v5465
  %v5468 = vrot.slane %v5328, 6
  %v5470 = vxor.u32 %v5468, 2147483648
  %v5471 = vmul.f32 %v5470, 1.442695
  %v5472 = vpow.pop %v5471
  %v5473 = vadd.f32 %v5472, 1.0
  %v5474 = vrcp.pop %v5473
  %v5475 = vmul.f32 %v5473, %v5474
  %v5476 = vsub.f32 1.0, %v5475
  %v5477 = vmul.f32 %v5474, %v5476
  %v5478 = vadd.f32 %v5474, %v5477
  %vm5479 = vweird.f32 %v5473
  %vm5480 = vweird.f32 %v5474
  %vm5481 = vmor %vm5479, %vm5480
  %v5482 = vsel %vm5481, %v5474, %v5478
  %v5483 = vand.u32 2147483647, %v5473
  %vm5484 = vcmp.eq.f32.partialorder %v5483, 8.507059e+37
  %v5485 = vand.u32 %v5473, 2147483648
  %v5486 = vor.u32 1.1754944e-38, %v5485
  %v5487 = vsel %vm5484, %v5486, %v5482
  %v5488 = vmul.f32 1.0, %v5487
  %v5489 = vmul.f32 %v5464, %v5423
  %v5490 = vmul.f32 %v5442, %v5467
  %v5491 = vadd.f32 %v5489, %v5490
  %v5492 = vtanh.pop %v5491
  %v5493 = vmul.f32 %v5488, %v5492
  %v5494 = vld [vmem:[#allocation9] sm:$0x3]
  %v5495 = vxor.u32 %v5422, 2147483648
  %v5496 = vmul.f32 %v5495, 1.442695
  %v5497 = vpow.pop %v5496
  %v5498 = vadd.f32 %v5497, 1.0
  %v5499 = vrcp.pop %v5498
  %v5500 = vmul.f32 %v5498, %v5499
  %v5501 = vsub.f32 1.0, %v5500
  %v5502 = vmul.f32 %v5499, %v5501
  %v5503 = vadd.f32 %v5499, %v5502
  %vm5504 = vweird.f32 %v5498
  %vm5505 = vweird.f32 %v5499
  %vm5506 = vmor %vm5504, %vm5505
  %v5507 = vsel %vm5506, %v5499, %v5503
  %v5508 = vand.u32 2147483647, %v5498
  %vm5509 = vcmp.eq.f32.partialorder %v5508, 8.507059e+37
  %v5510 = vand.u32 %v5498, 2147483648
  %v5511 = vor.u32 1.1754944e-38, %v5510
  %v5512 = vsel %vm5509, %v5511, %v5507
  %v5513 = vmul.f32 1.0, %v5512
  %v5515 = vrot.slane %v5422, 2
  %v5517 = vxor.u32 %v5515, 2147483648
  %v5518 = vmul.f32 %v5517, 1.442695
  %v5519 = vpow.pop %v5518
  %v5520 = vadd.f32 %v5519, 1.0
  %v5521 = vrcp.pop %v5520
  %v5522 = vmul.f32 %v5520, %v5521
  %v5523 = vsub.f32 1.0, %v5522
  %v5524 = vmul.f32 %v5521, %v5523
  %v5525 = vadd.f32 %v5521, %v5524
  %vm5526 = vweird.f32 %v5520
  %vm5527 = vweird.f32 %v5521
  %vm5528 = vmor %vm5526, %vm5527
  %v5529 = vsel %vm5528, %v5521, %v5525
  %v5530 = vand.u32 2147483647, %v5520
  %vm5531 = vcmp.eq.f32.partialorder %v5530, 8.507059e+37
  %v5532 = vand.u32 %v5520, 2147483648
  %v5533 = vor.u32 1.1754944e-38, %v5532
  %v5534 = vsel %vm5531, %v5533, %v5529
  %v5535 = vmul.f32 1.0, %v5534
  %v5536 = vrot.slane %v5422, 4
  %v5538 = vtanh.pop %v5536
  %v5539 = vrot.slane %v5422, 6
  %v5541 = vxor.u32 %v5539, 2147483648
  %v5542 = vmul.f32 %v5541, 1.442695
  %v5543 = vpow.pop %v5542
  %v5544 = vadd.f32 %v5543, 1.0
  %v5545 = vrcp.pop %v5544
  %v5546 = vmul.f32 %v5544, %v5545
  %v5547 = vsub.f32 1.0, %v5546
  %v5548 = vmul.f32 %v5545, %v5547
  %v5549 = vadd.f32 %v5545, %v5548
  %vm5550 = vweird.f32 %v5544
  %vm5551 = vweird.f32 %v5545
  %vm5552 = vmor %vm5550, %vm5551
  %v5553 = vsel %vm5552, %v5545, %v5549
  %v5554 = vand.u32 2147483647, %v5544
  %vm5555 = vcmp.eq.f32.partialorder %v5554, 8.507059e+37
  %v5556 = vand.u32 %v5544, 2147483648
  %v5557 = vor.u32 1.1754944e-38, %v5556
  %v5558 = vsel %vm5555, %v5557, %v5553
  %v5559 = vmul.f32 1.0, %v5558
  %v5560 = vmul.f32 %v5535, %v5494
  %v5561 = vmul.f32 %v5513, %v5538
  %v5562 = vadd.f32 %v5560, %v5561
  %v5563 = vtanh.pop %v5562
  %v5564 = vmul.f32 %v5559, %v5563
  %5565 = vst [vmem:[#allocation6] sm:$0x3] %v5493
  %5566 = vst [vmem:[#allocation7] sm:$0x3] %v5491
  %5567 = vst [vmem:[#allocation8] sm:$0x3] %v5564
  %5568 = vst [vmem:[#allocation9] sm:$0x3] %v5562
  %5569 = vst [vmem:[%s1900] sm:$0x3] %v5493
  %5570 = vst [vmem:[%s1902] sm:$0x3] %v5564
  %v5571 = vld [vmem:[%s1904] sm:$0xff]
  %v5572 = vld [vmem:[#allocation6] sm:$0x3]
  %5573 = vmatpush.msra.mxu0 %v3627
  %5574 = vmatpush.msra.mxu0 %v3623
  %5575 = vmatpush.msra.mxu0 %v3619
  %5576 = vmatpush.msra.mxu0 %v3615
  %5577 = vmatpush.msra.mxu0 %v3611
  %5578 = vmatpush.msra.mxu0 %v3607
  %5579 = vmatpush.msra.mxu0 %v3603
  %5580 = vmatpush.msra.mxu0 %v3599
  %5581 = vmatpush.msra.mxu0 %v3595
  %5582 = vmatpush.msra.mxu0 %v3591
  %5583 = vmatpush.msra.mxu0 %v3587
  %5584 = vmatpush.msra.mxu0 %v3583
  %5585 = vmatpush.msra.mxu0 %v3579
  %5586 = vmatpush.msra.mxu0 %v3575
  %5587 = vmatpush.msra.mxu0 %v3571
  %5588 = vmatpush.msra.mxu0 %v3567
  %5589 = vmatmul.f32.gmra.mxu0 %v5572
  %v5590 = vpop.f32.mrf.mxu0
  %v5591 = vadd.f32 0.0, %v5590
  %5592 = vdwg.mxu0
  %5593 = vmatpush.msra.mxu0 %v3628
  %5594 = vmatpush.msra.mxu0 %v3624
  %5595 = vmatpush.msra.mxu0 %v3620
  %5596 = vmatpush.msra.mxu0 %v3616
  %5597 = vmatpush.msra.mxu0 %v3612
  %5598 = vmatpush.msra.mxu0 %v3608
  %5599 = vmatpush.msra.mxu0 %v3604
  %5600 = vmatpush.msra.mxu0 %v3600
  %5601 = vmatpush.msra.mxu0 %v3596
  %5602 = vmatpush.msra.mxu0 %v3592
  %5603 = vmatpush.msra.mxu0 %v3588
  %5604 = vmatpush.msra.mxu0 %v3584
  %5605 = vmatpush.msra.mxu0 %v3580
  %5606 = vmatpush.msra.mxu0 %v3576
  %5607 = vmatpush.msra.mxu0 %v3572
  %5608 = vmatpush.msra.mxu0 %v3568
  %5609 = vmatmul.f32.gmra.mxu0 %v5572
  %v5610 = vpop.f32.mrf.mxu0
  %v5611 = vadd.f32 0.0, %v5610
  %5612 = vdwg.mxu0
  %5613 = vmatpush.msra.mxu0 %v3629
  %5614 = vmatpush.msra.mxu0 %v3625
  %5615 = vmatpush.msra.mxu0 %v3621
  %5616 = vmatpush.msra.mxu0 %v3617
  %5617 = vmatpush.msra.mxu0 %v3613
  %5618 = vmatpush.msra.mxu0 %v3609
  %5619 = vmatpush.msra.mxu0 %v3605
  %5620 = vmatpush.msra.mxu0 %v3601
  %5621 = vmatpush.msra.mxu0 %v3597
  %5622 = vmatpush.msra.mxu0 %v3593
  %5623 = vmatpush.msra.mxu0 %v3589
  %5624 = vmatpush.msra.mxu0 %v3585
  %5625 = vmatpush.msra.mxu0 %v3581
  %5626 = vmatpush.msra.mxu0 %v3577
  %5627 = vmatpush.msra.mxu0 %v3573
  %5628 = vmatpush.msra.mxu0 %v3569
  %5629 = vmatmul.f32.gmra.mxu0 %v5572
  %v5630 = vpop.f32.mrf.mxu0
  %v5631 = vadd.f32 0.0, %v5630
  %5632 = vdwg.mxu0
  %5633 = vmatpush.msra.mxu0 %v3630
  %5634 = vmatpush.msra.mxu0 %v3626
  %5635 = vmatpush.msra.mxu0 %v3622
  %5636 = vmatpush.msra.mxu0 %v3618
  %5637 = vmatpush.msra.mxu0 %v3614
  %5638 = vmatpush.msra.mxu0 %v3610
  %5639 = vmatpush.msra.mxu0 %v3606
  %5640 = vmatpush.msra.mxu0 %v3602
  %5641 = vmatpush.msra.mxu0 %v3598
  %5642 = vmatpush.msra.mxu0 %v3594
  %5643 = vmatpush.msra.mxu0 %v3590
  %5644 = vmatpush.msra.mxu0 %v3586
  %5645 = vmatpush.msra.mxu0 %v3582
  %5646 = vmatpush.msra.mxu0 %v3578
  %5647 = vmatpush.msra.mxu0 %v3574
  %5648 = vmatpush.msra.mxu0 %v3570
  %5649 = vmatmul.f32.gmra.mxu0 %v5572
  %v5650 = vpop.f32.mrf.mxu0
  %v5651 = vadd.f32 0.0, %v5650
  %5652 = vdwg.mxu0
  %v5657 = vrot.slane %v5611, 6
  %v5658 = vrot.slane %v5631, 4
  %v5659 = vrot.slane %v5651, 2
  %v5660 = vsel %vm430, %v5591, %v5657
  %v5661 = vsel %vm432, %v5658, %v5659
  %v5662 = vsel %vm434, %v5660, %v5661
  %v5664 = vadd.f32 %v5571, %v5662
  %v5665 = vld [vmem:[%s1999] sm:$0xff]
  %v5666 = vld [vmem:[#allocation8] sm:$0x3]
  %5667 = vmatpush.msra.mxu0 %v3691
  %5668 = vmatpush.msra.mxu0 %v3687
  %5669 = vmatpush.msra.mxu0 %v3683
  %5670 = vmatpush.msra.mxu0 %v3679
  %5671 = vmatpush.msra.mxu0 %v3675
  %5672 = vmatpush.msra.mxu0 %v3671
  %5673 = vmatpush.msra.mxu0 %v3667
  %5674 = vmatpush.msra.mxu0 %v3663
  %5675 = vmatpush.msra.mxu0 %v3659
  %5676 = vmatpush.msra.mxu0 %v3655
  %5677 = vmatpush.msra.mxu0 %v3651
  %5678 = vmatpush.msra.mxu0 %v3647
  %5679 = vmatpush.msra.mxu0 %v3643
  %5680 = vmatpush.msra.mxu0 %v3639
  %5681 = vmatpush.msra.mxu0 %v3635
  %5682 = vmatpush.msra.mxu0 %v3631
  %5683 = vmatmul.f32.gmra.mxu0 %v5666
  %v5684 = vpop.f32.mrf.mxu0
  %v5685 = vadd.f32 0.0, %v5684
  %5686 = vdwg.mxu0
  %5687 = vmatpush.msra.mxu0 %v3692
  %5688 = vmatpush.msra.mxu0 %v3688
  %5689 = vmatpush.msra.mxu0 %v3684
  %5690 = vmatpush.msra.mxu0 %v3680
  %5691 = vmatpush.msra.mxu0 %v3676
  %5692 = vmatpush.msra.mxu0 %v3672
  %5693 = vmatpush.msra.mxu0 %v3668
  %5694 = vmatpush.msra.mxu0 %v3664
  %5695 = vmatpush.msra.mxu0 %v3660
  %5696 = vmatpush.msra.mxu0 %v3656
  %5697 = vmatpush.msra.mxu0 %v3652
  %5698 = vmatpush.msra.mxu0 %v3648
  %5699 = vmatpush.msra.mxu0 %v3644
  %5700 = vmatpush.msra.mxu0 %v3640
  %5701 = vmatpush.msra.mxu0 %v3636
  %5702 = vmatpush.msra.mxu0 %v3632
  %5703 = vmatmul.f32.gmra.mxu0 %v5666
  %v5704 = vpop.f32.mrf.mxu0
  %v5705 = vadd.f32 0.0, %v5704
  %5706 = vdwg.mxu0
  %5707 = vmatpush.msra.mxu0 %v3693
  %5708 = vmatpush.msra.mxu0 %v3689
  %5709 = vmatpush.msra.mxu0 %v3685
  %5710 = vmatpush.msra.mxu0 %v3681
  %5711 = vmatpush.msra.mxu0 %v3677
  %5712 = vmatpush.msra.mxu0 %v3673
  %5713 = vmatpush.msra.mxu0 %v3669
  %5714 = vmatpush.msra.mxu0 %v3665
  %5715 = vmatpush.msra.mxu0 %v3661
  %5716 = vmatpush.msra.mxu0 %v3657
  %5717 = vmatpush.msra.mxu0 %v3653
  %5718 = vmatpush.msra.mxu0 %v3649
  %5719 = vmatpush.msra.mxu0 %v3645
  %5720 = vmatpush.msra.mxu0 %v3641
  %5721 = vmatpush.msra.mxu0 %v3637
  %5722 = vmatpush.msra.mxu0 %v3633
  %5723 = vmatmul.f32.gmra.mxu0 %v5666
  %v5724 = vpop.f32.mrf.mxu0
  %v5725 = vadd.f32 0.0, %v5724
  %5726 = vdwg.mxu0
  %5727 = vmatpush.msra.mxu0 %v3694
  %5728 = vmatpush.msra.mxu0 %v3690
  %5729 = vmatpush.msra.mxu0 %v3686
  %5730 = vmatpush.msra.mxu0 %v3682
  %5731 = vmatpush.msra.mxu0 %v3678
  %5732 = vmatpush.msra.mxu0 %v3674
  %5733 = vmatpush.msra.mxu0 %v3670
  %5734 = vmatpush.msra.mxu0 %v3666
  %5735 = vmatpush.msra.mxu0 %v3662
  %5736 = vmatpush.msra.mxu0 %v3658
  %5737 = vmatpush.msra.mxu0 %v3654
  %5738 = vmatpush.msra.mxu0 %v3650
  %5739 = vmatpush.msra.mxu0 %v3646
  %5740 = vmatpush.msra.mxu0 %v3642
  %5741 = vmatpush.msra.mxu0 %v3638
  %5742 = vmatpush.msra.mxu0 %v3634
  %5743 = vmatmul.f32.gmra.mxu0 %v5666
  %v5744 = vpop.f32.mrf.mxu0
  %v5745 = vadd.f32 0.0, %v5744
  %5746 = vdwg.mxu0
  %v5751 = vrot.slane %v5705, 6
  %v5752 = vrot.slane %v5725, 4
  %v5753 = vrot.slane %v5745, 2
  %v5754 = vsel %vm430, %v5685, %v5751
  %v5755 = vsel %vm432, %v5752, %v5753
  %v5756 = vsel %vm434, %v5754, %v5755
  %v5758 = vadd.f32 %v5665, %v5756
  %v5759 = vld [vmem:[#allocation7] sm:$0x3]
  %v5760 = vxor.u32 %v5664, 2147483648
  %v5761 = vmul.f32 %v5760, 1.442695
  %v5762 = vpow.pop %v5761
  %v5763 = vadd.f32 %v5762, 1.0
  %v5764 = vrcp.pop %v5763
  %v5765 = vmul.f32 %v5763, %v5764
  %v5766 = vsub.f32 1.0, %v5765
  %v5767 = vmul.f32 %v5764, %v5766
  %v5768 = vadd.f32 %v5764, %v5767
  %vm5769 = vweird.f32 %v5763
  %vm5770 = vweird.f32 %v5764
  %vm5771 = vmor %vm5769, %vm5770
  %v5772 = vsel %vm5771, %v5764, %v5768
  %v5773 = vand.u32 2147483647, %v5763
  %vm5774 = vcmp.eq.f32.partialorder %v5773, 8.507059e+37
  %v5775 = vand.u32 %v5763, 2147483648
  %v5776 = vor.u32 1.1754944e-38, %v5775
  %v5777 = vsel %vm5774, %v5776, %v5772
  %v5778 = vmul.f32 1.0, %v5777
  %v5780 = vrot.slane %v5664, 2
  %v5782 = vxor.u32 %v5780, 2147483648
  %v5783 = vmul.f32 %v5782, 1.442695
  %v5784 = vpow.pop %v5783
  %v5785 = vadd.f32 %v5784, 1.0
  %v5786 = vrcp.pop %v5785
  %v5787 = vmul.f32 %v5785, %v5786
  %v5788 = vsub.f32 1.0, %v5787
  %v5789 = vmul.f32 %v5786, %v5788
  %v5790 = vadd.f32 %v5786, %v5789
  %vm5791 = vweird.f32 %v5785
  %vm5792 = vweird.f32 %v5786
  %vm5793 = vmor %vm5791, %vm5792
  %v5794 = vsel %vm5793, %v5786, %v5790
  %v5795 = vand.u32 2147483647, %v5785
  %vm5796 = vcmp.eq.f32.partialorder %v5795, 8.507059e+37
  %v5797 = vand.u32 %v5785, 2147483648
  %v5798 = vor.u32 1.1754944e-38, %v5797
  %v5799 = vsel %vm5796, %v5798, %v5794
  %v5800 = vmul.f32 1.0, %v5799
  %v5801 = vrot.slane %v5664, 4
  %v5803 = vtanh.pop %v5801
  %v5804 = vrot.slane %v5664, 6
  %v5806 = vxor.u32 %v5804, 2147483648
  %v5807 = vmul.f32 %v5806, 1.442695
  %v5808 = vpow.pop %v5807
  %v5809 = vadd.f32 %v5808, 1.0
  %v5810 = vrcp.pop %v5809
  %v5811 = vmul.f32 %v5809, %v5810
  %v5812 = vsub.f32 1.0, %v5811
  %v5813 = vmul.f32 %v5810, %v5812
  %v5814 = vadd.f32 %v5810, %v5813
  %vm5815 = vweird.f32 %v5809
  %vm5816 = vweird.f32 %v5810
  %vm5817 = vmor %vm5815, %vm5816
  %v5818 = vsel %vm5817, %v5810, %v5814
  %v5819 = vand.u32 2147483647, %v5809
  %vm5820 = vcmp.eq.f32.partialorder %v5819, 8.507059e+37
  %v5821 = vand.u32 %v5809, 2147483648
  %v5822 = vor.u32 1.1754944e-38, %v5821
  %v5823 = vsel %vm5820, %v5822, %v5818
  %v5824 = vmul.f32 1.0, %v5823
  %v5825 = vmul.f32 %v5800, %v5759
  %v5826 = vmul.f32 %v5778, %v5803
  %v5827 = vadd.f32 %v5825, %v5826
  %v5828 = vtanh.pop %v5827
  %v5829 = vmul.f32 %v5824, %v5828
  %v5830 = vld [vmem:[#allocation9] sm:$0x3]
  %v5831 = vxor.u32 %v5758, 2147483648
  %v5832 = vmul.f32 %v5831, 1.442695
  %v5833 = vpow.pop %v5832
  %v5834 = vadd.f32 %v5833, 1.0
  %v5835 = vrcp.pop %v5834
  %v5836 = vmul.f32 %v5834, %v5835
  %v5837 = vsub.f32 1.0, %v5836
  %v5838 = vmul.f32 %v5835, %v5837
  %v5839 = vadd.f32 %v5835, %v5838
  %vm5840 = vweird.f32 %v5834
  %vm5841 = vweird.f32 %v5835
  %vm5842 = vmor %vm5840, %vm5841
  %v5843 = vsel %vm5842, %v5835, %v5839
  %v5844 = vand.u32 2147483647, %v5834
  %vm5845 = vcmp.eq.f32.partialorder %v5844, 8.507059e+37
  %v5846 = vand.u32 %v5834, 2147483648
  %v5847 = vor.u32 1.1754944e-38, %v5846
  %v5848 = vsel %vm5845, %v5847, %v5843
  %v5849 = vmul.f32 1.0, %v5848
  %v5851 = vrot.slane %v5758, 2
  %v5853 = vxor.u32 %v5851, 2147483648
  %v5854 = vmul.f32 %v5853, 1.442695
  %v5855 = vpow.pop %v5854
  %v5856 = vadd.f32 %v5855, 1.0
  %v5857 = vrcp.pop %v5856
  %v5858 = vmul.f32 %v5856, %v5857
  %v5859 = vsub.f32 1.0, %v5858
  %v5860 = vmul.f32 %v5857, %v5859
  %v5861 = vadd.f32 %v5857, %v5860
  %vm5862 = vweird.f32 %v5856
  %vm5863 = vweird.f32 %v5857
  %vm5864 = vmor %vm5862, %vm5863
  %v5865 = vsel %vm5864, %v5857, %v5861
  %v5866 = vand.u32 2147483647, %v5856
  %vm5867 = vcmp.eq.f32.partialorder %v5866, 8.507059e+37
  %v5868 = vand.u32 %v5856, 2147483648
  %v5869 = vor.u32 1.1754944e-38, %v5868
  %v5870 = vsel %vm5867, %v5869, %v5865
  %v5871 = vmul.f32 1.0, %v5870
  %v5872 = vrot.slane %v5758, 4
  %v5874 = vtanh.pop %v5872
  %v5875 = vrot.slane %v5758, 6
  %v5877 = vxor.u32 %v5875, 2147483648
  %v5878 = vmul.f32 %v5877, 1.442695
  %v5879 = vpow.pop %v5878
  %v5880 = vadd.f32 %v5879, 1.0
  %v5881 = vrcp.pop %v5880
  %v5882 = vmul.f32 %v5880, %v5881
  %v5883 = vsub.f32 1.0, %v5882
  %v5884 = vmul.f32 %v5881, %v5883
  %v5885 = vadd.f32 %v5881, %v5884
  %vm5886 = vweird.f32 %v5880
  %vm5887 = vweird.f32 %v5881
  %vm5888 = vmor %vm5886, %vm5887
  %v5889 = vsel %vm5888, %v5881, %v5885
  %v5890 = vand.u32 2147483647, %v5880
  %vm5891 = vcmp.eq.f32.partialorder %v5890, 8.507059e+37
  %v5892 = vand.u32 %v5880, 2147483648
  %v5893 = vor.u32 1.1754944e-38, %v5892
  %v5894 = vsel %vm5891, %v5893, %v5889
  %v5895 = vmul.f32 1.0, %v5894
  %v5896 = vmul.f32 %v5871, %v5830
  %v5897 = vmul.f32 %v5849, %v5874
  %v5898 = vadd.f32 %v5896, %v5897
  %v5899 = vtanh.pop %v5898
  %v5900 = vmul.f32 %v5895, %v5899
  %5901 = vst [vmem:[#allocation6] sm:$0x3] %v5829
  %5902 = vst [vmem:[#allocation7] sm:$0x3] %v5827
  %5903 = vst [vmem:[#allocation8] sm:$0x3] %v5900
  %5904 = vst [vmem:[#allocation9] sm:$0x3] %v5898
  %5905 = vst [vmem:[%s2240] sm:$0x3] %v5829
  %5906 = vst [vmem:[%s2242] sm:$0x3] %v5900
  %v5907 = vld [vmem:[%s2244] sm:$0xff]
  %v5908 = vld [vmem:[#allocation6] sm:$0x3]
  %5909 = vmatpush.msra.mxu0 %v3627
  %5910 = vmatpush.msra.mxu0 %v3623
  %5911 = vmatpush.msra.mxu0 %v3619
  %5912 = vmatpush.msra.mxu0 %v3615
  %5913 = vmatpush.msra.mxu0 %v3611
  %5914 = vmatpush.msra.mxu0 %v3607
  %5915 = vmatpush.msra.mxu0 %v3603
  %5916 = vmatpush.msra.mxu0 %v3599
  %5917 = vmatpush.msra.mxu0 %v3595
  %5918 = vmatpush.msra.mxu0 %v3591
  %5919 = vmatpush.msra.mxu0 %v3587
  %5920 = vmatpush.msra.mxu0 %v3583
  %5921 = vmatpush.msra.mxu0 %v3579
  %5922 = vmatpush.msra.mxu0 %v3575
  %5923 = vmatpush.msra.mxu0 %v3571
  %5924 = vmatpush.msra.mxu0 %v3567
  %5925 = vmatmul.f32.gmra.mxu0 %v5908
  %v5926 = vpop.f32.mrf.mxu0
  %v5927 = vadd.f32 0.0, %v5926
  %5928 = vdwg.mxu0
  %5929 = vmatpush.msra.mxu0 %v3628
  %5930 = vmatpush.msra.mxu0 %v3624
  %5931 = vmatpush.msra.mxu0 %v3620
  %5932 = vmatpush.msra.mxu0 %v3616
  %5933 = vmatpush.msra.mxu0 %v3612
  %5934 = vmatpush.msra.mxu0 %v3608
  %5935 = vmatpush.msra.mxu0 %v3604
  %5936 = vmatpush.msra.mxu0 %v3600
  %5937 = vmatpush.msra.mxu0 %v3596
  %5938 = vmatpush.msra.mxu0 %v3592
  %5939 = vmatpush.msra.mxu0 %v3588
  %5940 = vmatpush.msra.mxu0 %v3584
  %5941 = vmatpush.msra.mxu0 %v3580
  %5942 = vmatpush.msra.mxu0 %v3576
  %5943 = vmatpush.msra.mxu0 %v3572
  %5944 = vmatpush.msra.mxu0 %v3568
  %5945 = vmatmul.f32.gmra.mxu0 %v5908
  %v5946 = vpop.f32.mrf.mxu0
  %v5947 = vadd.f32 0.0, %v5946
  %5948 = vdwg.mxu0
  %5949 = vmatpush.msra.mxu0 %v3629
  %5950 = vmatpush.msra.mxu0 %v3625
  %5951 = vmatpush.msra.mxu0 %v3621
  %5952 = vmatpush.msra.mxu0 %v3617
  %5953 = vmatpush.msra.mxu0 %v3613
  %5954 = vmatpush.msra.mxu0 %v3609
  %5955 = vmatpush.msra.mxu0 %v3605
  %5956 = vmatpush.msra.mxu0 %v3601
  %5957 = vmatpush.msra.mxu0 %v3597
  %5958 = vmatpush.msra.mxu0 %v3593
  %5959 = vmatpush.msra.mxu0 %v3589
  %5960 = vmatpush.msra.mxu0 %v3585
  %5961 = vmatpush.msra.mxu0 %v3581
  %5962 = vmatpush.msra.mxu0 %v3577
  %5963 = vmatpush.msra.mxu0 %v3573
  %5964 = vmatpush.msra.mxu0 %v3569
  %5965 = vmatmul.f32.gmra.mxu0 %v5908
  %v5966 = vpop.f32.mrf.mxu0
  %v5967 = vadd.f32 0.0, %v5966
  %5968 = vdwg.mxu0
  %5969 = vmatpush.msra.mxu0 %v3630
  %5970 = vmatpush.msra.mxu0 %v3626
  %5971 = vmatpush.msra.mxu0 %v3622
  %5972 = vmatpush.msra.mxu0 %v3618
  %5973 = vmatpush.msra.mxu0 %v3614
  %5974 = vmatpush.msra.mxu0 %v3610
  %5975 = vmatpush.msra.mxu0 %v3606
  %5976 = vmatpush.msra.mxu0 %v3602
  %5977 = vmatpush.msra.mxu0 %v3598
  %5978 = vmatpush.msra.mxu0 %v3594
  %5979 = vmatpush.msra.mxu0 %v3590
  %5980 = vmatpush.msra.mxu0 %v3586
  %5981 = vmatpush.msra.mxu0 %v3582
  %5982 = vmatpush.msra.mxu0 %v3578
  %5983 = vmatpush.msra.mxu0 %v3574
  %5984 = vmatpush.msra.mxu0 %v3570
  %5985 = vmatmul.f32.gmra.mxu0 %v5908
  %v5986 = vpop.f32.mrf.mxu0
  %v5987 = vadd.f32 0.0, %v5986
  %5988 = vdwg.mxu0
  %v5993 = vrot.slane %v5947, 6
  %v5994 = vrot.slane %v5967, 4
  %v5995 = vrot.slane %v5987, 2
  %v5996 = vsel %vm430, %v5927, %v5993
  %v5997 = vsel %vm432, %v5994, %v5995
  %v5998 = vsel %vm434, %v5996, %v5997
  %v6000 = vadd.f32 %v5907, %v5998
  %v6001 = vld [vmem:[%s2339] sm:$0xff]
  %v6002 = vld [vmem:[#allocation8] sm:$0x3]
  %6003 = vmatpush.msra.mxu0 %v3691
  %6004 = vmatpush.msra.mxu0 %v3687
  %6005 = vmatpush.msra.mxu0 %v3683
  %6006 = vmatpush.msra.mxu0 %v3679
  %6007 = vmatpush.msra.mxu0 %v3675
  %6008 = vmatpush.msra.mxu0 %v3671
  %6009 = vmatpush.msra.mxu0 %v3667
  %6010 = vmatpush.msra.mxu0 %v3663
  %6011 = vmatpush.msra.mxu0 %v3659
  %6012 = vmatpush.msra.mxu0 %v3655
  %6013 = vmatpush.msra.mxu0 %v3651
  %6014 = vmatpush.msra.mxu0 %v3647
  %6015 = vmatpush.msra.mxu0 %v3643
  %6016 = vmatpush.msra.mxu0 %v3639
  %6017 = vmatpush.msra.mxu0 %v3635
  %6018 = vmatpush.msra.mxu0 %v3631
  %6019 = vmatmul.f32.gmra.mxu0 %v6002
  %v6020 = vpop.f32.mrf.mxu0
  %v6021 = vadd.f32 0.0, %v6020
  %6022 = vdwg.mxu0
  %6023 = vmatpush.msra.mxu0 %v3692
  %6024 = vmatpush.msra.mxu0 %v3688
  %6025 = vmatpush.msra.mxu0 %v3684
  %6026 = vmatpush.msra.mxu0 %v3680
  %6027 = vmatpush.msra.mxu0 %v3676
  %6028 = vmatpush.msra.mxu0 %v3672
  %6029 = vmatpush.msra.mxu0 %v3668
  %6030 = vmatpush.msra.mxu0 %v3664
  %6031 = vmatpush.msra.mxu0 %v3660
  %6032 = vmatpush.msra.mxu0 %v3656
  %6033 = vmatpush.msra.mxu0 %v3652
  %6034 = vmatpush.msra.mxu0 %v3648
  %6035 = vmatpush.msra.mxu0 %v3644
  %6036 = vmatpush.msra.mxu0 %v3640
  %6037 = vmatpush.msra.mxu0 %v3636
  %6038 = vmatpush.msra.mxu0 %v3632
  %6039 = vmatmul.f32.gmra.mxu0 %v6002
  %v6040 = vpop.f32.mrf.mxu0
  %v6041 = vadd.f32 0.0, %v6040
  %6042 = vdwg.mxu0
  %6043 = vmatpush.msra.mxu0 %v3693
  %6044 = vmatpush.msra.mxu0 %v3689
  %6045 = vmatpush.msra.mxu0 %v3685
  %6046 = vmatpush.msra.mxu0 %v3681
  %6047 = vmatpush.msra.mxu0 %v3677
  %6048 = vmatpush.msra.mxu0 %v3673
  %6049 = vmatpush.msra.mxu0 %v3669
  %6050 = vmatpush.msra.mxu0 %v3665
  %6051 = vmatpush.msra.mxu0 %v3661
  %6052 = vmatpush.msra.mxu0 %v3657
  %6053 = vmatpush.msra.mxu0 %v3653
  %6054 = vmatpush.msra.mxu0 %v3649
  %6055 = vmatpush.msra.mxu0 %v3645
  %6056 = vmatpush.msra.mxu0 %v3641
  %6057 = vmatpush.msra.mxu0 %v3637
  %6058 = vmatpush.msra.mxu0 %v3633
  %6059 = vmatmul.f32.gmra.mxu0 %v6002
  %v6060 = vpop.f32.mrf.mxu0
  %v6061 = vadd.f32 0.0, %v6060
  %6062 = vdwg.mxu0
  %6063 = vmatpush.msra.mxu0 %v3694
  %6064 = vmatpush.msra.mxu0 %v3690
  %6065 = vmatpush.msra.mxu0 %v3686
  %6066 = vmatpush.msra.mxu0 %v3682
  %6067 = vmatpush.msra.mxu0 %v3678
  %6068 = vmatpush.msra.mxu0 %v3674
  %6069 = vmatpush.msra.mxu0 %v3670
  %6070 = vmatpush.msra.mxu0 %v3666
  %6071 = vmatpush.msra.mxu0 %v3662
  %6072 = vmatpush.msra.mxu0 %v3658
  %6073 = vmatpush.msra.mxu0 %v3654
  %6074 = vmatpush.msra.mxu0 %v3650
  %6075 = vmatpush.msra.mxu0 %v3646
  %6076 = vmatpush.msra.mxu0 %v3642
  %6077 = vmatpush.msra.mxu0 %v3638
  %6078 = vmatpush.msra.mxu0 %v3634
  %6079 = vmatmul.f32.gmra.mxu0 %v6002
  %v6080 = vpop.f32.mrf.mxu0
  %v6081 = vadd.f32 0.0, %v6080
  %6082 = vdwg.mxu0
  %v6087 = vrot.slane %v6041, 6
  %v6088 = vrot.slane %v6061, 4
  %v6089 = vrot.slane %v6081, 2
  %v6090 = vsel %vm430, %v6021, %v6087
  %v6091 = vsel %vm432, %v6088, %v6089
  %v6092 = vsel %vm434, %v6090, %v6091
  %v6094 = vadd.f32 %v6001, %v6092
  %v6095 = vld [vmem:[#allocation7] sm:$0x3]
  %v6096 = vxor.u32 %v6000, 2147483648
  %v6097 = vmul.f32 %v6096, 1.442695
  %v6098 = vpow.pop %v6097
  %v6099 = vadd.f32 %v6098, 1.0
  %v6100 = vrcp.pop %v6099
  %v6101 = vmul.f32 %v6099, %v6100
  %v6102 = vsub.f32 1.0, %v6101
  %v6103 = vmul.f32 %v6100, %v6102
  %v6104 = vadd.f32 %v6100, %v6103
  %vm6105 = vweird.f32 %v6099
  %vm6106 = vweird.f32 %v6100
  %vm6107 = vmor %vm6105, %vm6106
  %v6108 = vsel %vm6107, %v6100, %v6104
  %v6109 = vand.u32 2147483647, %v6099
  %vm6110 = vcmp.eq.f32.partialorder %v6109, 8.507059e+37
  %v6111 = vand.u32 %v6099, 2147483648
  %v6112 = vor.u32 1.1754944e-38, %v6111
  %v6113 = vsel %vm6110, %v6112, %v6108
  %v6114 = vmul.f32 1.0, %v6113
  %v6116 = vrot.slane %v6000, 2
  %v6118 = vxor.u32 %v6116, 2147483648
  %v6119 = vmul.f32 %v6118, 1.442695
  %v6120 = vpow.pop %v6119
  %v6121 = vadd.f32 %v6120, 1.0
  %v6122 = vrcp.pop %v6121
  %v6123 = vmul.f32 %v6121, %v6122
  %v6124 = vsub.f32 1.0, %v6123
  %v6125 = vmul.f32 %v6122, %v6124
  %v6126 = vadd.f32 %v6122, %v6125
  %vm6127 = vweird.f32 %v6121
  %vm6128 = vweird.f32 %v6122
  %vm6129 = vmor %vm6127, %vm6128
  %v6130 = vsel %vm6129, %v6122, %v6126
  %v6131 = vand.u32 2147483647, %v6121
  %vm6132 = vcmp.eq.f32.partialorder %v6131, 8.507059e+37
  %v6133 = vand.u32 %v6121, 2147483648
  %v6134 = vor.u32 1.1754944e-38, %v6133
  %v6135 = vsel %vm6132, %v6134, %v6130
  %v6136 = vmul.f32 1.0, %v6135
  %v6137 = vrot.slane %v6000, 4
  %v6139 = vtanh.pop %v6137
  %v6140 = vrot.slane %v6000, 6
  %v6142 = vxor.u32 %v6140, 2147483648
  %v6143 = vmul.f32 %v6142, 1.442695
  %v6144 = vpow.pop %v6143
  %v6145 = vadd.f32 %v6144, 1.0
  %v6146 = vrcp.pop %v6145
  %v6147 = vmul.f32 %v6145, %v6146
  %v6148 = vsub.f32 1.0, %v6147
  %v6149 = vmul.f32 %v6146, %v6148
  %v6150 = vadd.f32 %v6146, %v6149
  %vm6151 = vweird.f32 %v6145
  %vm6152 = vweird.f32 %v6146
  %vm6153 = vmor %vm6151, %vm6152
  %v6154 = vsel %vm6153, %v6146, %v6150
  %v6155 = vand.u32 2147483647, %v6145
  %vm6156 = vcmp.eq.f32.partialorder %v6155, 8.507059e+37
  %v6157 = vand.u32 %v6145, 2147483648
  %v6158 = vor.u32 1.1754944e-38, %v6157
  %v6159 = vsel %vm6156, %v6158, %v6154
  %v6160 = vmul.f32 1.0, %v6159
  %v6161 = vmul.f32 %v6136, %v6095
  %v6162 = vmul.f32 %v6114, %v6139
  %v6163 = vadd.f32 %v6161, %v6162
  %v6164 = vtanh.pop %v6163
  %v6165 = vmul.f32 %v6160, %v6164
  %v6166 = vld [vmem:[#allocation9] sm:$0x3]
  %v6167 = vxor.u32 %v6094, 2147483648
  %v6168 = vmul.f32 %v6167, 1.442695
  %v6169 = vpow.pop %v6168
  %v6170 = vadd.f32 %v6169, 1.0
  %v6171 = vrcp.pop %v6170
  %v6172 = vmul.f32 %v6170, %v6171
  %v6173 = vsub.f32 1.0, %v6172
  %v6174 = vmul.f32 %v6171, %v6173
  %v6175 = vadd.f32 %v6171, %v6174
  %vm6176 = vweird.f32 %v6170
  %vm6177 = vweird.f32 %v6171
  %vm6178 = vmor %vm6176, %vm6177
  %v6179 = vsel %vm6178, %v6171, %v6175
  %v6180 = vand.u32 2147483647, %v6170
  %vm6181 = vcmp.eq.f32.partialorder %v6180, 8.507059e+37
  %v6182 = vand.u32 %v6170, 2147483648
  %v6183 = vor.u32 1.1754944e-38, %v6182
  %v6184 = vsel %vm6181, %v6183, %v6179
  %v6185 = vmul.f32 1.0, %v6184
  %v6187 = vrot.slane %v6094, 2
  %v6189 = vxor.u32 %v6187, 2147483648
  %v6190 = vmul.f32 %v6189, 1.442695
  %v6191 = vpow.pop %v6190
  %v6192 = vadd.f32 %v6191, 1.0
  %v6193 = vrcp.pop %v6192
  %v6194 = vmul.f32 %v6192, %v6193
  %v6195 = vsub.f32 1.0, %v6194
  %v6196 = vmul.f32 %v6193, %v6195
  %v6197 = vadd.f32 %v6193, %v6196
  %vm6198 = vweird.f32 %v6192
  %vm6199 = vweird.f32 %v6193
  %vm6200 = vmor %vm6198, %vm6199
  %v6201 = vsel %vm6200, %v6193, %v6197
  %v6202 = vand.u32 2147483647, %v6192
  %vm6203 = vcmp.eq.f32.partialorder %v6202, 8.507059e+37
  %v6204 = vand.u32 %v6192, 2147483648
  %v6205 = vor.u32 1.1754944e-38, %v6204
  %v6206 = vsel %vm6203, %v6205, %v6201
  %v6207 = vmul.f32 1.0, %v6206
  %v6208 = vrot.slane %v6094, 4
  %v6210 = vtanh.pop %v6208
  %v6211 = vrot.slane %v6094, 6
  %v6213 = vxor.u32 %v6211, 2147483648
  %v6214 = vmul.f32 %v6213, 1.442695
  %v6215 = vpow.pop %v6214
  %v6216 = vadd.f32 %v6215, 1.0
  %v6217 = vrcp.pop %v6216
  %v6218 = vmul.f32 %v6216, %v6217
  %v6219 = vsub.f32 1.0, %v6218
  %v6220 = vmul.f32 %v6217, %v6219
  %v6221 = vadd.f32 %v6217, %v6220
  %vm6222 = vweird.f32 %v6216
  %vm6223 = vweird.f32 %v6217
  %vm6224 = vmor %vm6222, %vm6223
  %v6225 = vsel %vm6224, %v6217, %v6221
  %v6226 = vand.u32 2147483647, %v6216
  %vm6227 = vcmp.eq.f32.partialorder %v6226, 8.507059e+37
  %v6228 = vand.u32 %v6216, 2147483648
  %v6229 = vor.u32 1.1754944e-38, %v6228
  %v6230 = vsel %vm6227, %v6229, %v6225
  %v6231 = vmul.f32 1.0, %v6230
  %v6232 = vmul.f32 %v6207, %v6166
  %v6233 = vmul.f32 %v6185, %v6210
  %v6234 = vadd.f32 %v6232, %v6233
  %v6235 = vtanh.pop %v6234
  %v6236 = vmul.f32 %v6231, %v6235
  %6237 = vst [vmem:[#allocation6] sm:$0x3] %v6165
  %6238 = vst [vmem:[#allocation7] sm:$0x3] %v6163
  %6239 = vst [vmem:[#allocation8] sm:$0x3] %v6236
  %6240 = vst [vmem:[#allocation9] sm:$0x3] %v6234
  %6241 = vst [vmem:[%s2580] sm:$0x3] %v6165
  %6242 = vst [vmem:[%s2582] sm:$0x3] %v6236
  %v6243 = vld [vmem:[%s2584] sm:$0xff]
  %v6244 = vld [vmem:[#allocation6] sm:$0x3]
  %6245 = vmatpush.msra.mxu0 %v3627
  %6246 = vmatpush.msra.mxu0 %v3623
  %6247 = vmatpush.msra.mxu0 %v3619
  %6248 = vmatpush.msra.mxu0 %v3615
  %6249 = vmatpush.msra.mxu0 %v3611
  %6250 = vmatpush.msra.mxu0 %v3607
  %6251 = vmatpush.msra.mxu0 %v3603
  %6252 = vmatpush.msra.mxu0 %v3599
  %6253 = vmatpush.msra.mxu0 %v3595
  %6254 = vmatpush.msra.mxu0 %v3591
  %6255 = vmatpush.msra.mxu0 %v3587
  %6256 = vmatpush.msra.mxu0 %v3583
  %6257 = vmatpush.msra.mxu0 %v3579
  %6258 = vmatpush.msra.mxu0 %v3575
  %6259 = vmatpush.msra.mxu0 %v3571
  %6260 = vmatpush.msra.mxu0 %v3567
  %6261 = vmatmul.f32.gmra.mxu0 %v6244
  %v6262 = vpop.f32.mrf.mxu0
  %v6263 = vadd.f32 0.0, %v6262
  %6264 = vdwg.mxu0
  %6265 = vmatpush.msra.mxu0 %v3628
  %6266 = vmatpush.msra.mxu0 %v3624
  %6267 = vmatpush.msra.mxu0 %v3620
  %6268 = vmatpush.msra.mxu0 %v3616
  %6269 = vmatpush.msra.mxu0 %v3612
  %6270 = vmatpush.msra.mxu0 %v3608
  %6271 = vmatpush.msra.mxu0 %v3604
  %6272 = vmatpush.msra.mxu0 %v3600
  %6273 = vmatpush.msra.mxu0 %v3596
  %6274 = vmatpush.msra.mxu0 %v3592
  %6275 = vmatpush.msra.mxu0 %v3588
  %6276 = vmatpush.msra.mxu0 %v3584
  %6277 = vmatpush.msra.mxu0 %v3580
  %6278 = vmatpush.msra.mxu0 %v3576
  %6279 = vmatpush.msra.mxu0 %v3572
  %6280 = vmatpush.msra.mxu0 %v3568
  %6281 = vmatmul.f32.gmra.mxu0 %v6244
  %v6282 = vpop.f32.mrf.mxu0
  %v6283 = vadd.f32 0.0, %v6282
  %6284 = vdwg.mxu0
  %6285 = vmatpush.msra.mxu0 %v3629
  %6286 = vmatpush.msra.mxu0 %v3625
  %6287 = vmatpush.msra.mxu0 %v3621
  %6288 = vmatpush.msra.mxu0 %v3617
  %6289 = vmatpush.msra.mxu0 %v3613
  %6290 = vmatpush.msra.mxu0 %v3609
  %6291 = vmatpush.msra.mxu0 %v3605
  %6292 = vmatpush.msra.mxu0 %v3601
  %6293 = vmatpush.msra.mxu0 %v3597
  %6294 = vmatpush.msra.mxu0 %v3593
  %6295 = vmatpush.msra.mxu0 %v3589
  %6296 = vmatpush.msra.mxu0 %v3585
  %6297 = vmatpush.msra.mxu0 %v3581
  %6298 = vmatpush.msra.mxu0 %v3577
  %6299 = vmatpush.msra.mxu0 %v3573
  %6300 = vmatpush.msra.mxu0 %v3569
  %6301 = vmatmul.f32.gmra.mxu0 %v6244
  %v6302 = vpop.f32.mrf.mxu0
  %v6303 = vadd.f32 0.0, %v6302
  %6304 = vdwg.mxu0
  %6305 = vmatpush.msra.mxu0 %v3630
  %6306 = vmatpush.msra.mxu0 %v3626
  %6307 = vmatpush.msra.mxu0 %v3622
  %6308 = vmatpush.msra.mxu0 %v3618
  %6309 = vmatpush.msra.mxu0 %v3614
  %6310 = vmatpush.msra.mxu0 %v3610
  %6311 = vmatpush.msra.mxu0 %v3606
  %6312 = vmatpush.msra.mxu0 %v3602
  %6313 = vmatpush.msra.mxu0 %v3598
  %6314 = vmatpush.msra.mxu0 %v3594
  %6315 = vmatpush.msra.mxu0 %v3590
  %6316 = vmatpush.msra.mxu0 %v3586
  %6317 = vmatpush.msra.mxu0 %v3582
  %6318 = vmatpush.msra.mxu0 %v3578
  %6319 = vmatpush.msra.mxu0 %v3574
  %6320 = vmatpush.msra.mxu0 %v3570
  %6321 = vmatmul.f32.gmra.mxu0 %v6244
  %v6322 = vpop.f32.mrf.mxu0
  %v6323 = vadd.f32 0.0, %v6322
  %6324 = vdwg.mxu0
  %v6329 = vrot.slane %v6283, 6
  %v6330 = vrot.slane %v6303, 4
  %v6331 = vrot.slane %v6323, 2
  %v6332 = vsel %vm430, %v6263, %v6329
  %v6333 = vsel %vm432, %v6330, %v6331
  %v6334 = vsel %vm434, %v6332, %v6333
  %v6336 = vadd.f32 %v6243, %v6334
  %v6337 = vld [vmem:[%s2679] sm:$0xff]
  %v6338 = vld [vmem:[#allocation8] sm:$0x3]
  %6339 = vmatpush.msra.mxu0 %v3691
  %6340 = vmatpush.msra.mxu0 %v3687
  %6341 = vmatpush.msra.mxu0 %v3683
  %6342 = vmatpush.msra.mxu0 %v3679
  %6343 = vmatpush.msra.mxu0 %v3675
  %6344 = vmatpush.msra.mxu0 %v3671
  %6345 = vmatpush.msra.mxu0 %v3667
  %6346 = vmatpush.msra.mxu0 %v3663
  %6347 = vmatpush.msra.mxu0 %v3659
  %6348 = vmatpush.msra.mxu0 %v3655
  %6349 = vmatpush.msra.mxu0 %v3651
  %6350 = vmatpush.msra.mxu0 %v3647
  %6351 = vmatpush.msra.mxu0 %v3643
  %6352 = vmatpush.msra.mxu0 %v3639
  %6353 = vmatpush.msra.mxu0 %v3635
  %6354 = vmatpush.msra.mxu0 %v3631
  %6355 = vmatmul.f32.gmra.mxu0 %v6338
  %v6356 = vpop.f32.mrf.mxu0
  %v6357 = vadd.f32 0.0, %v6356
  %6358 = vdwg.mxu0
  %6359 = vmatpush.msra.mxu0 %v3692
  %6360 = vmatpush.msra.mxu0 %v3688
  %6361 = vmatpush.msra.mxu0 %v3684
  %6362 = vmatpush.msra.mxu0 %v3680
  %6363 = vmatpush.msra.mxu0 %v3676
  %6364 = vmatpush.msra.mxu0 %v3672
  %6365 = vmatpush.msra.mxu0 %v3668
  %6366 = vmatpush.msra.mxu0 %v3664
  %6367 = vmatpush.msra.mxu0 %v3660
  %6368 = vmatpush.msra.mxu0 %v3656
  %6369 = vmatpush.msra.mxu0 %v3652
  %6370 = vmatpush.msra.mxu0 %v3648
  %6371 = vmatpush.msra.mxu0 %v3644
  %6372 = vmatpush.msra.mxu0 %v3640
  %6373 = vmatpush.msra.mxu0 %v3636
  %6374 = vmatpush.msra.mxu0 %v3632
  %6375 = vmatmul.f32.gmra.mxu0 %v6338
  %v6376 = vpop.f32.mrf.mxu0
  %v6377 = vadd.f32 0.0, %v6376
  %6378 = vdwg.mxu0
  %6379 = vmatpush.msra.mxu0 %v3693
  %6380 = vmatpush.msra.mxu0 %v3689
  %6381 = vmatpush.msra.mxu0 %v3685
  %6382 = vmatpush.msra.mxu0 %v3681
  %6383 = vmatpush.msra.mxu0 %v3677
  %6384 = vmatpush.msra.mxu0 %v3673
  %6385 = vmatpush.msra.mxu0 %v3669
  %6386 = vmatpush.msra.mxu0 %v3665
  %6387 = vmatpush.msra.mxu0 %v3661
  %6388 = vmatpush.msra.mxu0 %v3657
  %6389 = vmatpush.msra.mxu0 %v3653
  %6390 = vmatpush.msra.mxu0 %v3649
  %6391 = vmatpush.msra.mxu0 %v3645
  %6392 = vmatpush.msra.mxu0 %v3641
  %6393 = vmatpush.msra.mxu0 %v3637
  %6394 = vmatpush.msra.mxu0 %v3633
  %6395 = vmatmul.f32.gmra.mxu0 %v6338
  %v6396 = vpop.f32.mrf.mxu0
  %v6397 = vadd.f32 0.0, %v6396
  %6398 = vdwg.mxu0
  %6399 = vmatpush.msra.mxu0 %v3694
  %6400 = vmatpush.msra.mxu0 %v3690
  %6401 = vmatpush.msra.mxu0 %v3686
  %6402 = vmatpush.msra.mxu0 %v3682
  %6403 = vmatpush.msra.mxu0 %v3678
  %6404 = vmatpush.msra.mxu0 %v3674
  %6405 = vmatpush.msra.mxu0 %v3670
  %6406 = vmatpush.msra.mxu0 %v3666
  %6407 = vmatpush.msra.mxu0 %v3662
  %6408 = vmatpush.msra.mxu0 %v3658
  %6409 = vmatpush.msra.mxu0 %v3654
  %6410 = vmatpush.msra.mxu0 %v3650
  %6411 = vmatpush.msra.mxu0 %v3646
  %6412 = vmatpush.msra.mxu0 %v3642
  %6413 = vmatpush.msra.mxu0 %v3638
  %6414 = vmatpush.msra.mxu0 %v3634
  %6415 = vmatmul.f32.gmra.mxu0 %v6338
  %v6416 = vpop.f32.mrf.mxu0
  %v6417 = vadd.f32 0.0, %v6416
  %6418 = vdwg.mxu0
  %v6423 = vrot.slane %v6377, 6
  %v6424 = vrot.slane %v6397, 4
  %v6425 = vrot.slane %v6417, 2
  %v6426 = vsel %vm430, %v6357, %v6423
  %v6427 = vsel %vm432, %v6424, %v6425
  %v6428 = vsel %vm434, %v6426, %v6427
  %v6430 = vadd.f32 %v6337, %v6428
  %v6431 = vld [vmem:[#allocation7] sm:$0x3]
  %v6432 = vxor.u32 %v6336, 2147483648
  %v6433 = vmul.f32 %v6432, 1.442695
  %v6434 = vpow.pop %v6433
  %v6435 = vadd.f32 %v6434, 1.0
  %v6436 = vrcp.pop %v6435
  %v6437 = vmul.f32 %v6435, %v6436
  %v6438 = vsub.f32 1.0, %v6437
  %v6439 = vmul.f32 %v6436, %v6438
  %v6440 = vadd.f32 %v6436, %v6439
  %vm6441 = vweird.f32 %v6435
  %vm6442 = vweird.f32 %v6436
  %vm6443 = vmor %vm6441, %vm6442
  %v6444 = vsel %vm6443, %v6436, %v6440
  %v6445 = vand.u32 2147483647, %v6435
  %vm6446 = vcmp.eq.f32.partialorder %v6445, 8.507059e+37
  %v6447 = vand.u32 %v6435, 2147483648
  %v6448 = vor.u32 1.1754944e-38, %v6447
  %v6449 = vsel %vm6446, %v6448, %v6444
  %v6450 = vmul.f32 1.0, %v6449
  %v6452 = vrot.slane %v6336, 2
  %v6454 = vxor.u32 %v6452, 2147483648
  %v6455 = vmul.f32 %v6454, 1.442695
  %v6456 = vpow.pop %v6455
  %v6457 = vadd.f32 %v6456, 1.0
  %v6458 = vrcp.pop %v6457
  %v6459 = vmul.f32 %v6457, %v6458
  %v6460 = vsub.f32 1.0, %v6459
  %v6461 = vmul.f32 %v6458, %v6460
  %v6462 = vadd.f32 %v6458, %v6461
  %vm6463 = vweird.f32 %v6457
  %vm6464 = vweird.f32 %v6458
  %vm6465 = vmor %vm6463, %vm6464
  %v6466 = vsel %vm6465, %v6458, %v6462
  %v6467 = vand.u32 2147483647, %v6457
  %vm6468 = vcmp.eq.f32.partialorder %v6467, 8.507059e+37
  %v6469 = vand.u32 %v6457, 2147483648
  %v6470 = vor.u32 1.1754944e-38, %v6469
  %v6471 = vsel %vm6468, %v6470, %v6466
  %v6472 = vmul.f32 1.0, %v6471
  %v6473 = vrot.slane %v6336, 4
  %v6475 = vtanh.pop %v6473
  %v6476 = vrot.slane %v6336, 6
  %v6478 = vxor.u32 %v6476, 2147483648
  %v6479 = vmul.f32 %v6478, 1.442695
  %v6480 = vpow.pop %v6479
  %v6481 = vadd.f32 %v6480, 1.0
  %v6482 = vrcp.pop %v6481
  %v6483 = vmul.f32 %v6481, %v6482
  %v6484 = vsub.f32 1.0, %v6483
  %v6485 = vmul.f32 %v6482, %v6484
  %v6486 = vadd.f32 %v6482, %v6485
  %vm6487 = vweird.f32 %v6481
  %vm6488 = vweird.f32 %v6482
  %vm6489 = vmor %vm6487, %vm6488
  %v6490 = vsel %vm6489, %v6482, %v6486
  %v6491 = vand.u32 2147483647, %v6481
  %vm6492 = vcmp.eq.f32.partialorder %v6491, 8.507059e+37
  %v6493 = vand.u32 %v6481, 2147483648
  %v6494 = vor.u32 1.1754944e-38, %v6493
  %v6495 = vsel %vm6492, %v6494, %v6490
  %v6496 = vmul.f32 1.0, %v6495
  %v6497 = vmul.f32 %v6472, %v6431
  %v6498 = vmul.f32 %v6450, %v6475
  %v6499 = vadd.f32 %v6497, %v6498
  %v6500 = vtanh.pop %v6499
  %v6501 = vmul.f32 %v6496, %v6500
  %v6502 = vld [vmem:[#allocation9] sm:$0x3]
  %v6503 = vxor.u32 %v6430, 2147483648
  %v6504 = vmul.f32 %v6503, 1.442695
  %v6505 = vpow.pop %v6504
  %v6506 = vadd.f32 %v6505, 1.0
  %v6507 = vrcp.pop %v6506
  %v6508 = vmul.f32 %v6506, %v6507
  %v6509 = vsub.f32 1.0, %v6508
  %v6510 = vmul.f32 %v6507, %v6509
  %v6511 = vadd.f32 %v6507, %v6510
  %vm6512 = vweird.f32 %v6506
  %vm6513 = vweird.f32 %v6507
  %vm6514 = vmor %vm6512, %vm6513
  %v6515 = vsel %vm6514, %v6507, %v6511
  %v6516 = vand.u32 2147483647, %v6506
  %vm6517 = vcmp.eq.f32.partialorder %v6516, 8.507059e+37
  %v6518 = vand.u32 %v6506, 2147483648
  %v6519 = vor.u32 1.1754944e-38, %v6518
  %v6520 = vsel %vm6517, %v6519, %v6515
  %v6521 = vmul.f32 1.0, %v6520
  %v6523 = vrot.slane %v6430, 2
  %v6525 = vxor.u32 %v6523, 2147483648
  %v6526 = vmul.f32 %v6525, 1.442695
  %v6527 = vpow.pop %v6526
  %v6528 = vadd.f32 %v6527, 1.0
  %v6529 = vrcp.pop %v6528
  %v6530 = vmul.f32 %v6528, %v6529
  %v6531 = vsub.f32 1.0, %v6530
  %v6532 = vmul.f32 %v6529, %v6531
  %v6533 = vadd.f32 %v6529, %v6532
  %vm6534 = vweird.f32 %v6528
  %vm6535 = vweird.f32 %v6529
  %vm6536 = vmor %vm6534, %vm6535
  %v6537 = vsel %vm6536, %v6529, %v6533
  %v6538 = vand.u32 2147483647, %v6528
  %vm6539 = vcmp.eq.f32.partialorder %v6538, 8.507059e+37
  %v6540 = vand.u32 %v6528, 2147483648
  %v6541 = vor.u32 1.1754944e-38, %v6540
  %v6542 = vsel %vm6539, %v6541, %v6537
  %v6543 = vmul.f32 1.0, %v6542
  %v6544 = vrot.slane %v6430, 4
  %v6546 = vtanh.pop %v6544
  %v6547 = vrot.slane %v6430, 6
  %v6549 = vxor.u32 %v6547, 2147483648
  %v6550 = vmul.f32 %v6549, 1.442695
  %v6551 = vpow.pop %v6550
  %v6552 = vadd.f32 %v6551, 1.0
  %v6553 = vrcp.pop %v6552
  %v6554 = vmul.f32 %v6552, %v6553
  %v6555 = vsub.f32 1.0, %v6554
  %v6556 = vmul.f32 %v6553, %v6555
  %v6557 = vadd.f32 %v6553, %v6556
  %vm6558 = vweird.f32 %v6552
  %vm6559 = vweird.f32 %v6553
  %vm6560 = vmor %vm6558, %vm6559
  %v6561 = vsel %vm6560, %v6553, %v6557
  %v6562 = vand.u32 2147483647, %v6552
  %vm6563 = vcmp.eq.f32.partialorder %v6562, 8.507059e+37
  %v6564 = vand.u32 %v6552, 2147483648
  %v6565 = vor.u32 1.1754944e-38, %v6564
  %v6566 = vsel %vm6563, %v6565, %v6561
  %v6567 = vmul.f32 1.0, %v6566
  %v6568 = vmul.f32 %v6543, %v6502
  %v6569 = vmul.f32 %v6521, %v6546
  %v6570 = vadd.f32 %v6568, %v6569
  %v6571 = vtanh.pop %v6570
  %v6572 = vmul.f32 %v6567, %v6571
  %6573 = vst [vmem:[#allocation6] sm:$0x3] %v6501
  %6574 = vst [vmem:[#allocation7] sm:$0x3] %v6499
  %6575 = vst [vmem:[#allocation8] sm:$0x3] %v6572
  %6576 = vst [vmem:[#allocation9] sm:$0x3] %v6570
  %6577 = vst [vmem:[%s2920] sm:$0x3] %v6501
  %6578 = vst [vmem:[%s2922] sm:$0x3] %v6572
  %v6579 = vld [vmem:[%s2924] sm:$0xff]
  %v6580 = vld [vmem:[#allocation6] sm:$0x3]
  %6581 = vmatpush.msra.mxu0 %v3627
  %6582 = vmatpush.msra.mxu0 %v3623
  %6583 = vmatpush.msra.mxu0 %v3619
  %6584 = vmatpush.msra.mxu0 %v3615
  %6585 = vmatpush.msra.mxu0 %v3611
  %6586 = vmatpush.msra.mxu0 %v3607
  %6587 = vmatpush.msra.mxu0 %v3603
  %6588 = vmatpush.msra.mxu0 %v3599
  %6589 = vmatpush.msra.mxu0 %v3595
  %6590 = vmatpush.msra.mxu0 %v3591
  %6591 = vmatpush.msra.mxu0 %v3587
  %6592 = vmatpush.msra.mxu0 %v3583
  %6593 = vmatpush.msra.mxu0 %v3579
  %6594 = vmatpush.msra.mxu0 %v3575
  %6595 = vmatpush.msra.mxu0 %v3571
  %6596 = vmatpush.msra.mxu0 %v3567
  %6597 = vmatmul.f32.gmra.mxu0 %v6580
  %v6598 = vpop.f32.mrf.mxu0
  %v6599 = vadd.f32 0.0, %v6598
  %6600 = vdwg.mxu0
  %6601 = vmatpush.msra.mxu0 %v3628
  %6602 = vmatpush.msra.mxu0 %v3624
  %6603 = vmatpush.msra.mxu0 %v3620
  %6604 = vmatpush.msra.mxu0 %v3616
  %6605 = vmatpush.msra.mxu0 %v3612
  %6606 = vmatpush.msra.mxu0 %v3608
  %6607 = vmatpush.msra.mxu0 %v3604
  %6608 = vmatpush.msra.mxu0 %v3600
  %6609 = vmatpush.msra.mxu0 %v3596
  %6610 = vmatpush.msra.mxu0 %v3592
  %6611 = vmatpush.msra.mxu0 %v3588
  %6612 = vmatpush.msra.mxu0 %v3584
  %6613 = vmatpush.msra.mxu0 %v3580
  %6614 = vmatpush.msra.mxu0 %v3576
  %6615 = vmatpush.msra.mxu0 %v3572
  %6616 = vmatpush.msra.mxu0 %v3568
  %6617 = vmatmul.f32.gmra.mxu0 %v6580
  %v6618 = vpop.f32.mrf.mxu0
  %v6619 = vadd.f32 0.0, %v6618
  %6620 = vdwg.mxu0
  %6621 = vmatpush.msra.mxu0 %v3629
  %6622 = vmatpush.msra.mxu0 %v3625
  %6623 = vmatpush.msra.mxu0 %v3621
  %6624 = vmatpush.msra.mxu0 %v3617
  %6625 = vmatpush.msra.mxu0 %v3613
  %6626 = vmatpush.msra.mxu0 %v3609
  %6627 = vmatpush.msra.mxu0 %v3605
  %6628 = vmatpush.msra.mxu0 %v3601
  %6629 = vmatpush.msra.mxu0 %v3597
  %6630 = vmatpush.msra.mxu0 %v3593
  %6631 = vmatpush.msra.mxu0 %v3589
  %6632 = vmatpush.msra.mxu0 %v3585
  %6633 = vmatpush.msra.mxu0 %v3581
  %6634 = vmatpush.msra.mxu0 %v3577
  %6635 = vmatpush.msra.mxu0 %v3573
  %6636 = vmatpush.msra.mxu0 %v3569
  %6637 = vmatmul.f32.gmra.mxu0 %v6580
  %v6638 = vpop.f32.mrf.mxu0
  %v6639 = vadd.f32 0.0, %v6638
  %6640 = vdwg.mxu0
  %6641 = vmatpush.msra.mxu0 %v3630
  %6642 = vmatpush.msra.mxu0 %v3626
  %6643 = vmatpush.msra.mxu0 %v3622
  %6644 = vmatpush.msra.mxu0 %v3618
  %6645 = vmatpush.msra.mxu0 %v3614
  %6646 = vmatpush.msra.mxu0 %v3610
  %6647 = vmatpush.msra.mxu0 %v3606
  %6648 = vmatpush.msra.mxu0 %v3602
  %6649 = vmatpush.msra.mxu0 %v3598
  %6650 = vmatpush.msra.mxu0 %v3594
  %6651 = vmatpush.msra.mxu0 %v3590
  %6652 = vmatpush.msra.mxu0 %v3586
  %6653 = vmatpush.msra.mxu0 %v3582
  %6654 = vmatpush.msra.mxu0 %v3578
  %6655 = vmatpush.msra.mxu0 %v3574
  %6656 = vmatpush.msra.mxu0 %v3570
  %6657 = vmatmul.f32.gmra.mxu0 %v6580
  %v6658 = vpop.f32.mrf.mxu0
  %v6659 = vadd.f32 0.0, %v6658
  %6660 = vdwg.mxu0
  %v6665 = vrot.slane %v6619, 6
  %v6666 = vrot.slane %v6639, 4
  %v6667 = vrot.slane %v6659, 2
  %v6668 = vsel %vm430, %v6599, %v6665
  %v6669 = vsel %vm432, %v6666, %v6667
  %v6670 = vsel %vm434, %v6668, %v6669
  %v6672 = vadd.f32 %v6579, %v6670
  %v6673 = vld [vmem:[#allocation3] sm:$0xff]
  %v6674 = vld [vmem:[#allocation8] sm:$0x3]
  %6675 = vmatpush.msra.mxu0 %v3691
  %6676 = vmatpush.msra.mxu0 %v3687
  %6677 = vmatpush.msra.mxu0 %v3683
  %6678 = vmatpush.msra.mxu0 %v3679
  %6679 = vmatpush.msra.mxu0 %v3675
  %6680 = vmatpush.msra.mxu0 %v3671
  %6681 = vmatpush.msra.mxu0 %v3667
  %6682 = vmatpush.msra.mxu0 %v3663
  %6683 = vmatpush.msra.mxu0 %v3659
  %6684 = vmatpush.msra.mxu0 %v3655
  %6685 = vmatpush.msra.mxu0 %v3651
  %6686 = vmatpush.msra.mxu0 %v3647
  %6687 = vmatpush.msra.mxu0 %v3643
  %6688 = vmatpush.msra.mxu0 %v3639
  %6689 = vmatpush.msra.mxu0 %v3635
  %6690 = vmatpush.msra.mxu0 %v3631
  %6691 = vmatmul.f32.gmra.mxu0 %v6674
  %v6692 = vpop.f32.mrf.mxu0
  %v6693 = vadd.f32 0.0, %v6692
  %6694 = vdwg.mxu0
  %6695 = vmatpush.msra.mxu0 %v3692
  %6696 = vmatpush.msra.mxu0 %v3688
  %6697 = vmatpush.msra.mxu0 %v3684
  %6698 = vmatpush.msra.mxu0 %v3680
  %6699 = vmatpush.msra.mxu0 %v3676
  %6700 = vmatpush.msra.mxu0 %v3672
  %6701 = vmatpush.msra.mxu0 %v3668
  %6702 = vmatpush.msra.mxu0 %v3664
  %6703 = vmatpush.msra.mxu0 %v3660
  %6704 = vmatpush.msra.mxu0 %v3656
  %6705 = vmatpush.msra.mxu0 %v3652
  %6706 = vmatpush.msra.mxu0 %v3648
  %6707 = vmatpush.msra.mxu0 %v3644
  %6708 = vmatpush.msra.mxu0 %v3640
  %6709 = vmatpush.msra.mxu0 %v3636
  %6710 = vmatpush.msra.mxu0 %v3632
  %6711 = vmatmul.f32.gmra.mxu0 %v6674
  %v6712 = vpop.f32.mrf.mxu0
  %v6713 = vadd.f32 0.0, %v6712
  %6714 = vdwg.mxu0
  %6715 = vmatpush.msra.mxu0 %v3693
  %6716 = vmatpush.msra.mxu0 %v3689
  %6717 = vmatpush.msra.mxu0 %v3685
  %6718 = vmatpush.msra.mxu0 %v3681
  %6719 = vmatpush.msra.mxu0 %v3677
  %6720 = vmatpush.msra.mxu0 %v3673
  %6721 = vmatpush.msra.mxu0 %v3669
  %6722 = vmatpush.msra.mxu0 %v3665
  %6723 = vmatpush.msra.mxu0 %v3661
  %6724 = vmatpush.msra.mxu0 %v3657
  %6725 = vmatpush.msra.mxu0 %v3653
  %6726 = vmatpush.msra.mxu0 %v3649
  %6727 = vmatpush.msra.mxu0 %v3645
  %6728 = vmatpush.msra.mxu0 %v3641
  %6729 = vmatpush.msra.mxu0 %v3637
  %6730 = vmatpush.msra.mxu0 %v3633
  %6731 = vmatmul.f32.gmra.mxu0 %v6674
  %v6732 = vpop.f32.mrf.mxu0
  %v6733 = vadd.f32 0.0, %v6732
  %6734 = vdwg.mxu0
  %6735 = vmatpush.msra.mxu0 %v3694
  %6736 = vmatpush.msra.mxu0 %v3690
  %6737 = vmatpush.msra.mxu0 %v3686
  %6738 = vmatpush.msra.mxu0 %v3682
  %6739 = vmatpush.msra.mxu0 %v3678
  %6740 = vmatpush.msra.mxu0 %v3674
  %6741 = vmatpush.msra.mxu0 %v3670
  %6742 = vmatpush.msra.mxu0 %v3666
  %6743 = vmatpush.msra.mxu0 %v3662
  %6744 = vmatpush.msra.mxu0 %v3658
  %6745 = vmatpush.msra.mxu0 %v3654
  %6746 = vmatpush.msra.mxu0 %v3650
  %6747 = vmatpush.msra.mxu0 %v3646
  %6748 = vmatpush.msra.mxu0 %v3642
  %6749 = vmatpush.msra.mxu0 %v3638
  %6750 = vmatpush.msra.mxu0 %v3634
  %6751 = vmatmul.f32.gmra.mxu0 %v6674
  %v6752 = vpop.f32.mrf.mxu0
  %v6753 = vadd.f32 0.0, %v6752
  %6754 = vdwg.mxu0
  %v6759 = vrot.slane %v6713, 6
  %v6760 = vrot.slane %v6733, 4
  %v6761 = vrot.slane %v6753, 2
  %v6762 = vsel %vm430, %v6693, %v6759
  %v6763 = vsel %vm432, %v6760, %v6761
  %v6764 = vsel %vm434, %v6762, %v6763
  %v6766 = vadd.f32 %v6673, %v6764
  %v6767 = vld [vmem:[#allocation7] sm:$0x3]
  %v6768 = vxor.u32 %v6672, 2147483648
  %v6769 = vmul.f32 %v6768, 1.442695
  %v6770 = vpow.pop %v6769
  %v6771 = vadd.f32 %v6770, 1.0
  %v6772 = vrcp.pop %v6771
  %v6773 = vmul.f32 %v6771, %v6772
  %v6774 = vsub.f32 1.0, %v6773
  %v6775 = vmul.f32 %v6772, %v6774
  %v6776 = vadd.f32 %v6772, %v6775
  %vm6777 = vweird.f32 %v6771
  %vm6778 = vweird.f32 %v6772
  %vm6779 = vmor %vm6777, %vm6778
  %v6780 = vsel %vm6779, %v6772, %v6776
  %v6781 = vand.u32 2147483647, %v6771
  %vm6782 = vcmp.eq.f32.partialorder %v6781, 8.507059e+37
  %v6783 = vand.u32 %v6771, 2147483648
  %v6784 = vor.u32 1.1754944e-38, %v6783
  %v6785 = vsel %vm6782, %v6784, %v6780
  %v6786 = vmul.f32 1.0, %v6785
  %v6788 = vrot.slane %v6672, 2
  %v6790 = vxor.u32 %v6788, 2147483648
  %v6791 = vmul.f32 %v6790, 1.442695
  %v6792 = vpow.pop %v6791
  %v6793 = vadd.f32 %v6792, 1.0
  %v6794 = vrcp.pop %v6793
  %v6795 = vmul.f32 %v6793, %v6794
  %v6796 = vsub.f32 1.0, %v6795
  %v6797 = vmul.f32 %v6794, %v6796
  %v6798 = vadd.f32 %v6794, %v6797
  %vm6799 = vweird.f32 %v6793
  %vm6800 = vweird.f32 %v6794
  %vm6801 = vmor %vm6799, %vm6800
  %v6802 = vsel %vm6801, %v6794, %v6798
  %v6803 = vand.u32 2147483647, %v6793
  %vm6804 = vcmp.eq.f32.partialorder %v6803, 8.507059e+37
  %v6805 = vand.u32 %v6793, 2147483648
  %v6806 = vor.u32 1.1754944e-38, %v6805
  %v6807 = vsel %vm6804, %v6806, %v6802
  %v6808 = vmul.f32 1.0, %v6807
  %v6809 = vrot.slane %v6672, 4
  %v6811 = vtanh.pop %v6809
  %v6812 = vrot.slane %v6672, 6
  %v6814 = vxor.u32 %v6812, 2147483648
  %v6815 = vmul.f32 %v6814, 1.442695
  %v6816 = vpow.pop %v6815
  %v6817 = vadd.f32 %v6816, 1.0
  %v6818 = vrcp.pop %v6817
  %v6819 = vmul.f32 %v6817, %v6818
  %v6820 = vsub.f32 1.0, %v6819
  %v6821 = vmul.f32 %v6818, %v6820
  %v6822 = vadd.f32 %v6818, %v6821
  %vm6823 = vweird.f32 %v6817
  %vm6824 = vweird.f32 %v6818
  %vm6825 = vmor %vm6823, %vm6824
  %v6826 = vsel %vm6825, %v6818, %v6822
  %v6827 = vand.u32 2147483647, %v6817
  %vm6828 = vcmp.eq.f32.partialorder %v6827, 8.507059e+37
  %v6829 = vand.u32 %v6817, 2147483648
  %v6830 = vor.u32 1.1754944e-38, %v6829
  %v6831 = vsel %vm6828, %v6830, %v6826
  %v6832 = vmul.f32 1.0, %v6831
  %v6833 = vmul.f32 %v6808, %v6767
  %v6834 = vmul.f32 %v6786, %v6811
  %v6835 = vadd.f32 %v6833, %v6834
  %v6836 = vtanh.pop %v6835
  %v6837 = vmul.f32 %v6832, %v6836
  %v6838 = vld [vmem:[#allocation9] sm:$0x3]
  %v6839 = vxor.u32 %v6766, 2147483648
  %v6840 = vmul.f32 %v6839, 1.442695
  %v6841 = vpow.pop %v6840
  %v6842 = vadd.f32 %v6841, 1.0
  %v6843 = vrcp.pop %v6842
  %v6844 = vmul.f32 %v6842, %v6843
  %v6845 = vsub.f32 1.0, %v6844
  %v6846 = vmul.f32 %v6843, %v6845
  %v6847 = vadd.f32 %v6843, %v6846
  %vm6848 = vweird.f32 %v6842
  %vm6849 = vweird.f32 %v6843
  %vm6850 = vmor %vm6848, %vm6849
  %v6851 = vsel %vm6850, %v6843, %v6847
  %v6852 = vand.u32 2147483647, %v6842
  %vm6853 = vcmp.eq.f32.partialorder %v6852, 8.507059e+37
  %v6854 = vand.u32 %v6842, 2147483648
  %v6855 = vor.u32 1.1754944e-38, %v6854
  %v6856 = vsel %vm6853, %v6855, %v6851
  %v6857 = vmul.f32 1.0, %v6856
  %v6859 = vrot.slane %v6766, 2
  %v6861 = vxor.u32 %v6859, 2147483648
  %v6862 = vmul.f32 %v6861, 1.442695
  %v6863 = vpow.pop %v6862
  %v6864 = vadd.f32 %v6863, 1.0
  %v6865 = vrcp.pop %v6864
  %v6866 = vmul.f32 %v6864, %v6865
  %v6867 = vsub.f32 1.0, %v6866
  %v6868 = vmul.f32 %v6865, %v6867
  %v6869 = vadd.f32 %v6865, %v6868
  %vm6870 = vweird.f32 %v6864
  %vm6871 = vweird.f32 %v6865
  %vm6872 = vmor %vm6870, %vm6871
  %v6873 = vsel %vm6872, %v6865, %v6869
  %v6874 = vand.u32 2147483647, %v6864
  %vm6875 = vcmp.eq.f32.partialorder %v6874, 8.507059e+37
  %v6876 = vand.u32 %v6864, 2147483648
  %v6877 = vor.u32 1.1754944e-38, %v6876
  %v6878 = vsel %vm6875, %v6877, %v6873
  %v6879 = vmul.f32 1.0, %v6878
  %v6880 = vrot.slane %v6766, 4
  %v6882 = vtanh.pop %v6880
  %v6883 = vrot.slane %v6766, 6
  %v6885 = vxor.u32 %v6883, 2147483648
  %v6886 = vmul.f32 %v6885, 1.442695
  %v6887 = vpow.pop %v6886
  %v6888 = vadd.f32 %v6887, 1.0
  %v6889 = vrcp.pop %v6888
  %v6890 = vmul.f32 %v6888, %v6889
  %v6891 = vsub.f32 1.0, %v6890
  %v6892 = vmul.f32 %v6889, %v6891
  %v6893 = vadd.f32 %v6889, %v6892
  %vm6894 = vweird.f32 %v6888
  %vm6895 = vweird.f32 %v6889
  %vm6896 = vmor %vm6894, %vm6895
  %v6897 = vsel %vm6896, %v6889, %v6893
  %v6898 = vand.u32 2147483647, %v6888
  %vm6899 = vcmp.eq.f32.partialorder %v6898, 8.507059e+37
  %v6900 = vand.u32 %v6888, 2147483648
  %v6901 = vor.u32 1.1754944e-38, %v6900
  %v6902 = vsel %vm6899, %v6901, %v6897
  %v6903 = vmul.f32 1.0, %v6902
  %v6904 = vmul.f32 %v6879, %v6838
  %v6905 = vmul.f32 %v6857, %v6882
  %v6906 = vadd.f32 %v6904, %v6905
  %v6907 = vtanh.pop %v6906
  %v6908 = vmul.f32 %v6903, %v6907
  %6909 = vst [vmem:[#allocation6] sm:$0x3] %v6837
  %6910 = vst [vmem:[#allocation7] sm:$0x3] %v6835
  %6911 = vst [vmem:[#allocation8] sm:$0x3] %v6908
  %6912 = vst [vmem:[#allocation9] sm:$0x3] %v6906
  %6913 = vst [vmem:[%s3259] sm:$0x3] %v6837
  %6914 = vst [vmem:[#allocation5] sm:$0x3] %v6908
  %v6915 = vld [vmem:[#allocation4] sm:$0x3]
  %v6916 = vld [vmem:[#allocation4 + $0x2] sm:$0x3]
  %v6917 = vld [vmem:[#allocation4 + $0x4] sm:$0x3]
  %v6918 = vld [vmem:[#allocation4 + $0x6] sm:$0x3]
  %v6919 = vld [vmem:[#allocation4 + $0x8] sm:$0x3]
  %v6920 = vld [vmem:[#allocation4 + $0xa] sm:$0x3]
  %v6921 = vld [vmem:[#allocation4 + $0xc] sm:$0x3]
  %v6922 = vld [vmem:[#allocation4 + $0xe] sm:$0x3]
  %v6923 = vld [vmem:[#allocation5] sm:$0x3]
  %v6924 = vld [vmem:[#allocation5 + $0x2] sm:$0x3]
  %v6925 = vld [vmem:[#allocation5 + $0x4] sm:$0x3]
  %v6926 = vld [vmem:[#allocation5 + $0x6] sm:$0x3]
  %v6927 = vld [vmem:[#allocation5 + $0x8] sm:$0x3]
  %v6928 = vld [vmem:[#allocation5 + $0xa] sm:$0x3]
  %v6929 = vld [vmem:[#allocation5 + $0xc] sm:$0x3]
  %v6930 = vld [vmem:[#allocation5 + $0xe] sm:$0x3]
  %v6947 = vrot.slane %v6923, 6
  %v6948 = vrot.slane %v6924, 6
  %v6949 = vrot.slane %v6925, 6
  %v6950 = vrot.slane %v6926, 6
  %v6951 = vrot.slane %v6927, 6
  %v6952 = vrot.slane %v6928, 6
  %v6953 = vrot.slane %v6929, 6
  %v6954 = vrot.slane %v6930, 6
  %v6955 = vsel %vm430, %v6915, %v6947
  %v6956 = vsel %vm430, %v6916, %v6948
  %v6957 = vsel %vm430, %v6917, %v6949
  %v6958 = vsel %vm430, %v6918, %v6950
  %v6959 = vsel %vm430, %v6919, %v6951
  %v6960 = vsel %vm430, %v6920, %v6952
  %v6961 = vsel %vm430, %v6921, %v6953
  %v6962 = vsel %vm430, %v6922, %v6954
  %6971 = vst [vmem:[%s9] sm:$0xf] %v6955
  %6972 = vst [vmem:[%s9 + $0x4] sm:$0xf] %v6956
  %6973 = vst [vmem:[%s9 + $0x8] sm:$0xf] %v6957
  %6974 = vst [vmem:[%s9 + $0xc] sm:$0xf] %v6958
  %6975 = vst [vmem:[%s9 + $0x10] sm:$0xf] %v6959
  %6976 = vst [vmem:[%s9 + $0x14] sm:$0xf] %v6960
  %6977 = vst [vmem:[%s9 + $0x18] sm:$0xf] %v6961
  %6978 = vst [vmem:[%s9 + $0x1c] sm:$0xf] %v6962
  // Predicated region
  $region38: #{entity_model_forward.2} parent=0 // pred_check
    _
  $region39: #{entity_model_forward.2} parent=0 // pred_check_branch
    %6980 = sbr.rel (0) target = $region41
  $region40: #{entity_model_forward.2} parent=0 // pred_region
    _
  $region41: #{entity_model_forward.2} parent=0 // pred_fallthru
    _
  // Predicated region
  $region42: #{entity_model_forward.2} parent=0 // pred_check
    _
  $region43: #{entity_model_forward.2} parent=0 // pred_check_branch
    %6982 = sbr.rel (0) target = $region45
  $region44: #{entity_model_forward.2} parent=0 // pred_region
    _
  $region45: #{entity_model_forward.2} parent=0 // pred_fallthru
    _

</llo_original>
